<compile_context>
chip_gen: v7x
topology: tpu7x:2x2x1
jax: 0.10.0
libtpu: 0.0.40
codegen_flags: <defaults>
</compile_context>

<pallas_src>
import functools
import math

import jax
import jax.numpy as jnp
from jax.experimental import pallas as pl
from jax.experimental.pallas import tpu as pltpu


# ----------------------------- in-kernel math helpers -----------------------------

def _layernorm(v, eps=1e-6):
    # nn.LayerNorm(H, elementwise_affine=False, eps=1e-6)
    mu = jnp.mean(v, axis=-1, keepdims=True)
    var = jnp.mean(jnp.square(v - mu), axis=-1, keepdims=True)
    return (v - mu) * jax.lax.rsqrt(var + eps)


def _silu(u):
    # exact sigmoid (EUP exp + full-precision reciprocal) to keep error budget tight
    return u * pl.reciprocal(1.0 + jnp.exp(-u), approx=False)


def _gelu_tanh(u):
    # nn.GELU(approximate='tanh')
    c = 0.7978845608028654
    return 0.5 * u * (1.0 + jnp.tanh(c * (u + 0.044715 * u * u * u)))


def _mm(a, w):
    """bf16 x bf16 MXU matmul with f32 accumulation. a:(M,K) f32, w:(K,N) bf16."""
    return jnp.dot(a.astype(jnp.bfloat16), w, preferred_element_type=jnp.float32)


def _mha(q_src, kv_src, wq, wk, wv, bq, bk, bv, bkh, bvh, woh, ob, *, num_heads):
    """nn.MultiheadAttention(H, num_heads, add_bias_kv=True), eval mode.

    q_src:(Bb,T,H), kv_src:(Bb,S,H).  wq/wk/wv:(H,H) bf16 (in,out layout),
    bq/bk/bv:(1,H) f32, bkh/bvh:(num_heads,hd) f32 (add_bias_kv split per head),
    woh:(num_heads,hd,H) bf16 (out_proj split per head), ob:(1,H) f32.
    Returns (Bb*T, H) f32.
    """
    Bb, T, H = q_src.shape
    S = kv_src.shape[1]
    hd = H // num_heads
    G = num_heads * Bb
    scale = 1.0 / math.sqrt(hd)

    # full-width in_proj: lane-dense (Bb*rows, H) @ (H, H) bf16 matmuls
    q = _mm(q_src.reshape(Bb * T, H), wq) + bq
    k = _mm(kv_src.reshape(Bb * S, H), wk) + bk
    v = _mm(kv_src.reshape(Bb * S, H), wv) + bv
    q3 = q.reshape(Bb, T, H)
    k3 = k.reshape(Bb, S, H)
    v3 = v.reshape(Bb, S, H)

    # head-major stacks: (num_heads, Bb, L, hd)
    def split_heads(a3):
        parts = [a3[:, :, n * hd:(n + 1) * hd] for n in range(num_heads)]
        return jnp.stack(parts, axis=0)

    q4 = split_heads(q3)
    k4 = split_heads(k3)
    v4 = split_heads(v3)
    qg = q4.reshape(G, T, hd)
    kg = k4.reshape(G, S, hd)
    vg = v4.reshape(G, S, hd)

    # scores: one batched contraction over (head x batch-block)
    s = jnp.einsum('gtd,gsd->gts',
                   qg.astype(jnp.bfloat16), kg.astype(jnp.bfloat16),
                   preferred_element_type=jnp.float32) * scale          # (G,T,S)
    # add_bias_kv key handled analytically (avoids the (S+1) sublane concat)
    sb = (jnp.sum(q4 * bkh[:, None, None, :], axis=-1, keepdims=True)
          * scale).reshape(G, T, 1)                                      # (G,T,1)

    m = jnp.maximum(jnp.max(s, axis=-1, keepdims=True), sb)
    e = jnp.exp(s - m)
    eb = jnp.exp(sb - m)
    inv = pl.reciprocal(jnp.sum(e, axis=-1, keepdims=True) + eb, approx=True)

    o = jnp.einsum('gts,gsd->gtd',
                   e.astype(jnp.bfloat16), vg.astype(jnp.bfloat16),
                   preferred_element_type=jnp.float32) * inv             # (G,T,hd)
    o4 = (o.reshape(num_heads, Bb, T, hd)
          + (eb * inv).reshape(num_heads, Bb, T, 1) * bvh[:, None, None, :])

    # fold out_proj per head (no head concat); lane-dense (M,hd)@(hd,H), f32 acc
    acc = jnp.zeros((Bb * T, H), jnp.float32)
    for n in range(num_heads):
        acc = acc + _mm(o4[n].reshape(Bb * T, hd), woh[n])
    return acc + ob


# ------------------------------------ kernel ------------------------------------

def dit_block_kernel(x_ref, c_ref, t_ref,
                     ada_w_ref, ada_b_ref,
                     sa_wq_ref, sa_wk_ref, sa_wv_ref, sa_bq_ref, sa_bk_ref, sa_bv_ref,
                     sa_bkh_ref, sa_bvh_ref, sa_woh_ref, sa_ob_ref,
                     xa_wq_ref, xa_wk_ref, xa_wv_ref, xa_bq_ref, xa_bk_ref, xa_bv_ref,
                     xa_bkh_ref, xa_bvh_ref, xa_woh_ref, xa_ob_ref,
                     fc1_w_ref, fc1_b_ref, fc2_w_ref, fc2_b_ref,
                     o_ref, *, num_heads):
    x3 = x_ref[...]                       # (Bb, T, H) f32
    c3 = c_ref[...]                       # (Bb, S, H) f32
    Bb, T, H = x3.shape

    # rows of t for this batch block (t is passed whole, constant index map)
    tt = t_ref[pl.ds(pl.program_id(0) * Bb, Bb), :]             # (Bb, H)

    # adaLN_modulation: SiLU(t) -> Linear(H, 6H) -> 6 chunks
    ada = _mm(_silu(tt), ada_w_ref[...]) + ada_b_ref[...]       # (Bb, 6H) f32

    def chunk(i):
        return ada[:, i * H:(i + 1) * H][:, None, :]            # (Bb, 1, H)

    shift_msa, scale_msa, gate_msa = chunk(0), chunk(1), chunk(2)
    shift_mlp, scale_mlp, gate_mlp = chunk(3), chunk(4), chunk(5)

    # --- self-attention branch (q = k = v = modulate(norm1(x))) ---
    h = _layernorm(x3) * (1.0 + scale_msa) + shift_msa
    sa = _mha(h, h,
              sa_wq_ref[...], sa_wk_ref[...], sa_wv_ref[...],
              sa_bq_ref[...], sa_bk_ref[...], sa_bv_ref[...],
              sa_bkh_ref[...], sa_bvh_ref[...], sa_woh_ref[...], sa_ob_ref[...],
              num_heads=num_heads)
    x3 = x3 + gate_msa * sa.reshape(Bb, T, H)

    # --- cross-attention branch (q = norm2(x), k = v = c), no gate ---
    xa = _mha(_layernorm(x3), c3,
              xa_wq_ref[...], xa_wk_ref[...], xa_wv_ref[...],
              xa_bq_ref[...], xa_bk_ref[...], xa_bv_ref[...],
              xa_bkh_ref[...], xa_bvh_ref[...], xa_woh_ref[...], xa_ob_ref[...],
              num_heads=num_heads)
    x3 = x3 + xa.reshape(Bb, T, H)

    # --- MLP branch ---
    h = _layernorm(x3) * (1.0 + scale_mlp) + shift_mlp
    h1 = _gelu_tanh(_mm(h.reshape(Bb * T, H), fc1_w_ref[...]) + fc1_b_ref[...])
    mlp = _mm(h1, fc2_w_ref[...]) + fc2_b_ref[...]
    x3 = x3 + gate_mlp * mlp.reshape(Bb, T, H)

    o_ref[...] = x3


# ------------------------------------ wrapper ------------------------------------

def dit_block(x, c, t, params, num_heads, *, block_b=None):
    B, T, H = x.shape
    S = c.shape[1]
    assert H % num_heads == 0
    hd = H // num_heads

    if block_b is None:
        # keep >=2 grid steps (so v7x's 2 TensorCores both get work) while still
        # batching several sequences' rows into each matmul.
        block_b = B // 2 if (B >= 2 and B % 2 == 0) else 1
    assert B % block_b == 0

    bf = jnp.bfloat16
    f32 = jnp.float32

    (ada_w, ada_b, sa_in_w, sa_in_b, sa_bias_k, sa_bias_v, sa_out_w, sa_out_b,
     xa_in_w, xa_in_b, xa_bias_k, xa_bias_v, xa_out_w, xa_out_b,
     fc1_w, fc1_b, fc2_w, fc2_b) = [jnp.asarray(p, f32) for p in params]

    # host-side weight prep: (out,in) -> (in,out), bf16 matmul operands,
    # per-head splits done once here instead of every grid step.
    def prep_attn(in_w, in_b, bias_k, bias_v, out_w, out_b):
        return [
            in_w[:H].T.astype(bf),            # wq  (H, H)
            in_w[H:2 * H].T.astype(bf),       # wk  (H, H)
            in_w[2 * H:].T.astype(bf),        # wv  (H, H)
            in_b[:, :H],                      # bq  (1, H)  f32
            in_b[:, H:2 * H],                 # bk  (1, H)
            in_b[:, 2 * H:],                  # bv  (1, H)
            bias_k.reshape(num_heads, hd),    # add_bias_kv key,   per head, f32
            bias_v.reshape(num_heads, hd),    # add_bias_kv value, per head, f32
            out_w.T.reshape(num_heads, hd, H).astype(bf),   # out_proj per head
            out_b,                            # (1, H) f32
        ]

    prepped = ([ada_w.T.astype(bf), ada_b]
               + prep_attn(sa_in_w, sa_in_b, sa_bias_k, sa_bias_v, sa_out_w, sa_out_b)
               + prep_attn(xa_in_w, xa_in_b, xa_bias_k, xa_bias_v, xa_out_w, xa_out_b)
               + [fc1_w.T.astype(bf), fc1_b, fc2_w.T.astype(bf), fc2_b])

    def const_spec(p):
        z = (0,) * p.ndim
        return pl.BlockSpec(p.shape, lambda b, _z=z: _z)

    in_specs = ([pl.BlockSpec((block_b, T, H), lambda b: (b, 0, 0)),
                 pl.BlockSpec((block_b, S, H), lambda b: (b, 0, 0)),
                 pl.BlockSpec((B, H), lambda b: (0, 0))]          # t, whole array
                + [const_spec(p) for p in prepped])
    out_spec = pl.BlockSpec((block_b, T, H), lambda b: (b, 0, 0))

    # explicit VMEM budget: (double-buffered) resident weights + in/out blocks + slack
    w_bytes = sum(int(p.size) * p.dtype.itemsize for p in prepped)
    act_bytes = 4 * block_b * (T + S + 1) * H * 4
    vmem_limit = int(min(max(2 * w_bytes + act_bytes + (24 << 20), 32 << 20), 64 << 20))

    grid_spec = pltpu.PrefetchScalarGridSpec(
        num_scalar_prefetch=0,
        grid=(B // block_b,),
        in_specs=in_specs,
        out_specs=out_spec,
    )

    kernel = functools.partial(dit_block_kernel, num_heads=num_heads)
    return pl.pallas_call(
        kernel,
        out_shape=jax.ShapeDtypeStruct((B, T, H), f32),
        grid_spec=grid_spec,
        compiler_params=pltpu.CompilerParams(
            dimension_semantics=("parallel",),
            vmem_limit_bytes=vmem_limit,
        ),
    )(x, c, t, *prepped)


# --------------------------- pure-JAX f32 reference ---------------------------

def dit_block_reference(x, c, t, params, num_heads):
    (ada_w, ada_b, sa_in_w, sa_in_b, sa_bias_k, sa_bias_v, sa_out_w, sa_out_b,
     xa_in_w, xa_in_b, xa_bias_k, xa_bias_v, xa_out_w, xa_out_b,
     fc1_w, fc1_b, fc2_w, fc2_b) = params
    hi = jax.lax.Precision.HIGHEST

    def ln(v):
        mu = jnp.mean(v, -1, keepdims=True)
        var = jnp.mean((v - mu) ** 2, -1, keepdims=True)
        return (v - mu) / jnp.sqrt(var + 1e-6)

    def lin(a, w, b=None):
        out = jnp.dot(a, w.T, precision=hi)
        return out if b is None else out + b

    def mha(q_in, kv_in, in_w, in_b, bias_k, bias_v, out_w, out_b):
        H = q_in.shape[-1]
        hd = H // num_heads
        q = lin(q_in, in_w[:H], in_b[:, :H])
        k = lin(kv_in, in_w[H:2 * H], in_b[:, H:2 * H])
        v = lin(kv_in, in_w[2 * H:], in_b[:, 2 * H:])
        k = jnp.concatenate([k, bias_k], axis=0)
        v = jnp.concatenate([v, bias_v], axis=0)
        outs = []
        for n in range(num_heads):
            sl = slice(n * hd, (n + 1) * hd)
            s = jnp.dot(q[:, sl] / math.sqrt(hd), k[:, sl].T, precision=hi)
            p = jax.nn.softmax(s, axis=-1)
            outs.append(jnp.dot(p, v[:, sl], precision=hi))
        return lin(jnp.concatenate(outs, axis=-1), out_w, out_b)

    def one(xb, cb, tb):
        ada = lin(jax.nn.silu(tb[None, :]), ada_w, ada_b)
        sh_msa, sc_msa, g_msa, sh_mlp, sc_mlp, g_mlp = jnp.split(ada, 6, axis=1)
        h = ln(xb) * (1 + sc_msa) + sh_msa
        xb = xb + g_msa * mha(h, h, sa_in_w, sa_in_b, sa_bias_k, sa_bias_v,
                              sa_out_w, sa_out_b)
        xb = xb + mha(ln(xb), cb, xa_in_w, xa_in_b, xa_bias_k, xa_bias_v,
                      xa_out_w, xa_out_b)
        h = ln(xb) * (1 + sc_mlp) + sh_mlp
        h = lin(h, fc1_w, fc1_b)
        h = 0.5 * h * (1 + jnp.tanh(0.7978845608028654 * (h + 0.044715 * h ** 3)))
        xb = xb + g_mlp * lin(h, fc2_w, fc2_b)
        return xb

    return jax.vmap(one)(x, c, t)


# ------------------------------------- main -------------------------------------

if __name__ == "__main__":
    B, T, S, H, NH = 4, 8, 8, 128, 4
    MLP_RATIO = 4.0
    MH = int(H * MLP_RATIO)

    key = jax.random.PRNGKey(0)
    ks = jax.random.split(key, 24)

    def rn(k, shape, scale=0.05):
        return scale * jax.random.normal(k, shape, jnp.float32)

    # PyTorch nn.Linear layout: (out, in).
    params = [
        rn(ks[0], (6 * H, H)), rn(ks[1], (1, 6 * H)),           # adaLN_modulation Linear
        rn(ks[2], (3 * H, H)), rn(ks[3], (1, 3 * H)),           # attn in_proj
        rn(ks[4], (1, H)), rn(ks[5], (1, H)),                   # attn bias_k, bias_v
        rn(ks[6], (H, H)), rn(ks[7], (1, H)),                   # attn out_proj
        rn(ks[8], (3 * H, H)), rn(ks[9], (1, 3 * H)),           # xattn in_proj
        rn(ks[10], (1, H)), rn(ks[11], (1, H)),                 # xattn bias_k, bias_v
        rn(ks[12], (H, H)), rn(ks[13], (1, H)),                 # xattn out_proj
        rn(ks[14], (MH, H)), rn(ks[15], (1, MH)),               # mlp fc1
        rn(ks[16], (H, MH)), rn(ks[17], (1, H)),                # mlp fc2
    ]

    x = jax.random.normal(ks[20], (B, T, H), jnp.float32)
    c = jax.random.normal(ks[21], (B, S, H), jnp.float32)
    t = jax.random.normal(ks[22], (B, H), jnp.float32)

    out = jax.block_until_ready(dit_block(x, c, t, params, NH))
    assert out.shape == (B, T, H)

    ref = dit_block_reference(x, c, t, params, NH)
    max_err = float(jnp.max(jnp.abs(out - ref)))
    # Tolerance: bf16 matmul operands (8-bit mantissa, ~2e-3 relative per operand)
    # across ~6 chained projection stages on O(1) activations plus the EUP approx
    # reciprocal in softmax gives an expected worst-case abs error of ~1e-2.
    assert jnp.allclose(out, ref, atol=3e-2, rtol=3e-2), f"max_err={max_err}"
    print("KERNEL_OK")
</pallas_src>

<mosaic_0001>
module attributes {stable_mosaic.version = 11 : i64} {
  func.func @dit_block_kernel(%arg0: i32, %arg1: memref<2x8x128xf32, #tpu.memory_space<vmem>>, %arg2: memref<2x8x128xf32, #tpu.memory_space<vmem>>, %arg3: memref<4x128xf32, #tpu.memory_space<vmem>>, %arg4: memref<128x768xbf16, #tpu.memory_space<vmem>>, %arg5: memref<1x768xf32, #tpu.memory_space<vmem>>, %arg6: memref<128x128xbf16, #tpu.memory_space<vmem>>, %arg7: memref<128x128xbf16, #tpu.memory_space<vmem>>, %arg8: memref<128x128xbf16, #tpu.memory_space<vmem>>, %arg9: memref<1x128xf32, #tpu.memory_space<vmem>>, %arg10: memref<1x128xf32, #tpu.memory_space<vmem>>, %arg11: memref<1x128xf32, #tpu.memory_space<vmem>>, %arg12: memref<4x32xf32, #tpu.memory_space<vmem>>, %arg13: memref<4x32xf32, #tpu.memory_space<vmem>>, %arg14: memref<4x32x128xbf16, #tpu.memory_space<vmem>>, %arg15: memref<1x128xf32, #tpu.memory_space<vmem>>, %arg16: memref<128x128xbf16, #tpu.memory_space<vmem>>, %arg17: memref<128x128xbf16, #tpu.memory_space<vmem>>, %arg18: memref<128x128xbf16, #tpu.memory_space<vmem>>, %arg19: memref<1x128xf32, #tpu.memory_space<vmem>>, %arg20: memref<1x128xf32, #tpu.memory_space<vmem>>, %arg21: memref<1x128xf32, #tpu.memory_space<vmem>>, %arg22: memref<4x32xf32, #tpu.memory_space<vmem>>, %arg23: memref<4x32xf32, #tpu.memory_space<vmem>>, %arg24: memref<4x32x128xbf16, #tpu.memory_space<vmem>>, %arg25: memref<1x128xf32, #tpu.memory_space<vmem>>, %arg26: memref<128x512xbf16, #tpu.memory_space<vmem>>, %arg27: memref<1x512xf32, #tpu.memory_space<vmem>>, %arg28: memref<512x128xbf16, #tpu.memory_space<vmem>>, %arg29: memref<1x128xf32, #tpu.memory_space<vmem>>, %arg30: memref<2x8x128xf32, #tpu.memory_space<vmem>>) attributes {dimension_semantics = [#tpu.dimension_semantics<parallel>], iteration_bounds = array<i64: 2>, scalar_prefetch = 0 : i64, scratch_operands = 0 : i64, tpu.core_type = #tpu.core_type<tc>, window_params = [{transform_indices = @transform_0, window_bounds = array<i64: 2, 8, 128>}, {transform_indices = @transform_1, window_bounds = array<i64: 2, 8, 128>}, {pipeline_mode = #tpu.pipeline_mode<synchronous>, transform_indices = @transform_2, window_bounds = array<i64: 4, 128>}, {pipeline_mode = #tpu.pipeline_mode<synchronous>, transform_indices = @transform_3, window_bounds = array<i64: 128, 768>}, {pipeline_mode = #tpu.pipeline_mode<synchronous>, transform_indices = @transform_4, window_bounds = array<i64: 1, 768>}, {pipeline_mode = #tpu.pipeline_mode<synchronous>, transform_indices = @transform_5, window_bounds = array<i64: 128, 128>}, {pipeline_mode = #tpu.pipeline_mode<synchronous>, transform_indices = @transform_6, window_bounds = array<i64: 128, 128>}, {pipeline_mode = #tpu.pipeline_mode<synchronous>, transform_indices = @transform_7, window_bounds = array<i64: 128, 128>}, {pipeline_mode = #tpu.pipeline_mode<synchronous>, transform_indices = @transform_8, window_bounds = array<i64: 1, 128>}, {pipeline_mode = #tpu.pipeline_mode<synchronous>, transform_indices = @transform_9, window_bounds = array<i64: 1, 128>}, {pipeline_mode = #tpu.pipeline_mode<synchronous>, transform_indices = @transform_10, window_bounds = array<i64: 1, 128>}, {pipeline_mode = #tpu.pipeline_mode<synchronous>, transform_indices = @transform_11, window_bounds = array<i64: 4, 32>}, {pipeline_mode = #tpu.pipeline_mode<synchronous>, transform_indices = @transform_12, window_bounds = array<i64: 4, 32>}, {pipeline_mode = #tpu.pipeline_mode<synchronous>, transform_indices = @transform_13, window_bounds = array<i64: 4, 32, 128>}, {pipeline_mode = #tpu.pipeline_mode<synchronous>, transform_indices = @transform_14, window_bounds = array<i64: 1, 128>}, {pipeline_mode = #tpu.pipeline_mode<synchronous>, transform_indices = @transform_15, window_bounds = array<i64: 128, 128>}, {pipeline_mode = #tpu.pipeline_mode<synchronous>, transform_indices = @transform_16, window_bounds = array<i64: 128, 128>}, {pipeline_mode = #tpu.pipeline_mode<synchronous>, transform_indices = @transform_17, window_bounds = array<i64: 128, 128>}, {pipeline_mode = #tpu.pipeline_mode<synchronous>, transform_indices = @transform_18, window_bounds = array<i64: 1, 128>}, {pipeline_mode = #tpu.pipeline_mode<synchronous>, transform_indices = @transform_19, window_bounds = array<i64: 1, 128>}, {pipeline_mode = #tpu.pipeline_mode<synchronous>, transform_indices = @transform_20, window_bounds = array<i64: 1, 128>}, {pipeline_mode = #tpu.pipeline_mode<synchronous>, transform_indices = @transform_21, window_bounds = array<i64: 4, 32>}, {pipeline_mode = #tpu.pipeline_mode<synchronous>, transform_indices = @transform_22, window_bounds = array<i64: 4, 32>}, {pipeline_mode = #tpu.pipeline_mode<synchronous>, transform_indices = @transform_23, window_bounds = array<i64: 4, 32, 128>}, {pipeline_mode = #tpu.pipeline_mode<synchronous>, transform_indices = @transform_24, window_bounds = array<i64: 1, 128>}, {pipeline_mode = #tpu.pipeline_mode<synchronous>, transform_indices = @transform_25, window_bounds = array<i64: 128, 512>}, {pipeline_mode = #tpu.pipeline_mode<synchronous>, transform_indices = @transform_26, window_bounds = array<i64: 1, 512>}, {pipeline_mode = #tpu.pipeline_mode<synchronous>, transform_indices = @transform_27, window_bounds = array<i64: 512, 128>}, {pipeline_mode = #tpu.pipeline_mode<synchronous>, transform_indices = @transform_28, window_bounds = array<i64: 1, 128>}, {transform_indices = @transform_29, window_bounds = array<i64: 2, 8, 128>}]} {
    %c0 = arith.constant 0 : index
    %c0_0 = arith.constant 0 : index
    %c0_1 = arith.constant 0 : index
    %0 = vector.load %arg1[%c0, %c0_0, %c0_1] : memref<2x8x128xf32, #tpu.memory_space<vmem>>, vector<2x8x128xf32>
    %c0_2 = arith.constant 0 : index
    %c0_3 = arith.constant 0 : index
    %c0_4 = arith.constant 0 : index
    %1 = vector.load %arg2[%c0_2, %c0_3, %c0_4] : memref<2x8x128xf32, #tpu.memory_space<vmem>>, vector<2x8x128xf32>
    %c2_i32 = arith.constant 2 : i32
    %2 = arith.muli %arg0, %c2_i32 : i32
    %3 = arith.index_cast %2 : i32 to index
    %c0_5 = arith.constant 0 : index
    %4 = vector.load %arg3[%3, %c0_5] : memref<4x128xf32, #tpu.memory_space<vmem>>, vector<2x128xf32>
    %cst = arith.constant 0.000000e+00 : f32
    %5 = vector.broadcast %cst : f32 to vector<2x128xf32>
    %6 = arith.subf %5, %4 : vector<2x128xf32>
    %7 = math.exp %6 : vector<2x128xf32>
    %cst_6 = arith.constant 1.000000e+00 : f32
    %8 = vector.broadcast %cst_6 : f32 to vector<2x128xf32>
    %9 = arith.addf %8, %7 : vector<2x128xf32>
    %10 = tpu.reciprocal %9 : vector<2x128xf32> -> vector<2x128xf32>
    %11 = arith.mulf %4, %10 : vector<2x128xf32>
    %c0_7 = arith.constant 0 : index
    %c0_8 = arith.constant 0 : index
    %12 = vector.load %arg4[%c0_7, %c0_8] : memref<128x768xbf16, #tpu.memory_space<vmem>>, vector<128x768xbf16>
    %13 = arith.truncf %11 : vector<2x128xf32> to vector<2x128xbf16>
    %cst_9 = arith.constant dense<0.000000e+00> : vector<2x768xf32>
    %14 = tpu.matmul %13, %12, %cst_9 {dimension_numbers = #tpu.dot_dimension_numbers<[1], [0], [0], [1], [0, 0, 1, 1], [], []>} : vector<2x128xbf16>, vector<128x768xbf16>, vector<2x768xf32> -> vector<2x768xf32>
    %c0_10 = arith.constant 0 : index
    %c0_11 = arith.constant 0 : index
    %15 = vector.load %arg5[%c0_10, %c0_11] : memref<1x768xf32, #tpu.memory_space<vmem>>, vector<1x768xf32>
    %16 = vector.broadcast %15 : vector<1x768xf32> to vector<2x768xf32>
    %17 = arith.addf %14, %16 : vector<2x768xf32>
    %18 = vector.extract_strided_slice %17 {offsets = [0, 0], sizes = [2, 128], strides = [1, 1]} : vector<2x768xf32> to vector<2x128xf32>
    %19 = vector.shape_cast %18 : vector<2x128xf32> to vector<2x1x128xf32>
    %20 = vector.extract_strided_slice %17 {offsets = [0, 128], sizes = [2, 128], strides = [1, 1]} : vector<2x768xf32> to vector<2x128xf32>
    %21 = vector.shape_cast %20 : vector<2x128xf32> to vector<2x1x128xf32>
    %22 = vector.extract_strided_slice %17 {offsets = [0, 256], sizes = [2, 128], strides = [1, 1]} : vector<2x768xf32> to vector<2x128xf32>
    %23 = vector.shape_cast %22 : vector<2x128xf32> to vector<2x1x128xf32>
    %24 = vector.extract_strided_slice %17 {offsets = [0, 384], sizes = [2, 128], strides = [1, 1]} : vector<2x768xf32> to vector<2x128xf32>
    %25 = vector.shape_cast %24 : vector<2x128xf32> to vector<2x1x128xf32>
    %26 = vector.extract_strided_slice %17 {offsets = [0, 512], sizes = [2, 128], strides = [1, 1]} : vector<2x768xf32> to vector<2x128xf32>
    %27 = vector.shape_cast %26 : vector<2x128xf32> to vector<2x1x128xf32>
    %28 = vector.extract_strided_slice %17 {offsets = [0, 640], sizes = [2, 128], strides = [1, 1]} : vector<2x768xf32> to vector<2x128xf32>
    %29 = vector.shape_cast %28 : vector<2x128xf32> to vector<2x1x128xf32>
    %cst_12 = arith.constant dense<0.000000e+00> : vector<2x8xf32>
    %30 = vector.multi_reduction <add>, %0, %cst_12 [2] : vector<2x8x128xf32> to vector<2x8xf32>
    %31 = vector.shape_cast %30 : vector<2x8xf32> to vector<2x8x1xf32>
    %cst_13 = arith.constant 1.280000e+02 : f32
    %32 = vector.broadcast %cst_13 : f32 to vector<2x8x1xf32>
    %33 = arith.divf %31, %32 : vector<2x8x1xf32>
    %34 = vector.broadcast %33 : vector<2x8x1xf32> to vector<2x8x128xf32>
    %35 = arith.subf %0, %34 : vector<2x8x128xf32>
    %36 = arith.mulf %35, %35 : vector<2x8x128xf32>
    %cst_14 = arith.constant dense<0.000000e+00> : vector<2x8xf32>
    %37 = vector.multi_reduction <add>, %36, %cst_14 [2] : vector<2x8x128xf32> to vector<2x8xf32>
    %38 = vector.shape_cast %37 : vector<2x8xf32> to vector<2x8x1xf32>
    %cst_15 = arith.constant 1.280000e+02 : f32
    %39 = vector.broadcast %cst_15 : f32 to vector<2x8x1xf32>
    %40 = arith.divf %38, %39 : vector<2x8x1xf32>
    %41 = vector.broadcast %33 : vector<2x8x1xf32> to vector<2x8x128xf32>
    %42 = arith.subf %0, %41 : vector<2x8x128xf32>
    %cst_16 = arith.constant 9.99999997E-7 : f32
    %43 = vector.broadcast %cst_16 : f32 to vector<2x8x1xf32>
    %44 = arith.addf %40, %43 : vector<2x8x1xf32>
    %45 = math.rsqrt %44 : vector<2x8x1xf32>
    %46 = vector.broadcast %45 : vector<2x8x1xf32> to vector<2x8x128xf32>
    %47 = arith.mulf %42, %46 : vector<2x8x128xf32>
    %cst_17 = arith.constant 1.000000e+00 : f32
    %48 = vector.broadcast %cst_17 : f32 to vector<2x1x128xf32>
    %49 = arith.addf %48, %21 : vector<2x1x128xf32>
    %50 = vector.broadcast %49 : vector<2x1x128xf32> to vector<2x8x128xf32>
    %51 = arith.mulf %47, %50 : vector<2x8x128xf32>
    %52 = vector.broadcast %19 : vector<2x1x128xf32> to vector<2x8x128xf32>
    %53 = arith.addf %51, %52 : vector<2x8x128xf32>
    %c0_18 = arith.constant 0 : index
    %c0_19 = arith.constant 0 : index
    %54 = vector.load %arg6[%c0_18, %c0_19] : memref<128x128xbf16, #tpu.memory_space<vmem>>, vector<128x128xbf16>
    %c0_20 = arith.constant 0 : index
    %c0_21 = arith.constant 0 : index
    %55 = vector.load %arg7[%c0_20, %c0_21] : memref<128x128xbf16, #tpu.memory_space<vmem>>, vector<128x128xbf16>
    %c0_22 = arith.constant 0 : index
    %c0_23 = arith.constant 0 : index
    %56 = vector.load %arg8[%c0_22, %c0_23] : memref<128x128xbf16, #tpu.memory_space<vmem>>, vector<128x128xbf16>
    %c0_24 = arith.constant 0 : index
    %c0_25 = arith.constant 0 : index
    %57 = vector.load %arg9[%c0_24, %c0_25] : memref<1x128xf32, #tpu.memory_space<vmem>>, vector<1x128xf32>
    %c0_26 = arith.constant 0 : index
    %c0_27 = arith.constant 0 : index
    %58 = vector.load %arg10[%c0_26, %c0_27] : memref<1x128xf32, #tpu.memory_space<vmem>>, vector<1x128xf32>
    %c0_28 = arith.constant 0 : index
    %c0_29 = arith.constant 0 : index
    %59 = vector.load %arg11[%c0_28, %c0_29] : memref<1x128xf32, #tpu.memory_space<vmem>>, vector<1x128xf32>
    %c0_30 = arith.constant 0 : index
    %c0_31 = arith.constant 0 : index
    %60 = vector.load %arg12[%c0_30, %c0_31] : memref<4x32xf32, #tpu.memory_space<vmem>>, vector<4x32xf32>
    %c0_32 = arith.constant 0 : index
    %c0_33 = arith.constant 0 : index
    %61 = vector.load %arg13[%c0_32, %c0_33] : memref<4x32xf32, #tpu.memory_space<vmem>>, vector<4x32xf32>
    %c0_34 = arith.constant 0 : index
    %c0_35 = arith.constant 0 : index
    %c0_36 = arith.constant 0 : index
    %62 = vector.load %arg14[%c0_34, %c0_35, %c0_36] : memref<4x32x128xbf16, #tpu.memory_space<vmem>>, vector<4x32x128xbf16>
    %c0_37 = arith.constant 0 : index
    %c0_38 = arith.constant 0 : index
    %63 = vector.load %arg15[%c0_37, %c0_38] : memref<1x128xf32, #tpu.memory_space<vmem>>, vector<1x128xf32>
    %64 = vector.shape_cast %53 : vector<2x8x128xf32> to vector<16x128xf32>
    %65 = arith.truncf %64 : vector<16x128xf32> to vector<16x128xbf16>
    %cst_39 = arith.constant dense<0.000000e+00> : vector<16x128xf32>
    %66 = tpu.matmul %65, %54, %cst_39 {dimension_numbers = #tpu.dot_dimension_numbers<[1], [0], [0], [1], [0, 0, 1, 1], [], []>} : vector<16x128xbf16>, vector<128x128xbf16>, vector<16x128xf32> -> vector<16x128xf32>
    %67 = vector.broadcast %57 : vector<1x128xf32> to vector<16x128xf32>
    %68 = arith.addf %66, %67 : vector<16x128xf32>
    %69 = vector.shape_cast %53 : vector<2x8x128xf32> to vector<16x128xf32>
    %70 = arith.truncf %69 : vector<16x128xf32> to vector<16x128xbf16>
    %cst_40 = arith.constant dense<0.000000e+00> : vector<16x128xf32>
    %71 = tpu.matmul %70, %55, %cst_40 {dimension_numbers = #tpu.dot_dimension_numbers<[1], [0], [0], [1], [0, 0, 1, 1], [], []>} : vector<16x128xbf16>, vector<128x128xbf16>, vector<16x128xf32> -> vector<16x128xf32>
    %72 = vector.broadcast %58 : vector<1x128xf32> to vector<16x128xf32>
    %73 = arith.addf %71, %72 : vector<16x128xf32>
    %74 = vector.shape_cast %53 : vector<2x8x128xf32> to vector<16x128xf32>
    %75 = arith.truncf %74 : vector<16x128xf32> to vector<16x128xbf16>
    %cst_41 = arith.constant dense<0.000000e+00> : vector<16x128xf32>
    %76 = tpu.matmul %75, %56, %cst_41 {dimension_numbers = #tpu.dot_dimension_numbers<[1], [0], [0], [1], [0, 0, 1, 1], [], []>} : vector<16x128xbf16>, vector<128x128xbf16>, vector<16x128xf32> -> vector<16x128xf32>
    %77 = vector.broadcast %59 : vector<1x128xf32> to vector<16x128xf32>
    %78 = arith.addf %76, %77 : vector<16x128xf32>
    %79 = vector.shape_cast %68 : vector<16x128xf32> to vector<2x8x128xf32>
    %80 = vector.shape_cast %73 : vector<16x128xf32> to vector<2x8x128xf32>
    %81 = vector.shape_cast %78 : vector<16x128xf32> to vector<2x8x128xf32>
    %82 = vector.extract_strided_slice %79 {offsets = [0, 0, 0], sizes = [2, 8, 32], strides = [1, 1, 1]} : vector<2x8x128xf32> to vector<2x8x32xf32>
    %83 = vector.extract_strided_slice %79 {offsets = [0, 0, 32], sizes = [2, 8, 32], strides = [1, 1, 1]} : vector<2x8x128xf32> to vector<2x8x32xf32>
    %84 = vector.extract_strided_slice %79 {offsets = [0, 0, 64], sizes = [2, 8, 32], strides = [1, 1, 1]} : vector<2x8x128xf32> to vector<2x8x32xf32>
    %85 = vector.extract_strided_slice %79 {offsets = [0, 0, 96], sizes = [2, 8, 32], strides = [1, 1, 1]} : vector<2x8x128xf32> to vector<2x8x32xf32>
    %86 = vector.shape_cast %82 : vector<2x8x32xf32> to vector<1x2x8x32xf32>
    %87 = vector.shape_cast %83 : vector<2x8x32xf32> to vector<1x2x8x32xf32>
    %88 = vector.shape_cast %84 : vector<2x8x32xf32> to vector<1x2x8x32xf32>
    %89 = vector.shape_cast %85 : vector<2x8x32xf32> to vector<1x2x8x32xf32>
    %90 = tpu.concatenate %86, %87, %88, %89 in 0 : vector<1x2x8x32xf32>, vector<1x2x8x32xf32>, vector<1x2x8x32xf32>, vector<1x2x8x32xf32> -> vector<4x2x8x32xf32>
    %91 = vector.extract_strided_slice %80 {offsets = [0, 0, 0], sizes = [2, 8, 32], strides = [1, 1, 1]} : vector<2x8x128xf32> to vector<2x8x32xf32>
    %92 = vector.extract_strided_slice %80 {offsets = [0, 0, 32], sizes = [2, 8, 32], strides = [1, 1, 1]} : vector<2x8x128xf32> to vector<2x8x32xf32>
    %93 = vector.extract_strided_slice %80 {offsets = [0, 0, 64], sizes = [2, 8, 32], strides = [1, 1, 1]} : vector<2x8x128xf32> to vector<2x8x32xf32>
    %94 = vector.extract_strided_slice %80 {offsets = [0, 0, 96], sizes = [2, 8, 32], strides = [1, 1, 1]} : vector<2x8x128xf32> to vector<2x8x32xf32>
    %95 = vector.shape_cast %91 : vector<2x8x32xf32> to vector<1x2x8x32xf32>
    %96 = vector.shape_cast %92 : vector<2x8x32xf32> to vector<1x2x8x32xf32>
    %97 = vector.shape_cast %93 : vector<2x8x32xf32> to vector<1x2x8x32xf32>
    %98 = vector.shape_cast %94 : vector<2x8x32xf32> to vector<1x2x8x32xf32>
    %99 = tpu.concatenate %95, %96, %97, %98 in 0 : vector<1x2x8x32xf32>, vector<1x2x8x32xf32>, vector<1x2x8x32xf32>, vector<1x2x8x32xf32> -> vector<4x2x8x32xf32>
    %100 = vector.extract_strided_slice %81 {offsets = [0, 0, 0], sizes = [2, 8, 32], strides = [1, 1, 1]} : vector<2x8x128xf32> to vector<2x8x32xf32>
    %101 = vector.extract_strided_slice %81 {offsets = [0, 0, 32], sizes = [2, 8, 32], strides = [1, 1, 1]} : vector<2x8x128xf32> to vector<2x8x32xf32>
    %102 = vector.extract_strided_slice %81 {offsets = [0, 0, 64], sizes = [2, 8, 32], strides = [1, 1, 1]} : vector<2x8x128xf32> to vector<2x8x32xf32>
    %103 = vector.extract_strided_slice %81 {offsets = [0, 0, 96], sizes = [2, 8, 32], strides = [1, 1, 1]} : vector<2x8x128xf32> to vector<2x8x32xf32>
    %104 = vector.shape_cast %100 : vector<2x8x32xf32> to vector<1x2x8x32xf32>
    %105 = vector.shape_cast %101 : vector<2x8x32xf32> to vector<1x2x8x32xf32>
    %106 = vector.shape_cast %102 : vector<2x8x32xf32> to vector<1x2x8x32xf32>
    %107 = vector.shape_cast %103 : vector<2x8x32xf32> to vector<1x2x8x32xf32>
    %108 = tpu.concatenate %104, %105, %106, %107 in 0 : vector<1x2x8x32xf32>, vector<1x2x8x32xf32>, vector<1x2x8x32xf32>, vector<1x2x8x32xf32> -> vector<4x2x8x32xf32>
    %109 = vector.shape_cast %90 : vector<4x2x8x32xf32> to vector<8x8x32xf32>
    %110 = vector.shape_cast %99 : vector<4x2x8x32xf32> to vector<8x8x32xf32>
    %111 = vector.shape_cast %108 : vector<4x2x8x32xf32> to vector<8x8x32xf32>
    %112 = arith.truncf %109 : vector<8x8x32xf32> to vector<8x8x32xbf16>
    %113 = arith.truncf %110 : vector<8x8x32xf32> to vector<8x8x32xbf16>
    "tpu.trace_start"() <{level = 10 : i32, message = "gtd,gsd->gts"}> : () -> ()
    %cst_42 = arith.constant dense<0.000000e+00> : vector<8x8x8xf32>
    %114 = tpu.matmul %112, %113, %cst_42 {dimension_numbers = #tpu.dot_dimension_numbers<[2], [2], [1], [1], [0, 0, 0, 1, 1, 1], [0], [0]>} : vector<8x8x32xbf16>, vector<8x8x32xbf16>, vector<8x8x8xf32> -> vector<8x8x8xf32>
    "tpu.trace_stop"() : () -> ()
    %cst_43 = arith.constant 0.176776692 : f32
    %115 = vector.broadcast %cst_43 : f32 to vector<8x8x8xf32>
    %116 = arith.mulf %114, %115 : vector<8x8x8xf32>
    %117 = vector.shape_cast %60 : vector<4x32xf32> to vector<4x1x1x32xf32>
    %118 = vector.broadcast %117 : vector<4x1x1x32xf32> to vector<4x2x8x32xf32>
    %119 = arith.mulf %90, %118 : vector<4x2x8x32xf32>
    %cst_44 = arith.constant dense<0.000000e+00> : vector<4x2x8xf32>
    %120 = vector.multi_reduction <add>, %119, %cst_44 [3] : vector<4x2x8x32xf32> to vector<4x2x8xf32>
    %121 = vector.shape_cast %120 : vector<4x2x8xf32> to vector<4x2x8x1xf32>
    %cst_45 = arith.constant 0.176776692 : f32
    %122 = vector.broadcast %cst_45 : f32 to vector<4x2x8x1xf32>
    %123 = arith.mulf %121, %122 : vector<4x2x8x1xf32>
    %124 = vector.shape_cast %123 : vector<4x2x8x1xf32> to vector<8x8x1xf32>
    %cst_46 = arith.constant dense<0xFF800000> : vector<8x8xf32>
    %125 = vector.multi_reduction <maximumf>, %116, %cst_46 [2] : vector<8x8x8xf32> to vector<8x8xf32>
    %126 = vector.shape_cast %125 : vector<8x8xf32> to vector<8x8x1xf32>
    %127 = arith.maximumf %126, %124 : vector<8x8x1xf32>
    %128 = vector.broadcast %127 : vector<8x8x1xf32> to vector<8x8x8xf32>
    %129 = arith.subf %116, %128 : vector<8x8x8xf32>
    %130 = math.exp %129 : vector<8x8x8xf32>
    %131 = arith.subf %124, %127 : vector<8x8x1xf32>
    %132 = math.exp %131 : vector<8x8x1xf32>
    %cst_47 = arith.constant dense<0.000000e+00> : vector<8x8xf32>
    %133 = vector.multi_reduction <add>, %130, %cst_47 [2] : vector<8x8x8xf32> to vector<8x8xf32>
    %134 = vector.shape_cast %133 : vector<8x8xf32> to vector<8x8x1xf32>
    %135 = arith.addf %134, %132 : vector<8x8x1xf32>
    %136 = tpu.reciprocal %135 {approx = true} : vector<8x8x1xf32> -> vector<8x8x1xf32>
    %137 = arith.truncf %130 : vector<8x8x8xf32> to vector<8x8x8xbf16>
    %138 = arith.truncf %111 : vector<8x8x32xf32> to vector<8x8x32xbf16>
    "tpu.trace_start"() <{level = 10 : i32, message = "gts,gsd->gtd"}> : () -> ()
    %cst_48 = arith.constant dense<0.000000e+00> : vector<8x8x32xf32>
    %139 = tpu.matmul %137, %138, %cst_48 {dimension_numbers = #tpu.dot_dimension_numbers<[2], [1], [1], [2], [0, 0, 0, 1, 1, 2], [0], [0]>} : vector<8x8x8xbf16>, vector<8x8x32xbf16>, vector<8x8x32xf32> -> vector<8x8x32xf32>
    "tpu.trace_stop"() : () -> ()
    %140 = vector.broadcast %136 : vector<8x8x1xf32> to vector<8x8x32xf32>
    %141 = arith.mulf %139, %140 : vector<8x8x32xf32>
    %142 = vector.shape_cast %141 : vector<8x8x32xf32> to vector<4x2x8x32xf32>
    %143 = arith.mulf %132, %136 : vector<8x8x1xf32>
    %144 = vector.shape_cast %143 : vector<8x8x1xf32> to vector<4x2x8x1xf32>
    %145 = vector.shape_cast %61 : vector<4x32xf32> to vector<4x1x1x32xf32>
    %146 = vector.broadcast %144 : vector<4x2x8x1xf32> to vector<4x2x8x32xf32>
    %147 = vector.broadcast %145 : vector<4x1x1x32xf32> to vector<4x2x8x32xf32>
    %148 = arith.mulf %146, %147 : vector<4x2x8x32xf32>
    %149 = arith.addf %142, %148 : vector<4x2x8x32xf32>
    %cst_49 = arith.constant 0.000000e+00 : f32
    %150 = vector.broadcast %cst_49 : f32 to vector<16x128xf32>
    %151 = vector.extract_strided_slice %149 {offsets = [0, 0, 0, 0], sizes = [1, 2, 8, 32], strides = [1, 1, 1, 1]} : vector<4x2x8x32xf32> to vector<1x2x8x32xf32>
    %152 = vector.shape_cast %151 : vector<1x2x8x32xf32> to vector<2x8x32xf32>
    %153 = vector.shape_cast %152 : vector<2x8x32xf32> to vector<16x32xf32>
    %154 = vector.extract_strided_slice %62 {offsets = [0, 0, 0], sizes = [1, 32, 128], strides = [1, 1, 1]} : vector<4x32x128xbf16> to vector<1x32x128xbf16>
    %155 = vector.shape_cast %154 : vector<1x32x128xbf16> to vector<32x128xbf16>
    %156 = arith.truncf %153 : vector<16x32xf32> to vector<16x32xbf16>
    %cst_50 = arith.constant dense<0.000000e+00> : vector<16x128xf32>
    %157 = tpu.matmul %156, %155, %cst_50 {dimension_numbers = #tpu.dot_dimension_numbers<[1], [0], [0], [1], [0, 0, 1, 1], [], []>} : vector<16x32xbf16>, vector<32x128xbf16>, vector<16x128xf32> -> vector<16x128xf32>
    %158 = arith.addf %150, %157 : vector<16x128xf32>
    %159 = vector.extract_strided_slice %149 {offsets = [1, 0, 0, 0], sizes = [1, 2, 8, 32], strides = [1, 1, 1, 1]} : vector<4x2x8x32xf32> to vector<1x2x8x32xf32>
    %160 = vector.shape_cast %159 : vector<1x2x8x32xf32> to vector<2x8x32xf32>
    %161 = vector.shape_cast %160 : vector<2x8x32xf32> to vector<16x32xf32>
    %162 = vector.extract_strided_slice %62 {offsets = [1, 0, 0], sizes = [1, 32, 128], strides = [1, 1, 1]} : vector<4x32x128xbf16> to vector<1x32x128xbf16>
    %163 = vector.shape_cast %162 : vector<1x32x128xbf16> to vector<32x128xbf16>
    %164 = arith.truncf %161 : vector<16x32xf32> to vector<16x32xbf16>
    %cst_51 = arith.constant dense<0.000000e+00> : vector<16x128xf32>
    %165 = tpu.matmul %164, %163, %cst_51 {dimension_numbers = #tpu.dot_dimension_numbers<[1], [0], [0], [1], [0, 0, 1, 1], [], []>} : vector<16x32xbf16>, vector<32x128xbf16>, vector<16x128xf32> -> vector<16x128xf32>
    %166 = arith.addf %158, %165 : vector<16x128xf32>
    %167 = vector.extract_strided_slice %149 {offsets = [2, 0, 0, 0], sizes = [1, 2, 8, 32], strides = [1, 1, 1, 1]} : vector<4x2x8x32xf32> to vector<1x2x8x32xf32>
    %168 = vector.shape_cast %167 : vector<1x2x8x32xf32> to vector<2x8x32xf32>
    %169 = vector.shape_cast %168 : vector<2x8x32xf32> to vector<16x32xf32>
    %170 = vector.extract_strided_slice %62 {offsets = [2, 0, 0], sizes = [1, 32, 128], strides = [1, 1, 1]} : vector<4x32x128xbf16> to vector<1x32x128xbf16>
    %171 = vector.shape_cast %170 : vector<1x32x128xbf16> to vector<32x128xbf16>
    %172 = arith.truncf %169 : vector<16x32xf32> to vector<16x32xbf16>
    %cst_52 = arith.constant dense<0.000000e+00> : vector<16x128xf32>
    %173 = tpu.matmul %172, %171, %cst_52 {dimension_numbers = #tpu.dot_dimension_numbers<[1], [0], [0], [1], [0, 0, 1, 1], [], []>} : vector<16x32xbf16>, vector<32x128xbf16>, vector<16x128xf32> -> vector<16x128xf32>
    %174 = arith.addf %166, %173 : vector<16x128xf32>
    %175 = vector.extract_strided_slice %149 {offsets = [3, 0, 0, 0], sizes = [1, 2, 8, 32], strides = [1, 1, 1, 1]} : vector<4x2x8x32xf32> to vector<1x2x8x32xf32>
    %176 = vector.shape_cast %175 : vector<1x2x8x32xf32> to vector<2x8x32xf32>
    %177 = vector.shape_cast %176 : vector<2x8x32xf32> to vector<16x32xf32>
    %178 = vector.extract_strided_slice %62 {offsets = [3, 0, 0], sizes = [1, 32, 128], strides = [1, 1, 1]} : vector<4x32x128xbf16> to vector<1x32x128xbf16>
    %179 = vector.shape_cast %178 : vector<1x32x128xbf16> to vector<32x128xbf16>
    %180 = arith.truncf %177 : vector<16x32xf32> to vector<16x32xbf16>
    %cst_53 = arith.constant dense<0.000000e+00> : vector<16x128xf32>
    %181 = tpu.matmul %180, %179, %cst_53 {dimension_numbers = #tpu.dot_dimension_numbers<[1], [0], [0], [1], [0, 0, 1, 1], [], []>} : vector<16x32xbf16>, vector<32x128xbf16>, vector<16x128xf32> -> vector<16x128xf32>
    %182 = arith.addf %174, %181 : vector<16x128xf32>
    %183 = vector.broadcast %63 : vector<1x128xf32> to vector<16x128xf32>
    %184 = arith.addf %182, %183 : vector<16x128xf32>
    %185 = vector.shape_cast %184 : vector<16x128xf32> to vector<2x8x128xf32>
    %186 = vector.broadcast %23 : vector<2x1x128xf32> to vector<2x8x128xf32>
    %187 = arith.mulf %186, %185 : vector<2x8x128xf32>
    %188 = arith.addf %0, %187 : vector<2x8x128xf32>
    %cst_54 = arith.constant dense<0.000000e+00> : vector<2x8xf32>
    %189 = vector.multi_reduction <add>, %188, %cst_54 [2] : vector<2x8x128xf32> to vector<2x8xf32>
    %190 = vector.shape_cast %189 : vector<2x8xf32> to vector<2x8x1xf32>
    %cst_55 = arith.constant 1.280000e+02 : f32
    %191 = vector.broadcast %cst_55 : f32 to vector<2x8x1xf32>
    %192 = arith.divf %190, %191 : vector<2x8x1xf32>
    %193 = vector.broadcast %192 : vector<2x8x1xf32> to vector<2x8x128xf32>
    %194 = arith.subf %188, %193 : vector<2x8x128xf32>
    %195 = arith.mulf %194, %194 : vector<2x8x128xf32>
    %cst_56 = arith.constant dense<0.000000e+00> : vector<2x8xf32>
    %196 = vector.multi_reduction <add>, %195, %cst_56 [2] : vector<2x8x128xf32> to vector<2x8xf32>
    %197 = vector.shape_cast %196 : vector<2x8xf32> to vector<2x8x1xf32>
    %cst_57 = arith.constant 1.280000e+02 : f32
    %198 = vector.broadcast %cst_57 : f32 to vector<2x8x1xf32>
    %199 = arith.divf %197, %198 : vector<2x8x1xf32>
    %200 = vector.broadcast %192 : vector<2x8x1xf32> to vector<2x8x128xf32>
    %201 = arith.subf %188, %200 : vector<2x8x128xf32>
    %cst_58 = arith.constant 9.99999997E-7 : f32
    %202 = vector.broadcast %cst_58 : f32 to vector<2x8x1xf32>
    %203 = arith.addf %199, %202 : vector<2x8x1xf32>
    %204 = math.rsqrt %203 : vector<2x8x1xf32>
    %205 = vector.broadcast %204 : vector<2x8x1xf32> to vector<2x8x128xf32>
    %206 = arith.mulf %201, %205 : vector<2x8x128xf32>
    %c0_59 = arith.constant 0 : index
    %c0_60 = arith.constant 0 : index
    %207 = vector.load %arg16[%c0_59, %c0_60] : memref<128x128xbf16, #tpu.memory_space<vmem>>, vector<128x128xbf16>
    %c0_61 = arith.constant 0 : index
    %c0_62 = arith.constant 0 : index
    %208 = vector.load %arg17[%c0_61, %c0_62] : memref<128x128xbf16, #tpu.memory_space<vmem>>, vector<128x128xbf16>
    %c0_63 = arith.constant 0 : index
    %c0_64 = arith.constant 0 : index
    %209 = vector.load %arg18[%c0_63, %c0_64] : memref<128x128xbf16, #tpu.memory_space<vmem>>, vector<128x128xbf16>
    %c0_65 = arith.constant 0 : index
    %c0_66 = arith.constant 0 : index
    %210 = vector.load %arg19[%c0_65, %c0_66] : memref<1x128xf32, #tpu.memory_space<vmem>>, vector<1x128xf32>
    %c0_67 = arith.constant 0 : index
    %c0_68 = arith.constant 0 : index
    %211 = vector.load %arg20[%c0_67, %c0_68] : memref<1x128xf32, #tpu.memory_space<vmem>>, vector<1x128xf32>
    %c0_69 = arith.constant 0 : index
    %c0_70 = arith.constant 0 : index
    %212 = vector.load %arg21[%c0_69, %c0_70] : memref<1x128xf32, #tpu.memory_space<vmem>>, vector<1x128xf32>
    %c0_71 = arith.constant 0 : index
    %c0_72 = arith.constant 0 : index
    %213 = vector.load %arg22[%c0_71, %c0_72] : memref<4x32xf32, #tpu.memory_space<vmem>>, vector<4x32xf32>
    %c0_73 = arith.constant 0 : index
    %c0_74 = arith.constant 0 : index
    %214 = vector.load %arg23[%c0_73, %c0_74] : memref<4x32xf32, #tpu.memory_space<vmem>>, vector<4x32xf32>
    %c0_75 = arith.constant 0 : index
    %c0_76 = arith.constant 0 : index
    %c0_77 = arith.constant 0 : index
    %215 = vector.load %arg24[%c0_75, %c0_76, %c0_77] : memref<4x32x128xbf16, #tpu.memory_space<vmem>>, vector<4x32x128xbf16>
    %c0_78 = arith.constant 0 : index
    %c0_79 = arith.constant 0 : index
    %216 = vector.load %arg25[%c0_78, %c0_79] : memref<1x128xf32, #tpu.memory_space<vmem>>, vector<1x128xf32>
    %217 = vector.shape_cast %206 : vector<2x8x128xf32> to vector<16x128xf32>
    %218 = arith.truncf %217 : vector<16x128xf32> to vector<16x128xbf16>
    %cst_80 = arith.constant dense<0.000000e+00> : vector<16x128xf32>
    %219 = tpu.matmul %218, %207, %cst_80 {dimension_numbers = #tpu.dot_dimension_numbers<[1], [0], [0], [1], [0, 0, 1, 1], [], []>} : vector<16x128xbf16>, vector<128x128xbf16>, vector<16x128xf32> -> vector<16x128xf32>
    %220 = vector.broadcast %210 : vector<1x128xf32> to vector<16x128xf32>
    %221 = arith.addf %219, %220 : vector<16x128xf32>
    %222 = vector.shape_cast %1 : vector<2x8x128xf32> to vector<16x128xf32>
    %223 = arith.truncf %222 : vector<16x128xf32> to vector<16x128xbf16>
    %cst_81 = arith.constant dense<0.000000e+00> : vector<16x128xf32>
    %224 = tpu.matmul %223, %208, %cst_81 {dimension_numbers = #tpu.dot_dimension_numbers<[1], [0], [0], [1], [0, 0, 1, 1], [], []>} : vector<16x128xbf16>, vector<128x128xbf16>, vector<16x128xf32> -> vector<16x128xf32>
    %225 = vector.broadcast %211 : vector<1x128xf32> to vector<16x128xf32>
    %226 = arith.addf %224, %225 : vector<16x128xf32>
    %227 = vector.shape_cast %1 : vector<2x8x128xf32> to vector<16x128xf32>
    %228 = arith.truncf %227 : vector<16x128xf32> to vector<16x128xbf16>
    %cst_82 = arith.constant dense<0.000000e+00> : vector<16x128xf32>
    %229 = tpu.matmul %228, %209, %cst_82 {dimension_numbers = #tpu.dot_dimension_numbers<[1], [0], [0], [1], [0, 0, 1, 1], [], []>} : vector<16x128xbf16>, vector<128x128xbf16>, vector<16x128xf32> -> vector<16x128xf32>
    %230 = vector.broadcast %212 : vector<1x128xf32> to vector<16x128xf32>
    %231 = arith.addf %229, %230 : vector<16x128xf32>
    %232 = vector.shape_cast %221 : vector<16x128xf32> to vector<2x8x128xf32>
    %233 = vector.shape_cast %226 : vector<16x128xf32> to vector<2x8x128xf32>
    %234 = vector.shape_cast %231 : vector<16x128xf32> to vector<2x8x128xf32>
    %235 = vector.extract_strided_slice %232 {offsets = [0, 0, 0], sizes = [2, 8, 32], strides = [1, 1, 1]} : vector<2x8x128xf32> to vector<2x8x32xf32>
    %236 = vector.extract_strided_slice %232 {offsets = [0, 0, 32], sizes = [2, 8, 32], strides = [1, 1, 1]} : vector<2x8x128xf32> to vector<2x8x32xf32>
    %237 = vector.extract_strided_slice %232 {offsets = [0, 0, 64], sizes = [2, 8, 32], strides = [1, 1, 1]} : vector<2x8x128xf32> to vector<2x8x32xf32>
    %238 = vector.extract_strided_slice %232 {offsets = [0, 0, 96], sizes = [2, 8, 32], strides = [1, 1, 1]} : vector<2x8x128xf32> to vector<2x8x32xf32>
    %239 = vector.shape_cast %235 : vector<2x8x32xf32> to vector<1x2x8x32xf32>
    %240 = vector.shape_cast %236 : vector<2x8x32xf32> to vector<1x2x8x32xf32>
    %241 = vector.shape_cast %237 : vector<2x8x32xf32> to vector<1x2x8x32xf32>
    %242 = vector.shape_cast %238 : vector<2x8x32xf32> to vector<1x2x8x32xf32>
    %243 = tpu.concatenate %239, %240, %241, %242 in 0 : vector<1x2x8x32xf32>, vector<1x2x8x32xf32>, vector<1x2x8x32xf32>, vector<1x2x8x32xf32> -> vector<4x2x8x32xf32>
    %244 = vector.extract_strided_slice %233 {offsets = [0, 0, 0], sizes = [2, 8, 32], strides = [1, 1, 1]} : vector<2x8x128xf32> to vector<2x8x32xf32>
    %245 = vector.extract_strided_slice %233 {offsets = [0, 0, 32], sizes = [2, 8, 32], strides = [1, 1, 1]} : vector<2x8x128xf32> to vector<2x8x32xf32>
    %246 = vector.extract_strided_slice %233 {offsets = [0, 0, 64], sizes = [2, 8, 32], strides = [1, 1, 1]} : vector<2x8x128xf32> to vector<2x8x32xf32>
    %247 = vector.extract_strided_slice %233 {offsets = [0, 0, 96], sizes = [2, 8, 32], strides = [1, 1, 1]} : vector<2x8x128xf32> to vector<2x8x32xf32>
    %248 = vector.shape_cast %244 : vector<2x8x32xf32> to vector<1x2x8x32xf32>
    %249 = vector.shape_cast %245 : vector<2x8x32xf32> to vector<1x2x8x32xf32>
    %250 = vector.shape_cast %246 : vector<2x8x32xf32> to vector<1x2x8x32xf32>
    %251 = vector.shape_cast %247 : vector<2x8x32xf32> to vector<1x2x8x32xf32>
    %252 = tpu.concatenate %248, %249, %250, %251 in 0 : vector<1x2x8x32xf32>, vector<1x2x8x32xf32>, vector<1x2x8x32xf32>, vector<1x2x8x32xf32> -> vector<4x2x8x32xf32>
    %253 = vector.extract_strided_slice %234 {offsets = [0, 0, 0], sizes = [2, 8, 32], strides = [1, 1, 1]} : vector<2x8x128xf32> to vector<2x8x32xf32>
    %254 = vector.extract_strided_slice %234 {offsets = [0, 0, 32], sizes = [2, 8, 32], strides = [1, 1, 1]} : vector<2x8x128xf32> to vector<2x8x32xf32>
    %255 = vector.extract_strided_slice %234 {offsets = [0, 0, 64], sizes = [2, 8, 32], strides = [1, 1, 1]} : vector<2x8x128xf32> to vector<2x8x32xf32>
    %256 = vector.extract_strided_slice %234 {offsets = [0, 0, 96], sizes = [2, 8, 32], strides = [1, 1, 1]} : vector<2x8x128xf32> to vector<2x8x32xf32>
    %257 = vector.shape_cast %253 : vector<2x8x32xf32> to vector<1x2x8x32xf32>
    %258 = vector.shape_cast %254 : vector<2x8x32xf32> to vector<1x2x8x32xf32>
    %259 = vector.shape_cast %255 : vector<2x8x32xf32> to vector<1x2x8x32xf32>
    %260 = vector.shape_cast %256 : vector<2x8x32xf32> to vector<1x2x8x32xf32>
    %261 = tpu.concatenate %257, %258, %259, %260 in 0 : vector<1x2x8x32xf32>, vector<1x2x8x32xf32>, vector<1x2x8x32xf32>, vector<1x2x8x32xf32> -> vector<4x2x8x32xf32>
    %262 = vector.shape_cast %243 : vector<4x2x8x32xf32> to vector<8x8x32xf32>
    %263 = vector.shape_cast %252 : vector<4x2x8x32xf32> to vector<8x8x32xf32>
    %264 = vector.shape_cast %261 : vector<4x2x8x32xf32> to vector<8x8x32xf32>
    %265 = arith.truncf %262 : vector<8x8x32xf32> to vector<8x8x32xbf16>
    %266 = arith.truncf %263 : vector<8x8x32xf32> to vector<8x8x32xbf16>
    "tpu.trace_start"() <{level = 10 : i32, message = "gtd,gsd->gts"}> : () -> ()
    %cst_83 = arith.constant dense<0.000000e+00> : vector<8x8x8xf32>
    %267 = tpu.matmul %265, %266, %cst_83 {dimension_numbers = #tpu.dot_dimension_numbers<[2], [2], [1], [1], [0, 0, 0, 1, 1, 1], [0], [0]>} : vector<8x8x32xbf16>, vector<8x8x32xbf16>, vector<8x8x8xf32> -> vector<8x8x8xf32>
    "tpu.trace_stop"() : () -> ()
    %cst_84 = arith.constant 0.176776692 : f32
    %268 = vector.broadcast %cst_84 : f32 to vector<8x8x8xf32>
    %269 = arith.mulf %267, %268 : vector<8x8x8xf32>
    %270 = vector.shape_cast %213 : vector<4x32xf32> to vector<4x1x1x32xf32>
    %271 = vector.broadcast %270 : vector<4x1x1x32xf32> to vector<4x2x8x32xf32>
    %272 = arith.mulf %243, %271 : vector<4x2x8x32xf32>
    %cst_85 = arith.constant dense<0.000000e+00> : vector<4x2x8xf32>
    %273 = vector.multi_reduction <add>, %272, %cst_85 [3] : vector<4x2x8x32xf32> to vector<4x2x8xf32>
    %274 = vector.shape_cast %273 : vector<4x2x8xf32> to vector<4x2x8x1xf32>
    %cst_86 = arith.constant 0.176776692 : f32
    %275 = vector.broadcast %cst_86 : f32 to vector<4x2x8x1xf32>
    %276 = arith.mulf %274, %275 : vector<4x2x8x1xf32>
    %277 = vector.shape_cast %276 : vector<4x2x8x1xf32> to vector<8x8x1xf32>
    %cst_87 = arith.constant dense<0xFF800000> : vector<8x8xf32>
    %278 = vector.multi_reduction <maximumf>, %269, %cst_87 [2] : vector<8x8x8xf32> to vector<8x8xf32>
    %279 = vector.shape_cast %278 : vector<8x8xf32> to vector<8x8x1xf32>
    %280 = arith.maximumf %279, %277 : vector<8x8x1xf32>
    %281 = vector.broadcast %280 : vector<8x8x1xf32> to vector<8x8x8xf32>
    %282 = arith.subf %269, %281 : vector<8x8x8xf32>
    %283 = math.exp %282 : vector<8x8x8xf32>
    %284 = arith.subf %277, %280 : vector<8x8x1xf32>
    %285 = math.exp %284 : vector<8x8x1xf32>
    %cst_88 = arith.constant dense<0.000000e+00> : vector<8x8xf32>
    %286 = vector.multi_reduction <add>, %283, %cst_88 [2] : vector<8x8x8xf32> to vector<8x8xf32>
    %287 = vector.shape_cast %286 : vector<8x8xf32> to vector<8x8x1xf32>
    %288 = arith.addf %287, %285 : vector<8x8x1xf32>
    %289 = tpu.reciprocal %288 {approx = true} : vector<8x8x1xf32> -> vector<8x8x1xf32>
    %290 = arith.truncf %283 : vector<8x8x8xf32> to vector<8x8x8xbf16>
    %291 = arith.truncf %264 : vector<8x8x32xf32> to vector<8x8x32xbf16>
    "tpu.trace_start"() <{level = 10 : i32, message = "gts,gsd->gtd"}> : () -> ()
    %cst_89 = arith.constant dense<0.000000e+00> : vector<8x8x32xf32>
    %292 = tpu.matmul %290, %291, %cst_89 {dimension_numbers = #tpu.dot_dimension_numbers<[2], [1], [1], [2], [0, 0, 0, 1, 1, 2], [0], [0]>} : vector<8x8x8xbf16>, vector<8x8x32xbf16>, vector<8x8x32xf32> -> vector<8x8x32xf32>
    "tpu.trace_stop"() : () -> ()
    %293 = vector.broadcast %289 : vector<8x8x1xf32> to vector<8x8x32xf32>
    %294 = arith.mulf %292, %293 : vector<8x8x32xf32>
    %295 = vector.shape_cast %294 : vector<8x8x32xf32> to vector<4x2x8x32xf32>
    %296 = arith.mulf %285, %289 : vector<8x8x1xf32>
    %297 = vector.shape_cast %296 : vector<8x8x1xf32> to vector<4x2x8x1xf32>
    %298 = vector.shape_cast %214 : vector<4x32xf32> to vector<4x1x1x32xf32>
    %299 = vector.broadcast %297 : vector<4x2x8x1xf32> to vector<4x2x8x32xf32>
    %300 = vector.broadcast %298 : vector<4x1x1x32xf32> to vector<4x2x8x32xf32>
    %301 = arith.mulf %299, %300 : vector<4x2x8x32xf32>
    %302 = arith.addf %295, %301 : vector<4x2x8x32xf32>
    %cst_90 = arith.constant 0.000000e+00 : f32
    %303 = vector.broadcast %cst_90 : f32 to vector<16x128xf32>
    %304 = vector.extract_strided_slice %302 {offsets = [0, 0, 0, 0], sizes = [1, 2, 8, 32], strides = [1, 1, 1, 1]} : vector<4x2x8x32xf32> to vector<1x2x8x32xf32>
    %305 = vector.shape_cast %304 : vector<1x2x8x32xf32> to vector<2x8x32xf32>
    %306 = vector.shape_cast %305 : vector<2x8x32xf32> to vector<16x32xf32>
    %307 = vector.extract_strided_slice %215 {offsets = [0, 0, 0], sizes = [1, 32, 128], strides = [1, 1, 1]} : vector<4x32x128xbf16> to vector<1x32x128xbf16>
    %308 = vector.shape_cast %307 : vector<1x32x128xbf16> to vector<32x128xbf16>
    %309 = arith.truncf %306 : vector<16x32xf32> to vector<16x32xbf16>
    %cst_91 = arith.constant dense<0.000000e+00> : vector<16x128xf32>
    %310 = tpu.matmul %309, %308, %cst_91 {dimension_numbers = #tpu.dot_dimension_numbers<[1], [0], [0], [1], [0, 0, 1, 1], [], []>} : vector<16x32xbf16>, vector<32x128xbf16>, vector<16x128xf32> -> vector<16x128xf32>
    %311 = arith.addf %303, %310 : vector<16x128xf32>
    %312 = vector.extract_strided_slice %302 {offsets = [1, 0, 0, 0], sizes = [1, 2, 8, 32], strides = [1, 1, 1, 1]} : vector<4x2x8x32xf32> to vector<1x2x8x32xf32>
    %313 = vector.shape_cast %312 : vector<1x2x8x32xf32> to vector<2x8x32xf32>
    %314 = vector.shape_cast %313 : vector<2x8x32xf32> to vector<16x32xf32>
    %315 = vector.extract_strided_slice %215 {offsets = [1, 0, 0], sizes = [1, 32, 128], strides = [1, 1, 1]} : vector<4x32x128xbf16> to vector<1x32x128xbf16>
    %316 = vector.shape_cast %315 : vector<1x32x128xbf16> to vector<32x128xbf16>
    %317 = arith.truncf %314 : vector<16x32xf32> to vector<16x32xbf16>
    %cst_92 = arith.constant dense<0.000000e+00> : vector<16x128xf32>
    %318 = tpu.matmul %317, %316, %cst_92 {dimension_numbers = #tpu.dot_dimension_numbers<[1], [0], [0], [1], [0, 0, 1, 1], [], []>} : vector<16x32xbf16>, vector<32x128xbf16>, vector<16x128xf32> -> vector<16x128xf32>
    %319 = arith.addf %311, %318 : vector<16x128xf32>
    %320 = vector.extract_strided_slice %302 {offsets = [2, 0, 0, 0], sizes = [1, 2, 8, 32], strides = [1, 1, 1, 1]} : vector<4x2x8x32xf32> to vector<1x2x8x32xf32>
    %321 = vector.shape_cast %320 : vector<1x2x8x32xf32> to vector<2x8x32xf32>
    %322 = vector.shape_cast %321 : vector<2x8x32xf32> to vector<16x32xf32>
    %323 = vector.extract_strided_slice %215 {offsets = [2, 0, 0], sizes = [1, 32, 128], strides = [1, 1, 1]} : vector<4x32x128xbf16> to vector<1x32x128xbf16>
    %324 = vector.shape_cast %323 : vector<1x32x128xbf16> to vector<32x128xbf16>
    %325 = arith.truncf %322 : vector<16x32xf32> to vector<16x32xbf16>
    %cst_93 = arith.constant dense<0.000000e+00> : vector<16x128xf32>
    %326 = tpu.matmul %325, %324, %cst_93 {dimension_numbers = #tpu.dot_dimension_numbers<[1], [0], [0], [1], [0, 0, 1, 1], [], []>} : vector<16x32xbf16>, vector<32x128xbf16>, vector<16x128xf32> -> vector<16x128xf32>
    %327 = arith.addf %319, %326 : vector<16x128xf32>
    %328 = vector.extract_strided_slice %302 {offsets = [3, 0, 0, 0], sizes = [1, 2, 8, 32], strides = [1, 1, 1, 1]} : vector<4x2x8x32xf32> to vector<1x2x8x32xf32>
    %329 = vector.shape_cast %328 : vector<1x2x8x32xf32> to vector<2x8x32xf32>
    %330 = vector.shape_cast %329 : vector<2x8x32xf32> to vector<16x32xf32>
    %331 = vector.extract_strided_slice %215 {offsets = [3, 0, 0], sizes = [1, 32, 128], strides = [1, 1, 1]} : vector<4x32x128xbf16> to vector<1x32x128xbf16>
    %332 = vector.shape_cast %331 : vector<1x32x128xbf16> to vector<32x128xbf16>
    %333 = arith.truncf %330 : vector<16x32xf32> to vector<16x32xbf16>
    %cst_94 = arith.constant dense<0.000000e+00> : vector<16x128xf32>
    %334 = tpu.matmul %333, %332, %cst_94 {dimension_numbers = #tpu.dot_dimension_numbers<[1], [0], [0], [1], [0, 0, 1, 1], [], []>} : vector<16x32xbf16>, vector<32x128xbf16>, vector<16x128xf32> -> vector<16x128xf32>
    %335 = arith.addf %327, %334 : vector<16x128xf32>
    %336 = vector.broadcast %216 : vector<1x128xf32> to vector<16x128xf32>
    %337 = arith.addf %335, %336 : vector<16x128xf32>
    %338 = vector.shape_cast %337 : vector<16x128xf32> to vector<2x8x128xf32>
    %339 = arith.addf %188, %338 : vector<2x8x128xf32>
    %cst_95 = arith.constant dense<0.000000e+00> : vector<2x8xf32>
    %340 = vector.multi_reduction <add>, %339, %cst_95 [2] : vector<2x8x128xf32> to vector<2x8xf32>
    %341 = vector.shape_cast %340 : vector<2x8xf32> to vector<2x8x1xf32>
    %cst_96 = arith.constant 1.280000e+02 : f32
    %342 = vector.broadcast %cst_96 : f32 to vector<2x8x1xf32>
    %343 = arith.divf %341, %342 : vector<2x8x1xf32>
    %344 = vector.broadcast %343 : vector<2x8x1xf32> to vector<2x8x128xf32>
    %345 = arith.subf %339, %344 : vector<2x8x128xf32>
    %346 = arith.mulf %345, %345 : vector<2x8x128xf32>
    %cst_97 = arith.constant dense<0.000000e+00> : vector<2x8xf32>
    %347 = vector.multi_reduction <add>, %346, %cst_97 [2] : vector<2x8x128xf32> to vector<2x8xf32>
    %348 = vector.shape_cast %347 : vector<2x8xf32> to vector<2x8x1xf32>
    %cst_98 = arith.constant 1.280000e+02 : f32
    %349 = vector.broadcast %cst_98 : f32 to vector<2x8x1xf32>
    %350 = arith.divf %348, %349 : vector<2x8x1xf32>
    %351 = vector.broadcast %343 : vector<2x8x1xf32> to vector<2x8x128xf32>
    %352 = arith.subf %339, %351 : vector<2x8x128xf32>
    %cst_99 = arith.constant 9.99999997E-7 : f32
    %353 = vector.broadcast %cst_99 : f32 to vector<2x8x1xf32>
    %354 = arith.addf %350, %353 : vector<2x8x1xf32>
    %355 = math.rsqrt %354 : vector<2x8x1xf32>
    %356 = vector.broadcast %355 : vector<2x8x1xf32> to vector<2x8x128xf32>
    %357 = arith.mulf %352, %356 : vector<2x8x128xf32>
    %cst_100 = arith.constant 1.000000e+00 : f32
    %358 = vector.broadcast %cst_100 : f32 to vector<2x1x128xf32>
    %359 = arith.addf %358, %27 : vector<2x1x128xf32>
    %360 = vector.broadcast %359 : vector<2x1x128xf32> to vector<2x8x128xf32>
    %361 = arith.mulf %357, %360 : vector<2x8x128xf32>
    %362 = vector.broadcast %25 : vector<2x1x128xf32> to vector<2x8x128xf32>
    %363 = arith.addf %361, %362 : vector<2x8x128xf32>
    %364 = vector.shape_cast %363 : vector<2x8x128xf32> to vector<16x128xf32>
    %c0_101 = arith.constant 0 : index
    %c0_102 = arith.constant 0 : index
    %365 = vector.load %arg26[%c0_101, %c0_102] : memref<128x512xbf16, #tpu.memory_space<vmem>>, vector<128x512xbf16>
    %366 = arith.truncf %364 : vector<16x128xf32> to vector<16x128xbf16>
    %cst_103 = arith.constant dense<0.000000e+00> : vector<16x512xf32>
    %367 = tpu.matmul %366, %365, %cst_103 {dimension_numbers = #tpu.dot_dimension_numbers<[1], [0], [0], [1], [0, 0, 1, 1], [], []>} : vector<16x128xbf16>, vector<128x512xbf16>, vector<16x512xf32> -> vector<16x512xf32>
    %c0_104 = arith.constant 0 : index
    %c0_105 = arith.constant 0 : index
    %368 = vector.load %arg27[%c0_104, %c0_105] : memref<1x512xf32, #tpu.memory_space<vmem>>, vector<1x512xf32>
    %369 = vector.broadcast %368 : vector<1x512xf32> to vector<16x512xf32>
    %370 = arith.addf %367, %369 : vector<16x512xf32>
    %cst_106 = arith.constant 5.000000e-01 : f32
    %371 = vector.broadcast %cst_106 : f32 to vector<16x512xf32>
    %372 = arith.mulf %371, %370 : vector<16x512xf32>
    %cst_107 = arith.constant 4.471500e-02 : f32
    %373 = vector.broadcast %cst_107 : f32 to vector<16x512xf32>
    %374 = arith.mulf %373, %370 : vector<16x512xf32>
    %375 = arith.mulf %374, %370 : vector<16x512xf32>
    %376 = arith.mulf %375, %370 : vector<16x512xf32>
    %377 = arith.addf %370, %376 : vector<16x512xf32>
    %cst_108 = arith.constant 0.797884583 : f32
    %378 = vector.broadcast %cst_108 : f32 to vector<16x512xf32>
    %379 = arith.mulf %378, %377 : vector<16x512xf32>
    %380 = math.tanh %379 : vector<16x512xf32>
    %cst_109 = arith.constant 1.000000e+00 : f32
    %381 = vector.broadcast %cst_109 : f32 to vector<16x512xf32>
    %382 = arith.addf %381, %380 : vector<16x512xf32>
    %383 = arith.mulf %372, %382 : vector<16x512xf32>
    %c0_110 = arith.constant 0 : index
    %c0_111 = arith.constant 0 : index
    %384 = vector.load %arg28[%c0_110, %c0_111] : memref<512x128xbf16, #tpu.memory_space<vmem>>, vector<512x128xbf16>
    %385 = arith.truncf %383 : vector<16x512xf32> to vector<16x512xbf16>
    %cst_112 = arith.constant dense<0.000000e+00> : vector<16x128xf32>
    %386 = tpu.matmul %385, %384, %cst_112 {dimension_numbers = #tpu.dot_dimension_numbers<[1], [0], [0], [1], [0, 0, 1, 1], [], []>} : vector<16x512xbf16>, vector<512x128xbf16>, vector<16x128xf32> -> vector<16x128xf32>
    %c0_113 = arith.constant 0 : index
    %c0_114 = arith.constant 0 : index
    %387 = vector.load %arg29[%c0_113, %c0_114] : memref<1x128xf32, #tpu.memory_space<vmem>>, vector<1x128xf32>
    %388 = vector.broadcast %387 : vector<1x128xf32> to vector<16x128xf32>
    %389 = arith.addf %386, %388 : vector<16x128xf32>
    %390 = vector.shape_cast %389 : vector<16x128xf32> to vector<2x8x128xf32>
    %391 = vector.broadcast %29 : vector<2x1x128xf32> to vector<2x8x128xf32>
    %392 = arith.mulf %391, %390 : vector<2x8x128xf32>
    %393 = arith.addf %339, %392 : vector<2x8x128xf32>
    %c0_115 = arith.constant 0 : index
    %c0_116 = arith.constant 0 : index
    %c0_117 = arith.constant 0 : index
    %394 = vector.load %arg30[%c0_115, %c0_116, %c0_117] : memref<2x8x128xf32, #tpu.memory_space<vmem>>, vector<2x8x128xf32>
    tpu.vector_store %arg30[%c0_115, %c0_116, %c0_117], %393 {strides = array<i32>} : memref<2x8x128xf32, #tpu.memory_space<vmem>>, vector<2x8x128xf32>,
    return
  }
  func.func @transform_0(%arg0: i32) -> (i32, i32, i32) {
    %c0_i32 = arith.constant 0 : i32
    %c0_i32_0 = arith.constant 0 : i32
    %c0_i32_1 = arith.constant 0 : i32
    return %arg0, %c0_i32, %c0_i32_0 : i32, i32, i32
  }
  func.func @transform_1(%arg0: i32) -> (i32, i32, i32) {
    %c0_i32 = arith.constant 0 : i32
    %c0_i32_0 = arith.constant 0 : i32
    %c0_i32_1 = arith.constant 0 : i32
    return %arg0, %c0_i32, %c0_i32_0 : i32, i32, i32
  }
  func.func @transform_2(%arg0: i32) -> (i32, i32) {
    %c0_i32 = arith.constant 0 : i32
    %c0_i32_0 = arith.constant 0 : i32
    %c0_i32_1 = arith.constant 0 : i32
    return %c0_i32, %c0_i32_0 : i32, i32
  }
  func.func @transform_3(%arg0: i32) -> (i32, i32) {
    %c0_i32 = arith.constant 0 : i32
    %c0_i32_0 = arith.constant 0 : i32
    %c0_i32_1 = arith.constant 0 : i32
    return %c0_i32, %c0_i32_0 : i32, i32
  }
  func.func @transform_4(%arg0: i32) -> (i32, i32) {
    %c0_i32 = arith.constant 0 : i32
    %c0_i32_0 = arith.constant 0 : i32
    %c0_i32_1 = arith.constant 0 : i32
    return %c0_i32, %c0_i32_0 : i32, i32
  }
  func.func @transform_5(%arg0: i32) -> (i32, i32) {
    %c0_i32 = arith.constant 0 : i32
    %c0_i32_0 = arith.constant 0 : i32
    %c0_i32_1 = arith.constant 0 : i32
    return %c0_i32, %c0_i32_0 : i32, i32
  }
  func.func @transform_6(%arg0: i32) -> (i32, i32) {
    %c0_i32 = arith.constant 0 : i32
    %c0_i32_0 = arith.constant 0 : i32
    %c0_i32_1 = arith.constant 0 : i32
    return %c0_i32, %c0_i32_0 : i32, i32
  }
  func.func @transform_7(%arg0: i32) -> (i32, i32) {
    %c0_i32 = arith.constant 0 : i32
    %c0_i32_0 = arith.constant 0 : i32
    %c0_i32_1 = arith.constant 0 : i32
    return %c0_i32, %c0_i32_0 : i32, i32
  }
  func.func @transform_8(%arg0: i32) -> (i32, i32) {
    %c0_i32 = arith.constant 0 : i32
    %c0_i32_0 = arith.constant 0 : i32
    %c0_i32_1 = arith.constant 0 : i32
    return %c0_i32, %c0_i32_0 : i32, i32
  }
  func.func @transform_9(%arg0: i32) -> (i32, i32) {
    %c0_i32 = arith.constant 0 : i32
    %c0_i32_0 = arith.constant 0 : i32
    %c0_i32_1 = arith.constant 0 : i32
    return %c0_i32, %c0_i32_0 : i32, i32
  }
  func.func @transform_10(%arg0: i32) -> (i32, i32) {
    %c0_i32 = arith.constant 0 : i32
    %c0_i32_0 = arith.constant 0 : i32
    %c0_i32_1 = arith.constant 0 : i32
    return %c0_i32, %c0_i32_0 : i32, i32
  }
  func.func @transform_11(%arg0: i32) -> (i32, i32) {
    %c0_i32 = arith.constant 0 : i32
    %c0_i32_0 = arith.constant 0 : i32
    %c0_i32_1 = arith.constant 0 : i32
    return %c0_i32, %c0_i32_0 : i32, i32
  }
  func.func @transform_12(%arg0: i32) -> (i32, i32) {
    %c0_i32 = arith.constant 0 : i32
    %c0_i32_0 = arith.constant 0 : i32
    %c0_i32_1 = arith.constant 0 : i32
    return %c0_i32, %c0_i32_0 : i32, i32
  }
  func.func @transform_13(%arg0: i32) -> (i32, i32, i32) {
    %c0_i32 = arith.constant 0 : i32
    %c0_i32_0 = arith.constant 0 : i32
    %c0_i32_1 = arith.constant 0 : i32
    %c0_i32_2 = arith.constant 0 : i32
    return %c0_i32, %c0_i32_0, %c0_i32_1 : i32, i32, i32
  }
  func.func @transform_14(%arg0: i32) -> (i32, i32) {
    %c0_i32 = arith.constant 0 : i32
    %c0_i32_0 = arith.constant 0 : i32
    %c0_i32_1 = arith.constant 0 : i32
    return %c0_i32, %c0_i32_0 : i32, i32
  }
  func.func @transform_15(%arg0: i32) -> (i32, i32) {
    %c0_i32 = arith.constant 0 : i32
    %c0_i32_0 = arith.constant 0 : i32
    %c0_i32_1 = arith.constant 0 : i32
    return %c0_i32, %c0_i32_0 : i32, i32
  }
  func.func @transform_16(%arg0: i32) -> (i32, i32) {
    %c0_i32 = arith.constant 0 : i32
    %c0_i32_0 = arith.constant 0 : i32
    %c0_i32_1 = arith.constant 0 : i32
    return %c0_i32, %c0_i32_0 : i32, i32
  }
  func.func @transform_17(%arg0: i32) -> (i32, i32) {
    %c0_i32 = arith.constant 0 : i32
    %c0_i32_0 = arith.constant 0 : i32
    %c0_i32_1 = arith.constant 0 : i32
    return %c0_i32, %c0_i32_0 : i32, i32
  }
  func.func @transform_18(%arg0: i32) -> (i32, i32) {
    %c0_i32 = arith.constant 0 : i32
    %c0_i32_0 = arith.constant 0 : i32
    %c0_i32_1 = arith.constant 0 : i32
    return %c0_i32, %c0_i32_0 : i32, i32
  }
  func.func @transform_19(%arg0: i32) -> (i32, i32) {
    %c0_i32 = arith.constant 0 : i32
    %c0_i32_0 = arith.constant 0 : i32
    %c0_i32_1 = arith.constant 0 : i32
    return %c0_i32, %c0_i32_0 : i32, i32
  }
  func.func @transform_20(%arg0: i32) -> (i32, i32) {
    %c0_i32 = arith.constant 0 : i32
    %c0_i32_0 = arith.constant 0 : i32
    %c0_i32_1 = arith.constant 0 : i32
    return %c0_i32, %c0_i32_0 : i32, i32
  }
  func.func @transform_21(%arg0: i32) -> (i32, i32) {
    %c0_i32 = arith.constant 0 : i32
    %c0_i32_0 = arith.constant 0 : i32
    %c0_i32_1 = arith.constant 0 : i32
    return %c0_i32, %c0_i32_0 : i32, i32
  }
  func.func @transform_22(%arg0: i32) -> (i32, i32) {
    %c0_i32 = arith.constant 0 : i32
    %c0_i32_0 = arith.constant 0 : i32
    %c0_i32_1 = arith.constant 0 : i32
    return %c0_i32, %c0_i32_0 : i32, i32
  }
  func.func @transform_23(%arg0: i32) -> (i32, i32, i32) {
    %c0_i32 = arith.constant 0 : i32
    %c0_i32_0 = arith.constant 0 : i32
    %c0_i32_1 = arith.constant 0 : i32
    %c0_i32_2 = arith.constant 0 : i32
    return %c0_i32, %c0_i32_0, %c0_i32_1 : i32, i32, i32
  }
  func.func @transform_24(%arg0: i32) -> (i32, i32) {
    %c0_i32 = arith.constant 0 : i32
    %c0_i32_0 = arith.constant 0 : i32
    %c0_i32_1 = arith.constant 0 : i32
    return %c0_i32, %c0_i32_0 : i32, i32
  }
  func.func @transform_25(%arg0: i32) -> (i32, i32) {
    %c0_i32 = arith.constant 0 : i32
    %c0_i32_0 = arith.constant 0 : i32
    %c0_i32_1 = arith.constant 0 : i32
    return %c0_i32, %c0_i32_0 : i32, i32
  }
  func.func @transform_26(%arg0: i32) -> (i32, i32) {
    %c0_i32 = arith.constant 0 : i32
    %c0_i32_0 = arith.constant 0 : i32
    %c0_i32_1 = arith.constant 0 : i32
    return %c0_i32, %c0_i32_0 : i32, i32
  }
  func.func @transform_27(%arg0: i32) -> (i32, i32) {
    %c0_i32 = arith.constant 0 : i32
    %c0_i32_0 = arith.constant 0 : i32
    %c0_i32_1 = arith.constant 0 : i32
    return %c0_i32, %c0_i32_0 : i32, i32
  }
  func.func @transform_28(%arg0: i32) -> (i32, i32) {
    %c0_i32 = arith.constant 0 : i32
    %c0_i32_0 = arith.constant 0 : i32
    %c0_i32_1 = arith.constant 0 : i32
    return %c0_i32, %c0_i32_0 : i32, i32
  }
  func.func @transform_29(%arg0: i32) -> (i32, i32, i32) {
    %c0_i32 = arith.constant 0 : i32
    %c0_i32_0 = arith.constant 0 : i32
    %c0_i32_1 = arith.constant 0 : i32
    return %arg0, %c0_i32, %c0_i32_0 : i32, i32, i32
  }
}

</mosaic_0001>

<llo_original>
// kernel: tpu_custom_call.1
$region0: #{tpu_custom_call.1}
  #allocation0 [shape = 'u32[]', space=smem, size = 0x4, offset = 0x4, fixed_abs, tag = 'smem constant byte address 0x4 - core index']
  #allocation1 [shape = 'u32[144,128]{1,0:T(1,128)}', space=vmem, size = 0x12000, scoped, tag = 'internal scratch']
  %s0 = inlined_call_operand.smem [shape: u32[30], index: -1, kind: input, shape index: {}]
  %s1 = sld [smem:[%s0]]
  %s2 = scalar_lea.smem %s0, 1
  %s3 = sld [smem:[%s2]]
  %s4 = scalar_lea.smem %s0, 2
  %s5 = sld [smem:[%s4]]
  %s6 = scalar_lea.smem %s0, 3
  %s7 = sld [smem:[%s6]]
  %s8 = scalar_lea.smem %s0, 4
  %s9 = sld [smem:[%s8]]
  %s10 = scalar_lea.smem %s0, 5
  %s11 = sld [smem:[%s10]]
  %s12 = scalar_lea.smem %s0, 6
  %s13 = sld [smem:[%s12]]
  %s14 = scalar_lea.smem %s0, 7
  %s15 = sld [smem:[%s14]]
  %s16 = scalar_lea.smem %s0, 8
  %s17 = sld [smem:[%s16]]
  %s18 = scalar_lea.smem %s0, 9
  %s19 = sld [smem:[%s18]]
  %s20 = scalar_lea.smem %s0, 10
  %s21 = sld [smem:[%s20]]
  %s22 = scalar_lea.smem %s0, 11
  %s23 = sld [smem:[%s22]]
  %s24 = scalar_lea.smem %s0, 12
  %s25 = sld [smem:[%s24]]
  %s26 = scalar_lea.smem %s0, 13
  %s27 = sld [smem:[%s26]]
  %s28 = scalar_lea.smem %s0, 14
  %s29 = sld [smem:[%s28]]
  %s30 = scalar_lea.smem %s0, 15
  %s31 = sld [smem:[%s30]]
  %s32 = scalar_lea.smem %s0, 16
  %s33 = sld [smem:[%s32]]
  %s34 = scalar_lea.smem %s0, 17
  %s35 = sld [smem:[%s34]]
  %s36 = scalar_lea.smem %s0, 18
  %s37 = sld [smem:[%s36]]
  %s38 = scalar_lea.smem %s0, 19
  %s39 = sld [smem:[%s38]]
  %s40 = scalar_lea.smem %s0, 20
  %s41 = sld [smem:[%s40]]
  %s42 = scalar_lea.smem %s0, 21
  %s43 = sld [smem:[%s42]]
  %s44 = scalar_lea.smem %s0, 22
  %s45 = sld [smem:[%s44]]
  %s46 = scalar_lea.smem %s0, 23
  %s47 = sld [smem:[%s46]]
  %s48 = scalar_lea.smem %s0, 24
  %s49 = sld [smem:[%s48]]
  %s50 = scalar_lea.smem %s0, 25
  %s51 = sld [smem:[%s50]]
  %s52 = scalar_lea.smem %s0, 26
  %s53 = sld [smem:[%s52]]
  %s54 = scalar_lea.smem %s0, 27
  %s55 = sld [smem:[%s54]]
  %s56 = scalar_lea.smem %s0, 28
  %s57 = sld [smem:[%s56]]
  %s58 = scalar_lea.smem %s0, 29
  %s59 = sld [smem:[%s58]]
  %s60 = sld [smem:[#allocation0]]
  $region233: #{tpu_custom_call.1} parent=0
    _
  %s62 = ssub.s32 1, %s60
  %s63 = scalar_select 0, %s62, %s60
  $region1: #{tpu_custom_call.1} parent=0
    #allocation2 [shape = 'u8[16384]{0}', space=vmem, size = 0x4000, scoped, tag = 'input window, operand 0']
    #allocation3 [shape = 's32[2]{0}', space=sflag, size = 0x8, scoped, tag = 'scoped memory for tpu_custom_call.1']
    #allocation4 [shape = 's32[2]{0}', space=sflag, size = 0x8, scoped, tag = 'scoped memory for tpu_custom_call.1']
    #allocation5 [shape = 'u8[16384]{0}', space=vmem, size = 0x4000, scoped, tag = 'input window, operand 1']
    #allocation6 [shape = 's32[2]{0}', space=sflag, size = 0x8, scoped, tag = 'scoped memory for tpu_custom_call.1']
    #allocation7 [shape = 'u8[2048]{0}', space=vmem, size = 0x800, scoped, tag = 'input window, operand 2, single buffered']
    #allocation8 [shape = 'u8[196608]{0}', space=vmem, size = 0x30000, scoped, tag = 'input window, operand 3, single buffered']
    #allocation9 [shape = 's32[1]{0}', space=sflag, size = 0x4, scoped, tag = 'scoped memory for tpu_custom_call.1']
    #allocation10 [shape = 'u8[3072]{0}', space=vmem, size = 0xc00, scoped, tag = 'input window, operand 4, single buffered']
    #allocation11 [shape = 'u8[32768]{0}', space=vmem, size = 0x8000, scoped, tag = 'input window, operand 5, single buffered']
    #allocation12 [shape = 's32[1]{0}', space=sflag, size = 0x4, scoped, tag = 'scoped memory for tpu_custom_call.1']
    #allocation13 [shape = 'u8[32768]{0}', space=vmem, size = 0x8000, scoped, tag = 'input window, operand 6, single buffered']
    #allocation14 [shape = 'u8[32768]{0}', space=vmem, size = 0x8000, scoped, tag = 'input window, operand 7, single buffered']
    #allocation15 [shape = 's32[1]{0}', space=sflag, size = 0x4, scoped, tag = 'scoped memory for tpu_custom_call.1']
    #allocation16 [shape = 'u8[512]{0}', space=vmem, size = 0x400, scoped, tag = 'input window, operand 8, single buffered']
    #allocation17 [shape = 'u8[512]{0}', space=vmem, size = 0x400, scoped, tag = 'input window, operand 9, single buffered']
    #allocation18 [shape = 's32[1]{0}', space=sflag, size = 0x4, scoped, tag = 'scoped memory for tpu_custom_call.1']
    #allocation19 [shape = 'u8[512]{0}', space=vmem, size = 0x400, scoped, tag = 'input window, operand 10, single buffered']
    #allocation20 [shape = 'u8[2048]{0}', space=vmem, size = 0x800, scoped, tag = 'input window, operand 11, single buffered']
    #allocation21 [shape = 's32[1]{0}', space=sflag, size = 0x4, scoped, tag = 'scoped memory for tpu_custom_call.1']
    #allocation22 [shape = 'u8[2048]{0}', space=vmem, size = 0x800, scoped, tag = 'input window, operand 12, single buffered']
    #allocation23 [shape = 'u8[32768]{0}', space=vmem, size = 0x8000, scoped, tag = 'input window, operand 13, single buffered']
    #allocation24 [shape = 's32[1]{0}', space=sflag, size = 0x4, scoped, tag = 'scoped memory for tpu_custom_call.1']
    #allocation25 [shape = 'u8[512]{0}', space=vmem, size = 0x400, scoped, tag = 'input window, operand 14, single buffered']
    #allocation26 [shape = 'u8[32768]{0}', space=vmem, size = 0x8000, scoped, tag = 'input window, operand 15, single buffered']
    #allocation27 [shape = 's32[1]{0}', space=sflag, size = 0x4, scoped, tag = 'scoped memory for tpu_custom_call.1']
    #allocation28 [shape = 'u8[32768]{0}', space=vmem, size = 0x8000, scoped, tag = 'input window, operand 16, single buffered']
    #allocation29 [shape = 'u8[512]{0}', space=vmem, size = 0x400, scoped, tag = 'input window, operand 18, single buffered']
    #allocation30 [shape = 's32[1]{0}', space=sflag, size = 0x4, scoped, tag = 'scoped memory for tpu_custom_call.1']
    #allocation31 [shape = 'u8[32768]{0}', space=vmem, size = 0x8000, scoped, tag = 'input window, operand 23, single buffered']
    #allocation32 [shape = 'u8[131072]{0}', space=vmem, size = 0x20000, scoped, tag = 'input window, operand 25, single buffered']
    #allocation33 [shape = 's32[1]{0}', space=sflag, size = 0x4, scoped, tag = 'scoped memory for tpu_custom_call.1']
    #allocation34 [shape = 'u8[131072]{0}', space=vmem, size = 0x20000, scoped, tag = 'input window, operand 27, single buffered']
    #allocation35 [shape = 'u8[16384]{0}', space=vmem, size = 0x4000, scoped, tag = 'output window, operand 0']
    %64 = vsyncpa [#allocation3], 0
    %s65 = scalar_lea.sflag [#allocation3], 1
    %66 = vsyncpa %s65, 0
    %67 = vsyncpa [#allocation6], 0
    %s68 = scalar_lea.sflag [#allocation6], 1
    %69 = vsyncpa %s68, 0
    %70 = vsyncpa [#allocation9], 0
    %71 = vsyncpa [#allocation12], 0
    %72 = vsyncpa [#allocation15], 0
    %73 = vsyncpa [#allocation18], 0
    %74 = vsyncpa [#allocation21], 0
    %75 = vsyncpa [#allocation24], 0
    %76 = vsyncpa [#allocation27], 0
    %77 = vsyncpa [#allocation30], 0
    %78 = vsyncpa [#allocation33], 0
    %79 = vsyncpa [#allocation4], 0
    %s80 = scalar_lea.sflag [#allocation4], 1
    %81 = vsyncpa %s80, 0
    loop: start=0, step=1, limit=4
    $region2: #{tpu_custom_call.1} parent=1 // loop_pre_header
      _
    $region3: #{tpu_custom_call.1} parent=1 // loop_header
      %s83 = sphi 0, %s87
      %p84 = scmp.ge.s32.totalorder %s83, 4
      %s93 = sphi 0, %s95
      %s96 = sphi 0, %s93
      %s97 = sphi 0, %s96
      %s113 = sphi 0, %s97
      %s119 = sphi 0, %s121
      %s122 = sphi 0, %s119
      %s123 = sphi 0, %s122
      %s139 = sphi 0, %s123
      %s143 = sphi 0, %s143
      %s145 = sphi 0, %s143
      %s146 = sphi 0, %s145
      %s160 = sphi 0, %s146
      %s164 = sphi 0, %s164
      %s166 = sphi 0, %s164
      %s167 = sphi 0, %s166
      %s181 = sphi 0, %s167
      %s185 = sphi 0, %s185
      %s187 = sphi 0, %s185
      %s188 = sphi 0, %s187
      %s202 = sphi 0, %s188
      %s206 = sphi 0, %s206
      %s208 = sphi 0, %s206
      %s209 = sphi 0, %s208
      %s223 = sphi 0, %s209
      %s227 = sphi 0, %s227
      %s229 = sphi 0, %s227
      %s230 = sphi 0, %s229
      %s244 = sphi 0, %s230
      %s248 = sphi 0, %s248
      %s250 = sphi 0, %s248
      %s251 = sphi 0, %s250
      %s265 = sphi 0, %s251
      %s269 = sphi 0, %s269
      %s271 = sphi 0, %s269
      %s272 = sphi 0, %s271
      %s286 = sphi 0, %s272
      %s290 = sphi 0, %s290
      %s292 = sphi 0, %s290
      %s293 = sphi 0, %s292
      %s307 = sphi 0, %s293
      %s311 = sphi 0, %s311
      %s313 = sphi 0, %s311
      %s314 = sphi 0, %s313
      %s328 = sphi 0, %s314
      %s332 = sphi 0, %s332
      %s334 = sphi 0, %s332
      %s335 = sphi 0, %s334
      %s349 = sphi 0, %s335
      %s353 = sphi 0, %s353
      %s355 = sphi 0, %s353
      %s356 = sphi 0, %s355
      %s370 = sphi 0, %s356
      %s374 = sphi 0, %s374
      %s376 = sphi 0, %s374
      %s377 = sphi 0, %s376
      %s391 = sphi 0, %s377
      %s395 = sphi 0, %s395
      %s397 = sphi 0, %s395
      %s398 = sphi 0, %s397
      %s412 = sphi 0, %s398
      %s416 = sphi 0, %s416
      %s418 = sphi 0, %s416
      %s419 = sphi 0, %s418
      %s433 = sphi 0, %s419
      %s437 = sphi 0, %s437
      %s439 = sphi 0, %s437
      %s440 = sphi 0, %s439
      %s454 = sphi 0, %s440
      %s458 = sphi 0, %s458
      %s460 = sphi 0, %s458
      %s461 = sphi 0, %s460
      %s475 = sphi 0, %s461
      %s479 = sphi 0, %s479
      %s481 = sphi 0, %s479
      %s482 = sphi 0, %s481
      %s496 = sphi 0, %s482
      %s500 = sphi 0, %s500
      %s502 = sphi 0, %s500
      %s503 = sphi 0, %s502
      %s517 = sphi 0, %s503
      %s521 = sphi 0, %s521
      %s523 = sphi 0, %s521
      %s524 = sphi 0, %s523
      %s538 = sphi 0, %s524
      %s542 = sphi 0, %s542
      %s544 = sphi 0, %s542
      %s545 = sphi 0, %s544
      %s559 = sphi 0, %s545
      %s563 = sphi 0, %s563
      %s565 = sphi 0, %s563
      %s566 = sphi 0, %s565
      %s580 = sphi 0, %s566
      %s584 = sphi 0, %s584
      %s586 = sphi 0, %s584
      %s587 = sphi 0, %s586
      %s601 = sphi 0, %s587
      %s605 = sphi 0, %s605
      %s607 = sphi 0, %s605
      %s608 = sphi 0, %s607
      %s622 = sphi 0, %s608
      %s626 = sphi 0, %s626
      %s628 = sphi 0, %s626
      %s629 = sphi 0, %s628
      %s643 = sphi 0, %s629
      %s647 = sphi 0, %s647
      %s649 = sphi 0, %s647
      %s650 = sphi 0, %s649
      %s664 = sphi 0, %s650
      %s668 = sphi 0, %s668
      %s670 = sphi 0, %s668
      %s671 = sphi 0, %s670
      %s685 = sphi 0, %s671
      %s689 = sphi 0, %s689
      %s691 = sphi 0, %s689
      %s692 = sphi 0, %s691
      %s706 = sphi 0, %s692
      %s712 = sphi 0, %s714
      %s715 = sphi 0, %s712
      %s716 = sphi 0, %s715
      %s732 = sphi 0, %s716
    $region4: #{tpu_custom_call.1} parent=1 // loop_header_branch
      %86 = sbr.rel (%p84) target = $region8
    $region5: #{tpu_custom_call.1} parent=1 // loop_body
      %s88 = ssub.s32 %s83, 1
      %s89 = ssub.s32 %s83, 2
      %s90 = sadd.s32 %s83, 1
      %s91 = ssub.s32 %s83, %s90
      %p92 = scmp.eq.s32.totalorder %s91, 0
      %s94 = sadd.s32 %s93, 1
      %s95 = scalar_select %p92, %s93, %s94
      %p98 = pneg %p92
      %p99 = scmp.eq.s32.totalorder %s83, 1
      %p100 = por %p98, %p99
      %p101 = scmp.ne.s32.totalorder %s93, %s96
      %p102 = scmp.eq.s32.totalorder %s83, 0
      %p103 = por %p101, %p102
      %p104 = scmp.ne.s32.totalorder %s93, %s96
      %p105 = scmp.eq.s32.totalorder %s88, 1
      %p106 = por %p104, %p105
      %p107 = scmp.ne.s32.totalorder %s96, %s97
      %p108 = scmp.eq.s32.totalorder %s88, 0
      %p109 = por %p107, %p108
      %p110 = scmp.ne.s32.totalorder %s96, %s97
      %p111 = scmp.eq.s32.totalorder %s89, 1
      %p112 = por %p110, %p111
      %p114 = scmp.ne.s32.totalorder %s97, %s113
      %p115 = scmp.eq.s32.totalorder %s89, 0
      %p116 = por %p114, %p115
      %s117 = ssub.s32 %s83, %s90
      %p118 = scmp.eq.s32.totalorder %s117, 0
      %s120 = sadd.s32 %s119, 1
      %s121 = scalar_select %p118, %s119, %s120
      %p124 = pneg %p118
      %p125 = scmp.eq.s32.totalorder %s83, 1
      %p126 = por %p124, %p125
      %p127 = scmp.ne.s32.totalorder %s119, %s122
      %p128 = scmp.eq.s32.totalorder %s83, 0
      %p129 = por %p127, %p128
      %p130 = scmp.ne.s32.totalorder %s119, %s122
      %p131 = scmp.eq.s32.totalorder %s88, 1
      %p132 = por %p130, %p131
      %p133 = scmp.ne.s32.totalorder %s122, %s123
      %p134 = scmp.eq.s32.totalorder %s88, 0
      %p135 = por %p133, %p134
      %p136 = scmp.ne.s32.totalorder %s122, %s123
      %p137 = scmp.eq.s32.totalorder %s89, 1
      %p138 = por %p136, %p137
      %p140 = scmp.ne.s32.totalorder %s123, %s139
      %p141 = scmp.eq.s32.totalorder %s89, 0
      %p142 = por %p140, %p141
      %s144 = sadd.s32 %s143, 1
      %p147 = scmp.eq.s32.totalorder %s83, 1
      %p148 = scmp.ne.s32.totalorder %s143, %s145
      %p149 = scmp.eq.s32.totalorder %s83, 0
      %p150 = por %p148, %p149
      %p151 = scmp.ne.s32.totalorder %s143, %s145
      %p152 = scmp.eq.s32.totalorder %s88, 1
      %p153 = por %p151, %p152
      %p154 = scmp.ne.s32.totalorder %s145, %s146
      %p155 = scmp.eq.s32.totalorder %s88, 0
      %p156 = por %p154, %p155
      %p157 = scmp.ne.s32.totalorder %s145, %s146
      %p158 = scmp.eq.s32.totalorder %s89, 1
      %p159 = por %p157, %p158
      %p161 = scmp.ne.s32.totalorder %s146, %s160
      %p162 = scmp.eq.s32.totalorder %s89, 0
      %p163 = por %p161, %p162
      %s165 = sadd.s32 %s164, 1
      %p168 = scmp.eq.s32.totalorder %s83, 1
      %p169 = scmp.ne.s32.totalorder %s164, %s166
      %p170 = scmp.eq.s32.totalorder %s83, 0
      %p171 = por %p169, %p170
      %p172 = scmp.ne.s32.totalorder %s164, %s166
      %p173 = scmp.eq.s32.totalorder %s88, 1
      %p174 = por %p172, %p173
      %p175 = scmp.ne.s32.totalorder %s166, %s167
      %p176 = scmp.eq.s32.totalorder %s88, 0
      %p177 = por %p175, %p176
      %p178 = scmp.ne.s32.totalorder %s166, %s167
      %p179 = scmp.eq.s32.totalorder %s89, 1
      %p180 = por %p178, %p179
      %p182 = scmp.ne.s32.totalorder %s167, %s181
      %p183 = scmp.eq.s32.totalorder %s89, 0
      %p184 = por %p182, %p183
      %s186 = sadd.s32 %s185, 1
      %p189 = scmp.eq.s32.totalorder %s83, 1
      %p190 = scmp.ne.s32.totalorder %s185, %s187
      %p191 = scmp.eq.s32.totalorder %s83, 0
      %p192 = por %p190, %p191
      %p193 = scmp.ne.s32.totalorder %s185, %s187
      %p194 = scmp.eq.s32.totalorder %s88, 1
      %p195 = por %p193, %p194
      %p196 = scmp.ne.s32.totalorder %s187, %s188
      %p197 = scmp.eq.s32.totalorder %s88, 0
      %p198 = por %p196, %p197
      %p199 = scmp.ne.s32.totalorder %s187, %s188
      %p200 = scmp.eq.s32.totalorder %s89, 1
      %p201 = por %p199, %p200
      %p203 = scmp.ne.s32.totalorder %s188, %s202
      %p204 = scmp.eq.s32.totalorder %s89, 0
      %p205 = por %p203, %p204
      %s207 = sadd.s32 %s206, 1
      %p210 = scmp.eq.s32.totalorder %s83, 1
      %p211 = scmp.ne.s32.totalorder %s206, %s208
      %p212 = scmp.eq.s32.totalorder %s83, 0
      %p213 = por %p211, %p212
      %p214 = scmp.ne.s32.totalorder %s206, %s208
      %p215 = scmp.eq.s32.totalorder %s88, 1
      %p216 = por %p214, %p215
      %p217 = scmp.ne.s32.totalorder %s208, %s209
      %p218 = scmp.eq.s32.totalorder %s88, 0
      %p219 = por %p217, %p218
      %p220 = scmp.ne.s32.totalorder %s208, %s209
      %p221 = scmp.eq.s32.totalorder %s89, 1
      %p222 = por %p220, %p221
      %p224 = scmp.ne.s32.totalorder %s209, %s223
      %p225 = scmp.eq.s32.totalorder %s89, 0
      %p226 = por %p224, %p225
      %s228 = sadd.s32 %s227, 1
      %p231 = scmp.eq.s32.totalorder %s83, 1
      %p232 = scmp.ne.s32.totalorder %s227, %s229
      %p233 = scmp.eq.s32.totalorder %s83, 0
      %p234 = por %p232, %p233
      %p235 = scmp.ne.s32.totalorder %s227, %s229
      %p236 = scmp.eq.s32.totalorder %s88, 1
      %p237 = por %p235, %p236
      %p238 = scmp.ne.s32.totalorder %s229, %s230
      %p239 = scmp.eq.s32.totalorder %s88, 0
      %p240 = por %p238, %p239
      %p241 = scmp.ne.s32.totalorder %s229, %s230
      %p242 = scmp.eq.s32.totalorder %s89, 1
      %p243 = por %p241, %p242
      %p245 = scmp.ne.s32.totalorder %s230, %s244
      %p246 = scmp.eq.s32.totalorder %s89, 0
      %p247 = por %p245, %p246
      %s249 = sadd.s32 %s248, 1
      %p252 = scmp.eq.s32.totalorder %s83, 1
      %p253 = scmp.ne.s32.totalorder %s248, %s250
      %p254 = scmp.eq.s32.totalorder %s83, 0
      %p255 = por %p253, %p254
      %p256 = scmp.ne.s32.totalorder %s248, %s250
      %p257 = scmp.eq.s32.totalorder %s88, 1
      %p258 = por %p256, %p257
      %p259 = scmp.ne.s32.totalorder %s250, %s251
      %p260 = scmp.eq.s32.totalorder %s88, 0
      %p261 = por %p259, %p260
      %p262 = scmp.ne.s32.totalorder %s250, %s251
      %p263 = scmp.eq.s32.totalorder %s89, 1
      %p264 = por %p262, %p263
      %p266 = scmp.ne.s32.totalorder %s251, %s265
      %p267 = scmp.eq.s32.totalorder %s89, 0
      %p268 = por %p266, %p267
      %s270 = sadd.s32 %s269, 1
      %p273 = scmp.eq.s32.totalorder %s83, 1
      %p274 = scmp.ne.s32.totalorder %s269, %s271
      %p275 = scmp.eq.s32.totalorder %s83, 0
      %p276 = por %p274, %p275
      %p277 = scmp.ne.s32.totalorder %s269, %s271
      %p278 = scmp.eq.s32.totalorder %s88, 1
      %p279 = por %p277, %p278
      %p280 = scmp.ne.s32.totalorder %s271, %s272
      %p281 = scmp.eq.s32.totalorder %s88, 0
      %p282 = por %p280, %p281
      %p283 = scmp.ne.s32.totalorder %s271, %s272
      %p284 = scmp.eq.s32.totalorder %s89, 1
      %p285 = por %p283, %p284
      %p287 = scmp.ne.s32.totalorder %s272, %s286
      %p288 = scmp.eq.s32.totalorder %s89, 0
      %p289 = por %p287, %p288
      %s291 = sadd.s32 %s290, 1
      %p294 = scmp.eq.s32.totalorder %s83, 1
      %p295 = scmp.ne.s32.totalorder %s290, %s292
      %p296 = scmp.eq.s32.totalorder %s83, 0
      %p297 = por %p295, %p296
      %p298 = scmp.ne.s32.totalorder %s290, %s292
      %p299 = scmp.eq.s32.totalorder %s88, 1
      %p300 = por %p298, %p299
      %p301 = scmp.ne.s32.totalorder %s292, %s293
      %p302 = scmp.eq.s32.totalorder %s88, 0
      %p303 = por %p301, %p302
      %p304 = scmp.ne.s32.totalorder %s292, %s293
      %p305 = scmp.eq.s32.totalorder %s89, 1
      %p306 = por %p304, %p305
      %p308 = scmp.ne.s32.totalorder %s293, %s307
      %p309 = scmp.eq.s32.totalorder %s89, 0
      %p310 = por %p308, %p309
      %s312 = sadd.s32 %s311, 1
      %p315 = scmp.eq.s32.totalorder %s83, 1
      %p316 = scmp.ne.s32.totalorder %s311, %s313
      %p317 = scmp.eq.s32.totalorder %s83, 0
      %p318 = por %p316, %p317
      %p319 = scmp.ne.s32.totalorder %s311, %s313
      %p320 = scmp.eq.s32.totalorder %s88, 1
      %p321 = por %p319, %p320
      %p322 = scmp.ne.s32.totalorder %s313, %s314
      %p323 = scmp.eq.s32.totalorder %s88, 0
      %p324 = por %p322, %p323
      %p325 = scmp.ne.s32.totalorder %s313, %s314
      %p326 = scmp.eq.s32.totalorder %s89, 1
      %p327 = por %p325, %p326
      %p329 = scmp.ne.s32.totalorder %s314, %s328
      %p330 = scmp.eq.s32.totalorder %s89, 0
      %p331 = por %p329, %p330
      %s333 = sadd.s32 %s332, 1
      %p336 = scmp.eq.s32.totalorder %s83, 1
      %p337 = scmp.ne.s32.totalorder %s332, %s334
      %p338 = scmp.eq.s32.totalorder %s83, 0
      %p339 = por %p337, %p338
      %p340 = scmp.ne.s32.totalorder %s332, %s334
      %p341 = scmp.eq.s32.totalorder %s88, 1
      %p342 = por %p340, %p341
      %p343 = scmp.ne.s32.totalorder %s334, %s335
      %p344 = scmp.eq.s32.totalorder %s88, 0
      %p345 = por %p343, %p344
      %p346 = scmp.ne.s32.totalorder %s334, %s335
      %p347 = scmp.eq.s32.totalorder %s89, 1
      %p348 = por %p346, %p347
      %p350 = scmp.ne.s32.totalorder %s335, %s349
      %p351 = scmp.eq.s32.totalorder %s89, 0
      %p352 = por %p350, %p351
      %s354 = sadd.s32 %s353, 1
      %p357 = scmp.eq.s32.totalorder %s83, 1
      %p358 = scmp.ne.s32.totalorder %s353, %s355
      %p359 = scmp.eq.s32.totalorder %s83, 0
      %p360 = por %p358, %p359
      %p361 = scmp.ne.s32.totalorder %s353, %s355
      %p362 = scmp.eq.s32.totalorder %s88, 1
      %p363 = por %p361, %p362
      %p364 = scmp.ne.s32.totalorder %s355, %s356
      %p365 = scmp.eq.s32.totalorder %s88, 0
      %p366 = por %p364, %p365
      %p367 = scmp.ne.s32.totalorder %s355, %s356
      %p368 = scmp.eq.s32.totalorder %s89, 1
      %p369 = por %p367, %p368
      %p371 = scmp.ne.s32.totalorder %s356, %s370
      %p372 = scmp.eq.s32.totalorder %s89, 0
      %p373 = por %p371, %p372
      %s375 = sadd.s32 %s374, 1
      %p378 = scmp.eq.s32.totalorder %s83, 1
      %p379 = scmp.ne.s32.totalorder %s374, %s376
      %p380 = scmp.eq.s32.totalorder %s83, 0
      %p381 = por %p379, %p380
      %p382 = scmp.ne.s32.totalorder %s374, %s376
      %p383 = scmp.eq.s32.totalorder %s88, 1
      %p384 = por %p382, %p383
      %p385 = scmp.ne.s32.totalorder %s376, %s377
      %p386 = scmp.eq.s32.totalorder %s88, 0
      %p387 = por %p385, %p386
      %p388 = scmp.ne.s32.totalorder %s376, %s377
      %p389 = scmp.eq.s32.totalorder %s89, 1
      %p390 = por %p388, %p389
      %p392 = scmp.ne.s32.totalorder %s377, %s391
      %p393 = scmp.eq.s32.totalorder %s89, 0
      %p394 = por %p392, %p393
      %s396 = sadd.s32 %s395, 1
      %p399 = scmp.eq.s32.totalorder %s83, 1
      %p400 = scmp.ne.s32.totalorder %s395, %s397
      %p401 = scmp.eq.s32.totalorder %s83, 0
      %p402 = por %p400, %p401
      %p403 = scmp.ne.s32.totalorder %s395, %s397
      %p404 = scmp.eq.s32.totalorder %s88, 1
      %p405 = por %p403, %p404
      %p406 = scmp.ne.s32.totalorder %s397, %s398
      %p407 = scmp.eq.s32.totalorder %s88, 0
      %p408 = por %p406, %p407
      %p409 = scmp.ne.s32.totalorder %s397, %s398
      %p410 = scmp.eq.s32.totalorder %s89, 1
      %p411 = por %p409, %p410
      %p413 = scmp.ne.s32.totalorder %s398, %s412
      %p414 = scmp.eq.s32.totalorder %s89, 0
      %p415 = por %p413, %p414
      %s417 = sadd.s32 %s416, 1
      %p420 = scmp.eq.s32.totalorder %s83, 1
      %p421 = scmp.ne.s32.totalorder %s416, %s418
      %p422 = scmp.eq.s32.totalorder %s83, 0
      %p423 = por %p421, %p422
      %p424 = scmp.ne.s32.totalorder %s416, %s418
      %p425 = scmp.eq.s32.totalorder %s88, 1
      %p426 = por %p424, %p425
      %p427 = scmp.ne.s32.totalorder %s418, %s419
      %p428 = scmp.eq.s32.totalorder %s88, 0
      %p429 = por %p427, %p428
      %p430 = scmp.ne.s32.totalorder %s418, %s419
      %p431 = scmp.eq.s32.totalorder %s89, 1
      %p432 = por %p430, %p431
      %p434 = scmp.ne.s32.totalorder %s419, %s433
      %p435 = scmp.eq.s32.totalorder %s89, 0
      %p436 = por %p434, %p435
      %s438 = sadd.s32 %s437, 1
      %p441 = scmp.eq.s32.totalorder %s83, 1
      %p442 = scmp.ne.s32.totalorder %s437, %s439
      %p443 = scmp.eq.s32.totalorder %s83, 0
      %p444 = por %p442, %p443
      %p445 = scmp.ne.s32.totalorder %s437, %s439
      %p446 = scmp.eq.s32.totalorder %s88, 1
      %p447 = por %p445, %p446
      %p448 = scmp.ne.s32.totalorder %s439, %s440
      %p449 = scmp.eq.s32.totalorder %s88, 0
      %p450 = por %p448, %p449
      %p451 = scmp.ne.s32.totalorder %s439, %s440
      %p452 = scmp.eq.s32.totalorder %s89, 1
      %p453 = por %p451, %p452
      %p455 = scmp.ne.s32.totalorder %s440, %s454
      %p456 = scmp.eq.s32.totalorder %s89, 0
      %p457 = por %p455, %p456
      %s459 = sadd.s32 %s458, 1
      %p462 = scmp.eq.s32.totalorder %s83, 1
      %p463 = scmp.ne.s32.totalorder %s458, %s460
      %p464 = scmp.eq.s32.totalorder %s83, 0
      %p465 = por %p463, %p464
      %p466 = scmp.ne.s32.totalorder %s458, %s460
      %p467 = scmp.eq.s32.totalorder %s88, 1
      %p468 = por %p466, %p467
      %p469 = scmp.ne.s32.totalorder %s460, %s461
      %p470 = scmp.eq.s32.totalorder %s88, 0
      %p471 = por %p469, %p470
      %p472 = scmp.ne.s32.totalorder %s460, %s461
      %p473 = scmp.eq.s32.totalorder %s89, 1
      %p474 = por %p472, %p473
      %p476 = scmp.ne.s32.totalorder %s461, %s475
      %p477 = scmp.eq.s32.totalorder %s89, 0
      %p478 = por %p476, %p477
      %s480 = sadd.s32 %s479, 1
      %p483 = scmp.eq.s32.totalorder %s83, 1
      %p484 = scmp.ne.s32.totalorder %s479, %s481
      %p485 = scmp.eq.s32.totalorder %s83, 0
      %p486 = por %p484, %p485
      %p487 = scmp.ne.s32.totalorder %s479, %s481
      %p488 = scmp.eq.s32.totalorder %s88, 1
      %p489 = por %p487, %p488
      %p490 = scmp.ne.s32.totalorder %s481, %s482
      %p491 = scmp.eq.s32.totalorder %s88, 0
      %p492 = por %p490, %p491
      %p493 = scmp.ne.s32.totalorder %s481, %s482
      %p494 = scmp.eq.s32.totalorder %s89, 1
      %p495 = por %p493, %p494
      %p497 = scmp.ne.s32.totalorder %s482, %s496
      %p498 = scmp.eq.s32.totalorder %s89, 0
      %p499 = por %p497, %p498
      %s501 = sadd.s32 %s500, 1
      %p504 = scmp.eq.s32.totalorder %s83, 1
      %p505 = scmp.ne.s32.totalorder %s500, %s502
      %p506 = scmp.eq.s32.totalorder %s83, 0
      %p507 = por %p505, %p506
      %p508 = scmp.ne.s32.totalorder %s500, %s502
      %p509 = scmp.eq.s32.totalorder %s88, 1
      %p510 = por %p508, %p509
      %p511 = scmp.ne.s32.totalorder %s502, %s503
      %p512 = scmp.eq.s32.totalorder %s88, 0
      %p513 = por %p511, %p512
      %p514 = scmp.ne.s32.totalorder %s502, %s503
      %p515 = scmp.eq.s32.totalorder %s89, 1
      %p516 = por %p514, %p515
      %p518 = scmp.ne.s32.totalorder %s503, %s517
      %p519 = scmp.eq.s32.totalorder %s89, 0
      %p520 = por %p518, %p519
      %s522 = sadd.s32 %s521, 1
      %p525 = scmp.eq.s32.totalorder %s83, 1
      %p526 = scmp.ne.s32.totalorder %s521, %s523
      %p527 = scmp.eq.s32.totalorder %s83, 0
      %p528 = por %p526, %p527
      %p529 = scmp.ne.s32.totalorder %s521, %s523
      %p530 = scmp.eq.s32.totalorder %s88, 1
      %p531 = por %p529, %p530
      %p532 = scmp.ne.s32.totalorder %s523, %s524
      %p533 = scmp.eq.s32.totalorder %s88, 0
      %p534 = por %p532, %p533
      %p535 = scmp.ne.s32.totalorder %s523, %s524
      %p536 = scmp.eq.s32.totalorder %s89, 1
      %p537 = por %p535, %p536
      %p539 = scmp.ne.s32.totalorder %s524, %s538
      %p540 = scmp.eq.s32.totalorder %s89, 0
      %p541 = por %p539, %p540
      %s543 = sadd.s32 %s542, 1
      %p546 = scmp.eq.s32.totalorder %s83, 1
      %p547 = scmp.ne.s32.totalorder %s542, %s544
      %p548 = scmp.eq.s32.totalorder %s83, 0
      %p549 = por %p547, %p548
      %p550 = scmp.ne.s32.totalorder %s542, %s544
      %p551 = scmp.eq.s32.totalorder %s88, 1
      %p552 = por %p550, %p551
      %p553 = scmp.ne.s32.totalorder %s544, %s545
      %p554 = scmp.eq.s32.totalorder %s88, 0
      %p555 = por %p553, %p554
      %p556 = scmp.ne.s32.totalorder %s544, %s545
      %p557 = scmp.eq.s32.totalorder %s89, 1
      %p558 = por %p556, %p557
      %p560 = scmp.ne.s32.totalorder %s545, %s559
      %p561 = scmp.eq.s32.totalorder %s89, 0
      %p562 = por %p560, %p561
      %s564 = sadd.s32 %s563, 1
      %p567 = scmp.eq.s32.totalorder %s83, 1
      %p568 = scmp.ne.s32.totalorder %s563, %s565
      %p569 = scmp.eq.s32.totalorder %s83, 0
      %p570 = por %p568, %p569
      %p571 = scmp.ne.s32.totalorder %s563, %s565
      %p572 = scmp.eq.s32.totalorder %s88, 1
      %p573 = por %p571, %p572
      %p574 = scmp.ne.s32.totalorder %s565, %s566
      %p575 = scmp.eq.s32.totalorder %s88, 0
      %p576 = por %p574, %p575
      %p577 = scmp.ne.s32.totalorder %s565, %s566
      %p578 = scmp.eq.s32.totalorder %s89, 1
      %p579 = por %p577, %p578
      %p581 = scmp.ne.s32.totalorder %s566, %s580
      %p582 = scmp.eq.s32.totalorder %s89, 0
      %p583 = por %p581, %p582
      %s585 = sadd.s32 %s584, 1
      %p588 = scmp.eq.s32.totalorder %s83, 1
      %p589 = scmp.ne.s32.totalorder %s584, %s586
      %p590 = scmp.eq.s32.totalorder %s83, 0
      %p591 = por %p589, %p590
      %p592 = scmp.ne.s32.totalorder %s584, %s586
      %p593 = scmp.eq.s32.totalorder %s88, 1
      %p594 = por %p592, %p593
      %p595 = scmp.ne.s32.totalorder %s586, %s587
      %p596 = scmp.eq.s32.totalorder %s88, 0
      %p597 = por %p595, %p596
      %p598 = scmp.ne.s32.totalorder %s586, %s587
      %p599 = scmp.eq.s32.totalorder %s89, 1
      %p600 = por %p598, %p599
      %p602 = scmp.ne.s32.totalorder %s587, %s601
      %p603 = scmp.eq.s32.totalorder %s89, 0
      %p604 = por %p602, %p603
      %s606 = sadd.s32 %s605, 1
      %p609 = scmp.eq.s32.totalorder %s83, 1
      %p610 = scmp.ne.s32.totalorder %s605, %s607
      %p611 = scmp.eq.s32.totalorder %s83, 0
      %p612 = por %p610, %p611
      %p613 = scmp.ne.s32.totalorder %s605, %s607
      %p614 = scmp.eq.s32.totalorder %s88, 1
      %p615 = por %p613, %p614
      %p616 = scmp.ne.s32.totalorder %s607, %s608
      %p617 = scmp.eq.s32.totalorder %s88, 0
      %p618 = por %p616, %p617
      %p619 = scmp.ne.s32.totalorder %s607, %s608
      %p620 = scmp.eq.s32.totalorder %s89, 1
      %p621 = por %p619, %p620
      %p623 = scmp.ne.s32.totalorder %s608, %s622
      %p624 = scmp.eq.s32.totalorder %s89, 0
      %p625 = por %p623, %p624
      %s627 = sadd.s32 %s626, 1
      %p630 = scmp.eq.s32.totalorder %s83, 1
      %p631 = scmp.ne.s32.totalorder %s626, %s628
      %p632 = scmp.eq.s32.totalorder %s83, 0
      %p633 = por %p631, %p632
      %p634 = scmp.ne.s32.totalorder %s626, %s628
      %p635 = scmp.eq.s32.totalorder %s88, 1
      %p636 = por %p634, %p635
      %p637 = scmp.ne.s32.totalorder %s628, %s629
      %p638 = scmp.eq.s32.totalorder %s88, 0
      %p639 = por %p637, %p638
      %p640 = scmp.ne.s32.totalorder %s628, %s629
      %p641 = scmp.eq.s32.totalorder %s89, 1
      %p642 = por %p640, %p641
      %p644 = scmp.ne.s32.totalorder %s629, %s643
      %p645 = scmp.eq.s32.totalorder %s89, 0
      %p646 = por %p644, %p645
      %s648 = sadd.s32 %s647, 1
      %p651 = scmp.eq.s32.totalorder %s83, 1
      %p652 = scmp.ne.s32.totalorder %s647, %s649
      %p653 = scmp.eq.s32.totalorder %s83, 0
      %p654 = por %p652, %p653
      %p655 = scmp.ne.s32.totalorder %s647, %s649
      %p656 = scmp.eq.s32.totalorder %s88, 1
      %p657 = por %p655, %p656
      %p658 = scmp.ne.s32.totalorder %s649, %s650
      %p659 = scmp.eq.s32.totalorder %s88, 0
      %p660 = por %p658, %p659
      %p661 = scmp.ne.s32.totalorder %s649, %s650
      %p662 = scmp.eq.s32.totalorder %s89, 1
      %p663 = por %p661, %p662
      %p665 = scmp.ne.s32.totalorder %s650, %s664
      %p666 = scmp.eq.s32.totalorder %s89, 0
      %p667 = por %p665, %p666
      %s669 = sadd.s32 %s668, 1
      %p672 = scmp.eq.s32.totalorder %s83, 1
      %p673 = scmp.ne.s32.totalorder %s668, %s670
      %p674 = scmp.eq.s32.totalorder %s83, 0
      %p675 = por %p673, %p674
      %p676 = scmp.ne.s32.totalorder %s668, %s670
      %p677 = scmp.eq.s32.totalorder %s88, 1
      %p678 = por %p676, %p677
      %p679 = scmp.ne.s32.totalorder %s670, %s671
      %p680 = scmp.eq.s32.totalorder %s88, 0
      %p681 = por %p679, %p680
      %p682 = scmp.ne.s32.totalorder %s670, %s671
      %p683 = scmp.eq.s32.totalorder %s89, 1
      %p684 = por %p682, %p683
      %p686 = scmp.ne.s32.totalorder %s671, %s685
      %p687 = scmp.eq.s32.totalorder %s89, 0
      %p688 = por %p686, %p687
      %s690 = sadd.s32 %s689, 1
      %p693 = scmp.eq.s32.totalorder %s83, 1
      %p694 = scmp.ne.s32.totalorder %s689, %s691
      %p695 = scmp.eq.s32.totalorder %s83, 0
      %p696 = por %p694, %p695
      %p697 = scmp.ne.s32.totalorder %s689, %s691
      %p698 = scmp.eq.s32.totalorder %s88, 1
      %p699 = por %p697, %p698
      %p700 = scmp.ne.s32.totalorder %s691, %s692
      %p701 = scmp.eq.s32.totalorder %s88, 0
      %p702 = por %p700, %p701
      %p703 = scmp.ne.s32.totalorder %s691, %s692
      %p704 = scmp.eq.s32.totalorder %s89, 1
      %p705 = por %p703, %p704
      %p707 = scmp.ne.s32.totalorder %s692, %s706
      %p708 = scmp.eq.s32.totalorder %s89, 0
      %p709 = por %p707, %p708
      %s710 = ssub.s32 %s83, %s90
      %p711 = scmp.eq.s32.totalorder %s710, 0
      %s713 = sadd.s32 %s712, 1
      %s714 = scalar_select %p711, %s712, %s713
      %p717 = pneg %p711
      %p718 = scmp.eq.s32.totalorder %s83, 1
      %p719 = por %p717, %p718
      %p720 = scmp.ne.s32.totalorder %s712, %s715
      %p721 = scmp.eq.s32.totalorder %s83, 0
      %p722 = por %p720, %p721
      %p723 = scmp.ne.s32.totalorder %s712, %s715
      %p724 = scmp.eq.s32.totalorder %s88, 1
      %p725 = por %p723, %p724
      %p726 = scmp.ne.s32.totalorder %s715, %s716
      %p727 = scmp.eq.s32.totalorder %s88, 0
      %p728 = por %p726, %p727
      %p729 = scmp.ne.s32.totalorder %s715, %s716
      %p730 = scmp.eq.s32.totalorder %s89, 1
      %p731 = por %p729, %p730
      %p733 = scmp.ne.s32.totalorder %s716, %s732
      %p734 = scmp.eq.s32.totalorder %s89, 0
      %p735 = por %p733, %p734
      %p736 = scmp.le.s32.totalorder 1, %s83
      %p737 = scmp.lt.s32.totalorder %s83, 3
      %p738 = pnand %p736, %p737
      %p739 = pneg %p738
      // Predicated region
      $region9: #{tpu_custom_call.1} parent=5 // pred_check
        _
      $region10: #{tpu_custom_call.1} parent=5 // pred_check_branch
        %741 = sbr.rel (%p738) target = $region12
      $region11: #{tpu_custom_call.1} parent=5 // pred_region
        %s742 = ssub.s32 %s83, 1
        // Predicated region
        $region13: #{tpu_custom_call.1} parent=11 // pred_check
          %p743 = pneg %p156
        $region14: #{tpu_custom_call.1} parent=11 // pred_check_branch
          %745 = sbr.rel (%p743) target = $region16
        $region15: #{tpu_custom_call.1} parent=11 // pred_region
          %s747 = ssub.s32 64, 64
          %748 = vsyncadd [#allocation6], %s747
          %s750 = sshll.u32 [#allocation7], 4
          %s751 = int_to_ptr.vmem [resolvable:$true] %s750
          %753 = dma.hbm_to_vmem [thread:$0]  %s5, 64, %s751, [#allocation6]
        $region16: #{tpu_custom_call.1} parent=11 // pred_fallthru
          _
        // Predicated region
        $region17: #{tpu_custom_call.1} parent=11 // pred_check
          %p754 = pneg %p177
        $region18: #{tpu_custom_call.1} parent=11 // pred_check_branch
          %756 = sbr.rel (%p754) target = $region20
        $region19: #{tpu_custom_call.1} parent=11 // pred_region
          %s758 = ssub.s32 6144, 6144
          %759 = vsyncadd [#allocation9], %s758
          %s760 = sshll.u32 [#allocation8], 4
          %s761 = int_to_ptr.vmem [resolvable:$true] %s760
          %766 = dma.hbm_to_vmem [thread:$0]  %s7, 6144, %s761, [#allocation9], 384, 384, 24
        $region20: #{tpu_custom_call.1} parent=11 // pred_fallthru
          _
        // Predicated region
        $region21: #{tpu_custom_call.1} parent=11 // pred_check
          %p767 = pneg %p198
        $region22: #{tpu_custom_call.1} parent=11 // pred_check_branch
          %769 = sbr.rel (%p767) target = $region24
        $region23: #{tpu_custom_call.1} parent=11 // pred_region
          %s771 = ssub.s32 96, 96
          %772 = vsyncadd [#allocation9], %s771
          %s774 = sshll.u32 [#allocation10], 4
          %s775 = int_to_ptr.vmem [resolvable:$true] %s774
          %777 = dma.hbm_to_vmem [thread:$0]  %s9, 96, %s775, [#allocation9]
        $region24: #{tpu_custom_call.1} parent=11 // pred_fallthru
          _
        // Predicated region
        $region25: #{tpu_custom_call.1} parent=11 // pred_check
          %p778 = pneg %p219
        $region26: #{tpu_custom_call.1} parent=11 // pred_check_branch
          %780 = sbr.rel (%p778) target = $region28
        $region27: #{tpu_custom_call.1} parent=11 // pred_region
          %s782 = ssub.s32 1024, 1024
          %783 = vsyncadd [#allocation12], %s782
          %s784 = sshll.u32 [#allocation11], 4
          %s785 = int_to_ptr.vmem [resolvable:$true] %s784
          %790 = dma.hbm_to_vmem [thread:$0]  %s11, 1024, %s785, [#allocation12], 64, 64, 4
        $region28: #{tpu_custom_call.1} parent=11 // pred_fallthru
          _
        // Predicated region
        $region29: #{tpu_custom_call.1} parent=11 // pred_check
          %p791 = pneg %p240
        $region30: #{tpu_custom_call.1} parent=11 // pred_check_branch
          %793 = sbr.rel (%p791) target = $region32
        $region31: #{tpu_custom_call.1} parent=11 // pred_region
          %s795 = ssub.s32 1024, 1024
          %796 = vsyncadd [#allocation12], %s795
          %s797 = sshll.u32 [#allocation13], 4
          %s798 = int_to_ptr.vmem [resolvable:$true] %s797
          %803 = dma.hbm_to_vmem [thread:$0]  %s13, 1024, %s798, [#allocation12], 64, 64, 4
        $region32: #{tpu_custom_call.1} parent=11 // pred_fallthru
          _
        // Predicated region
        $region33: #{tpu_custom_call.1} parent=11 // pred_check
          %p804 = pneg %p261
        $region34: #{tpu_custom_call.1} parent=11 // pred_check_branch
          %806 = sbr.rel (%p804) target = $region36
        $region35: #{tpu_custom_call.1} parent=11 // pred_region
          %s808 = ssub.s32 1024, 1024
          %809 = vsyncadd [#allocation15], %s808
          %s810 = sshll.u32 [#allocation14], 4
          %s811 = int_to_ptr.vmem [resolvable:$true] %s810
          %816 = dma.hbm_to_vmem [thread:$0]  %s15, 1024, %s811, [#allocation15], 64, 64, 4
        $region36: #{tpu_custom_call.1} parent=11 // pred_fallthru
          _
        // Predicated region
        $region37: #{tpu_custom_call.1} parent=11 // pred_check
          %p817 = pneg %p282
        $region38: #{tpu_custom_call.1} parent=11 // pred_check_branch
          %819 = sbr.rel (%p817) target = $region40
        $region39: #{tpu_custom_call.1} parent=11 // pred_region
          %s821 = ssub.s32 16, 16
          %822 = vsyncadd [#allocation15], %s821
          %s824 = sshll.u32 [#allocation16], 4
          %s825 = int_to_ptr.vmem [resolvable:$true] %s824
          %827 = dma.hbm_to_vmem [thread:$0]  %s17, 16, %s825, [#allocation15]
        $region40: #{tpu_custom_call.1} parent=11 // pred_fallthru
          _
        // Predicated region
        $region41: #{tpu_custom_call.1} parent=11 // pred_check
          %p828 = pneg %p303
        $region42: #{tpu_custom_call.1} parent=11 // pred_check_branch
          %830 = sbr.rel (%p828) target = $region44
        $region43: #{tpu_custom_call.1} parent=11 // pred_region
          %s832 = ssub.s32 16, 16
          %833 = vsyncadd [#allocation18], %s832
          %s835 = sshll.u32 [#allocation17], 4
          %s836 = int_to_ptr.vmem [resolvable:$true] %s835
          %838 = dma.hbm_to_vmem [thread:$0]  %s19, 16, %s836, [#allocation18]
        $region44: #{tpu_custom_call.1} parent=11 // pred_fallthru
          _
        // Predicated region
        $region45: #{tpu_custom_call.1} parent=11 // pred_check
          %p839 = pneg %p324
        $region46: #{tpu_custom_call.1} parent=11 // pred_check_branch
          %841 = sbr.rel (%p839) target = $region48
        $region47: #{tpu_custom_call.1} parent=11 // pred_region
          %s843 = ssub.s32 16, 16
          %844 = vsyncadd [#allocation18], %s843
          %s846 = sshll.u32 [#allocation19], 4
          %s847 = int_to_ptr.vmem [resolvable:$true] %s846
          %849 = dma.hbm_to_vmem [thread:$0]  %s21, 16, %s847, [#allocation18]
        $region48: #{tpu_custom_call.1} parent=11 // pred_fallthru
          _
        // Predicated region
        $region49: #{tpu_custom_call.1} parent=11 // pred_check
          %p850 = pneg %p345
        $region50: #{tpu_custom_call.1} parent=11 // pred_check_branch
          %852 = sbr.rel (%p850) target = $region52
        $region51: #{tpu_custom_call.1} parent=11 // pred_region
          %s854 = ssub.s32 64, 64
          %855 = vsyncadd [#allocation21], %s854
          %s857 = sshll.u32 [#allocation20], 4
          %s858 = int_to_ptr.vmem [resolvable:$true] %s857
          %860 = dma.hbm_to_vmem [thread:$0]  %s23, 64, %s858, [#allocation21]
        $region52: #{tpu_custom_call.1} parent=11 // pred_fallthru
          _
        // Predicated region
        $region53: #{tpu_custom_call.1} parent=11 // pred_check
          %p861 = pneg %p366
        $region54: #{tpu_custom_call.1} parent=11 // pred_check_branch
          %863 = sbr.rel (%p861) target = $region56
        $region55: #{tpu_custom_call.1} parent=11 // pred_region
          %s865 = ssub.s32 64, 64
          %866 = vsyncadd [#allocation21], %s865
          %s868 = sshll.u32 [#allocation22], 4
          %s869 = int_to_ptr.vmem [resolvable:$true] %s868
          %871 = dma.hbm_to_vmem [thread:$0]  %s25, 64, %s869, [#allocation21]
        $region56: #{tpu_custom_call.1} parent=11 // pred_fallthru
          _
        // Predicated region
        $region57: #{tpu_custom_call.1} parent=11 // pred_check
          %p872 = pneg %p387
        $region58: #{tpu_custom_call.1} parent=11 // pred_check_branch
          %874 = sbr.rel (%p872) target = $region60
        $region59: #{tpu_custom_call.1} parent=11 // pred_region
          %s876 = ssub.s32 1024, 1024
          %877 = vsyncadd [#allocation24], %s876
          %s878 = sshll.u32 [#allocation23], 4
          %s879 = int_to_ptr.vmem [resolvable:$true] %s878
          %884 = dma.hbm_to_vmem [thread:$0]  %s27, 1024, %s879, [#allocation24], 64, 64, 4
        $region60: #{tpu_custom_call.1} parent=11 // pred_fallthru
          _
        // Predicated region
        $region61: #{tpu_custom_call.1} parent=11 // pred_check
          %p885 = pneg %p408
        $region62: #{tpu_custom_call.1} parent=11 // pred_check_branch
          %887 = sbr.rel (%p885) target = $region64
        $region63: #{tpu_custom_call.1} parent=11 // pred_region
          %s889 = ssub.s32 16, 16
          %890 = vsyncadd [#allocation24], %s889
          %s892 = sshll.u32 [#allocation25], 4
          %s893 = int_to_ptr.vmem [resolvable:$true] %s892
          %895 = dma.hbm_to_vmem [thread:$0]  %s29, 16, %s893, [#allocation24]
        $region64: #{tpu_custom_call.1} parent=11 // pred_fallthru
          _
        // Predicated region
        $region65: #{tpu_custom_call.1} parent=11 // pred_check
          %p896 = pneg %p429
        $region66: #{tpu_custom_call.1} parent=11 // pred_check_branch
          %898 = sbr.rel (%p896) target = $region68
        $region67: #{tpu_custom_call.1} parent=11 // pred_region
          %s900 = ssub.s32 1024, 1024
          %901 = vsyncadd [#allocation27], %s900
          %s902 = sshll.u32 [#allocation26], 4
          %s903 = int_to_ptr.vmem [resolvable:$true] %s902
          %908 = dma.hbm_to_vmem [thread:$0]  %s31, 1024, %s903, [#allocation27], 64, 64, 4
        $region68: #{tpu_custom_call.1} parent=11 // pred_fallthru
          _
        // Predicated region
        $region69: #{tpu_custom_call.1} parent=11 // pred_check
          %p909 = pneg %p450
        $region70: #{tpu_custom_call.1} parent=11 // pred_check_branch
          %911 = sbr.rel (%p909) target = $region72
        $region71: #{tpu_custom_call.1} parent=11 // pred_region
          %s913 = ssub.s32 1024, 1024
          %914 = vsyncadd [#allocation27], %s913
          %s915 = sshll.u32 [#allocation28], 4
          %s916 = int_to_ptr.vmem [resolvable:$true] %s915
          %921 = dma.hbm_to_vmem [thread:$0]  %s33, 1024, %s916, [#allocation27], 64, 64, 4
        $region72: #{tpu_custom_call.1} parent=11 // pred_fallthru
          _
        // Predicated region
        $region73: #{tpu_custom_call.1} parent=11 // pred_check
          %p922 = pneg %p471
        $region74: #{tpu_custom_call.1} parent=11 // pred_check_branch
          %924 = sbr.rel (%p922) target = $region76
        $region75: #{tpu_custom_call.1} parent=11 // pred_region
          _
        $region76: #{tpu_custom_call.1} parent=11 // pred_fallthru
          _
        // Predicated region
        $region77: #{tpu_custom_call.1} parent=11 // pred_check
          %p925 = pneg %p492
        $region78: #{tpu_custom_call.1} parent=11 // pred_check_branch
          %927 = sbr.rel (%p925) target = $region80
        $region79: #{tpu_custom_call.1} parent=11 // pred_region
          %s929 = ssub.s32 16, 16
          %930 = vsyncadd [#allocation30], %s929
          %s932 = sshll.u32 [#allocation29], 4
          %s933 = int_to_ptr.vmem [resolvable:$true] %s932
          %935 = dma.hbm_to_vmem [thread:$0]  %s37, 16, %s933, [#allocation30]
        $region80: #{tpu_custom_call.1} parent=11 // pred_fallthru
          _
        // Predicated region
        $region81: #{tpu_custom_call.1} parent=11 // pred_check
          %p936 = pneg %p513
        $region82: #{tpu_custom_call.1} parent=11 // pred_check_branch
          %938 = sbr.rel (%p936) target = $region84
        $region83: #{tpu_custom_call.1} parent=11 // pred_region
          _
        $region84: #{tpu_custom_call.1} parent=11 // pred_fallthru
          _
        // Predicated region
        $region85: #{tpu_custom_call.1} parent=11 // pred_check
          %p939 = pneg %p534
        $region86: #{tpu_custom_call.1} parent=11 // pred_check_branch
          %941 = sbr.rel (%p939) target = $region88
        $region87: #{tpu_custom_call.1} parent=11 // pred_region
          _
        $region88: #{tpu_custom_call.1} parent=11 // pred_fallthru
          _
        // Predicated region
        $region89: #{tpu_custom_call.1} parent=11 // pred_check
          %p942 = pneg %p555
        $region90: #{tpu_custom_call.1} parent=11 // pred_check_branch
          %944 = sbr.rel (%p942) target = $region92
        $region91: #{tpu_custom_call.1} parent=11 // pred_region
          _
        $region92: #{tpu_custom_call.1} parent=11 // pred_fallthru
          _
        // Predicated region
        $region93: #{tpu_custom_call.1} parent=11 // pred_check
          %p945 = pneg %p576
        $region94: #{tpu_custom_call.1} parent=11 // pred_check_branch
          %947 = sbr.rel (%p945) target = $region96
        $region95: #{tpu_custom_call.1} parent=11 // pred_region
          _
        $region96: #{tpu_custom_call.1} parent=11 // pred_fallthru
          _
        // Predicated region
        $region97: #{tpu_custom_call.1} parent=11 // pred_check
          %p948 = pneg %p597
        $region98: #{tpu_custom_call.1} parent=11 // pred_check_branch
          %950 = sbr.rel (%p948) target = $region100
        $region99: #{tpu_custom_call.1} parent=11 // pred_region
          %s952 = ssub.s32 1024, 1024
          %953 = vsyncadd [#allocation30], %s952
          %s954 = sshll.u32 [#allocation31], 4
          %s955 = int_to_ptr.vmem [resolvable:$true] %s954
          %960 = dma.hbm_to_vmem [thread:$0]  %s47, 1024, %s955, [#allocation30], 64, 64, 4
        $region100: #{tpu_custom_call.1} parent=11 // pred_fallthru
          _
        // Predicated region
        $region101: #{tpu_custom_call.1} parent=11 // pred_check
          %p961 = pneg %p618
        $region102: #{tpu_custom_call.1} parent=11 // pred_check_branch
          %963 = sbr.rel (%p961) target = $region104
        $region103: #{tpu_custom_call.1} parent=11 // pred_region
          _
        $region104: #{tpu_custom_call.1} parent=11 // pred_fallthru
          _
        // Predicated region
        $region105: #{tpu_custom_call.1} parent=11 // pred_check
          %p964 = pneg %p639
        $region106: #{tpu_custom_call.1} parent=11 // pred_check_branch
          %966 = sbr.rel (%p964) target = $region108
        $region107: #{tpu_custom_call.1} parent=11 // pred_region
          %s968 = ssub.s32 4096, 4096
          %969 = vsyncadd [#allocation33], %s968
          %s970 = sshll.u32 [#allocation32], 4
          %s971 = int_to_ptr.vmem [resolvable:$true] %s970
          %976 = dma.hbm_to_vmem [thread:$0]  %s51, 4096, %s971, [#allocation33], 256, 256, 16
        $region108: #{tpu_custom_call.1} parent=11 // pred_fallthru
          _
        // Predicated region
        $region109: #{tpu_custom_call.1} parent=11 // pred_check
          %p977 = pneg %p660
        $region110: #{tpu_custom_call.1} parent=11 // pred_check_branch
          %979 = sbr.rel (%p977) target = $region112
        $region111: #{tpu_custom_call.1} parent=11 // pred_region
          _
        $region112: #{tpu_custom_call.1} parent=11 // pred_fallthru
          _
        // Predicated region
        $region113: #{tpu_custom_call.1} parent=11 // pred_check
          %p980 = pneg %p681
        $region114: #{tpu_custom_call.1} parent=11 // pred_check_branch
          %982 = sbr.rel (%p980) target = $region116
        $region115: #{tpu_custom_call.1} parent=11 // pred_region
          %s984 = ssub.s32 4096, 4096
          %985 = vsyncadd [#allocation33], %s984
          %s986 = sshll.u32 [#allocation34], 4
          %s987 = int_to_ptr.vmem [resolvable:$true] %s986
          %992 = dma.hbm_to_vmem [thread:$0]  %s55, 4096, %s987, [#allocation33], 64, 64, 4
        $region116: #{tpu_custom_call.1} parent=11 // pred_fallthru
          _
        // Predicated region
        $region117: #{tpu_custom_call.1} parent=11 // pred_check
          %p993 = pneg %p702
        $region118: #{tpu_custom_call.1} parent=11 // pred_check_branch
          %995 = sbr.rel (%p993) target = $region120
        $region119: #{tpu_custom_call.1} parent=11 // pred_region
          _
        $region120: #{tpu_custom_call.1} parent=11 // pred_fallthru
          _
      $region12: #{tpu_custom_call.1} parent=5 // pred_fallthru
        _
      %p996 = scmp.lt.s32.totalorder %s83, 2
      // Predicated region
      $region121: #{tpu_custom_call.1} parent=5 // pred_check
        %p997 = pneg %p996
      $region122: #{tpu_custom_call.1} parent=5 // pred_check_branch
        %999 = sbr.rel (%p997) target = $region124
      $region123: #{tpu_custom_call.1} parent=5 // pred_region
        // Predicated region
        $region125: #{tpu_custom_call.1} parent=123 // pred_check
          %p1000 = pneg %p103
        $region126: #{tpu_custom_call.1} parent=123 // pred_check_branch
          %1002 = sbr.rel (%p1000) target = $region128
        $region127: #{tpu_custom_call.1} parent=123 // pred_region
          %s1003 = sand.u32 %s93, 1
          %s1004 = scalar_lea.sflag [#allocation3], %s1003
          %s1005 = sand.u32 %s93, 1
          %s1006 = smul.addr %s1005, 16
          %s1007 = scalar_lea.vmem [#allocation2], %s1006
          %s1008 = smul.u32 2, %s83
          %s1010 = ssub.s32 256, 256
          %1011 = vsyncadd %s1004, %s1010
          %s1012 = smul.addr %s1008, 128
          %s1013 = scalar_lea.hbm %s1, %s1012
          %s1014 = sshll.u32 %s1007, 4
          %s1015 = int_to_ptr.vmem [resolvable:$true] %s1014
          %1020 = dma.hbm_to_vmem [thread:$0]  %s1013, 256, %s1015, %s1004, 128, 128, 8
        $region128: #{tpu_custom_call.1} parent=123 // pred_fallthru
          _
        // Predicated region
        $region129: #{tpu_custom_call.1} parent=123 // pred_check
          %p1021 = pneg %p129
        $region130: #{tpu_custom_call.1} parent=123 // pred_check_branch
          %1023 = sbr.rel (%p1021) target = $region132
        $region131: #{tpu_custom_call.1} parent=123 // pred_region
          %s1024 = sand.u32 %s83, 1
          %s1025 = scalar_lea.sflag [#allocation6], %s1024
          %s1026 = sand.u32 %s119, 1
          %s1027 = smul.addr %s1026, 16
          %s1028 = scalar_lea.vmem [#allocation5], %s1027
          %s1029 = smul.u32 2, %s83
          %s1031 = ssub.s32 256, 256
          %1032 = vsyncadd %s1025, %s1031
          %s1033 = smul.addr %s1029, 128
          %s1034 = scalar_lea.hbm %s3, %s1033
          %s1035 = sshll.u32 %s1028, 4
          %s1036 = int_to_ptr.vmem [resolvable:$true] %s1035
          %1041 = dma.hbm_to_vmem [thread:$0]  %s1034, 256, %s1036, %s1025, 128, 128, 8
        $region132: #{tpu_custom_call.1} parent=123 // pred_fallthru
          _
      $region124: #{tpu_custom_call.1} parent=5 // pred_fallthru
        _
      %p1042 = scmp.le.s32.totalorder 1, %s83
      %p1043 = scmp.lt.s32.totalorder %s83, 3
      %p1044 = pnand %p1042, %p1043
      %p1045 = pneg %p1044
      // Predicated region
      $region133: #{tpu_custom_call.1} parent=5 // pred_check
        _
      $region134: #{tpu_custom_call.1} parent=5 // pred_check_branch
        %1047 = sbr.rel (%p1044) target = $region136
      $region135: #{tpu_custom_call.1} parent=5 // pred_region
        %s1048 = ssub.s32 %s83, 1
        %s1049 = sand.u32 %s96, 1
        %s1050 = scalar_lea.sflag [#allocation3], %s1049
        %s1051 = sand.u32 %s96, 1
        %s1052 = smul.addr %s1051, 16
        %s1053 = scalar_lea.vmem [#allocation2], %s1052
        // Predicated region
        $region137: #{tpu_custom_call.1} parent=135 // pred_check
          %p1054 = pneg %p109
        $region138: #{tpu_custom_call.1} parent=135 // pred_check_branch
          %1056 = sbr.rel (%p1054) target = $region140
        $region139: #{tpu_custom_call.1} parent=135 // pred_region
          %1057 = dma.done %s1050, 256
        $region140: #{tpu_custom_call.1} parent=135 // pred_fallthru
          _
        %s1058 = sand.u32 %s88, 1
        %s1059 = scalar_lea.sflag [#allocation6], %s1058
        %s1060 = sand.u32 %s122, 1
        %s1061 = smul.addr %s1060, 16
        %s1062 = scalar_lea.vmem [#allocation5], %s1061
        // Predicated region
        $region141: #{tpu_custom_call.1} parent=135 // pred_check
          %p1063 = pneg %p135
        $region142: #{tpu_custom_call.1} parent=135 // pred_check_branch
          %1065 = sbr.rel (%p1063) target = $region144
        $region143: #{tpu_custom_call.1} parent=135 // pred_region
          %1066 = dma.done %s1059, 256
        $region144: #{tpu_custom_call.1} parent=135 // pred_fallthru
          _
        // Predicated region
        $region145: #{tpu_custom_call.1} parent=135 // pred_check
          %p1067 = pneg %p156
        $region146: #{tpu_custom_call.1} parent=135 // pred_check_branch
          %1069 = sbr.rel (%p1067) target = $region148
        $region147: #{tpu_custom_call.1} parent=135 // pred_region
          %1070 = dma.done [#allocation6], 64
        $region148: #{tpu_custom_call.1} parent=135 // pred_fallthru
          _
        // Predicated region
        $region149: #{tpu_custom_call.1} parent=135 // pred_check
          %p1071 = pneg %p177
        $region150: #{tpu_custom_call.1} parent=135 // pred_check_branch
          %1073 = sbr.rel (%p1071) target = $region152
        $region151: #{tpu_custom_call.1} parent=135 // pred_region
          %1074 = dma.done [#allocation9], 6144
        $region152: #{tpu_custom_call.1} parent=135 // pred_fallthru
          _
        // Predicated region
        $region153: #{tpu_custom_call.1} parent=135 // pred_check
          %p1075 = pneg %p198
        $region154: #{tpu_custom_call.1} parent=135 // pred_check_branch
          %1077 = sbr.rel (%p1075) target = $region156
        $region155: #{tpu_custom_call.1} parent=135 // pred_region
          %1078 = dma.done [#allocation9], 96
        $region156: #{tpu_custom_call.1} parent=135 // pred_fallthru
          _
        // Predicated region
        $region157: #{tpu_custom_call.1} parent=135 // pred_check
          %p1079 = pneg %p219
        $region158: #{tpu_custom_call.1} parent=135 // pred_check_branch
          %1081 = sbr.rel (%p1079) target = $region160
        $region159: #{tpu_custom_call.1} parent=135 // pred_region
          %1082 = dma.done [#allocation12], 1024
        $region160: #{tpu_custom_call.1} parent=135 // pred_fallthru
          _
        // Predicated region
        $region161: #{tpu_custom_call.1} parent=135 // pred_check
          %p1083 = pneg %p240
        $region162: #{tpu_custom_call.1} parent=135 // pred_check_branch
          %1085 = sbr.rel (%p1083) target = $region164
        $region163: #{tpu_custom_call.1} parent=135 // pred_region
          %1086 = dma.done [#allocation12], 1024
        $region164: #{tpu_custom_call.1} parent=135 // pred_fallthru
          _
        // Predicated region
        $region165: #{tpu_custom_call.1} parent=135 // pred_check
          %p1087 = pneg %p261
        $region166: #{tpu_custom_call.1} parent=135 // pred_check_branch
          %1089 = sbr.rel (%p1087) target = $region168
        $region167: #{tpu_custom_call.1} parent=135 // pred_region
          %1090 = dma.done [#allocation15], 1024
        $region168: #{tpu_custom_call.1} parent=135 // pred_fallthru
          _
        // Predicated region
        $region169: #{tpu_custom_call.1} parent=135 // pred_check
          %p1091 = pneg %p282
        $region170: #{tpu_custom_call.1} parent=135 // pred_check_branch
          %1093 = sbr.rel (%p1091) target = $region172
        $region171: #{tpu_custom_call.1} parent=135 // pred_region
          %1094 = dma.done [#allocation15], 16
        $region172: #{tpu_custom_call.1} parent=135 // pred_fallthru
          _
        // Predicated region
        $region173: #{tpu_custom_call.1} parent=135 // pred_check
          %p1095 = pneg %p303
        $region174: #{tpu_custom_call.1} parent=135 // pred_check_branch
          %1097 = sbr.rel (%p1095) target = $region176
        $region175: #{tpu_custom_call.1} parent=135 // pred_region
          %1098 = dma.done [#allocation18], 16
        $region176: #{tpu_custom_call.1} parent=135 // pred_fallthru
          _
        // Predicated region
        $region177: #{tpu_custom_call.1} parent=135 // pred_check
          %p1099 = pneg %p324
        $region178: #{tpu_custom_call.1} parent=135 // pred_check_branch
          %1101 = sbr.rel (%p1099) target = $region180
        $region179: #{tpu_custom_call.1} parent=135 // pred_region
          %1102 = dma.done [#allocation18], 16
        $region180: #{tpu_custom_call.1} parent=135 // pred_fallthru
          _
        // Predicated region
        $region181: #{tpu_custom_call.1} parent=135 // pred_check
          %p1103 = pneg %p345
        $region182: #{tpu_custom_call.1} parent=135 // pred_check_branch
          %1105 = sbr.rel (%p1103) target = $region184
        $region183: #{tpu_custom_call.1} parent=135 // pred_region
          %1106 = dma.done [#allocation21], 64
        $region184: #{tpu_custom_call.1} parent=135 // pred_fallthru
          _
        // Predicated region
        $region185: #{tpu_custom_call.1} parent=135 // pred_check
          %p1107 = pneg %p366
        $region186: #{tpu_custom_call.1} parent=135 // pred_check_branch
          %1109 = sbr.rel (%p1107) target = $region188
        $region187: #{tpu_custom_call.1} parent=135 // pred_region
          %1110 = dma.done [#allocation21], 64
        $region188: #{tpu_custom_call.1} parent=135 // pred_fallthru
          _
        // Predicated region
        $region189: #{tpu_custom_call.1} parent=135 // pred_check
          %p1111 = pneg %p387
        $region190: #{tpu_custom_call.1} parent=135 // pred_check_branch
          %1113 = sbr.rel (%p1111) target = $region192
        $region191: #{tpu_custom_call.1} parent=135 // pred_region
          %1114 = dma.done [#allocation24], 1024
        $region192: #{tpu_custom_call.1} parent=135 // pred_fallthru
          _
        // Predicated region
        $region193: #{tpu_custom_call.1} parent=135 // pred_check
          %p1115 = pneg %p408
        $region194: #{tpu_custom_call.1} parent=135 // pred_check_branch
          %1117 = sbr.rel (%p1115) target = $region196
        $region195: #{tpu_custom_call.1} parent=135 // pred_region
          %1118 = dma.done [#allocation24], 16
        $region196: #{tpu_custom_call.1} parent=135 // pred_fallthru
          _
        // Predicated region
        $region197: #{tpu_custom_call.1} parent=135 // pred_check
          %p1119 = pneg %p429
        $region198: #{tpu_custom_call.1} parent=135 // pred_check_branch
          %1121 = sbr.rel (%p1119) target = $region200
        $region199: #{tpu_custom_call.1} parent=135 // pred_region
          %1122 = dma.done [#allocation27], 1024
        $region200: #{tpu_custom_call.1} parent=135 // pred_fallthru
          _
        // Predicated region
        $region201: #{tpu_custom_call.1} parent=135 // pred_check
          %p1123 = pneg %p450
        $region202: #{tpu_custom_call.1} parent=135 // pred_check_branch
          %1125 = sbr.rel (%p1123) target = $region204
        $region203: #{tpu_custom_call.1} parent=135 // pred_region
          %1126 = dma.done [#allocation27], 1024
        $region204: #{tpu_custom_call.1} parent=135 // pred_fallthru
          _
        // Predicated region
        $region205: #{tpu_custom_call.1} parent=135 // pred_check
          %p1127 = pneg %p492
        $region206: #{tpu_custom_call.1} parent=135 // pred_check_branch
          %1129 = sbr.rel (%p1127) target = $region208
        $region207: #{tpu_custom_call.1} parent=135 // pred_region
          %1130 = dma.done [#allocation30], 16
        $region208: #{tpu_custom_call.1} parent=135 // pred_fallthru
          _
        // Predicated region
        $region209: #{tpu_custom_call.1} parent=135 // pred_check
          %p1131 = pneg %p597
        $region210: #{tpu_custom_call.1} parent=135 // pred_check_branch
          %1133 = sbr.rel (%p1131) target = $region212
        $region211: #{tpu_custom_call.1} parent=135 // pred_region
          %1134 = dma.done [#allocation30], 1024
        $region212: #{tpu_custom_call.1} parent=135 // pred_fallthru
          _
        // Predicated region
        $region213: #{tpu_custom_call.1} parent=135 // pred_check
          %p1135 = pneg %p639
        $region214: #{tpu_custom_call.1} parent=135 // pred_check_branch
          %1137 = sbr.rel (%p1135) target = $region216
        $region215: #{tpu_custom_call.1} parent=135 // pred_region
          %1138 = dma.done [#allocation33], 4096
        $region216: #{tpu_custom_call.1} parent=135 // pred_fallthru
          _
        // Predicated region
        $region217: #{tpu_custom_call.1} parent=135 // pred_check
          %p1139 = pneg %p681
        $region218: #{tpu_custom_call.1} parent=135 // pred_check_branch
          %1141 = sbr.rel (%p1139) target = $region220
        $region219: #{tpu_custom_call.1} parent=135 // pred_region
          %1142 = dma.done [#allocation33], 4096
        $region220: #{tpu_custom_call.1} parent=135 // pred_fallthru
          _
        %s1143 = sand.u32 %s96, 1
        %s1144 = scalar_lea.sflag [#allocation3], %s1143
        %s1145 = sand.u32 %s96, 1
        %s1146 = smul.addr %s1145, 16
        %s1147 = scalar_lea.vmem [#allocation2], %s1146
        %p1148 = pneg %p109
        %p1149 = pneg %p106
        %s1150 = sand.u32 %s88, 1
        %s1151 = scalar_lea.sflag [#allocation6], %s1150
        %s1152 = sand.u32 %s122, 1
        %s1153 = smul.addr %s1152, 16
        %s1154 = scalar_lea.vmem [#allocation5], %s1153
        %p1155 = pneg %p135
        %p1156 = pneg %p132
        %p1157 = pneg %p156
        %p1158 = pneg %p153
        %p1159 = pneg %p177
        %p1160 = pneg %p174
        %p1161 = pneg %p198
        %p1162 = pneg %p195
        %p1163 = pneg %p219
        %p1164 = pneg %p216
        %p1165 = pneg %p240
        %p1166 = pneg %p237
        %p1167 = pneg %p261
        %p1168 = pneg %p258
        %p1169 = pneg %p282
        %p1170 = pneg %p279
        %p1171 = pneg %p303
        %p1172 = pneg %p300
        %p1173 = pneg %p324
        %p1174 = pneg %p321
        %p1175 = pneg %p345
        %p1176 = pneg %p342
        %p1177 = pneg %p366
        %p1178 = pneg %p363
        %p1179 = pneg %p387
        %p1180 = pneg %p384
        %p1181 = pneg %p408
        %p1182 = pneg %p405
        %p1183 = pneg %p429
        %p1184 = pneg %p426
        %p1185 = pneg %p450
        %p1186 = pneg %p447
        %p1187 = pneg %p471
        %p1188 = pneg %p468
        %p1189 = pneg %p492
        %p1190 = pneg %p489
        %p1191 = pneg %p513
        %p1192 = pneg %p510
        %p1193 = pneg %p534
        %p1194 = pneg %p531
        %p1195 = pneg %p555
        %p1196 = pneg %p552
        %p1197 = pneg %p576
        %p1198 = pneg %p573
        %p1199 = pneg %p597
        %p1200 = pneg %p594
        %p1201 = pneg %p618
        %p1202 = pneg %p615
        %p1203 = pneg %p639
        %p1204 = pneg %p636
        %p1205 = pneg %p660
        %p1206 = pneg %p657
        %p1207 = pneg %p681
        %p1208 = pneg %p678
        %p1209 = pneg %p702
        %p1210 = pneg %p699
        %p1211 = pneg %p728
        %p1212 = pneg %p725
        %s1213 = sand.u32 %s715, 1
        %s1214 = scalar_lea.sflag [#allocation4], %s1213
        %s1215 = sand.u32 %s715, 1
        %s1216 = smul.addr %s1215, 16
        %s1217 = scalar_lea.vmem [#allocation35], %s1216
        %s1218 = smul.u32 2, %s88
        %s1219 = smul.u32 2, %s88
        %s1220 = smul.u32 2, %s88
        %v1222 = vld [vmem:[%s1053] sm:$0xff]
        %v1223 = vld [vmem:[%s1053 + $0x8] sm:$0xff]
        %v1224 = vld [vmem:[%s1062] sm:$0xff]
        %v1225 = vld [vmem:[%s1062 + $0x8] sm:$0xff]
        %s1226 = smul.u32 %s88, 2
        %s1227 = scalar_lea.vmem [#allocation7], %s1226
        %v1228 = vld [vmem:[%s1227] sm:$0x3]
        %v1229 = vsub.f32 0.0, %v1228
        %v1230 = vmul.f32 %v1229, 1.442695
        %v1231 = vpow.pop %v1230
        %v1232 = vadd.f32 %v1231, 1.0
        %v1233 = vrcp.pop %v1232
        %v1234 = vmul.f32 %v1228, %v1233
        %v1235 = vld [vmem:[#allocation8] sm:$0xff]
        %v1236 = vld [vmem:[#allocation8 + $0x8] sm:$0xff]
        %v1237 = vld [vmem:[#allocation8 + $0x10] sm:$0xff]
        %v1238 = vld [vmem:[#allocation8 + $0x18] sm:$0xff]
        %v1239 = vld [vmem:[#allocation8 + $0x20] sm:$0xff]
        %v1240 = vld [vmem:[#allocation8 + $0x28] sm:$0xff]
        %v1241 = vld [vmem:[#allocation8 + $0x30] sm:$0xff]
        %v1242 = vld [vmem:[#allocation8 + $0x38] sm:$0xff]
        %v1243 = vld [vmem:[#allocation8 + $0x40] sm:$0xff]
        %v1244 = vld [vmem:[#allocation8 + $0x48] sm:$0xff]
        %v1245 = vld [vmem:[#allocation8 + $0x50] sm:$0xff]
        %v1246 = vld [vmem:[#allocation8 + $0x58] sm:$0xff]
        %v1247 = vld [vmem:[#allocation8 + $0x60] sm:$0xff]
        %v1248 = vld [vmem:[#allocation8 + $0x68] sm:$0xff]
        %v1249 = vld [vmem:[#allocation8 + $0x70] sm:$0xff]
        %v1250 = vld [vmem:[#allocation8 + $0x78] sm:$0xff]
        %v1251 = vld [vmem:[#allocation8 + $0x80] sm:$0xff]
        %v1252 = vld [vmem:[#allocation8 + $0x88] sm:$0xff]
        %v1253 = vld [vmem:[#allocation8 + $0x90] sm:$0xff]
        %v1254 = vld [vmem:[#allocation8 + $0x98] sm:$0xff]
        %v1255 = vld [vmem:[#allocation8 + $0xa0] sm:$0xff]
        %v1256 = vld [vmem:[#allocation8 + $0xa8] sm:$0xff]
        %v1257 = vld [vmem:[#allocation8 + $0xb0] sm:$0xff]
        %v1258 = vld [vmem:[#allocation8 + $0xb8] sm:$0xff]
        %v1259 = vld [vmem:[#allocation8 + $0xc0] sm:$0xff]
        %v1260 = vld [vmem:[#allocation8 + $0xc8] sm:$0xff]
        %v1261 = vld [vmem:[#allocation8 + $0xd0] sm:$0xff]
        %v1262 = vld [vmem:[#allocation8 + $0xd8] sm:$0xff]
        %v1263 = vld [vmem:[#allocation8 + $0xe0] sm:$0xff]
        %v1264 = vld [vmem:[#allocation8 + $0xe8] sm:$0xff]
        %v1265 = vld [vmem:[#allocation8 + $0xf0] sm:$0xff]
        %v1266 = vld [vmem:[#allocation8 + $0xf8] sm:$0xff]
        %v1267 = vld [vmem:[#allocation8 + $0x100] sm:$0xff]
        %v1268 = vld [vmem:[#allocation8 + $0x108] sm:$0xff]
        %v1269 = vld [vmem:[#allocation8 + $0x110] sm:$0xff]
        %v1270 = vld [vmem:[#allocation8 + $0x118] sm:$0xff]
        %v1271 = vld [vmem:[#allocation8 + $0x120] sm:$0xff]
        %v1272 = vld [vmem:[#allocation8 + $0x128] sm:$0xff]
        %v1273 = vld [vmem:[#allocation8 + $0x130] sm:$0xff]
        %v1274 = vld [vmem:[#allocation8 + $0x138] sm:$0xff]
        %v1275 = vld [vmem:[#allocation8 + $0x140] sm:$0xff]
        %v1276 = vld [vmem:[#allocation8 + $0x148] sm:$0xff]
        %v1277 = vld [vmem:[#allocation8 + $0x150] sm:$0xff]
        %v1278 = vld [vmem:[#allocation8 + $0x158] sm:$0xff]
        %v1279 = vld [vmem:[#allocation8 + $0x160] sm:$0xff]
        %v1280 = vld [vmem:[#allocation8 + $0x168] sm:$0xff]
        %v1281 = vld [vmem:[#allocation8 + $0x170] sm:$0xff]
        %v1282 = vld [vmem:[#allocation8 + $0x178] sm:$0xff]
        %v1283 = vpack.c.bf16 %v1234, %v1234
        %v1284 = vld [vmem:[#allocation10] sm:$0x3f]
        %v1286 = vlaneseq
        %v1287 = vshrl.u32 %v1286, 7
        %v1288 = vsub.s32 0, %v1287
        %v1289 = vrot.slane %v1284, %v1288
        %v1290 = vlaneseq
        %v1291 = vshrl.u32 %v1290, 7
        %v1292 = vsub.s32 1, %v1291
        %v1293 = vrot.slane %v1284, %v1292
        %v1294 = vlaneseq
        %v1295 = vshrl.u32 %v1294, 7
        %v1296 = vsub.s32 2, %v1295
        %v1297 = vrot.slane %v1284, %v1296
        %v1298 = vlaneseq
        %v1299 = vshrl.u32 %v1298, 7
        %v1300 = vsub.s32 3, %v1299
        %v1301 = vrot.slane %v1284, %v1300
        %v1302 = vlaneseq
        %v1303 = vshrl.u32 %v1302, 7
        %v1304 = vsub.s32 4, %v1303
        %v1305 = vrot.slane %v1284, %v1304
        %v1306 = vlaneseq
        %v1307 = vshrl.u32 %v1306, 7
        %v1308 = vsub.s32 5, %v1307
        %v1309 = vrot.slane %v1284, %v1308
        %v1364 = vunpack.c.l.b16 %v1235
        %v1365 = vunpack.c.h.b16 %v1235
        %v1366 = vunpack.c.l.b16 %v1236
        %v1367 = vunpack.c.h.b16 %v1236
        %v1368 = vunpack.c.l.b16 %v1237
        %v1369 = vunpack.c.h.b16 %v1237
        %v1370 = vunpack.c.l.b16 %v1238
        %v1371 = vunpack.c.h.b16 %v1238
        %v1372 = vunpack.c.l.b16 %v1239
        %v1373 = vunpack.c.h.b16 %v1239
        %v1374 = vunpack.c.l.b16 %v1240
        %v1375 = vunpack.c.h.b16 %v1240
        %v1376 = vunpack.c.l.b16 %v1241
        %v1377 = vunpack.c.h.b16 %v1241
        %v1378 = vunpack.c.l.b16 %v1242
        %v1379 = vunpack.c.h.b16 %v1242
        %v1380 = vunpack.c.l.b16 %v1243
        %v1381 = vunpack.c.h.b16 %v1243
        %v1382 = vunpack.c.l.b16 %v1244
        %v1383 = vunpack.c.h.b16 %v1244
        %v1384 = vunpack.c.l.b16 %v1245
        %v1385 = vunpack.c.h.b16 %v1245
        %v1386 = vunpack.c.l.b16 %v1246
        %v1387 = vunpack.c.h.b16 %v1246
        %v1388 = vunpack.c.l.b16 %v1247
        %v1389 = vunpack.c.h.b16 %v1247
        %v1390 = vunpack.c.l.b16 %v1248
        %v1391 = vunpack.c.h.b16 %v1248
        %v1392 = vunpack.c.l.b16 %v1249
        %v1393 = vunpack.c.h.b16 %v1249
        %v1394 = vunpack.c.l.b16 %v1250
        %v1395 = vunpack.c.h.b16 %v1250
        %v1396 = vunpack.c.l.b16 %v1251
        %v1397 = vunpack.c.h.b16 %v1251
        %v1398 = vunpack.c.l.b16 %v1252
        %v1399 = vunpack.c.h.b16 %v1252
        %v1400 = vunpack.c.l.b16 %v1253
        %v1401 = vunpack.c.h.b16 %v1253
        %v1402 = vunpack.c.l.b16 %v1254
        %v1403 = vunpack.c.h.b16 %v1254
        %v1404 = vunpack.c.l.b16 %v1255
        %v1405 = vunpack.c.h.b16 %v1255
        %v1406 = vunpack.c.l.b16 %v1256
        %v1407 = vunpack.c.h.b16 %v1256
        %v1408 = vunpack.c.l.b16 %v1257
        %v1409 = vunpack.c.h.b16 %v1257
        %v1410 = vunpack.c.l.b16 %v1258
        %v1411 = vunpack.c.h.b16 %v1258
        %v1412 = vunpack.c.l.b16 %v1259
        %v1413 = vunpack.c.h.b16 %v1259
        %v1414 = vunpack.c.l.b16 %v1260
        %v1415 = vunpack.c.h.b16 %v1260
        %v1416 = vunpack.c.l.b16 %v1261
        %v1417 = vunpack.c.h.b16 %v1261
        %v1418 = vunpack.c.l.b16 %v1262
        %v1419 = vunpack.c.h.b16 %v1262
        %v1420 = vunpack.c.l.b16 %v1263
        %v1421 = vunpack.c.h.b16 %v1263
        %v1422 = vunpack.c.l.b16 %v1264
        %v1423 = vunpack.c.h.b16 %v1264
        %v1424 = vunpack.c.l.b16 %v1265
        %v1425 = vunpack.c.h.b16 %v1265
        %v1426 = vunpack.c.l.b16 %v1266
        %v1427 = vunpack.c.h.b16 %v1266
        %v1428 = vunpack.c.l.b16 %v1267
        %v1429 = vunpack.c.h.b16 %v1267
        %v1430 = vunpack.c.l.b16 %v1268
        %v1431 = vunpack.c.h.b16 %v1268
        %v1432 = vunpack.c.l.b16 %v1269
        %v1433 = vunpack.c.h.b16 %v1269
        %v1434 = vunpack.c.l.b16 %v1270
        %v1435 = vunpack.c.h.b16 %v1270
        %v1436 = vunpack.c.l.b16 %v1271
        %v1437 = vunpack.c.h.b16 %v1271
        %v1438 = vunpack.c.l.b16 %v1272
        %v1439 = vunpack.c.h.b16 %v1272
        %v1440 = vunpack.c.l.b16 %v1273
        %v1441 = vunpack.c.h.b16 %v1273
        %v1442 = vunpack.c.l.b16 %v1274
        %v1443 = vunpack.c.h.b16 %v1274
        %v1444 = vunpack.c.l.b16 %v1275
        %v1445 = vunpack.c.h.b16 %v1275
        %v1446 = vunpack.c.l.b16 %v1276
        %v1447 = vunpack.c.h.b16 %v1276
        %v1448 = vunpack.c.l.b16 %v1277
        %v1449 = vunpack.c.h.b16 %v1277
        %v1450 = vunpack.c.l.b16 %v1278
        %v1451 = vunpack.c.h.b16 %v1278
        %v1452 = vunpack.c.l.b16 %v1279
        %v1453 = vunpack.c.h.b16 %v1279
        %v1454 = vunpack.c.l.b16 %v1280
        %v1455 = vunpack.c.h.b16 %v1280
        %v1456 = vunpack.c.l.b16 %v1281
        %v1457 = vunpack.c.h.b16 %v1281
        %v1458 = vunpack.c.l.b16 %v1282
        %v1459 = vunpack.c.h.b16 %v1282
        %v1460 = vpack.c.b16 %v1370, %v1364
        %v1461 = vpack.c.b16 %v1371, %v1365
        %v1462 = vpack.c.b16 %v1372, %v1366
        %v1463 = vpack.c.b16 %v1373, %v1367
        %v1464 = vpack.c.b16 %v1374, %v1368
        %v1465 = vpack.c.b16 %v1375, %v1369
        %v1466 = vpack.c.b16 %v1382, %v1376
        %v1467 = vpack.c.b16 %v1383, %v1377
        %v1468 = vpack.c.b16 %v1384, %v1378
        %v1469 = vpack.c.b16 %v1385, %v1379
        %v1470 = vpack.c.b16 %v1386, %v1380
        %v1471 = vpack.c.b16 %v1387, %v1381
        %v1472 = vpack.c.b16 %v1394, %v1388
        %v1473 = vpack.c.b16 %v1395, %v1389
        %v1474 = vpack.c.b16 %v1396, %v1390
        %v1475 = vpack.c.b16 %v1397, %v1391
        %v1476 = vpack.c.b16 %v1398, %v1392
        %v1477 = vpack.c.b16 %v1399, %v1393
        %v1478 = vpack.c.b16 %v1406, %v1400
        %v1479 = vpack.c.b16 %v1407, %v1401
        %v1480 = vpack.c.b16 %v1408, %v1402
        %v1481 = vpack.c.b16 %v1409, %v1403
        %v1482 = vpack.c.b16 %v1410, %v1404
        %v1483 = vpack.c.b16 %v1411, %v1405
        %v1484 = vpack.c.b16 %v1418, %v1412
        %v1485 = vpack.c.b16 %v1419, %v1413
        %v1486 = vpack.c.b16 %v1420, %v1414
        %v1487 = vpack.c.b16 %v1421, %v1415
        %v1488 = vpack.c.b16 %v1422, %v1416
        %v1489 = vpack.c.b16 %v1423, %v1417
        %v1490 = vpack.c.b16 %v1430, %v1424
        %v1491 = vpack.c.b16 %v1431, %v1425
        %v1492 = vpack.c.b16 %v1432, %v1426
        %v1493 = vpack.c.b16 %v1433, %v1427
        %v1494 = vpack.c.b16 %v1434, %v1428
        %v1495 = vpack.c.b16 %v1435, %v1429
        %v1496 = vpack.c.b16 %v1442, %v1436
        %v1497 = vpack.c.b16 %v1443, %v1437
        %v1498 = vpack.c.b16 %v1444, %v1438
        %v1499 = vpack.c.b16 %v1445, %v1439
        %v1500 = vpack.c.b16 %v1446, %v1440
        %v1501 = vpack.c.b16 %v1447, %v1441
        %v1502 = vpack.c.b16 %v1454, %v1448
        %v1503 = vpack.c.b16 %v1455, %v1449
        %v1504 = vpack.c.b16 %v1456, %v1450
        %v1505 = vpack.c.b16 %v1457, %v1451
        %v1506 = vpack.c.b16 %v1458, %v1452
        %v1507 = vpack.c.b16 %v1459, %v1453
        %1556 = vmatprep.subr.bf16.mxu0 %v1461
        %1557 = vmatpush1.bf16.msra.mxu0 %v1460
        %1558 = vmatprep.subr.bf16.mxu0 %v1467
        %1559 = vmatpush1.bf16.msra.mxu0 %v1466
        %1560 = vmatprep.subr.bf16.mxu0 %v1473
        %1561 = vmatpush1.bf16.msra.mxu0 %v1472
        %1562 = vmatprep.subr.bf16.mxu0 %v1479
        %1563 = vmatpush1.bf16.msra.mxu0 %v1478
        %1564 = vmatprep.subr.bf16.mxu0 %v1485
        %1565 = vmatpush1.bf16.msra.mxu0 %v1484
        %1566 = vmatprep.subr.bf16.mxu0 %v1491
        %1567 = vmatpush1.bf16.msra.mxu0 %v1490
        %1568 = vmatprep.subr.bf16.mxu0 %v1497
        %1569 = vmatpush1.bf16.msra.mxu0 %v1496
        %1570 = vmatprep.subr.bf16.mxu0 %v1503
        %1571 = vmatpush1.bf16.msra.mxu0 %v1502
        %1572 = vmatprep.subr.bf16.mxu0 0
        %1573 = vmatpush1.bf16.msra.mxu0 0
        %1574 = vmatprep.subr.bf16.mxu0 0
        %1575 = vmatpush1.bf16.msra.mxu0 0
        %1576 = vmatprep.subr.bf16.mxu0 0
        %1577 = vmatpush1.bf16.msra.mxu0 0
        %1578 = vmatprep.subr.bf16.mxu0 0
        %1579 = vmatpush1.bf16.msra.mxu0 0
        %1580 = vmatprep.subr.bf16.mxu0 0
        %1581 = vmatpush1.bf16.msra.mxu0 0
        %1582 = vmatprep.subr.bf16.mxu0 0
        %1583 = vmatpush1.bf16.msra.mxu0 0
        %1584 = vmatprep.subr.bf16.mxu0 0
        %1585 = vmatpush1.bf16.msra.mxu0 0
        %1586 = vmatprep.subr.bf16.mxu0 0
        %1587 = vmatpush1.bf16.msra.mxu0 0
        %1588 = vmatprep.mubr.bf16.mxu0 0
        %1589 = vmatmul.mubr.bf16.gmra.mrb[0].mxu0 %v1283
        %v1590 = vpop.f32.mrb[0].mxu0
        %v1591 = vadd.f32 %v1289, %v1590
        %v1592 = vpop.f32.mrb[0].mxu0
        %v1593 = vadd.f32 %v1293, %v1592
        %v1594 = vpop.f32.mrb[0].mxu0
        %v1595 = vpop.f32.mrb[0].mxu0
        %1596 = vdwg.mxu0
        %1597 = vmatprep.subr.bf16.mxu0 %v1463
        %1598 = vmatpush1.bf16.msra.mxu0 %v1462
        %1599 = vmatprep.subr.bf16.mxu0 %v1469
        %1600 = vmatpush1.bf16.msra.mxu0 %v1468
        %1601 = vmatprep.subr.bf16.mxu0 %v1475
        %1602 = vmatpush1.bf16.msra.mxu0 %v1474
        %1603 = vmatprep.subr.bf16.mxu0 %v1481
        %1604 = vmatpush1.bf16.msra.mxu0 %v1480
        %1605 = vmatprep.subr.bf16.mxu0 %v1487
        %1606 = vmatpush1.bf16.msra.mxu0 %v1486
        %1607 = vmatprep.subr.bf16.mxu0 %v1493
        %1608 = vmatpush1.bf16.msra.mxu0 %v1492
        %1609 = vmatprep.subr.bf16.mxu0 %v1499
        %1610 = vmatpush1.bf16.msra.mxu0 %v1498
        %1611 = vmatprep.subr.bf16.mxu0 %v1505
        %1612 = vmatpush1.bf16.msra.mxu0 %v1504
        %1613 = vmatprep.subr.bf16.mxu0 0
        %1614 = vmatpush1.bf16.msra.mxu0 0
        %1615 = vmatprep.subr.bf16.mxu0 0
        %1616 = vmatpush1.bf16.msra.mxu0 0
        %1617 = vmatprep.subr.bf16.mxu0 0
        %1618 = vmatpush1.bf16.msra.mxu0 0
        %1619 = vmatprep.subr.bf16.mxu0 0
        %1620 = vmatpush1.bf16.msra.mxu0 0
        %1621 = vmatprep.subr.bf16.mxu0 0
        %1622 = vmatpush1.bf16.msra.mxu0 0
        %1623 = vmatprep.subr.bf16.mxu0 0
        %1624 = vmatpush1.bf16.msra.mxu0 0
        %1625 = vmatprep.subr.bf16.mxu0 0
        %1626 = vmatpush1.bf16.msra.mxu0 0
        %1627 = vmatprep.subr.bf16.mxu0 0
        %1628 = vmatpush1.bf16.msra.mxu0 0
        %1629 = vmatprep.mubr.bf16.mxu0 0
        %1630 = vmatmul.mubr.bf16.gmra.mrb[0].mxu0 %v1283
        %v1631 = vpop.f32.mrb[0].mxu0
        %v1632 = vadd.f32 %v1297, %v1631
        %v1633 = vpop.f32.mrb[0].mxu0
        %v1634 = vadd.f32 %v1301, %v1633
        %v1635 = vpop.f32.mrb[0].mxu0
        %v1636 = vpop.f32.mrb[0].mxu0
        %1637 = vdwg.mxu0
        %1638 = vmatprep.subr.bf16.mxu0 %v1465
        %1639 = vmatpush1.bf16.msra.mxu0 %v1464
        %1640 = vmatprep.subr.bf16.mxu0 %v1471
        %1641 = vmatpush1.bf16.msra.mxu0 %v1470
        %1642 = vmatprep.subr.bf16.mxu0 %v1477
        %1643 = vmatpush1.bf16.msra.mxu0 %v1476
        %1644 = vmatprep.subr.bf16.mxu0 %v1483
        %1645 = vmatpush1.bf16.msra.mxu0 %v1482
        %1646 = vmatprep.subr.bf16.mxu0 %v1489
        %1647 = vmatpush1.bf16.msra.mxu0 %v1488
        %1648 = vmatprep.subr.bf16.mxu0 %v1495
        %1649 = vmatpush1.bf16.msra.mxu0 %v1494
        %1650 = vmatprep.subr.bf16.mxu0 %v1501
        %1651 = vmatpush1.bf16.msra.mxu0 %v1500
        %1652 = vmatprep.subr.bf16.mxu0 %v1507
        %1653 = vmatpush1.bf16.msra.mxu0 %v1506
        %1654 = vmatprep.subr.bf16.mxu0 0
        %1655 = vmatpush1.bf16.msra.mxu0 0
        %1656 = vmatprep.subr.bf16.mxu0 0
        %1657 = vmatpush1.bf16.msra.mxu0 0
        %1658 = vmatprep.subr.bf16.mxu0 0
        %1659 = vmatpush1.bf16.msra.mxu0 0
        %1660 = vmatprep.subr.bf16.mxu0 0
        %1661 = vmatpush1.bf16.msra.mxu0 0
        %1662 = vmatprep.subr.bf16.mxu0 0
        %1663 = vmatpush1.bf16.msra.mxu0 0
        %1664 = vmatprep.subr.bf16.mxu0 0
        %1665 = vmatpush1.bf16.msra.mxu0 0
        %1666 = vmatprep.subr.bf16.mxu0 0
        %1667 = vmatpush1.bf16.msra.mxu0 0
        %1668 = vmatprep.subr.bf16.mxu0 0
        %1669 = vmatpush1.bf16.msra.mxu0 0
        %1670 = vmatprep.mubr.bf16.mxu0 0
        %1671 = vmatmul.mubr.bf16.gmra.mrb[0].mxu0 %v1283
        %v1672 = vpop.f32.mrb[0].mxu0
        %v1673 = vadd.f32 %v1305, %v1672
        %v1674 = vpop.f32.mrb[0].mxu0
        %v1675 = vadd.f32 %v1309, %v1674
        %v1676 = vpop.f32.mrb[0].mxu0
        %v1677 = vpop.f32.mrb[0].mxu0
        %1678 = vdwg.mxu0
        %v1681 = vunpack.c.l.s4 1966171168
        %v1682 = vunpack.c.0.s8 %v1681
        %v1683 = vlaneseq
        %v1684 = vshrl.u32 %v1683, 7
        %v1685 = vsub.s32 %v1682, %v1684
        %v1686 = vrot.slane %v1591, %v1685
        %v1687 = vcombine.high %v1686, %v1686
        %v1689 = vunpack.c.l.s4 1966171168
        %v1690 = vunpack.c.0.s8 %v1689
        %v1691 = vlaneseq
        %v1692 = vshrl.u32 %v1691, 7
        %v1693 = vsub.s32 %v1690, %v1692
        %v1694 = vrot.slane %v1686, %v1693
        %v1696 = vunpack.c.l.s4 1966171168
        %v1697 = vunpack.c.0.s8 %v1696
        %v1698 = vlaneseq
        %v1699 = vshrl.u32 %v1698, 7
        %v1700 = vsub.s32 %v1697, %v1699
        %v1701 = vrot.slane %v1687, %v1700
        %v1704 = vunpack.c.l.s4 1966171168
        %v1705 = vunpack.c.0.s8 %v1704
        %v1706 = vlaneseq
        %v1707 = vshrl.u32 %v1706, 7
        %v1708 = vsub.s32 %v1705, %v1707
        %v1709 = vrot.slane %v1593, %v1708
        %v1710 = vcombine.high %v1709, %v1709
        %v1712 = vunpack.c.l.s4 1966171168
        %v1713 = vunpack.c.0.s8 %v1712
        %v1714 = vlaneseq
        %v1715 = vshrl.u32 %v1714, 7
        %v1716 = vsub.s32 %v1713, %v1715
        %v1717 = vrot.slane %v1709, %v1716
        %v1719 = vunpack.c.l.s4 1966171168
        %v1720 = vunpack.c.0.s8 %v1719
        %v1721 = vlaneseq
        %v1722 = vshrl.u32 %v1721, 7
        %v1723 = vsub.s32 %v1720, %v1722
        %v1724 = vrot.slane %v1710, %v1723
        %v1729 = vunpack.c.l.s4 1966171168
        %v1730 = vunpack.c.0.s8 %v1729
        %v1731 = vlaneseq
        %v1732 = vshrl.u32 %v1731, 7
        %v1733 = vsub.s32 %v1730, %v1732
        %v1734 = vrot.slane %v1632, %v1733
        %v1735 = vcombine.high %v1734, %v1734
        %v1737 = vunpack.c.l.s4 1966171168
        %v1738 = vunpack.c.0.s8 %v1737
        %v1739 = vlaneseq
        %v1740 = vshrl.u32 %v1739, 7
        %v1741 = vsub.s32 %v1738, %v1740
        %v1742 = vrot.slane %v1734, %v1741
        %v1744 = vunpack.c.l.s4 1966171168
        %v1745 = vunpack.c.0.s8 %v1744
        %v1746 = vlaneseq
        %v1747 = vshrl.u32 %v1746, 7
        %v1748 = vsub.s32 %v1745, %v1747
        %v1749 = vrot.slane %v1735, %v1748
        %v1752 = vunpack.c.l.s4 1966171168
        %v1753 = vunpack.c.0.s8 %v1752
        %v1754 = vlaneseq
        %v1755 = vshrl.u32 %v1754, 7
        %v1756 = vsub.s32 %v1753, %v1755
        %v1757 = vrot.slane %v1634, %v1756
        %v1758 = vcombine.high %v1757, %v1757
        %v1760 = vunpack.c.l.s4 1966171168
        %v1761 = vunpack.c.0.s8 %v1760
        %v1762 = vlaneseq
        %v1763 = vshrl.u32 %v1762, 7
        %v1764 = vsub.s32 %v1761, %v1763
        %v1765 = vrot.slane %v1757, %v1764
        %v1767 = vunpack.c.l.s4 1966171168
        %v1768 = vunpack.c.0.s8 %v1767
        %v1769 = vlaneseq
        %v1770 = vshrl.u32 %v1769, 7
        %v1771 = vsub.s32 %v1768, %v1770
        %v1772 = vrot.slane %v1758, %v1771
        %v1775 = vunpack.c.l.s4 1966171168
        %v1776 = vunpack.c.0.s8 %v1775
        %v1777 = vlaneseq
        %v1778 = vshrl.u32 %v1777, 7
        %v1779 = vsub.s32 %v1776, %v1778
        %v1780 = vrot.slane %v1673, %v1779
        %v1781 = vcombine.high %v1780, %v1780
        %v1783 = vunpack.c.l.s4 1966171168
        %v1784 = vunpack.c.0.s8 %v1783
        %v1785 = vlaneseq
        %v1786 = vshrl.u32 %v1785, 7
        %v1787 = vsub.s32 %v1784, %v1786
        %v1788 = vrot.slane %v1780, %v1787
        %v1790 = vunpack.c.l.s4 1966171168
        %v1791 = vunpack.c.0.s8 %v1790
        %v1792 = vlaneseq
        %v1793 = vshrl.u32 %v1792, 7
        %v1794 = vsub.s32 %v1791, %v1793
        %v1795 = vrot.slane %v1781, %v1794
        %v1800 = vunpack.c.l.s4 1966171168
        %v1801 = vunpack.c.0.s8 %v1800
        %v1802 = vlaneseq
        %v1803 = vshrl.u32 %v1802, 7
        %v1804 = vsub.s32 %v1801, %v1803
        %v1805 = vrot.slane %v1675, %v1804
        %v1806 = vcombine.high %v1805, %v1805
        %v1808 = vunpack.c.l.s4 1966171168
        %v1809 = vunpack.c.0.s8 %v1808
        %v1810 = vlaneseq
        %v1811 = vshrl.u32 %v1810, 7
        %v1812 = vsub.s32 %v1809, %v1811
        %v1813 = vrot.slane %v1805, %v1812
        %v1815 = vunpack.c.l.s4 1966171168
        %v1816 = vunpack.c.0.s8 %v1815
        %v1817 = vlaneseq
        %v1818 = vshrl.u32 %v1817, 7
        %v1819 = vsub.s32 %v1816, %v1818
        %v1820 = vrot.slane %v1806, %v1819
        %1821 = vadd.xlane.f32.xlu0 %v1222
        %v1822 = vpop.xlane.xlu0 %1821
        %1823 = vadd.xlane.f32.xlu0 %v1223
        %v1824 = vpop.xlane.xlu0 %1823
        %v1825 = vrcp.pop 128.0
        %v1826 = vmul.f32 %v1822, %v1825
        %v1827 = vmul.f32 %v1824, %v1825
        %v1828 = vsub.f32 %v1222, %v1826
        %v1829 = vsub.f32 %v1223, %v1827
        %v1830 = vmul.f32 %v1828, %v1828
        %v1831 = vmul.f32 %v1829, %v1829
        %1832 = vadd.xlane.f32.xlu0 %v1830
        %v1833 = vpop.xlane.xlu0 %1832
        %1834 = vadd.xlane.f32.xlu0 %v1831
        %v1835 = vpop.xlane.xlu0 %1834
        %v1836 = vmul.f32 %v1833, %v1825
        %v1837 = vmul.f32 %v1835, %v1825
        %v1838 = vadd.f32 %v1836, 1e-06
        %v1839 = vadd.f32 %v1837, 1e-06
        %v1840 = vrsqrt.pop %v1838
        %v1841 = vrsqrt.pop %v1839
        %v1842 = vmul.f32 %v1828, %v1840
        %v1843 = vmul.f32 %v1829, %v1841
        %v1844 = vadd.f32 %v1717, 1.0
        %v1845 = vadd.f32 %v1724, 1.0
        %v1848 = vlaneseq
        %v1849 = vshrl.u32 %v1848, 7
        %v1850 = vsub.s32 0, %v1849
        %v1851 = vrot.slane %v1844, %v1850
        %v1852 = vlaneseq
        %v1853 = vshrl.u32 %v1852, 7
        %v1854 = vsub.s32 0, %v1853
        %v1855 = vrot.slane %v1845, %v1854
        %v1858 = vmul.f32 %v1842, %v1851
        %v1859 = vmul.f32 %v1843, %v1855
        %v1860 = vlaneseq
        %v1861 = vshrl.u32 %v1860, 7
        %v1862 = vsub.s32 0, %v1861
        %v1863 = vrot.slane %v1694, %v1862
        %v1864 = vlaneseq
        %v1865 = vshrl.u32 %v1864, 7
        %v1866 = vsub.s32 0, %v1865
        %v1867 = vrot.slane %v1701, %v1866
        %v1870 = vadd.f32 %v1858, %v1863
        %v1871 = vadd.f32 %v1859, %v1867
        %v1872 = vld [vmem:[#allocation11] sm:$0xf]
        %v1873 = vld [vmem:[#allocation11 + $0x4] sm:$0xf]
        %v1874 = vld [vmem:[#allocation11 + $0x8] sm:$0xf]
        %v1875 = vld [vmem:[#allocation11 + $0xc] sm:$0xf]
        %v1876 = vld [vmem:[#allocation11 + $0x10] sm:$0xf]
        %v1877 = vld [vmem:[#allocation11 + $0x14] sm:$0xf]
        %v1878 = vld [vmem:[#allocation11 + $0x18] sm:$0xf]
        %v1879 = vld [vmem:[#allocation11 + $0x1c] sm:$0xf]
        %v1880 = vld [vmem:[#allocation11 + $0x20] sm:$0xf]
        %v1881 = vld [vmem:[#allocation11 + $0x24] sm:$0xf]
        %v1882 = vld [vmem:[#allocation11 + $0x28] sm:$0xf]
        %v1883 = vld [vmem:[#allocation11 + $0x2c] sm:$0xf]
        %v1884 = vld [vmem:[#allocation11 + $0x30] sm:$0xf]
        %v1885 = vld [vmem:[#allocation11 + $0x34] sm:$0xf]
        %v1886 = vld [vmem:[#allocation11 + $0x38] sm:$0xf]
        %v1887 = vld [vmem:[#allocation11 + $0x3c] sm:$0xf]
        %v1888 = vld [vmem:[#allocation13] sm:$0xf]
        %v1889 = vld [vmem:[#allocation13 + $0x4] sm:$0xf]
        %v1890 = vld [vmem:[#allocation13 + $0x8] sm:$0xf]
        %v1891 = vld [vmem:[#allocation13 + $0xc] sm:$0xf]
        %v1892 = vld [vmem:[#allocation13 + $0x10] sm:$0xf]
        %v1893 = vld [vmem:[#allocation13 + $0x14] sm:$0xf]
        %v1894 = vld [vmem:[#allocation13 + $0x18] sm:$0xf]
        %v1895 = vld [vmem:[#allocation13 + $0x1c] sm:$0xf]
        %v1896 = vld [vmem:[#allocation13 + $0x20] sm:$0xf]
        %v1897 = vld [vmem:[#allocation13 + $0x24] sm:$0xf]
        %v1898 = vld [vmem:[#allocation13 + $0x28] sm:$0xf]
        %v1899 = vld [vmem:[#allocation13 + $0x2c] sm:$0xf]
        %v1900 = vld [vmem:[#allocation13 + $0x30] sm:$0xf]
        %v1901 = vld [vmem:[#allocation13 + $0x34] sm:$0xf]
        %v1902 = vld [vmem:[#allocation13 + $0x38] sm:$0xf]
        %v1903 = vld [vmem:[#allocation13 + $0x3c] sm:$0xf]
        %v1904 = vld [vmem:[#allocation14] sm:$0xf]
        %v1905 = vld [vmem:[#allocation14 + $0x4] sm:$0xf]
        %v1906 = vld [vmem:[#allocation14 + $0x8] sm:$0xf]
        %v1907 = vld [vmem:[#allocation14 + $0xc] sm:$0xf]
        %v1908 = vld [vmem:[#allocation14 + $0x10] sm:$0xf]
        %v1909 = vld [vmem:[#allocation14 + $0x14] sm:$0xf]
        %v1910 = vld [vmem:[#allocation14 + $0x18] sm:$0xf]
        %v1911 = vld [vmem:[#allocation14 + $0x1c] sm:$0xf]
        %v1912 = vld [vmem:[#allocation14 + $0x20] sm:$0xf]
        %v1913 = vld [vmem:[#allocation14 + $0x24] sm:$0xf]
        %v1914 = vld [vmem:[#allocation14 + $0x28] sm:$0xf]
        %v1915 = vld [vmem:[#allocation14 + $0x2c] sm:$0xf]
        %v1916 = vld [vmem:[#allocation14 + $0x30] sm:$0xf]
        %v1917 = vld [vmem:[#allocation14 + $0x34] sm:$0xf]
        %v1918 = vld [vmem:[#allocation14 + $0x38] sm:$0xf]
        %v1919 = vld [vmem:[#allocation14 + $0x3c] sm:$0xf]
        %v1920 = vld [vmem:[#allocation16] sm:$0x1]
        %v1921 = vld [vmem:[#allocation17] sm:$0x1]
        %v1922 = vld [vmem:[#allocation19] sm:$0x1]
        %v1923 = vld [vmem:[#allocation20] sm:$0xf]
        %v1924 = vld [vmem:[#allocation22] sm:$0xf]
        %v1925 = vld [vmem:[#allocation23] sm:$0xf]
        %v1926 = vld [vmem:[#allocation23 + $0x4] sm:$0xf]
        %v1927 = vld [vmem:[#allocation23 + $0x8] sm:$0xf]
        %v1928 = vld [vmem:[#allocation23 + $0xc] sm:$0xf]
        %v1929 = vld [vmem:[#allocation23 + $0x10] sm:$0xf]
        %v1930 = vld [vmem:[#allocation23 + $0x14] sm:$0xf]
        %v1931 = vld [vmem:[#allocation23 + $0x18] sm:$0xf]
        %v1932 = vld [vmem:[#allocation23 + $0x1c] sm:$0xf]
        %v1933 = vld [vmem:[#allocation23 + $0x20] sm:$0xf]
        %v1934 = vld [vmem:[#allocation23 + $0x24] sm:$0xf]
        %v1935 = vld [vmem:[#allocation23 + $0x28] sm:$0xf]
        %v1936 = vld [vmem:[#allocation23 + $0x2c] sm:$0xf]
        %v1937 = vld [vmem:[#allocation23 + $0x30] sm:$0xf]
        %v1938 = vld [vmem:[#allocation23 + $0x34] sm:$0xf]
        %v1939 = vld [vmem:[#allocation23 + $0x38] sm:$0xf]
        %v1940 = vld [vmem:[#allocation23 + $0x3c] sm:$0xf]
        %v1941 = vld [vmem:[#allocation25] sm:$0x1]
        %v1942 = vpack.c.bf16 %v1871, %v1870
        %v1944 = vlaneseq
        %v1945 = vshrl.u32 %v1944, 7
        %v1946 = vsub.s32 0, %v1945
        %v1947 = vrot.slane %v1920, %v1946
        %v1965 = vunpack.c.l.b16 %v1872
        %v1966 = vunpack.c.l.b16 %v1873
        %v1967 = vunpack.c.l.b16 %v1874
        %v1968 = vunpack.c.l.b16 %v1875
        %v1969 = vunpack.c.l.b16 %v1876
        %v1970 = vunpack.c.l.b16 %v1877
        %v1971 = vunpack.c.l.b16 %v1878
        %v1972 = vunpack.c.l.b16 %v1879
        %v1973 = vunpack.c.l.b16 %v1880
        %v1974 = vunpack.c.l.b16 %v1881
        %v1975 = vunpack.c.l.b16 %v1882
        %v1976 = vunpack.c.l.b16 %v1883
        %v1977 = vunpack.c.l.b16 %v1884
        %v1978 = vunpack.c.l.b16 %v1885
        %v1979 = vunpack.c.l.b16 %v1886
        %v1980 = vunpack.c.l.b16 %v1887
        %v1981 = vpack.c.b16 %v1966, %v1965
        %v1982 = vpack.c.b16 %v1968, %v1967
        %v1983 = vpack.c.b16 %v1970, %v1969
        %v1984 = vpack.c.b16 %v1972, %v1971
        %v1985 = vpack.c.b16 %v1974, %v1973
        %v1986 = vpack.c.b16 %v1976, %v1975
        %v1987 = vpack.c.b16 %v1978, %v1977
        %v1988 = vpack.c.b16 %v1980, %v1979
        %1997 = vmatprep.subr.bf16.mxu0 0
        %1998 = vmatpush1.bf16.msra.mxu0 %v1981
        %1999 = vmatprep.subr.bf16.mxu0 0
        %2000 = vmatpush1.bf16.msra.mxu0 %v1982
        %2001 = vmatprep.subr.bf16.mxu0 0
        %2002 = vmatpush1.bf16.msra.mxu0 %v1983
        %2003 = vmatprep.subr.bf16.mxu0 0
        %2004 = vmatpush1.bf16.msra.mxu0 %v1984
        %2005 = vmatprep.subr.bf16.mxu0 0
        %2006 = vmatpush1.bf16.msra.mxu0 %v1985
        %2007 = vmatprep.subr.bf16.mxu0 0
        %2008 = vmatpush1.bf16.msra.mxu0 %v1986
        %2009 = vmatprep.subr.bf16.mxu0 0
        %2010 = vmatpush1.bf16.msra.mxu0 %v1987
        %2011 = vmatprep.subr.bf16.mxu0 0
        %2012 = vmatpush1.bf16.msra.mxu0 %v1988
        %2013 = vmatprep.subr.bf16.mxu0 0
        %2014 = vmatpush1.bf16.msra.mxu0 0
        %2015 = vmatprep.subr.bf16.mxu0 0
        %2016 = vmatpush1.bf16.msra.mxu0 0
        %2017 = vmatprep.subr.bf16.mxu0 0
        %2018 = vmatpush1.bf16.msra.mxu0 0
        %2019 = vmatprep.subr.bf16.mxu0 0
        %2020 = vmatpush1.bf16.msra.mxu0 0
        %2021 = vmatprep.subr.bf16.mxu0 0
        %2022 = vmatpush1.bf16.msra.mxu0 0
        %2023 = vmatprep.subr.bf16.mxu0 0
        %2024 = vmatpush1.bf16.msra.mxu0 0
        %2025 = vmatprep.subr.bf16.mxu0 0
        %2026 = vmatpush1.bf16.msra.mxu0 0
        %2027 = vmatprep.subr.bf16.mxu0 0
        %2028 = vmatpush1.bf16.msra.mxu0 0
        %2029 = vmatprep.mubr.bf16.mxu0 0
        %2030 = vmatmul.mubr.bf16.gmra.mrb[0].mxu0 %v1942
        %v2031 = vpop.f32.mrb[0].mxu0
        %v2032 = vadd.f32 %v1947, %v2031
        %v2033 = vpop.f32.mrb[0].mxu0
        %v2034 = vpop.f32.mrb[0].mxu0
        %v2035 = vadd.f32 %v1947, %v2034
        %v2036 = vpop.f32.mrb[0].mxu0
        %2037 = vdwg.mxu0
        %v2039 = vlaneseq
        %v2040 = vshrl.u32 %v2039, 7
        %v2041 = vsub.s32 0, %v2040
        %v2042 = vrot.slane %v1921, %v2041
        %v2060 = vunpack.c.l.b16 %v1888
        %v2061 = vunpack.c.l.b16 %v1889
        %v2062 = vunpack.c.l.b16 %v1890
        %v2063 = vunpack.c.l.b16 %v1891
        %v2064 = vunpack.c.l.b16 %v1892
        %v2065 = vunpack.c.l.b16 %v1893
        %v2066 = vunpack.c.l.b16 %v1894
        %v2067 = vunpack.c.l.b16 %v1895
        %v2068 = vunpack.c.l.b16 %v1896
        %v2069 = vunpack.c.l.b16 %v1897
        %v2070 = vunpack.c.l.b16 %v1898
        %v2071 = vunpack.c.l.b16 %v1899
        %v2072 = vunpack.c.l.b16 %v1900
        %v2073 = vunpack.c.l.b16 %v1901
        %v2074 = vunpack.c.l.b16 %v1902
        %v2075 = vunpack.c.l.b16 %v1903
        %v2076 = vpack.c.b16 %v2061, %v2060
        %v2077 = vpack.c.b16 %v2063, %v2062
        %v2078 = vpack.c.b16 %v2065, %v2064
        %v2079 = vpack.c.b16 %v2067, %v2066
        %v2080 = vpack.c.b16 %v2069, %v2068
        %v2081 = vpack.c.b16 %v2071, %v2070
        %v2082 = vpack.c.b16 %v2073, %v2072
        %v2083 = vpack.c.b16 %v2075, %v2074
        %2092 = vmatprep.subr.bf16.mxu0 0
        %2093 = vmatpush1.bf16.msra.mxu0 %v2076
        %2094 = vmatprep.subr.bf16.mxu0 0
        %2095 = vmatpush1.bf16.msra.mxu0 %v2077
        %2096 = vmatprep.subr.bf16.mxu0 0
        %2097 = vmatpush1.bf16.msra.mxu0 %v2078
        %2098 = vmatprep.subr.bf16.mxu0 0
        %2099 = vmatpush1.bf16.msra.mxu0 %v2079
        %2100 = vmatprep.subr.bf16.mxu0 0
        %2101 = vmatpush1.bf16.msra.mxu0 %v2080
        %2102 = vmatprep.subr.bf16.mxu0 0
        %2103 = vmatpush1.bf16.msra.mxu0 %v2081
        %2104 = vmatprep.subr.bf16.mxu0 0
        %2105 = vmatpush1.bf16.msra.mxu0 %v2082
        %2106 = vmatprep.subr.bf16.mxu0 0
        %2107 = vmatpush1.bf16.msra.mxu0 %v2083
        %2108 = vmatprep.subr.bf16.mxu0 0
        %2109 = vmatpush1.bf16.msra.mxu0 0
        %2110 = vmatprep.subr.bf16.mxu0 0
        %2111 = vmatpush1.bf16.msra.mxu0 0
        %2112 = vmatprep.subr.bf16.mxu0 0
        %2113 = vmatpush1.bf16.msra.mxu0 0
        %2114 = vmatprep.subr.bf16.mxu0 0
        %2115 = vmatpush1.bf16.msra.mxu0 0
        %2116 = vmatprep.subr.bf16.mxu0 0
        %2117 = vmatpush1.bf16.msra.mxu0 0
        %2118 = vmatprep.subr.bf16.mxu0 0
        %2119 = vmatpush1.bf16.msra.mxu0 0
        %2120 = vmatprep.subr.bf16.mxu0 0
        %2121 = vmatpush1.bf16.msra.mxu0 0
        %2122 = vmatprep.subr.bf16.mxu0 0
        %2123 = vmatpush1.bf16.msra.mxu0 0
        %2124 = vmatprep.mubr.bf16.mxu0 0
        %2125 = vmatmul.mubr.bf16.gmra.mrb[0].mxu0 %v1942
        %v2126 = vpop.f32.mrb[0].mxu0
        %v2127 = vadd.f32 %v2042, %v2126
        %v2128 = vpop.f32.mrb[0].mxu0
        %v2129 = vpop.f32.mrb[0].mxu0
        %v2130 = vadd.f32 %v2042, %v2129
        %v2131 = vpop.f32.mrb[0].mxu0
        %2132 = vdwg.mxu0
        %v2134 = vlaneseq
        %v2135 = vshrl.u32 %v2134, 7
        %v2136 = vsub.s32 0, %v2135
        %v2137 = vrot.slane %v1922, %v2136
        %v2155 = vunpack.c.l.b16 %v1904
        %v2156 = vunpack.c.l.b16 %v1905
        %v2157 = vunpack.c.l.b16 %v1906
        %v2158 = vunpack.c.l.b16 %v1907
        %v2159 = vunpack.c.l.b16 %v1908
        %v2160 = vunpack.c.l.b16 %v1909
        %v2161 = vunpack.c.l.b16 %v1910
        %v2162 = vunpack.c.l.b16 %v1911
        %v2163 = vunpack.c.l.b16 %v1912
        %v2164 = vunpack.c.l.b16 %v1913
        %v2165 = vunpack.c.l.b16 %v1914
        %v2166 = vunpack.c.l.b16 %v1915
        %v2167 = vunpack.c.l.b16 %v1916
        %v2168 = vunpack.c.l.b16 %v1917
        %v2169 = vunpack.c.l.b16 %v1918
        %v2170 = vunpack.c.l.b16 %v1919
        %v2171 = vpack.c.b16 %v2156, %v2155
        %v2172 = vpack.c.b16 %v2158, %v2157
        %v2173 = vpack.c.b16 %v2160, %v2159
        %v2174 = vpack.c.b16 %v2162, %v2161
        %v2175 = vpack.c.b16 %v2164, %v2163
        %v2176 = vpack.c.b16 %v2166, %v2165
        %v2177 = vpack.c.b16 %v2168, %v2167
        %v2178 = vpack.c.b16 %v2170, %v2169
        %2187 = vmatprep.subr.bf16.mxu0 0
        %2188 = vmatpush1.bf16.msra.mxu0 %v2171
        %2189 = vmatprep.subr.bf16.mxu0 0
        %2190 = vmatpush1.bf16.msra.mxu0 %v2172
        %2191 = vmatprep.subr.bf16.mxu0 0
        %2192 = vmatpush1.bf16.msra.mxu0 %v2173
        %2193 = vmatprep.subr.bf16.mxu0 0
        %2194 = vmatpush1.bf16.msra.mxu0 %v2174
        %2195 = vmatprep.subr.bf16.mxu0 0
        %2196 = vmatpush1.bf16.msra.mxu0 %v2175
        %2197 = vmatprep.subr.bf16.mxu0 0
        %2198 = vmatpush1.bf16.msra.mxu0 %v2176
        %2199 = vmatprep.subr.bf16.mxu0 0
        %2200 = vmatpush1.bf16.msra.mxu0 %v2177
        %2201 = vmatprep.subr.bf16.mxu0 0
        %2202 = vmatpush1.bf16.msra.mxu0 %v2178
        %2203 = vmatprep.subr.bf16.mxu0 0
        %2204 = vmatpush1.bf16.msra.mxu0 0
        %2205 = vmatprep.subr.bf16.mxu0 0
        %2206 = vmatpush1.bf16.msra.mxu0 0
        %2207 = vmatprep.subr.bf16.mxu0 0
        %2208 = vmatpush1.bf16.msra.mxu0 0
        %2209 = vmatprep.subr.bf16.mxu0 0
        %2210 = vmatpush1.bf16.msra.mxu0 0
        %2211 = vmatprep.subr.bf16.mxu0 0
        %2212 = vmatpush1.bf16.msra.mxu0 0
        %2213 = vmatprep.subr.bf16.mxu0 0
        %2214 = vmatpush1.bf16.msra.mxu0 0
        %2215 = vmatprep.subr.bf16.mxu0 0
        %2216 = vmatpush1.bf16.msra.mxu0 0
        %2217 = vmatprep.subr.bf16.mxu0 0
        %2218 = vmatpush1.bf16.msra.mxu0 0
        %2219 = vmatprep.mubr.bf16.mxu0 0
        %2220 = vmatmul.mubr.bf16.gmra.mrb[0].mxu0 %v1942
        %v2221 = vpop.f32.mrb[0].mxu0
        %v2222 = vadd.f32 %v2137, %v2221
        %v2223 = vpop.f32.mrb[0].mxu0
        %v2224 = vpop.f32.mrb[0].mxu0
        %v2225 = vadd.f32 %v2137, %v2224
        %v2226 = vpop.f32.mrb[0].mxu0
        %2227 = vdwg.mxu0
        %2230 = vrot.lane.b32.xlu0 %v2032, 96
        %v2231 = vpop.permute.xlu0 %2230
        %2232 = vrot.lane.b32.xlu0 %v2035, 96
        %v2233 = vpop.permute.xlu0 %2232
        %2236 = vrot.lane.b32.xlu0 %v2032, 64
        %v2237 = vpop.permute.xlu0 %2236
        %2238 = vrot.lane.b32.xlu0 %v2035, 64
        %v2239 = vpop.permute.xlu0 %2238
        %2242 = vrot.lane.b32.xlu0 %v2032, 32
        %v2243 = vpop.permute.xlu0 %2242
        %2244 = vrot.lane.b32.xlu0 %v2035, 32
        %v2245 = vpop.permute.xlu0 %2244
        %2250 = vrot.lane.b32.xlu0 %v2127, 96
        %v2251 = vpop.permute.xlu0 %2250
        %2252 = vrot.lane.b32.xlu0 %v2130, 96
        %v2253 = vpop.permute.xlu0 %2252
        %2256 = vrot.lane.b32.xlu0 %v2127, 64
        %v2257 = vpop.permute.xlu0 %2256
        %2258 = vrot.lane.b32.xlu0 %v2130, 64
        %v2259 = vpop.permute.xlu0 %2258
        %2262 = vrot.lane.b32.xlu0 %v2127, 32
        %v2263 = vpop.permute.xlu0 %2262
        %2264 = vrot.lane.b32.xlu0 %v2130, 32
        %v2265 = vpop.permute.xlu0 %2264
        %2270 = vrot.lane.b32.xlu0 %v2222, 96
        %v2271 = vpop.permute.xlu0 %2270
        %2272 = vrot.lane.b32.xlu0 %v2225, 96
        %v2273 = vpop.permute.xlu0 %2272
        %2276 = vrot.lane.b32.xlu0 %v2222, 64
        %v2277 = vpop.permute.xlu0 %2276
        %2278 = vrot.lane.b32.xlu0 %v2225, 64
        %v2279 = vpop.permute.xlu0 %2278
        %2282 = vrot.lane.b32.xlu0 %v2222, 32
        %v2283 = vpop.permute.xlu0 %2282
        %2284 = vrot.lane.b32.xlu0 %v2225, 32
        %v2285 = vpop.permute.xlu0 %2284
        %v2288 = vpack.c.bf16 %v2032, %v2032
        %v2289 = vpack.c.bf16 %v2035, %v2035
        %v2290 = vpack.c.bf16 %v2231, %v2231
        %v2291 = vpack.c.bf16 %v2233, %v2233
        %v2292 = vpack.c.bf16 %v2237, %v2237
        %v2293 = vpack.c.bf16 %v2239, %v2239
        %v2294 = vpack.c.bf16 %v2243, %v2243
        %v2295 = vpack.c.bf16 %v2245, %v2245
        %v2296 = vpack.c.bf16 %v2127, %v2127
        %v2297 = vpack.c.bf16 %v2130, %v2130
        %v2298 = vpack.c.bf16 %v2251, %v2251
        %v2299 = vpack.c.bf16 %v2253, %v2253
        %v2300 = vpack.c.bf16 %v2257, %v2257
        %v2301 = vpack.c.bf16 %v2259, %v2259
        %v2302 = vpack.c.bf16 %v2263, %v2263
        %v2303 = vpack.c.bf16 %v2265, %v2265
        %vm2304 = vcmask 261120
        %v2306 = vsel %vm2304, %v2288, 0
        %v2309 = vsel %vm2304, %v2296, 0
        %2311 = vmatprep.subr.bf16.mxu0 0
        %2312 = vmatpush1.bf16.xpose.msra.mxu0 %v2309
        %2313 = vmatprep.subr.bf16.mxu0 0
        %2314 = vmatpush1.bf16.xpose.msra.mxu0 0
        %2315 = vmatprep.subr.bf16.mxu0 0
        %2316 = vmatpush1.bf16.xpose.msra.mxu0 0
        %2317 = vmatprep.subr.bf16.mxu0 0
        %2318 = vmatpush1.bf16.xpose.msra.mxu0 0
        %2319 = vmatprep.subr.bf16.mxu0 0
        %2320 = vmatpush1.bf16.xpose.msra.mxu0 0
        %2321 = vmatprep.subr.bf16.mxu0 0
        %2322 = vmatpush1.bf16.xpose.msra.mxu0 0
        %2323 = vmatprep.subr.bf16.mxu0 0
        %2324 = vmatpush1.bf16.xpose.msra.mxu0 0
        %2325 = vmatprep.subr.bf16.mxu0 0
        %2326 = vmatpush1.bf16.xpose.msra.mxu0 0
        %2327 = vmatprep.subr.bf16.mxu0 0
        %2328 = vmatpush1.bf16.xpose.msra.mxu0 0
        %2329 = vmatprep.subr.bf16.mxu0 0
        %2330 = vmatpush1.bf16.xpose.msra.mxu0 0
        %2331 = vmatprep.subr.bf16.mxu0 0
        %2332 = vmatpush1.bf16.xpose.msra.mxu0 0
        %2333 = vmatprep.subr.bf16.mxu0 0
        %2334 = vmatpush1.bf16.xpose.msra.mxu0 0
        %2335 = vmatprep.subr.bf16.mxu0 0
        %2336 = vmatpush1.bf16.xpose.msra.mxu0 0
        %2337 = vmatprep.subr.bf16.mxu0 0
        %2338 = vmatpush1.bf16.xpose.msra.mxu0 0
        %2339 = vmatprep.subr.bf16.mxu0 0
        %2340 = vmatpush1.bf16.xpose.msra.mxu0 0
        %2341 = vmatprep.subr.bf16.mxu0 0
        %2342 = vmatpush1.bf16.xpose.msra.mxu0 0
        %2343 = vmatprep.mubr.bf16.mxu0 0
        %2344 = vmatmul.mubr.bf16.gmra.mrb[0].mxu0 %v2306
        %v2345 = vpop.f32.mrb[0].mxu0
        %v2346 = vadd.f32 0.0, %v2345
        %v2347 = vpop.f32.mrb[0].mxu0
        %v2348 = vpop.f32.mrb[0].mxu0
        %v2349 = vpop.f32.mrb[0].mxu0
        %2350 = vdwg.mxu0
        %v2352 = vsel %vm2304, %v2289, 0
        %v2355 = vsel %vm2304, %v2297, 0
        %2357 = vmatprep.subr.bf16.mxu0 0
        %2358 = vmatpush1.bf16.xpose.msra.mxu0 %v2355
        %2359 = vmatprep.subr.bf16.mxu0 0
        %2360 = vmatpush1.bf16.xpose.msra.mxu0 0
        %2361 = vmatprep.subr.bf16.mxu0 0
        %2362 = vmatpush1.bf16.xpose.msra.mxu0 0
        %2363 = vmatprep.subr.bf16.mxu0 0
        %2364 = vmatpush1.bf16.xpose.msra.mxu0 0
        %2365 = vmatprep.subr.bf16.mxu0 0
        %2366 = vmatpush1.bf16.xpose.msra.mxu0 0
        %2367 = vmatprep.subr.bf16.mxu0 0
        %2368 = vmatpush1.bf16.xpose.msra.mxu0 0
        %2369 = vmatprep.subr.bf16.mxu0 0
        %2370 = vmatpush1.bf16.xpose.msra.mxu0 0
        %2371 = vmatprep.subr.bf16.mxu0 0
        %2372 = vmatpush1.bf16.xpose.msra.mxu0 0
        %2373 = vmatprep.subr.bf16.mxu0 0
        %2374 = vmatpush1.bf16.xpose.msra.mxu0 0
        %2375 = vmatprep.subr.bf16.mxu0 0
        %2376 = vmatpush1.bf16.xpose.msra.mxu0 0
        %2377 = vmatprep.subr.bf16.mxu0 0
        %2378 = vmatpush1.bf16.xpose.msra.mxu0 0
        %2379 = vmatprep.subr.bf16.mxu0 0
        %2380 = vmatpush1.bf16.xpose.msra.mxu0 0
        %2381 = vmatprep.subr.bf16.mxu0 0
        %2382 = vmatpush1.bf16.xpose.msra.mxu0 0
        %2383 = vmatprep.subr.bf16.mxu0 0
        %2384 = vmatpush1.bf16.xpose.msra.mxu0 0
        %2385 = vmatprep.subr.bf16.mxu0 0
        %2386 = vmatpush1.bf16.xpose.msra.mxu0 0
        %2387 = vmatprep.subr.bf16.mxu0 0
        %2388 = vmatpush1.bf16.xpose.msra.mxu0 0
        %2389 = vmatprep.mubr.bf16.mxu0 0
        %2390 = vmatmul.mubr.bf16.gmra.mrb[0].mxu0 %v2352
        %v2391 = vpop.f32.mrb[0].mxu0
        %v2392 = vadd.f32 0.0, %v2391
        %v2393 = vpop.f32.mrb[0].mxu0
        %v2394 = vpop.f32.mrb[0].mxu0
        %v2395 = vpop.f32.mrb[0].mxu0
        %2396 = vdwg.mxu0
        %v2398 = vsel %vm2304, %v2290, 0
        %v2401 = vsel %vm2304, %v2298, 0
        %2403 = vmatprep.subr.bf16.mxu0 0
        %2404 = vmatpush1.bf16.xpose.msra.mxu0 %v2401
        %2405 = vmatprep.subr.bf16.mxu0 0
        %2406 = vmatpush1.bf16.xpose.msra.mxu0 0
        %2407 = vmatprep.subr.bf16.mxu0 0
        %2408 = vmatpush1.bf16.xpose.msra.mxu0 0
        %2409 = vmatprep.subr.bf16.mxu0 0
        %2410 = vmatpush1.bf16.xpose.msra.mxu0 0
        %2411 = vmatprep.subr.bf16.mxu0 0
        %2412 = vmatpush1.bf16.xpose.msra.mxu0 0
        %2413 = vmatprep.subr.bf16.mxu0 0
        %2414 = vmatpush1.bf16.xpose.msra.mxu0 0
        %2415 = vmatprep.subr.bf16.mxu0 0
        %2416 = vmatpush1.bf16.xpose.msra.mxu0 0
        %2417 = vmatprep.subr.bf16.mxu0 0
        %2418 = vmatpush1.bf16.xpose.msra.mxu0 0
        %2419 = vmatprep.subr.bf16.mxu0 0
        %2420 = vmatpush1.bf16.xpose.msra.mxu0 0
        %2421 = vmatprep.subr.bf16.mxu0 0
        %2422 = vmatpush1.bf16.xpose.msra.mxu0 0
        %2423 = vmatprep.subr.bf16.mxu0 0
        %2424 = vmatpush1.bf16.xpose.msra.mxu0 0
        %2425 = vmatprep.subr.bf16.mxu0 0
        %2426 = vmatpush1.bf16.xpose.msra.mxu0 0
        %2427 = vmatprep.subr.bf16.mxu0 0
        %2428 = vmatpush1.bf16.xpose.msra.mxu0 0
        %2429 = vmatprep.subr.bf16.mxu0 0
        %2430 = vmatpush1.bf16.xpose.msra.mxu0 0
        %2431 = vmatprep.subr.bf16.mxu0 0
        %2432 = vmatpush1.bf16.xpose.msra.mxu0 0
        %2433 = vmatprep.subr.bf16.mxu0 0
        %2434 = vmatpush1.bf16.xpose.msra.mxu0 0
        %2435 = vmatprep.mubr.bf16.mxu0 0
        %2436 = vmatmul.mubr.bf16.gmra.mrb[0].mxu0 %v2398
        %v2437 = vpop.f32.mrb[0].mxu0
        %v2438 = vadd.f32 0.0, %v2437
        %v2439 = vpop.f32.mrb[0].mxu0
        %v2440 = vpop.f32.mrb[0].mxu0
        %v2441 = vpop.f32.mrb[0].mxu0
        %2442 = vdwg.mxu0
        %v2444 = vsel %vm2304, %v2291, 0
        %v2447 = vsel %vm2304, %v2299, 0
        %2449 = vmatprep.subr.bf16.mxu0 0
        %2450 = vmatpush1.bf16.xpose.msra.mxu0 %v2447
        %2451 = vmatprep.subr.bf16.mxu0 0
        %2452 = vmatpush1.bf16.xpose.msra.mxu0 0
        %2453 = vmatprep.subr.bf16.mxu0 0
        %2454 = vmatpush1.bf16.xpose.msra.mxu0 0
        %2455 = vmatprep.subr.bf16.mxu0 0
        %2456 = vmatpush1.bf16.xpose.msra.mxu0 0
        %2457 = vmatprep.subr.bf16.mxu0 0
        %2458 = vmatpush1.bf16.xpose.msra.mxu0 0
        %2459 = vmatprep.subr.bf16.mxu0 0
        %2460 = vmatpush1.bf16.xpose.msra.mxu0 0
        %2461 = vmatprep.subr.bf16.mxu0 0
        %2462 = vmatpush1.bf16.xpose.msra.mxu0 0
        %2463 = vmatprep.subr.bf16.mxu0 0
        %2464 = vmatpush1.bf16.xpose.msra.mxu0 0
        %2465 = vmatprep.subr.bf16.mxu0 0
        %2466 = vmatpush1.bf16.xpose.msra.mxu0 0
        %2467 = vmatprep.subr.bf16.mxu0 0
        %2468 = vmatpush1.bf16.xpose.msra.mxu0 0
        %2469 = vmatprep.subr.bf16.mxu0 0
        %2470 = vmatpush1.bf16.xpose.msra.mxu0 0
        %2471 = vmatprep.subr.bf16.mxu0 0
        %2472 = vmatpush1.bf16.xpose.msra.mxu0 0
        %2473 = vmatprep.subr.bf16.mxu0 0
        %2474 = vmatpush1.bf16.xpose.msra.mxu0 0
        %2475 = vmatprep.subr.bf16.mxu0 0
        %2476 = vmatpush1.bf16.xpose.msra.mxu0 0
        %2477 = vmatprep.subr.bf16.mxu0 0
        %2478 = vmatpush1.bf16.xpose.msra.mxu0 0
        %2479 = vmatprep.subr.bf16.mxu0 0
        %2480 = vmatpush1.bf16.xpose.msra.mxu0 0
        %2481 = vmatprep.mubr.bf16.mxu0 0
        %2482 = vmatmul.mubr.bf16.gmra.mrb[0].mxu0 %v2444
        %v2483 = vpop.f32.mrb[0].mxu0
        %v2484 = vadd.f32 0.0, %v2483
        %v2485 = vpop.f32.mrb[0].mxu0
        %v2486 = vpop.f32.mrb[0].mxu0
        %v2487 = vpop.f32.mrb[0].mxu0
        %2488 = vdwg.mxu0
        %v2490 = vsel %vm2304, %v2292, 0
        %v2493 = vsel %vm2304, %v2300, 0
        %2495 = vmatprep.subr.bf16.mxu0 0
        %2496 = vmatpush1.bf16.xpose.msra.mxu0 %v2493
        %2497 = vmatprep.subr.bf16.mxu0 0
        %2498 = vmatpush1.bf16.xpose.msra.mxu0 0
        %2499 = vmatprep.subr.bf16.mxu0 0
        %2500 = vmatpush1.bf16.xpose.msra.mxu0 0
        %2501 = vmatprep.subr.bf16.mxu0 0
        %2502 = vmatpush1.bf16.xpose.msra.mxu0 0
        %2503 = vmatprep.subr.bf16.mxu0 0
        %2504 = vmatpush1.bf16.xpose.msra.mxu0 0
        %2505 = vmatprep.subr.bf16.mxu0 0
        %2506 = vmatpush1.bf16.xpose.msra.mxu0 0
        %2507 = vmatprep.subr.bf16.mxu0 0
        %2508 = vmatpush1.bf16.xpose.msra.mxu0 0
        %2509 = vmatprep.subr.bf16.mxu0 0
        %2510 = vmatpush1.bf16.xpose.msra.mxu0 0
        %2511 = vmatprep.subr.bf16.mxu0 0
        %2512 = vmatpush1.bf16.xpose.msra.mxu0 0
        %2513 = vmatprep.subr.bf16.mxu0 0
        %2514 = vmatpush1.bf16.xpose.msra.mxu0 0
        %2515 = vmatprep.subr.bf16.mxu0 0
        %2516 = vmatpush1.bf16.xpose.msra.mxu0 0
        %2517 = vmatprep.subr.bf16.mxu0 0
        %2518 = vmatpush1.bf16.xpose.msra.mxu0 0
        %2519 = vmatprep.subr.bf16.mxu0 0
        %2520 = vmatpush1.bf16.xpose.msra.mxu0 0
        %2521 = vmatprep.subr.bf16.mxu0 0
        %2522 = vmatpush1.bf16.xpose.msra.mxu0 0
        %2523 = vmatprep.subr.bf16.mxu0 0
        %2524 = vmatpush1.bf16.xpose.msra.mxu0 0
        %2525 = vmatprep.subr.bf16.mxu0 0
        %2526 = vmatpush1.bf16.xpose.msra.mxu0 0
        %2527 = vmatprep.mubr.bf16.mxu0 0
        %2528 = vmatmul.mubr.bf16.gmra.mrb[0].mxu0 %v2490
        %v2529 = vpop.f32.mrb[0].mxu0
        %v2530 = vadd.f32 0.0, %v2529
        %v2531 = vpop.f32.mrb[0].mxu0
        %v2532 = vpop.f32.mrb[0].mxu0
        %v2533 = vpop.f32.mrb[0].mxu0
        %2534 = vdwg.mxu0
        %v2536 = vsel %vm2304, %v2293, 0
        %v2539 = vsel %vm2304, %v2301, 0
        %2541 = vmatprep.subr.bf16.mxu0 0
        %2542 = vmatpush1.bf16.xpose.msra.mxu0 %v2539
        %2543 = vmatprep.subr.bf16.mxu0 0
        %2544 = vmatpush1.bf16.xpose.msra.mxu0 0
        %2545 = vmatprep.subr.bf16.mxu0 0
        %2546 = vmatpush1.bf16.xpose.msra.mxu0 0
        %2547 = vmatprep.subr.bf16.mxu0 0
        %2548 = vmatpush1.bf16.xpose.msra.mxu0 0
        %2549 = vmatprep.subr.bf16.mxu0 0
        %2550 = vmatpush1.bf16.xpose.msra.mxu0 0
        %2551 = vmatprep.subr.bf16.mxu0 0
        %2552 = vmatpush1.bf16.xpose.msra.mxu0 0
        %2553 = vmatprep.subr.bf16.mxu0 0
        %2554 = vmatpush1.bf16.xpose.msra.mxu0 0
        %2555 = vmatprep.subr.bf16.mxu0 0
        %2556 = vmatpush1.bf16.xpose.msra.mxu0 0
        %2557 = vmatprep.subr.bf16.mxu0 0
        %2558 = vmatpush1.bf16.xpose.msra.mxu0 0
        %2559 = vmatprep.subr.bf16.mxu0 0
        %2560 = vmatpush1.bf16.xpose.msra.mxu0 0
        %2561 = vmatprep.subr.bf16.mxu0 0
        %2562 = vmatpush1.bf16.xpose.msra.mxu0 0
        %2563 = vmatprep.subr.bf16.mxu0 0
        %2564 = vmatpush1.bf16.xpose.msra.mxu0 0
        %2565 = vmatprep.subr.bf16.mxu0 0
        %2566 = vmatpush1.bf16.xpose.msra.mxu0 0
        %2567 = vmatprep.subr.bf16.mxu0 0
        %2568 = vmatpush1.bf16.xpose.msra.mxu0 0
        %2569 = vmatprep.subr.bf16.mxu0 0
        %2570 = vmatpush1.bf16.xpose.msra.mxu0 0
        %2571 = vmatprep.subr.bf16.mxu0 0
        %2572 = vmatpush1.bf16.xpose.msra.mxu0 0
        %2573 = vmatprep.mubr.bf16.mxu0 0
        %2574 = vmatmul.mubr.bf16.gmra.mrb[0].mxu0 %v2536
        %v2575 = vpop.f32.mrb[0].mxu0
        %v2576 = vadd.f32 0.0, %v2575
        %v2577 = vpop.f32.mrb[0].mxu0
        %v2578 = vpop.f32.mrb[0].mxu0
        %v2579 = vpop.f32.mrb[0].mxu0
        %2580 = vdwg.mxu0
        %v2582 = vsel %vm2304, %v2294, 0
        %v2585 = vsel %vm2304, %v2302, 0
        %2587 = vmatprep.subr.bf16.mxu0 0
        %2588 = vmatpush1.bf16.xpose.msra.mxu0 %v2585
        %2589 = vmatprep.subr.bf16.mxu0 0
        %2590 = vmatpush1.bf16.xpose.msra.mxu0 0
        %2591 = vmatprep.subr.bf16.mxu0 0
        %2592 = vmatpush1.bf16.xpose.msra.mxu0 0
        %2593 = vmatprep.subr.bf16.mxu0 0
        %2594 = vmatpush1.bf16.xpose.msra.mxu0 0
        %2595 = vmatprep.subr.bf16.mxu0 0
        %2596 = vmatpush1.bf16.xpose.msra.mxu0 0
        %2597 = vmatprep.subr.bf16.mxu0 0
        %2598 = vmatpush1.bf16.xpose.msra.mxu0 0
        %2599 = vmatprep.subr.bf16.mxu0 0
        %2600 = vmatpush1.bf16.xpose.msra.mxu0 0
        %2601 = vmatprep.subr.bf16.mxu0 0
        %2602 = vmatpush1.bf16.xpose.msra.mxu0 0
        %2603 = vmatprep.subr.bf16.mxu0 0
        %2604 = vmatpush1.bf16.xpose.msra.mxu0 0
        %2605 = vmatprep.subr.bf16.mxu0 0
        %2606 = vmatpush1.bf16.xpose.msra.mxu0 0
        %2607 = vmatprep.subr.bf16.mxu0 0
        %2608 = vmatpush1.bf16.xpose.msra.mxu0 0
        %2609 = vmatprep.subr.bf16.mxu0 0
        %2610 = vmatpush1.bf16.xpose.msra.mxu0 0
        %2611 = vmatprep.subr.bf16.mxu0 0
        %2612 = vmatpush1.bf16.xpose.msra.mxu0 0
        %2613 = vmatprep.subr.bf16.mxu0 0
        %2614 = vmatpush1.bf16.xpose.msra.mxu0 0
        %2615 = vmatprep.subr.bf16.mxu0 0
        %2616 = vmatpush1.bf16.xpose.msra.mxu0 0
        %2617 = vmatprep.subr.bf16.mxu0 0
        %2618 = vmatpush1.bf16.xpose.msra.mxu0 0
        %2619 = vmatprep.mubr.bf16.mxu0 0
        %2620 = vmatmul.mubr.bf16.gmra.mrb[0].mxu0 %v2582
        %v2621 = vpop.f32.mrb[0].mxu0
        %v2622 = vadd.f32 0.0, %v2621
        %v2623 = vpop.f32.mrb[0].mxu0
        %v2624 = vpop.f32.mrb[0].mxu0
        %v2625 = vpop.f32.mrb[0].mxu0
        %2626 = vdwg.mxu0
        %v2628 = vsel %vm2304, %v2295, 0
        %v2631 = vsel %vm2304, %v2303, 0
        %2633 = vmatprep.subr.bf16.mxu0 0
        %2634 = vmatpush1.bf16.xpose.msra.mxu0 %v2631
        %2635 = vmatprep.subr.bf16.mxu0 0
        %2636 = vmatpush1.bf16.xpose.msra.mxu0 0
        %2637 = vmatprep.subr.bf16.mxu0 0
        %2638 = vmatpush1.bf16.xpose.msra.mxu0 0
        %2639 = vmatprep.subr.bf16.mxu0 0
        %2640 = vmatpush1.bf16.xpose.msra.mxu0 0
        %2641 = vmatprep.subr.bf16.mxu0 0
        %2642 = vmatpush1.bf16.xpose.msra.mxu0 0
        %2643 = vmatprep.subr.bf16.mxu0 0
        %2644 = vmatpush1.bf16.xpose.msra.mxu0 0
        %2645 = vmatprep.subr.bf16.mxu0 0
        %2646 = vmatpush1.bf16.xpose.msra.mxu0 0
        %2647 = vmatprep.subr.bf16.mxu0 0
        %2648 = vmatpush1.bf16.xpose.msra.mxu0 0
        %2649 = vmatprep.subr.bf16.mxu0 0
        %2650 = vmatpush1.bf16.xpose.msra.mxu0 0
        %2651 = vmatprep.subr.bf16.mxu0 0
        %2652 = vmatpush1.bf16.xpose.msra.mxu0 0
        %2653 = vmatprep.subr.bf16.mxu0 0
        %2654 = vmatpush1.bf16.xpose.msra.mxu0 0
        %2655 = vmatprep.subr.bf16.mxu0 0
        %2656 = vmatpush1.bf16.xpose.msra.mxu0 0
        %2657 = vmatprep.subr.bf16.mxu0 0
        %2658 = vmatpush1.bf16.xpose.msra.mxu0 0
        %2659 = vmatprep.subr.bf16.mxu0 0
        %2660 = vmatpush1.bf16.xpose.msra.mxu0 0
        %2661 = vmatprep.subr.bf16.mxu0 0
        %2662 = vmatpush1.bf16.xpose.msra.mxu0 0
        %2663 = vmatprep.subr.bf16.mxu0 0
        %2664 = vmatpush1.bf16.xpose.msra.mxu0 0
        %2665 = vmatprep.mubr.bf16.mxu0 0
        %2666 = vmatmul.mubr.bf16.gmra.mrb[0].mxu0 %v2628
        %v2667 = vpop.f32.mrb[0].mxu0
        %v2668 = vadd.f32 0.0, %v2667
        %v2669 = vpop.f32.mrb[0].mxu0
        %v2670 = vpop.f32.mrb[0].mxu0
        %v2671 = vpop.f32.mrb[0].mxu0
        %2672 = vdwg.mxu0
        %v2673 = vmul.f32 %v2346, 0.17677669
        %v2674 = vmul.f32 %v2392, 0.17677669
        %v2675 = vmul.f32 %v2438, 0.17677669
        %v2676 = vmul.f32 %v2484, 0.17677669
        %v2677 = vmul.f32 %v2530, 0.17677669
        %v2678 = vmul.f32 %v2576, 0.17677669
        %v2679 = vmul.f32 %v2622, 0.17677669
        %v2680 = vmul.f32 %v2668, 0.17677669
        %v2683 = vunpack.c.l.s4 1966171168
        %v2684 = vunpack.c.0.s8 %v2683
        %v2685 = vlaneseq
        %v2686 = vshrl.u32 %v2685, 7
        %v2687 = vsub.s32 %v2684, %v2686
        %v2688 = vrot.slane %v1923, %v2687
        %v2689 = vcombine.high %v2688, %v2688
        %v2691 = vunpack.c.l.s4 1966171168
        %v2692 = vunpack.c.0.s8 %v2691
        %v2693 = vlaneseq
        %v2694 = vshrl.u32 %v2693, 7
        %v2695 = vsub.s32 %v2692, %v2694
        %v2696 = vrot.slane %v2688, %v2695
        %v2698 = vunpack.c.l.s4 1966171168
        %v2699 = vunpack.c.0.s8 %v2698
        %v2700 = vlaneseq
        %v2701 = vshrl.u32 %v2700, 7
        %v2702 = vsub.s32 %v2699, %v2701
        %v2703 = vrot.slane %v2689, %v2702
        %v2704 = vcombine.high %v2696, %v2696
        %v2705 = vcombine.high %v2703, %v2703
        %v2706 = vlaneseq
        %v2707 = vshrl.u32 %v2706, 7
        %v2708 = vsub.s32 0, %v2707
        %v2709 = vrot.slane %v2696, %v2708
        %v2710 = vlaneseq
        %v2711 = vshrl.u32 %v2710, 7
        %v2712 = vsub.s32 0, %v2711
        %v2713 = vrot.slane %v2703, %v2712
        %v2714 = vlaneseq
        %v2715 = vshrl.u32 %v2714, 7
        %v2716 = vsub.s32 0, %v2715
        %v2717 = vrot.slane %v2704, %v2716
        %v2718 = vlaneseq
        %v2719 = vshrl.u32 %v2718, 7
        %v2720 = vsub.s32 0, %v2719
        %v2721 = vrot.slane %v2705, %v2720
        %v2726 = vmul.f32 %v2032, %v2709
        %v2727 = vmul.f32 %v2035, %v2709
        %v2728 = vmul.f32 %v2231, %v2713
        %v2729 = vmul.f32 %v2233, %v2713
        %v2730 = vmul.f32 %v2237, %v2717
        %v2731 = vmul.f32 %v2239, %v2717
        %v2732 = vmul.f32 %v2243, %v2721
        %v2733 = vmul.f32 %v2245, %v2721
        %v2734 = vsel %vm2304, %v2726, 0.0
        %2735 = vadd.xlane.f32.xlu0 %v2734
        %v2736 = vpop.xlane.xlu0 %2735
        %v2737 = vsel %vm2304, %v2727, 0.0
        %2738 = vadd.xlane.f32.xlu0 %v2737
        %v2739 = vpop.xlane.xlu0 %2738
        %v2740 = vsel %vm2304, %v2728, 0.0
        %2741 = vadd.xlane.f32.xlu0 %v2740
        %v2742 = vpop.xlane.xlu0 %2741
        %v2743 = vsel %vm2304, %v2729, 0.0
        %2744 = vadd.xlane.f32.xlu0 %v2743
        %v2745 = vpop.xlane.xlu0 %2744
        %v2746 = vsel %vm2304, %v2730, 0.0
        %2747 = vadd.xlane.f32.xlu0 %v2746
        %v2748 = vpop.xlane.xlu0 %2747
        %v2749 = vsel %vm2304, %v2731, 0.0
        %2750 = vadd.xlane.f32.xlu0 %v2749
        %v2751 = vpop.xlane.xlu0 %2750
        %v2752 = vsel %vm2304, %v2732, 0.0
        %2753 = vadd.xlane.f32.xlu0 %v2752
        %v2754 = vpop.xlane.xlu0 %2753
        %v2755 = vsel %vm2304, %v2733, 0.0
        %2756 = vadd.xlane.f32.xlu0 %v2755
        %v2757 = vpop.xlane.xlu0 %2756
        %v2758 = vmul.f32 %v2736, 0.17677669
        %v2759 = vmul.f32 %v2739, 0.17677669
        %v2760 = vmul.f32 %v2742, 0.17677669
        %v2761 = vmul.f32 %v2745, 0.17677669
        %v2762 = vmul.f32 %v2748, 0.17677669
        %v2763 = vmul.f32 %v2751, 0.17677669
        %v2764 = vmul.f32 %v2754, 0.17677669
        %v2765 = vmul.f32 %v2757, 0.17677669
        %vm2766 = vcmask 64512
        %v2767 = vsel %vm2766, %v2673, -inf
        %2768 = vmax.xlane.f32.xlu0 %v2767
        %v2769 = vpop.xlane.xlu0 %2768
        %v2770 = vsel %vm2766, %v2674, -inf
        %2771 = vmax.xlane.f32.xlu0 %v2770
        %v2772 = vpop.xlane.xlu0 %2771
        %v2773 = vsel %vm2766, %v2675, -inf
        %2774 = vmax.xlane.f32.xlu0 %v2773
        %v2775 = vpop.xlane.xlu0 %2774
        %v2776 = vsel %vm2766, %v2676, -inf
        %2777 = vmax.xlane.f32.xlu0 %v2776
        %v2778 = vpop.xlane.xlu0 %2777
        %v2779 = vsel %vm2766, %v2677, -inf
        %2780 = vmax.xlane.f32.xlu0 %v2779
        %v2781 = vpop.xlane.xlu0 %2780
        %v2782 = vsel %vm2766, %v2678, -inf
        %2783 = vmax.xlane.f32.xlu0 %v2782
        %v2784 = vpop.xlane.xlu0 %2783
        %v2785 = vsel %vm2766, %v2679, -inf
        %2786 = vmax.xlane.f32.xlu0 %v2785
        %v2787 = vpop.xlane.xlu0 %2786
        %v2788 = vsel %vm2766, %v2680, -inf
        %2789 = vmax.xlane.f32.xlu0 %v2788
        %v2790 = vpop.xlane.xlu0 %2789
        %v2791 = vmax.f32 %v2769, %v2758
        %v2792 = vmax.f32 %v2772, %v2759
        %v2793 = vmax.f32 %v2775, %v2760
        %v2794 = vmax.f32 %v2778, %v2761
        %v2795 = vmax.f32 %v2781, %v2762
        %v2796 = vmax.f32 %v2784, %v2763
        %v2797 = vmax.f32 %v2787, %v2764
        %v2798 = vmax.f32 %v2790, %v2765
        %v2799 = vsub.f32 %v2673, %v2791
        %v2800 = vsub.f32 %v2674, %v2792
        %v2801 = vsub.f32 %v2675, %v2793
        %v2802 = vsub.f32 %v2676, %v2794
        %v2803 = vsub.f32 %v2677, %v2795
        %v2804 = vsub.f32 %v2678, %v2796
        %v2805 = vsub.f32 %v2679, %v2797
        %v2806 = vsub.f32 %v2680, %v2798
        %v2807 = vmul.f32 %v2799, 1.442695
        %v2808 = vpow.pop %v2807
        %v2809 = vmul.f32 %v2800, 1.442695
        %v2810 = vpow.pop %v2809
        %v2811 = vmul.f32 %v2801, 1.442695
        %v2812 = vpow.pop %v2811
        %v2813 = vmul.f32 %v2802, 1.442695
        %v2814 = vpow.pop %v2813
        %v2815 = vmul.f32 %v2803, 1.442695
        %v2816 = vpow.pop %v2815
        %v2817 = vmul.f32 %v2804, 1.442695
        %v2818 = vpow.pop %v2817
        %v2819 = vmul.f32 %v2805, 1.442695
        %v2820 = vpow.pop %v2819
        %v2821 = vmul.f32 %v2806, 1.442695
        %v2822 = vpow.pop %v2821
        %v2823 = vsub.f32 %v2758, %v2791
        %v2824 = vsub.f32 %v2759, %v2792
        %v2825 = vsub.f32 %v2760, %v2793
        %v2826 = vsub.f32 %v2761, %v2794
        %v2827 = vsub.f32 %v2762, %v2795
        %v2828 = vsub.f32 %v2763, %v2796
        %v2829 = vsub.f32 %v2764, %v2797
        %v2830 = vsub.f32 %v2765, %v2798
        %v2831 = vmul.f32 %v2823, 1.442695
        %v2832 = vpow.pop %v2831
        %v2833 = vmul.f32 %v2824, 1.442695
        %v2834 = vpow.pop %v2833
        %v2835 = vmul.f32 %v2825, 1.442695
        %v2836 = vpow.pop %v2835
        %v2837 = vmul.f32 %v2826, 1.442695
        %v2838 = vpow.pop %v2837
        %v2839 = vmul.f32 %v2827, 1.442695
        %v2840 = vpow.pop %v2839
        %v2841 = vmul.f32 %v2828, 1.442695
        %v2842 = vpow.pop %v2841
        %v2843 = vmul.f32 %v2829, 1.442695
        %v2844 = vpow.pop %v2843
        %v2845 = vmul.f32 %v2830, 1.442695
        %v2846 = vpow.pop %v2845
        %v2847 = vsel %vm2766, %v2808, 0.0
        %2848 = vadd.xlane.f32.xlu0 %v2847
        %v2849 = vpop.xlane.xlu0 %2848
        %v2850 = vsel %vm2766, %v2810, 0.0
        %2851 = vadd.xlane.f32.xlu0 %v2850
        %v2852 = vpop.xlane.xlu0 %2851
        %v2853 = vsel %vm2766, %v2812, 0.0
        %2854 = vadd.xlane.f32.xlu0 %v2853
        %v2855 = vpop.xlane.xlu0 %2854
        %v2856 = vsel %vm2766, %v2814, 0.0
        %2857 = vadd.xlane.f32.xlu0 %v2856
        %v2858 = vpop.xlane.xlu0 %2857
        %v2859 = vsel %vm2766, %v2816, 0.0
        %2860 = vadd.xlane.f32.xlu0 %v2859
        %v2861 = vpop.xlane.xlu0 %2860
        %v2862 = vsel %vm2766, %v2818, 0.0
        %2863 = vadd.xlane.f32.xlu0 %v2862
        %v2864 = vpop.xlane.xlu0 %2863
        %v2865 = vsel %vm2766, %v2820, 0.0
        %2866 = vadd.xlane.f32.xlu0 %v2865
        %v2867 = vpop.xlane.xlu0 %2866
        %v2868 = vsel %vm2766, %v2822, 0.0
        %2869 = vadd.xlane.f32.xlu0 %v2868
        %v2870 = vpop.xlane.xlu0 %2869
        %v2871 = vadd.f32 %v2849, %v2832
        %v2872 = vadd.f32 %v2852, %v2834
        %v2873 = vadd.f32 %v2855, %v2836
        %v2874 = vadd.f32 %v2858, %v2838
        %v2875 = vadd.f32 %v2861, %v2840
        %v2876 = vadd.f32 %v2864, %v2842
        %v2877 = vadd.f32 %v2867, %v2844
        %v2878 = vadd.f32 %v2870, %v2846
        %v2879 = vrcp.pop %v2871
        %v2880 = vrcp.pop %v2872
        %v2881 = vrcp.pop %v2873
        %v2882 = vrcp.pop %v2874
        %v2883 = vrcp.pop %v2875
        %v2884 = vrcp.pop %v2876
        %v2885 = vrcp.pop %v2877
        %v2886 = vrcp.pop %v2878
        %v2887 = vpack.c.bf16 %v2808, %v2808
        %v2888 = vpack.c.bf16 %v2810, %v2810
        %v2889 = vpack.c.bf16 %v2812, %v2812
        %v2890 = vpack.c.bf16 %v2814, %v2814
        %v2891 = vpack.c.bf16 %v2816, %v2816
        %v2892 = vpack.c.bf16 %v2818, %v2818
        %v2893 = vpack.c.bf16 %v2820, %v2820
        %v2894 = vpack.c.bf16 %v2822, %v2822
        %v2895 = vpack.c.bf16 %v2222, %v2222
        %v2896 = vpack.c.bf16 %v2225, %v2225
        %v2897 = vpack.c.bf16 %v2271, %v2271
        %v2898 = vpack.c.bf16 %v2273, %v2273
        %v2899 = vpack.c.bf16 %v2277, %v2277
        %v2900 = vpack.c.bf16 %v2279, %v2279
        %v2901 = vpack.c.bf16 %v2283, %v2283
        %v2902 = vpack.c.bf16 %v2285, %v2285
        %v2904 = vsel %vm2766, %v2887, 0
        %vm2906 = vcmask 1043456
        %v2908 = vsel %vm2906, %v2895, 0
        %2910 = vmatprep.subr.bf16.mxu0 0
        %2911 = vmatpush1.bf16.msra.mxu0 %v2908
        %2912 = vmatprep.subr.bf16.mxu0 0
        %2913 = vmatpush1.bf16.msra.mxu0 0
        %2914 = vmatprep.subr.bf16.mxu0 0
        %2915 = vmatpush1.bf16.msra.mxu0 0
        %2916 = vmatprep.subr.bf16.mxu0 0
        %2917 = vmatpush1.bf16.msra.mxu0 0
        %2918 = vmatprep.subr.bf16.mxu0 0
        %2919 = vmatpush1.bf16.msra.mxu0 0
        %2920 = vmatprep.subr.bf16.mxu0 0
        %2921 = vmatpush1.bf16.msra.mxu0 0
        %2922 = vmatprep.subr.bf16.mxu0 0
        %2923 = vmatpush1.bf16.msra.mxu0 0
        %2924 = vmatprep.subr.bf16.mxu0 0
        %2925 = vmatpush1.bf16.msra.mxu0 0
        %2926 = vmatprep.subr.bf16.mxu0 0
        %2927 = vmatpush1.bf16.msra.mxu0 0
        %2928 = vmatprep.subr.bf16.mxu0 0
        %2929 = vmatpush1.bf16.msra.mxu0 0
        %2930 = vmatprep.subr.bf16.mxu0 0
        %2931 = vmatpush1.bf16.msra.mxu0 0
        %2932 = vmatprep.subr.bf16.mxu0 0
        %2933 = vmatpush1.bf16.msra.mxu0 0
        %2934 = vmatprep.subr.bf16.mxu0 0
        %2935 = vmatpush1.bf16.msra.mxu0 0
        %2936 = vmatprep.subr.bf16.mxu0 0
        %2937 = vmatpush1.bf16.msra.mxu0 0
        %2938 = vmatprep.subr.bf16.mxu0 0
        %2939 = vmatpush1.bf16.msra.mxu0 0
        %2940 = vmatprep.subr.bf16.mxu0 0
        %2941 = vmatpush1.bf16.msra.mxu0 0
        %2942 = vmatprep.mubr.bf16.mxu0 0
        %2943 = vmatmul.mubr.bf16.gmra.mrb[0].mxu0 %v2904
        %v2944 = vpop.f32.mrb[0].mxu0
        %v2945 = vadd.f32 0.0, %v2944
        %v2946 = vpop.f32.mrb[0].mxu0
        %v2947 = vpop.f32.mrb[0].mxu0
        %v2948 = vpop.f32.mrb[0].mxu0
        %2949 = vdwg.mxu0
        %v2951 = vsel %vm2766, %v2888, 0
        %v2954 = vsel %vm2906, %v2896, 0
        %2956 = vmatprep.subr.bf16.mxu0 0
        %2957 = vmatpush1.bf16.msra.mxu0 %v2954
        %2958 = vmatprep.subr.bf16.mxu0 0
        %2959 = vmatpush1.bf16.msra.mxu0 0
        %2960 = vmatprep.subr.bf16.mxu0 0
        %2961 = vmatpush1.bf16.msra.mxu0 0
        %2962 = vmatprep.subr.bf16.mxu0 0
        %2963 = vmatpush1.bf16.msra.mxu0 0
        %2964 = vmatprep.subr.bf16.mxu0 0
        %2965 = vmatpush1.bf16.msra.mxu0 0
        %2966 = vmatprep.subr.bf16.mxu0 0
        %2967 = vmatpush1.bf16.msra.mxu0 0
        %2968 = vmatprep.subr.bf16.mxu0 0
        %2969 = vmatpush1.bf16.msra.mxu0 0
        %2970 = vmatprep.subr.bf16.mxu0 0
        %2971 = vmatpush1.bf16.msra.mxu0 0
        %2972 = vmatprep.subr.bf16.mxu0 0
        %2973 = vmatpush1.bf16.msra.mxu0 0
        %2974 = vmatprep.subr.bf16.mxu0 0
        %2975 = vmatpush1.bf16.msra.mxu0 0
        %2976 = vmatprep.subr.bf16.mxu0 0
        %2977 = vmatpush1.bf16.msra.mxu0 0
        %2978 = vmatprep.subr.bf16.mxu0 0
        %2979 = vmatpush1.bf16.msra.mxu0 0
        %2980 = vmatprep.subr.bf16.mxu0 0
        %2981 = vmatpush1.bf16.msra.mxu0 0
        %2982 = vmatprep.subr.bf16.mxu0 0
        %2983 = vmatpush1.bf16.msra.mxu0 0
        %2984 = vmatprep.subr.bf16.mxu0 0
        %2985 = vmatpush1.bf16.msra.mxu0 0
        %2986 = vmatprep.subr.bf16.mxu0 0
        %2987 = vmatpush1.bf16.msra.mxu0 0
        %2988 = vmatprep.mubr.bf16.mxu0 0
        %2989 = vmatmul.mubr.bf16.gmra.mrb[0].mxu0 %v2951
        %v2990 = vpop.f32.mrb[0].mxu0
        %v2991 = vadd.f32 0.0, %v2990
        %v2992 = vpop.f32.mrb[0].mxu0
        %v2993 = vpop.f32.mrb[0].mxu0
        %v2994 = vpop.f32.mrb[0].mxu0
        %2995 = vdwg.mxu0
        %v2997 = vsel %vm2766, %v2889, 0
        %v3000 = vsel %vm2906, %v2897, 0
        %3002 = vmatprep.subr.bf16.mxu0 0
        %3003 = vmatpush1.bf16.msra.mxu0 %v3000
        %3004 = vmatprep.subr.bf16.mxu0 0
        %3005 = vmatpush1.bf16.msra.mxu0 0
        %3006 = vmatprep.subr.bf16.mxu0 0
        %3007 = vmatpush1.bf16.msra.mxu0 0
        %3008 = vmatprep.subr.bf16.mxu0 0
        %3009 = vmatpush1.bf16.msra.mxu0 0
        %3010 = vmatprep.subr.bf16.mxu0 0
        %3011 = vmatpush1.bf16.msra.mxu0 0
        %3012 = vmatprep.subr.bf16.mxu0 0
        %3013 = vmatpush1.bf16.msra.mxu0 0
        %3014 = vmatprep.subr.bf16.mxu0 0
        %3015 = vmatpush1.bf16.msra.mxu0 0
        %3016 = vmatprep.subr.bf16.mxu0 0
        %3017 = vmatpush1.bf16.msra.mxu0 0
        %3018 = vmatprep.subr.bf16.mxu0 0
        %3019 = vmatpush1.bf16.msra.mxu0 0
        %3020 = vmatprep.subr.bf16.mxu0 0
        %3021 = vmatpush1.bf16.msra.mxu0 0
        %3022 = vmatprep.subr.bf16.mxu0 0
        %3023 = vmatpush1.bf16.msra.mxu0 0
        %3024 = vmatprep.subr.bf16.mxu0 0
        %3025 = vmatpush1.bf16.msra.mxu0 0
        %3026 = vmatprep.subr.bf16.mxu0 0
        %3027 = vmatpush1.bf16.msra.mxu0 0
        %3028 = vmatprep.subr.bf16.mxu0 0
        %3029 = vmatpush1.bf16.msra.mxu0 0
        %3030 = vmatprep.subr.bf16.mxu0 0
        %3031 = vmatpush1.bf16.msra.mxu0 0
        %3032 = vmatprep.subr.bf16.mxu0 0
        %3033 = vmatpush1.bf16.msra.mxu0 0
        %3034 = vmatprep.mubr.bf16.mxu0 0
        %3035 = vmatmul.mubr.bf16.gmra.mrb[0].mxu0 %v2997
        %v3036 = vpop.f32.mrb[0].mxu0
        %v3037 = vadd.f32 0.0, %v3036
        %v3038 = vpop.f32.mrb[0].mxu0
        %v3039 = vpop.f32.mrb[0].mxu0
        %v3040 = vpop.f32.mrb[0].mxu0
        %3041 = vdwg.mxu0
        %v3043 = vsel %vm2766, %v2890, 0
        %v3046 = vsel %vm2906, %v2898, 0
        %3048 = vmatprep.subr.bf16.mxu0 0
        %3049 = vmatpush1.bf16.msra.mxu0 %v3046
        %3050 = vmatprep.subr.bf16.mxu0 0
        %3051 = vmatpush1.bf16.msra.mxu0 0
        %3052 = vmatprep.subr.bf16.mxu0 0
        %3053 = vmatpush1.bf16.msra.mxu0 0
        %3054 = vmatprep.subr.bf16.mxu0 0
        %3055 = vmatpush1.bf16.msra.mxu0 0
        %3056 = vmatprep.subr.bf16.mxu0 0
        %3057 = vmatpush1.bf16.msra.mxu0 0
        %3058 = vmatprep.subr.bf16.mxu0 0
        %3059 = vmatpush1.bf16.msra.mxu0 0
        %3060 = vmatprep.subr.bf16.mxu0 0
        %3061 = vmatpush1.bf16.msra.mxu0 0
        %3062 = vmatprep.subr.bf16.mxu0 0
        %3063 = vmatpush1.bf16.msra.mxu0 0
        %3064 = vmatprep.subr.bf16.mxu0 0
        %3065 = vmatpush1.bf16.msra.mxu0 0
        %3066 = vmatprep.subr.bf16.mxu0 0
        %3067 = vmatpush1.bf16.msra.mxu0 0
        %3068 = vmatprep.subr.bf16.mxu0 0
        %3069 = vmatpush1.bf16.msra.mxu0 0
        %3070 = vmatprep.subr.bf16.mxu0 0
        %3071 = vmatpush1.bf16.msra.mxu0 0
        %3072 = vmatprep.subr.bf16.mxu0 0
        %3073 = vmatpush1.bf16.msra.mxu0 0
        %3074 = vmatprep.subr.bf16.mxu0 0
        %3075 = vmatpush1.bf16.msra.mxu0 0
        %3076 = vmatprep.subr.bf16.mxu0 0
        %3077 = vmatpush1.bf16.msra.mxu0 0
        %3078 = vmatprep.subr.bf16.mxu0 0
        %3079 = vmatpush1.bf16.msra.mxu0 0
        %3080 = vmatprep.mubr.bf16.mxu0 0
        %3081 = vmatmul.mubr.bf16.gmra.mrb[0].mxu0 %v3043
        %v3082 = vpop.f32.mrb[0].mxu0
        %v3083 = vadd.f32 0.0, %v3082
        %v3084 = vpop.f32.mrb[0].mxu0
        %v3085 = vpop.f32.mrb[0].mxu0
        %v3086 = vpop.f32.mrb[0].mxu0
        %3087 = vdwg.mxu0
        %v3089 = vsel %vm2766, %v2891, 0
        %v3092 = vsel %vm2906, %v2899, 0
        %3094 = vmatprep.subr.bf16.mxu0 0
        %3095 = vmatpush1.bf16.msra.mxu0 %v3092
        %3096 = vmatprep.subr.bf16.mxu0 0
        %3097 = vmatpush1.bf16.msra.mxu0 0
        %3098 = vmatprep.subr.bf16.mxu0 0
        %3099 = vmatpush1.bf16.msra.mxu0 0
        %3100 = vmatprep.subr.bf16.mxu0 0
        %3101 = vmatpush1.bf16.msra.mxu0 0
        %3102 = vmatprep.subr.bf16.mxu0 0
        %3103 = vmatpush1.bf16.msra.mxu0 0
        %3104 = vmatprep.subr.bf16.mxu0 0
        %3105 = vmatpush1.bf16.msra.mxu0 0
        %3106 = vmatprep.subr.bf16.mxu0 0
        %3107 = vmatpush1.bf16.msra.mxu0 0
        %3108 = vmatprep.subr.bf16.mxu0 0
        %3109 = vmatpush1.bf16.msra.mxu0 0
        %3110 = vmatprep.subr.bf16.mxu0 0
        %3111 = vmatpush1.bf16.msra.mxu0 0
        %3112 = vmatprep.subr.bf16.mxu0 0
        %3113 = vmatpush1.bf16.msra.mxu0 0
        %3114 = vmatprep.subr.bf16.mxu0 0
        %3115 = vmatpush1.bf16.msra.mxu0 0
        %3116 = vmatprep.subr.bf16.mxu0 0
        %3117 = vmatpush1.bf16.msra.mxu0 0
        %3118 = vmatprep.subr.bf16.mxu0 0
        %3119 = vmatpush1.bf16.msra.mxu0 0
        %3120 = vmatprep.subr.bf16.mxu0 0
        %3121 = vmatpush1.bf16.msra.mxu0 0
        %3122 = vmatprep.subr.bf16.mxu0 0
        %3123 = vmatpush1.bf16.msra.mxu0 0
        %3124 = vmatprep.subr.bf16.mxu0 0
        %3125 = vmatpush1.bf16.msra.mxu0 0
        %3126 = vmatprep.mubr.bf16.mxu0 0
        %3127 = vmatmul.mubr.bf16.gmra.mrb[0].mxu0 %v3089
        %v3128 = vpop.f32.mrb[0].mxu0
        %v3129 = vadd.f32 0.0, %v3128
        %v3130 = vpop.f32.mrb[0].mxu0
        %v3131 = vpop.f32.mrb[0].mxu0
        %v3132 = vpop.f32.mrb[0].mxu0
        %3133 = vdwg.mxu0
        %v3135 = vsel %vm2766, %v2892, 0
        %v3138 = vsel %vm2906, %v2900, 0
        %3140 = vmatprep.subr.bf16.mxu0 0
        %3141 = vmatpush1.bf16.msra.mxu0 %v3138
        %3142 = vmatprep.subr.bf16.mxu0 0
        %3143 = vmatpush1.bf16.msra.mxu0 0
        %3144 = vmatprep.subr.bf16.mxu0 0
        %3145 = vmatpush1.bf16.msra.mxu0 0
        %3146 = vmatprep.subr.bf16.mxu0 0
        %3147 = vmatpush1.bf16.msra.mxu0 0
        %3148 = vmatprep.subr.bf16.mxu0 0
        %3149 = vmatpush1.bf16.msra.mxu0 0
        %3150 = vmatprep.subr.bf16.mxu0 0
        %3151 = vmatpush1.bf16.msra.mxu0 0
        %3152 = vmatprep.subr.bf16.mxu0 0
        %3153 = vmatpush1.bf16.msra.mxu0 0
        %3154 = vmatprep.subr.bf16.mxu0 0
        %3155 = vmatpush1.bf16.msra.mxu0 0
        %3156 = vmatprep.subr.bf16.mxu0 0
        %3157 = vmatpush1.bf16.msra.mxu0 0
        %3158 = vmatprep.subr.bf16.mxu0 0
        %3159 = vmatpush1.bf16.msra.mxu0 0
        %3160 = vmatprep.subr.bf16.mxu0 0
        %3161 = vmatpush1.bf16.msra.mxu0 0
        %3162 = vmatprep.subr.bf16.mxu0 0
        %3163 = vmatpush1.bf16.msra.mxu0 0
        %3164 = vmatprep.subr.bf16.mxu0 0
        %3165 = vmatpush1.bf16.msra.mxu0 0
        %3166 = vmatprep.subr.bf16.mxu0 0
        %3167 = vmatpush1.bf16.msra.mxu0 0
        %3168 = vmatprep.subr.bf16.mxu0 0
        %3169 = vmatpush1.bf16.msra.mxu0 0
        %3170 = vmatprep.subr.bf16.mxu0 0
        %3171 = vmatpush1.bf16.msra.mxu0 0
        %3172 = vmatprep.mubr.bf16.mxu0 0
        %3173 = vmatmul.mubr.bf16.gmra.mrb[0].mxu0 %v3135
        %v3174 = vpop.f32.mrb[0].mxu0
        %v3175 = vadd.f32 0.0, %v3174
        %v3176 = vpop.f32.mrb[0].mxu0
        %v3177 = vpop.f32.mrb[0].mxu0
        %v3178 = vpop.f32.mrb[0].mxu0
        %3179 = vdwg.mxu0
        %v3181 = vsel %vm2766, %v2893, 0
        %v3184 = vsel %vm2906, %v2901, 0
        %3186 = vmatprep.subr.bf16.mxu0 0
        %3187 = vmatpush1.bf16.msra.mxu0 %v3184
        %3188 = vmatprep.subr.bf16.mxu0 0
        %3189 = vmatpush1.bf16.msra.mxu0 0
        %3190 = vmatprep.subr.bf16.mxu0 0
        %3191 = vmatpush1.bf16.msra.mxu0 0
        %3192 = vmatprep.subr.bf16.mxu0 0
        %3193 = vmatpush1.bf16.msra.mxu0 0
        %3194 = vmatprep.subr.bf16.mxu0 0
        %3195 = vmatpush1.bf16.msra.mxu0 0
        %3196 = vmatprep.subr.bf16.mxu0 0
        %3197 = vmatpush1.bf16.msra.mxu0 0
        %3198 = vmatprep.subr.bf16.mxu0 0
        %3199 = vmatpush1.bf16.msra.mxu0 0
        %3200 = vmatprep.subr.bf16.mxu0 0
        %3201 = vmatpush1.bf16.msra.mxu0 0
        %3202 = vmatprep.subr.bf16.mxu0 0
        %3203 = vmatpush1.bf16.msra.mxu0 0
        %3204 = vmatprep.subr.bf16.mxu0 0
        %3205 = vmatpush1.bf16.msra.mxu0 0
        %3206 = vmatprep.subr.bf16.mxu0 0
        %3207 = vmatpush1.bf16.msra.mxu0 0
        %3208 = vmatprep.subr.bf16.mxu0 0
        %3209 = vmatpush1.bf16.msra.mxu0 0
        %3210 = vmatprep.subr.bf16.mxu0 0
        %3211 = vmatpush1.bf16.msra.mxu0 0
        %3212 = vmatprep.subr.bf16.mxu0 0
        %3213 = vmatpush1.bf16.msra.mxu0 0
        %3214 = vmatprep.subr.bf16.mxu0 0
        %3215 = vmatpush1.bf16.msra.mxu0 0
        %3216 = vmatprep.subr.bf16.mxu0 0
        %3217 = vmatpush1.bf16.msra.mxu0 0
        %3218 = vmatprep.mubr.bf16.mxu0 0
        %3219 = vmatmul.mubr.bf16.gmra.mrb[0].mxu0 %v3181
        %v3220 = vpop.f32.mrb[0].mxu0
        %v3221 = vadd.f32 0.0, %v3220
        %v3222 = vpop.f32.mrb[0].mxu0
        %v3223 = vpop.f32.mrb[0].mxu0
        %v3224 = vpop.f32.mrb[0].mxu0
        %3225 = vdwg.mxu0
        %v3227 = vsel %vm2766, %v2894, 0
        %v3230 = vsel %vm2906, %v2902, 0
        %3232 = vmatprep.subr.bf16.mxu0 0
        %3233 = vmatpush1.bf16.msra.mxu0 %v3230
        %3234 = vmatprep.subr.bf16.mxu0 0
        %3235 = vmatpush1.bf16.msra.mxu0 0
        %3236 = vmatprep.subr.bf16.mxu0 0
        %3237 = vmatpush1.bf16.msra.mxu0 0
        %3238 = vmatprep.subr.bf16.mxu0 0
        %3239 = vmatpush1.bf16.msra.mxu0 0
        %3240 = vmatprep.subr.bf16.mxu0 0
        %3241 = vmatpush1.bf16.msra.mxu0 0
        %3242 = vmatprep.subr.bf16.mxu0 0
        %3243 = vmatpush1.bf16.msra.mxu0 0
        %3244 = vmatprep.subr.bf16.mxu0 0
        %3245 = vmatpush1.bf16.msra.mxu0 0
        %3246 = vmatprep.subr.bf16.mxu0 0
        %3247 = vmatpush1.bf16.msra.mxu0 0
        %3248 = vmatprep.subr.bf16.mxu0 0
        %3249 = vmatpush1.bf16.msra.mxu0 0
        %3250 = vmatprep.subr.bf16.mxu0 0
        %3251 = vmatpush1.bf16.msra.mxu0 0
        %3252 = vmatprep.subr.bf16.mxu0 0
        %3253 = vmatpush1.bf16.msra.mxu0 0
        %3254 = vmatprep.subr.bf16.mxu0 0
        %3255 = vmatpush1.bf16.msra.mxu0 0
        %3256 = vmatprep.subr.bf16.mxu0 0
        %3257 = vmatpush1.bf16.msra.mxu0 0
        %3258 = vmatprep.subr.bf16.mxu0 0
        %3259 = vmatpush1.bf16.msra.mxu0 0
        %3260 = vmatprep.subr.bf16.mxu0 0
        %3261 = vmatpush1.bf16.msra.mxu0 0
        %3262 = vmatprep.subr.bf16.mxu0 0
        %3263 = vmatpush1.bf16.msra.mxu0 0
        %3264 = vmatprep.mubr.bf16.mxu0 0
        %3265 = vmatmul.mubr.bf16.gmra.mrb[0].mxu0 %v3227
        %v3266 = vpop.f32.mrb[0].mxu0
        %v3267 = vadd.f32 0.0, %v3266
        %v3268 = vpop.f32.mrb[0].mxu0
        %v3269 = vpop.f32.mrb[0].mxu0
        %v3270 = vpop.f32.mrb[0].mxu0
        %3271 = vdwg.mxu0
        %v3272 = vmul.f32 %v2945, %v2879
        %v3273 = vmul.f32 %v2991, %v2880
        %v3274 = vmul.f32 %v3037, %v2881
        %v3275 = vmul.f32 %v3083, %v2882
        %v3276 = vmul.f32 %v3129, %v2883
        %v3277 = vmul.f32 %v3175, %v2884
        %v3278 = vmul.f32 %v3221, %v2885
        %v3279 = vmul.f32 %v3267, %v2886
        %v3280 = vmul.f32 %v2832, %v2879
        %v3281 = vmul.f32 %v2834, %v2880
        %v3282 = vmul.f32 %v2836, %v2881
        %v3283 = vmul.f32 %v2838, %v2882
        %v3284 = vmul.f32 %v2840, %v2883
        %v3285 = vmul.f32 %v2842, %v2884
        %v3286 = vmul.f32 %v2844, %v2885
        %v3287 = vmul.f32 %v2846, %v2886
        %v3290 = vunpack.c.l.s4 1966171168
        %v3291 = vunpack.c.0.s8 %v3290
        %v3292 = vlaneseq
        %v3293 = vshrl.u32 %v3292, 7
        %v3294 = vsub.s32 %v3291, %v3293
        %v3295 = vrot.slane %v1924, %v3294
        %v3296 = vcombine.high %v3295, %v3295
        %v3298 = vunpack.c.l.s4 1966171168
        %v3299 = vunpack.c.0.s8 %v3298
        %v3300 = vlaneseq
        %v3301 = vshrl.u32 %v3300, 7
        %v3302 = vsub.s32 %v3299, %v3301
        %v3303 = vrot.slane %v3295, %v3302
        %v3305 = vunpack.c.l.s4 1966171168
        %v3306 = vunpack.c.0.s8 %v3305
        %v3307 = vlaneseq
        %v3308 = vshrl.u32 %v3307, 7
        %v3309 = vsub.s32 %v3306, %v3308
        %v3310 = vrot.slane %v3296, %v3309
        %v3311 = vcombine.high %v3303, %v3303
        %v3312 = vcombine.high %v3310, %v3310
        %v3313 = vlaneseq
        %v3314 = vshrl.u32 %v3313, 7
        %v3315 = vsub.s32 0, %v3314
        %v3316 = vrot.slane %v3303, %v3315
        %v3317 = vlaneseq
        %v3318 = vshrl.u32 %v3317, 7
        %v3319 = vsub.s32 0, %v3318
        %v3320 = vrot.slane %v3310, %v3319
        %v3321 = vlaneseq
        %v3322 = vshrl.u32 %v3321, 7
        %v3323 = vsub.s32 0, %v3322
        %v3324 = vrot.slane %v3311, %v3323
        %v3325 = vlaneseq
        %v3326 = vshrl.u32 %v3325, 7
        %v3327 = vsub.s32 0, %v3326
        %v3328 = vrot.slane %v3312, %v3327
        %v3333 = vmul.f32 %v3280, %v3316
        %v3334 = vmul.f32 %v3281, %v3316
        %v3335 = vmul.f32 %v3282, %v3320
        %v3336 = vmul.f32 %v3283, %v3320
        %v3337 = vmul.f32 %v3284, %v3324
        %v3338 = vmul.f32 %v3285, %v3324
        %v3339 = vmul.f32 %v3286, %v3328
        %v3340 = vmul.f32 %v3287, %v3328
        %v3341 = vadd.f32 %v3272, %v3333
        %v3342 = vadd.f32 %v3273, %v3334
        %v3343 = vadd.f32 %v3274, %v3335
        %v3344 = vadd.f32 %v3275, %v3336
        %v3345 = vadd.f32 %v3276, %v3337
        %v3346 = vadd.f32 %v3277, %v3338
        %v3347 = vadd.f32 %v3278, %v3339
        %v3348 = vadd.f32 %v3279, %v3340
        %v3349 = vpack.c.bf16 %v3342, %v3341
        %v3350 = vpack.c.bf16 %v3344, %v3343
        %v3355 = vunpack.c.l.b16 %v1929
        %v3356 = vunpack.c.l.b16 %v1930
        %v3357 = vunpack.c.l.b16 %v1931
        %v3358 = vunpack.c.l.b16 %v1932
        %v3359 = vpack.c.b16 %v3356, %v3355
        %v3360 = vpack.c.b16 %v3358, %v3357
        %v3364 = vsel %vm2304, %v3350, 0
        %3366 = vmatprep.subr.bf16.mxu0 0
        %3367 = vmatpush1.bf16.msra.mxu0 %v3359
        %3368 = vmatprep.subr.bf16.mxu0 0
        %3369 = vmatpush1.bf16.msra.mxu0 %v3360
        %3370 = vmatprep.subr.bf16.mxu0 0
        %3371 = vmatpush1.bf16.msra.mxu0 0
        %3372 = vmatprep.subr.bf16.mxu0 0
        %3373 = vmatpush1.bf16.msra.mxu0 0
        %3374 = vmatprep.subr.bf16.mxu0 0
        %3375 = vmatpush1.bf16.msra.mxu0 0
        %3376 = vmatprep.subr.bf16.mxu0 0
        %3377 = vmatpush1.bf16.msra.mxu0 0
        %3378 = vmatprep.subr.bf16.mxu0 0
        %3379 = vmatpush1.bf16.msra.mxu0 0
        %3380 = vmatprep.subr.bf16.mxu0 0
        %3381 = vmatpush1.bf16.msra.mxu0 0
        %3382 = vmatprep.subr.bf16.mxu0 0
        %3383 = vmatpush1.bf16.msra.mxu0 0
        %3384 = vmatprep.subr.bf16.mxu0 0
        %3385 = vmatpush1.bf16.msra.mxu0 0
        %3386 = vmatprep.subr.bf16.mxu0 0
        %3387 = vmatpush1.bf16.msra.mxu0 0
        %3388 = vmatprep.subr.bf16.mxu0 0
        %3389 = vmatpush1.bf16.msra.mxu0 0
        %3390 = vmatprep.subr.bf16.mxu0 0
        %3391 = vmatpush1.bf16.msra.mxu0 0
        %3392 = vmatprep.subr.bf16.mxu0 0
        %3393 = vmatpush1.bf16.msra.mxu0 0
        %3394 = vmatprep.subr.bf16.mxu0 0
        %3395 = vmatpush1.bf16.msra.mxu0 0
        %3396 = vmatprep.subr.bf16.mxu0 0
        %3397 = vmatpush1.bf16.msra.mxu0 0
        %3398 = vmatprep.mubr.bf16.mxu0 0
        %3399 = vmatmul.mubr.bf16.gmra.mrb[0].mxu0 %v3364
        %v3400 = vpop.f32.mrb[0].mxu0
        %v3401 = vadd.f32 0.0, %v3400
        %v3402 = vpop.f32.mrb[0].mxu0
        %v3403 = vpop.f32.mrb[0].mxu0
        %v3404 = vadd.f32 0.0, %v3403
        %v3405 = vpop.f32.mrb[0].mxu0
        %3406 = vdwg.mxu0
        %v3411 = vunpack.c.l.b16 %v1925
        %v3412 = vunpack.c.l.b16 %v1926
        %v3413 = vunpack.c.l.b16 %v1927
        %v3414 = vunpack.c.l.b16 %v1928
        %v3415 = vpack.c.b16 %v3412, %v3411
        %v3416 = vpack.c.b16 %v3414, %v3413
        %v3420 = vsel %vm2304, %v3349, 0
        %3422 = vmatprep.subr.bf16.mxu0 0
        %3423 = vmatpush1.bf16.msra.mxu0 %v3415
        %3424 = vmatprep.subr.bf16.mxu0 0
        %3425 = vmatpush1.bf16.msra.mxu0 %v3416
        %3426 = vmatprep.subr.bf16.mxu0 0
        %3427 = vmatpush1.bf16.msra.mxu0 0
        %3428 = vmatprep.subr.bf16.mxu0 0
        %3429 = vmatpush1.bf16.msra.mxu0 0
        %3430 = vmatprep.subr.bf16.mxu0 0
        %3431 = vmatpush1.bf16.msra.mxu0 0
        %3432 = vmatprep.subr.bf16.mxu0 0
        %3433 = vmatpush1.bf16.msra.mxu0 0
        %3434 = vmatprep.subr.bf16.mxu0 0
        %3435 = vmatpush1.bf16.msra.mxu0 0
        %3436 = vmatprep.subr.bf16.mxu0 0
        %3437 = vmatpush1.bf16.msra.mxu0 0
        %3438 = vmatprep.subr.bf16.mxu0 0
        %3439 = vmatpush1.bf16.msra.mxu0 0
        %3440 = vmatprep.subr.bf16.mxu0 0
        %3441 = vmatpush1.bf16.msra.mxu0 0
        %3442 = vmatprep.subr.bf16.mxu0 0
        %3443 = vmatpush1.bf16.msra.mxu0 0
        %3444 = vmatprep.subr.bf16.mxu0 0
        %3445 = vmatpush1.bf16.msra.mxu0 0
        %3446 = vmatprep.subr.bf16.mxu0 0
        %3447 = vmatpush1.bf16.msra.mxu0 0
        %3448 = vmatprep.subr.bf16.mxu0 0
        %3449 = vmatpush1.bf16.msra.mxu0 0
        %3450 = vmatprep.subr.bf16.mxu0 0
        %3451 = vmatpush1.bf16.msra.mxu0 0
        %3452 = vmatprep.subr.bf16.mxu0 0
        %3453 = vmatpush1.bf16.msra.mxu0 0
        %3454 = vmatprep.mubr.bf16.mxu0 0
        %3455 = vmatmul.mubr.bf16.gmra.mrb[0].mxu0 %v3420
        %v3456 = vpop.f32.mrb[0].mxu0
        %v3457 = vadd.f32 %v3401, %v3456
        %v3458 = vpop.f32.mrb[0].mxu0
        %v3459 = vpop.f32.mrb[0].mxu0
        %v3460 = vadd.f32 %v3404, %v3459
        %v3461 = vpop.f32.mrb[0].mxu0
        %3462 = vdwg.mxu0
        %v3463 = vpack.c.bf16 %v3346, %v3345
        %v3468 = vunpack.c.l.b16 %v1933
        %v3469 = vunpack.c.l.b16 %v1934
        %v3470 = vunpack.c.l.b16 %v1935
        %v3471 = vunpack.c.l.b16 %v1936
        %v3472 = vpack.c.b16 %v3469, %v3468
        %v3473 = vpack.c.b16 %v3471, %v3470
        %v3477 = vsel %vm2304, %v3463, 0
        %3479 = vmatprep.subr.bf16.mxu0 0
        %3480 = vmatpush1.bf16.msra.mxu0 %v3472
        %3481 = vmatprep.subr.bf16.mxu0 0
        %3482 = vmatpush1.bf16.msra.mxu0 %v3473
        %3483 = vmatprep.subr.bf16.mxu0 0
        %3484 = vmatpush1.bf16.msra.mxu0 0
        %3485 = vmatprep.subr.bf16.mxu0 0
        %3486 = vmatpush1.bf16.msra.mxu0 0
        %3487 = vmatprep.subr.bf16.mxu0 0
        %3488 = vmatpush1.bf16.msra.mxu0 0
        %3489 = vmatprep.subr.bf16.mxu0 0
        %3490 = vmatpush1.bf16.msra.mxu0 0
        %3491 = vmatprep.subr.bf16.mxu0 0
        %3492 = vmatpush1.bf16.msra.mxu0 0
        %3493 = vmatprep.subr.bf16.mxu0 0
        %3494 = vmatpush1.bf16.msra.mxu0 0
        %3495 = vmatprep.subr.bf16.mxu0 0
        %3496 = vmatpush1.bf16.msra.mxu0 0
        %3497 = vmatprep.subr.bf16.mxu0 0
        %3498 = vmatpush1.bf16.msra.mxu0 0
        %3499 = vmatprep.subr.bf16.mxu0 0
        %3500 = vmatpush1.bf16.msra.mxu0 0
        %3501 = vmatprep.subr.bf16.mxu0 0
        %3502 = vmatpush1.bf16.msra.mxu0 0
        %3503 = vmatprep.subr.bf16.mxu0 0
        %3504 = vmatpush1.bf16.msra.mxu0 0
        %3505 = vmatprep.subr.bf16.mxu0 0
        %3506 = vmatpush1.bf16.msra.mxu0 0
        %3507 = vmatprep.subr.bf16.mxu0 0
        %3508 = vmatpush1.bf16.msra.mxu0 0
        %3509 = vmatprep.subr.bf16.mxu0 0
        %3510 = vmatpush1.bf16.msra.mxu0 0
        %3511 = vmatprep.mubr.bf16.mxu0 0
        %3512 = vmatmul.mubr.bf16.gmra.mrb[0].mxu0 %v3477
        %v3513 = vpop.f32.mrb[0].mxu0
        %v3514 = vadd.f32 0.0, %v3513
        %v3515 = vpop.f32.mrb[0].mxu0
        %v3516 = vpop.f32.mrb[0].mxu0
        %v3517 = vadd.f32 0.0, %v3516
        %v3518 = vpop.f32.mrb[0].mxu0
        %3519 = vdwg.mxu0
        %v3520 = vadd.f32 %v3457, %v3514
        %v3521 = vadd.f32 %v3460, %v3517
        %v3522 = vpack.c.bf16 %v3348, %v3347
        %v3527 = vunpack.c.l.b16 %v1937
        %v3528 = vunpack.c.l.b16 %v1938
        %v3529 = vunpack.c.l.b16 %v1939
        %v3530 = vunpack.c.l.b16 %v1940
        %v3531 = vpack.c.b16 %v3528, %v3527
        %v3532 = vpack.c.b16 %v3530, %v3529
        %v3536 = vsel %vm2304, %v3522, 0
        %3538 = vmatprep.subr.bf16.mxu0 0
        %3539 = vmatpush1.bf16.msra.mxu0 %v3531
        %3540 = vmatprep.subr.bf16.mxu0 0
        %3541 = vmatpush1.bf16.msra.mxu0 %v3532
        %3542 = vmatprep.subr.bf16.mxu0 0
        %3543 = vmatpush1.bf16.msra.mxu0 0
        %3544 = vmatprep.subr.bf16.mxu0 0
        %3545 = vmatpush1.bf16.msra.mxu0 0
        %3546 = vmatprep.subr.bf16.mxu0 0
        %3547 = vmatpush1.bf16.msra.mxu0 0
        %3548 = vmatprep.subr.bf16.mxu0 0
        %3549 = vmatpush1.bf16.msra.mxu0 0
        %3550 = vmatprep.subr.bf16.mxu0 0
        %3551 = vmatpush1.bf16.msra.mxu0 0
        %3552 = vmatprep.subr.bf16.mxu0 0
        %3553 = vmatpush1.bf16.msra.mxu0 0
        %3554 = vmatprep.subr.bf16.mxu0 0
        %3555 = vmatpush1.bf16.msra.mxu0 0
        %3556 = vmatprep.subr.bf16.mxu0 0
        %3557 = vmatpush1.bf16.msra.mxu0 0
        %3558 = vmatprep.subr.bf16.mxu0 0
        %3559 = vmatpush1.bf16.msra.mxu0 0
        %3560 = vmatprep.subr.bf16.mxu0 0
        %3561 = vmatpush1.bf16.msra.mxu0 0
        %3562 = vmatprep.subr.bf16.mxu0 0
        %3563 = vmatpush1.bf16.msra.mxu0 0
        %3564 = vmatprep.subr.bf16.mxu0 0
        %3565 = vmatpush1.bf16.msra.mxu0 0
        %3566 = vmatprep.subr.bf16.mxu0 0
        %3567 = vmatpush1.bf16.msra.mxu0 0
        %3568 = vmatprep.subr.bf16.mxu0 0
        %3569 = vmatpush1.bf16.msra.mxu0 0
        %3570 = vmatprep.mubr.bf16.mxu0 0
        %3571 = vmatmul.mubr.bf16.gmra.mrb[0].mxu0 %v3536
        %v3572 = vpop.f32.mrb[0].mxu0
        %v3573 = vadd.f32 0.0, %v3572
        %v3574 = vpop.f32.mrb[0].mxu0
        %v3575 = vpop.f32.mrb[0].mxu0
        %v3576 = vadd.f32 0.0, %v3575
        %v3577 = vpop.f32.mrb[0].mxu0
        %3578 = vdwg.mxu0
        %v3579 = vadd.f32 %v3520, %v3573
        %v3580 = vadd.f32 %v3521, %v3576
        %v3582 = vlaneseq
        %v3583 = vshrl.u32 %v3582, 7
        %v3584 = vsub.s32 0, %v3583
        %v3585 = vrot.slane %v1941, %v3584
        %v3587 = vadd.f32 %v3579, %v3585
        %v3588 = vadd.f32 %v3580, %v3585
        %v3589 = vlaneseq
        %v3590 = vshrl.u32 %v3589, 7
        %v3591 = vsub.s32 0, %v3590
        %v3592 = vrot.slane %v1742, %v3591
        %v3593 = vlaneseq
        %v3594 = vshrl.u32 %v3593, 7
        %v3595 = vsub.s32 0, %v3594
        %v3596 = vrot.slane %v1749, %v3595
        %v3599 = vmul.f32 %v3592, %v3587
        %v3600 = vmul.f32 %v3596, %v3588
        %v3601 = vadd.f32 %v1222, %v3599
        %v3602 = vadd.f32 %v1223, %v3600
        %3603 = vadd.xlane.f32.xlu0 %v3601
        %v3604 = vpop.xlane.xlu0 %3603
        %3605 = vadd.xlane.f32.xlu0 %v3602
        %v3606 = vpop.xlane.xlu0 %3605
        %v3607 = vmul.f32 %v3604, %v1825
        %v3608 = vmul.f32 %v3606, %v1825
        %v3609 = vsub.f32 %v3601, %v3607
        %v3610 = vsub.f32 %v3602, %v3608
        %v3611 = vmul.f32 %v3609, %v3609
        %v3612 = vmul.f32 %v3610, %v3610
        %3613 = vadd.xlane.f32.xlu0 %v3611
        %v3614 = vpop.xlane.xlu0 %3613
        %3615 = vadd.xlane.f32.xlu0 %v3612
        %v3616 = vpop.xlane.xlu0 %3615
        %v3617 = vmul.f32 %v3614, %v1825
        %v3618 = vmul.f32 %v3616, %v1825
        %v3619 = vadd.f32 %v3617, 1e-06
        %v3620 = vadd.f32 %v3618, 1e-06
        %v3621 = vrsqrt.pop %v3619
        %v3622 = vrsqrt.pop %v3620
        %v3623 = vmul.f32 %v3609, %v3621
        %v3624 = vmul.f32 %v3610, %v3622
        %v3625 = vld [vmem:[#allocation26] sm:$0xf]
        %v3626 = vld [vmem:[#allocation26 + $0x4] sm:$0xf]
        %v3627 = vld [vmem:[#allocation26 + $0x8] sm:$0xf]
        %v3628 = vld [vmem:[#allocation26 + $0xc] sm:$0xf]
        %v3629 = vld [vmem:[#allocation26 + $0x10] sm:$0xf]
        %v3630 = vld [vmem:[#allocation26 + $0x14] sm:$0xf]
        %v3631 = vld [vmem:[#allocation26 + $0x18] sm:$0xf]
        %v3632 = vld [vmem:[#allocation26 + $0x1c] sm:$0xf]
        %v3633 = vld [vmem:[#allocation26 + $0x20] sm:$0xf]
        %v3634 = vld [vmem:[#allocation26 + $0x24] sm:$0xf]
        %v3635 = vld [vmem:[#allocation26 + $0x28] sm:$0xf]
        %v3636 = vld [vmem:[#allocation26 + $0x2c] sm:$0xf]
        %v3637 = vld [vmem:[#allocation26 + $0x30] sm:$0xf]
        %v3638 = vld [vmem:[#allocation26 + $0x34] sm:$0xf]
        %v3639 = vld [vmem:[#allocation26 + $0x38] sm:$0xf]
        %v3640 = vld [vmem:[#allocation26 + $0x3c] sm:$0xf]
        %v3641 = vld [vmem:[#allocation28] sm:$0xf]
        %v3642 = vld [vmem:[#allocation28 + $0x4] sm:$0xf]
        %v3643 = vld [vmem:[#allocation28 + $0x8] sm:$0xf]
        %v3644 = vld [vmem:[#allocation28 + $0xc] sm:$0xf]
        %v3645 = vld [vmem:[#allocation28 + $0x10] sm:$0xf]
        %v3646 = vld [vmem:[#allocation28 + $0x14] sm:$0xf]
        %v3647 = vld [vmem:[#allocation28 + $0x18] sm:$0xf]
        %v3648 = vld [vmem:[#allocation28 + $0x1c] sm:$0xf]
        %v3649 = vld [vmem:[#allocation28 + $0x20] sm:$0xf]
        %v3650 = vld [vmem:[#allocation28 + $0x24] sm:$0xf]
        %v3651 = vld [vmem:[#allocation28 + $0x28] sm:$0xf]
        %v3652 = vld [vmem:[#allocation28 + $0x2c] sm:$0xf]
        %v3653 = vld [vmem:[#allocation28 + $0x30] sm:$0xf]
        %v3654 = vld [vmem:[#allocation28 + $0x34] sm:$0xf]
        %v3655 = vld [vmem:[#allocation28 + $0x38] sm:$0xf]
        %v3656 = vld [vmem:[#allocation28 + $0x3c] sm:$0xf]
        %v3657 = vld [vmem:[%s35] sm:$0xf]
        %v3658 = vld [vmem:[%s35 + $0x4] sm:$0xf]
        %v3659 = vld [vmem:[%s35 + $0x8] sm:$0xf]
        %v3660 = vld [vmem:[%s35 + $0xc] sm:$0xf]
        %v3661 = vld [vmem:[%s35 + $0x10] sm:$0xf]
        %v3662 = vld [vmem:[%s35 + $0x14] sm:$0xf]
        %v3663 = vld [vmem:[%s35 + $0x18] sm:$0xf]
        %v3664 = vld [vmem:[%s35 + $0x1c] sm:$0xf]
        %v3665 = vld [vmem:[%s35 + $0x20] sm:$0xf]
        %v3666 = vld [vmem:[%s35 + $0x24] sm:$0xf]
        %v3667 = vld [vmem:[%s35 + $0x28] sm:$0xf]
        %v3668 = vld [vmem:[%s35 + $0x2c] sm:$0xf]
        %v3669 = vld [vmem:[%s35 + $0x30] sm:$0xf]
        %v3670 = vld [vmem:[%s35 + $0x34] sm:$0xf]
        %v3671 = vld [vmem:[%s35 + $0x38] sm:$0xf]
        %v3672 = vld [vmem:[%s35 + $0x3c] sm:$0xf]
        %v3673 = vld [vmem:[#allocation29] sm:$0x1]
        %v3674 = vld [vmem:[%s39] sm:$0x1]
        %v3675 = vld [vmem:[%s41] sm:$0x1]
        %v3676 = vld [vmem:[%s43] sm:$0xf]
        %v3677 = vld [vmem:[%s45] sm:$0xf]
        %v3678 = vld [vmem:[#allocation31] sm:$0xf]
        %v3679 = vld [vmem:[#allocation31 + $0x4] sm:$0xf]
        %v3680 = vld [vmem:[#allocation31 + $0x8] sm:$0xf]
        %v3681 = vld [vmem:[#allocation31 + $0xc] sm:$0xf]
        %v3682 = vld [vmem:[#allocation31 + $0x10] sm:$0xf]
        %v3683 = vld [vmem:[#allocation31 + $0x14] sm:$0xf]
        %v3684 = vld [vmem:[#allocation31 + $0x18] sm:$0xf]
        %v3685 = vld [vmem:[#allocation31 + $0x1c] sm:$0xf]
        %v3686 = vld [vmem:[#allocation31 + $0x20] sm:$0xf]
        %v3687 = vld [vmem:[#allocation31 + $0x24] sm:$0xf]
        %v3688 = vld [vmem:[#allocation31 + $0x28] sm:$0xf]
        %v3689 = vld [vmem:[#allocation31 + $0x2c] sm:$0xf]
        %v3690 = vld [vmem:[#allocation31 + $0x30] sm:$0xf]
        %v3691 = vld [vmem:[#allocation31 + $0x34] sm:$0xf]
        %v3692 = vld [vmem:[#allocation31 + $0x38] sm:$0xf]
        %v3693 = vld [vmem:[#allocation31 + $0x3c] sm:$0xf]
        %v3694 = vld [vmem:[%s49] sm:$0x1]
        %v3695 = vpack.c.bf16 %v3624, %v3623
        %v3697 = vlaneseq
        %v3698 = vshrl.u32 %v3697, 7
        %v3699 = vsub.s32 0, %v3698
        %v3700 = vrot.slane %v3673, %v3699
        %v3718 = vunpack.c.l.b16 %v3625
        %v3719 = vunpack.c.l.b16 %v3626
        %v3720 = vunpack.c.l.b16 %v3627
        %v3721 = vunpack.c.l.b16 %v3628
        %v3722 = vunpack.c.l.b16 %v3629
        %v3723 = vunpack.c.l.b16 %v3630
        %v3724 = vunpack.c.l.b16 %v3631
        %v3725 = vunpack.c.l.b16 %v3632
        %v3726 = vunpack.c.l.b16 %v3633
        %v3727 = vunpack.c.l.b16 %v3634
        %v3728 = vunpack.c.l.b16 %v3635
        %v3729 = vunpack.c.l.b16 %v3636
        %v3730 = vunpack.c.l.b16 %v3637
        %v3731 = vunpack.c.l.b16 %v3638
        %v3732 = vunpack.c.l.b16 %v3639
        %v3733 = vunpack.c.l.b16 %v3640
        %v3734 = vpack.c.b16 %v3719, %v3718
        %v3735 = vpack.c.b16 %v3721, %v3720
        %v3736 = vpack.c.b16 %v3723, %v3722
        %v3737 = vpack.c.b16 %v3725, %v3724
        %v3738 = vpack.c.b16 %v3727, %v3726
        %v3739 = vpack.c.b16 %v3729, %v3728
        %v3740 = vpack.c.b16 %v3731, %v3730
        %v3741 = vpack.c.b16 %v3733, %v3732
        %3750 = vmatprep.subr.bf16.mxu0 0
        %3751 = vmatpush1.bf16.msra.mxu0 %v3734
        %3752 = vmatprep.subr.bf16.mxu0 0
        %3753 = vmatpush1.bf16.msra.mxu0 %v3735
        %3754 = vmatprep.subr.bf16.mxu0 0
        %3755 = vmatpush1.bf16.msra.mxu0 %v3736
        %3756 = vmatprep.subr.bf16.mxu0 0
        %3757 = vmatpush1.bf16.msra.mxu0 %v3737
        %3758 = vmatprep.subr.bf16.mxu0 0
        %3759 = vmatpush1.bf16.msra.mxu0 %v3738
        %3760 = vmatprep.subr.bf16.mxu0 0
        %3761 = vmatpush1.bf16.msra.mxu0 %v3739
        %3762 = vmatprep.subr.bf16.mxu0 0
        %3763 = vmatpush1.bf16.msra.mxu0 %v3740
        %3764 = vmatprep.subr.bf16.mxu0 0
        %3765 = vmatpush1.bf16.msra.mxu0 %v3741
        %3766 = vmatprep.subr.bf16.mxu0 0
        %3767 = vmatpush1.bf16.msra.mxu0 0
        %3768 = vmatprep.subr.bf16.mxu0 0
        %3769 = vmatpush1.bf16.msra.mxu0 0
        %3770 = vmatprep.subr.bf16.mxu0 0
        %3771 = vmatpush1.bf16.msra.mxu0 0
        %3772 = vmatprep.subr.bf16.mxu0 0
        %3773 = vmatpush1.bf16.msra.mxu0 0
        %3774 = vmatprep.subr.bf16.mxu0 0
        %3775 = vmatpush1.bf16.msra.mxu0 0
        %3776 = vmatprep.subr.bf16.mxu0 0
        %3777 = vmatpush1.bf16.msra.mxu0 0
        %3778 = vmatprep.subr.bf16.mxu0 0
        %3779 = vmatpush1.bf16.msra.mxu0 0
        %3780 = vmatprep.subr.bf16.mxu0 0
        %3781 = vmatpush1.bf16.msra.mxu0 0
        %3782 = vmatprep.mubr.bf16.mxu0 0
        %3783 = vmatmul.mubr.bf16.gmra.mrb[0].mxu0 %v3695
        %v3784 = vpop.f32.mrb[0].mxu0
        %v3785 = vadd.f32 %v3700, %v3784
        %v3786 = vpop.f32.mrb[0].mxu0
        %v3787 = vpop.f32.mrb[0].mxu0
        %v3788 = vadd.f32 %v3700, %v3787
        %v3789 = vpop.f32.mrb[0].mxu0
        %3790 = vdwg.mxu0
        %v3791 = vpack.c.bf16 %v1225, %v1224
        %v3793 = vlaneseq
        %v3794 = vshrl.u32 %v3793, 7
        %v3795 = vsub.s32 0, %v3794
        %v3796 = vrot.slane %v3674, %v3795
        %v3814 = vunpack.c.l.b16 %v3641
        %v3815 = vunpack.c.l.b16 %v3642
        %v3816 = vunpack.c.l.b16 %v3643
        %v3817 = vunpack.c.l.b16 %v3644
        %v3818 = vunpack.c.l.b16 %v3645
        %v3819 = vunpack.c.l.b16 %v3646
        %v3820 = vunpack.c.l.b16 %v3647
        %v3821 = vunpack.c.l.b16 %v3648
        %v3822 = vunpack.c.l.b16 %v3649
        %v3823 = vunpack.c.l.b16 %v3650
        %v3824 = vunpack.c.l.b16 %v3651
        %v3825 = vunpack.c.l.b16 %v3652
        %v3826 = vunpack.c.l.b16 %v3653
        %v3827 = vunpack.c.l.b16 %v3654
        %v3828 = vunpack.c.l.b16 %v3655
        %v3829 = vunpack.c.l.b16 %v3656
        %v3830 = vpack.c.b16 %v3815, %v3814
        %v3831 = vpack.c.b16 %v3817, %v3816
        %v3832 = vpack.c.b16 %v3819, %v3818
        %v3833 = vpack.c.b16 %v3821, %v3820
        %v3834 = vpack.c.b16 %v3823, %v3822
        %v3835 = vpack.c.b16 %v3825, %v3824
        %v3836 = vpack.c.b16 %v3827, %v3826
        %v3837 = vpack.c.b16 %v3829, %v3828
        %3846 = vmatprep.subr.bf16.mxu0 0
        %3847 = vmatpush1.bf16.msra.mxu0 %v3830
        %3848 = vmatprep.subr.bf16.mxu0 0
        %3849 = vmatpush1.bf16.msra.mxu0 %v3831
        %3850 = vmatprep.subr.bf16.mxu0 0
        %3851 = vmatpush1.bf16.msra.mxu0 %v3832
        %3852 = vmatprep.subr.bf16.mxu0 0
        %3853 = vmatpush1.bf16.msra.mxu0 %v3833
        %3854 = vmatprep.subr.bf16.mxu0 0
        %3855 = vmatpush1.bf16.msra.mxu0 %v3834
        %3856 = vmatprep.subr.bf16.mxu0 0
        %3857 = vmatpush1.bf16.msra.mxu0 %v3835
        %3858 = vmatprep.subr.bf16.mxu0 0
        %3859 = vmatpush1.bf16.msra.mxu0 %v3836
        %3860 = vmatprep.subr.bf16.mxu0 0
        %3861 = vmatpush1.bf16.msra.mxu0 %v3837
        %3862 = vmatprep.subr.bf16.mxu0 0
        %3863 = vmatpush1.bf16.msra.mxu0 0
        %3864 = vmatprep.subr.bf16.mxu0 0
        %3865 = vmatpush1.bf16.msra.mxu0 0
        %3866 = vmatprep.subr.bf16.mxu0 0
        %3867 = vmatpush1.bf16.msra.mxu0 0
        %3868 = vmatprep.subr.bf16.mxu0 0
        %3869 = vmatpush1.bf16.msra.mxu0 0
        %3870 = vmatprep.subr.bf16.mxu0 0
        %3871 = vmatpush1.bf16.msra.mxu0 0
        %3872 = vmatprep.subr.bf16.mxu0 0
        %3873 = vmatpush1.bf16.msra.mxu0 0
        %3874 = vmatprep.subr.bf16.mxu0 0
        %3875 = vmatpush1.bf16.msra.mxu0 0
        %3876 = vmatprep.subr.bf16.mxu0 0
        %3877 = vmatpush1.bf16.msra.mxu0 0
        %3878 = vmatprep.mubr.bf16.mxu0 0
        %3879 = vmatmul.mubr.bf16.gmra.mrb[0].mxu0 %v3791
        %v3880 = vpop.f32.mrb[0].mxu0
        %v3881 = vadd.f32 %v3796, %v3880
        %v3882 = vpop.f32.mrb[0].mxu0
        %v3883 = vpop.f32.mrb[0].mxu0
        %v3884 = vadd.f32 %v3796, %v3883
        %v3885 = vpop.f32.mrb[0].mxu0
        %3886 = vdwg.mxu0
        %v3888 = vlaneseq
        %v3889 = vshrl.u32 %v3888, 7
        %v3890 = vsub.s32 0, %v3889
        %v3891 = vrot.slane %v3675, %v3890
        %v3909 = vunpack.c.l.b16 %v3657
        %v3910 = vunpack.c.l.b16 %v3658
        %v3911 = vunpack.c.l.b16 %v3659
        %v3912 = vunpack.c.l.b16 %v3660
        %v3913 = vunpack.c.l.b16 %v3661
        %v3914 = vunpack.c.l.b16 %v3662
        %v3915 = vunpack.c.l.b16 %v3663
        %v3916 = vunpack.c.l.b16 %v3664
        %v3917 = vunpack.c.l.b16 %v3665
        %v3918 = vunpack.c.l.b16 %v3666
        %v3919 = vunpack.c.l.b16 %v3667
        %v3920 = vunpack.c.l.b16 %v3668
        %v3921 = vunpack.c.l.b16 %v3669
        %v3922 = vunpack.c.l.b16 %v3670
        %v3923 = vunpack.c.l.b16 %v3671
        %v3924 = vunpack.c.l.b16 %v3672
        %v3925 = vpack.c.b16 %v3910, %v3909
        %v3926 = vpack.c.b16 %v3912, %v3911
        %v3927 = vpack.c.b16 %v3914, %v3913
        %v3928 = vpack.c.b16 %v3916, %v3915
        %v3929 = vpack.c.b16 %v3918, %v3917
        %v3930 = vpack.c.b16 %v3920, %v3919
        %v3931 = vpack.c.b16 %v3922, %v3921
        %v3932 = vpack.c.b16 %v3924, %v3923
        %3941 = vmatprep.subr.bf16.mxu0 0
        %3942 = vmatpush1.bf16.msra.mxu0 %v3925
        %3943 = vmatprep.subr.bf16.mxu0 0
        %3944 = vmatpush1.bf16.msra.mxu0 %v3926
        %3945 = vmatprep.subr.bf16.mxu0 0
        %3946 = vmatpush1.bf16.msra.mxu0 %v3927
        %3947 = vmatprep.subr.bf16.mxu0 0
        %3948 = vmatpush1.bf16.msra.mxu0 %v3928
        %3949 = vmatprep.subr.bf16.mxu0 0
        %3950 = vmatpush1.bf16.msra.mxu0 %v3929
        %3951 = vmatprep.subr.bf16.mxu0 0
        %3952 = vmatpush1.bf16.msra.mxu0 %v3930
        %3953 = vmatprep.subr.bf16.mxu0 0
        %3954 = vmatpush1.bf16.msra.mxu0 %v3931
        %3955 = vmatprep.subr.bf16.mxu0 0
        %3956 = vmatpush1.bf16.msra.mxu0 %v3932
        %3957 = vmatprep.subr.bf16.mxu0 0
        %3958 = vmatpush1.bf16.msra.mxu0 0
        %3959 = vmatprep.subr.bf16.mxu0 0
        %3960 = vmatpush1.bf16.msra.mxu0 0
        %3961 = vmatprep.subr.bf16.mxu0 0
        %3962 = vmatpush1.bf16.msra.mxu0 0
        %3963 = vmatprep.subr.bf16.mxu0 0
        %3964 = vmatpush1.bf16.msra.mxu0 0
        %3965 = vmatprep.subr.bf16.mxu0 0
        %3966 = vmatpush1.bf16.msra.mxu0 0
        %3967 = vmatprep.subr.bf16.mxu0 0
        %3968 = vmatpush1.bf16.msra.mxu0 0
        %3969 = vmatprep.subr.bf16.mxu0 0
        %3970 = vmatpush1.bf16.msra.mxu0 0
        %3971 = vmatprep.subr.bf16.mxu0 0
        %3972 = vmatpush1.bf16.msra.mxu0 0
        %3973 = vmatprep.mubr.bf16.mxu0 0
        %3974 = vmatmul.mubr.bf16.gmra.mrb[0].mxu0 %v3791
        %v3975 = vpop.f32.mrb[0].mxu0
        %v3976 = vadd.f32 %v3891, %v3975
        %v3977 = vpop.f32.mrb[0].mxu0
        %v3978 = vpop.f32.mrb[0].mxu0
        %v3979 = vadd.f32 %v3891, %v3978
        %v3980 = vpop.f32.mrb[0].mxu0
        %3981 = vdwg.mxu0
        %3984 = vrot.lane.b32.xlu0 %v3785, 96
        %v3985 = vpop.permute.xlu0 %3984
        %3986 = vrot.lane.b32.xlu0 %v3788, 96
        %v3987 = vpop.permute.xlu0 %3986
        %3990 = vrot.lane.b32.xlu0 %v3785, 64
        %v3991 = vpop.permute.xlu0 %3990
        %3992 = vrot.lane.b32.xlu0 %v3788, 64
        %v3993 = vpop.permute.xlu0 %3992
        %3996 = vrot.lane.b32.xlu0 %v3785, 32
        %v3997 = vpop.permute.xlu0 %3996
        %3998 = vrot.lane.b32.xlu0 %v3788, 32
        %v3999 = vpop.permute.xlu0 %3998
        %4004 = vrot.lane.b32.xlu0 %v3881, 96
        %v4005 = vpop.permute.xlu0 %4004
        %4006 = vrot.lane.b32.xlu0 %v3884, 96
        %v4007 = vpop.permute.xlu0 %4006
        %4010 = vrot.lane.b32.xlu0 %v3881, 64
        %v4011 = vpop.permute.xlu0 %4010
        %4012 = vrot.lane.b32.xlu0 %v3884, 64
        %v4013 = vpop.permute.xlu0 %4012
        %4016 = vrot.lane.b32.xlu0 %v3881, 32
        %v4017 = vpop.permute.xlu0 %4016
        %4018 = vrot.lane.b32.xlu0 %v3884, 32
        %v4019 = vpop.permute.xlu0 %4018
        %4024 = vrot.lane.b32.xlu0 %v3976, 96
        %v4025 = vpop.permute.xlu0 %4024
        %4026 = vrot.lane.b32.xlu0 %v3979, 96
        %v4027 = vpop.permute.xlu0 %4026
        %4030 = vrot.lane.b32.xlu0 %v3976, 64
        %v4031 = vpop.permute.xlu0 %4030
        %4032 = vrot.lane.b32.xlu0 %v3979, 64
        %v4033 = vpop.permute.xlu0 %4032
        %4036 = vrot.lane.b32.xlu0 %v3976, 32
        %v4037 = vpop.permute.xlu0 %4036
        %4038 = vrot.lane.b32.xlu0 %v3979, 32
        %v4039 = vpop.permute.xlu0 %4038
        %v4042 = vpack.c.bf16 %v3785, %v3785
        %v4043 = vpack.c.bf16 %v3788, %v3788
        %v4044 = vpack.c.bf16 %v3985, %v3985
        %v4045 = vpack.c.bf16 %v3987, %v3987
        %v4046 = vpack.c.bf16 %v3991, %v3991
        %v4047 = vpack.c.bf16 %v3993, %v3993
        %v4048 = vpack.c.bf16 %v3997, %v3997
        %v4049 = vpack.c.bf16 %v3999, %v3999
        %v4050 = vpack.c.bf16 %v3881, %v3881
        %v4051 = vpack.c.bf16 %v3884, %v3884
        %v4052 = vpack.c.bf16 %v4005, %v4005
        %v4053 = vpack.c.bf16 %v4007, %v4007
        %v4054 = vpack.c.bf16 %v4011, %v4011
        %v4055 = vpack.c.bf16 %v4013, %v4013
        %v4056 = vpack.c.bf16 %v4017, %v4017
        %v4057 = vpack.c.bf16 %v4019, %v4019
        %v4059 = vsel %vm2304, %v4042, 0
        %v4062 = vsel %vm2304, %v4050, 0
        %4064 = vmatprep.subr.bf16.mxu0 0
        %4065 = vmatpush1.bf16.xpose.msra.mxu0 %v4062
        %4066 = vmatprep.subr.bf16.mxu0 0
        %4067 = vmatpush1.bf16.xpose.msra.mxu0 0
        %4068 = vmatprep.subr.bf16.mxu0 0
        %4069 = vmatpush1.bf16.xpose.msra.mxu0 0
        %4070 = vmatprep.subr.bf16.mxu0 0
        %4071 = vmatpush1.bf16.xpose.msra.mxu0 0
        %4072 = vmatprep.subr.bf16.mxu0 0
        %4073 = vmatpush1.bf16.xpose.msra.mxu0 0
        %4074 = vmatprep.subr.bf16.mxu0 0
        %4075 = vmatpush1.bf16.xpose.msra.mxu0 0
        %4076 = vmatprep.subr.bf16.mxu0 0
        %4077 = vmatpush1.bf16.xpose.msra.mxu0 0
        %4078 = vmatprep.subr.bf16.mxu0 0
        %4079 = vmatpush1.bf16.xpose.msra.mxu0 0
        %4080 = vmatprep.subr.bf16.mxu0 0
        %4081 = vmatpush1.bf16.xpose.msra.mxu0 0
        %4082 = vmatprep.subr.bf16.mxu0 0
        %4083 = vmatpush1.bf16.xpose.msra.mxu0 0
        %4084 = vmatprep.subr.bf16.mxu0 0
        %4085 = vmatpush1.bf16.xpose.msra.mxu0 0
        %4086 = vmatprep.subr.bf16.mxu0 0
        %4087 = vmatpush1.bf16.xpose.msra.mxu0 0
        %4088 = vmatprep.subr.bf16.mxu0 0
        %4089 = vmatpush1.bf16.xpose.msra.mxu0 0
        %4090 = vmatprep.subr.bf16.mxu0 0
        %4091 = vmatpush1.bf16.xpose.msra.mxu0 0
        %4092 = vmatprep.subr.bf16.mxu0 0
        %4093 = vmatpush1.bf16.xpose.msra.mxu0 0
        %4094 = vmatprep.subr.bf16.mxu0 0
        %4095 = vmatpush1.bf16.xpose.msra.mxu0 0
        %4096 = vmatprep.mubr.bf16.mxu0 0
        %4097 = vmatmul.mubr.bf16.gmra.mrb[0].mxu0 %v4059
        %v4098 = vpop.f32.mrb[0].mxu0
        %v4099 = vadd.f32 0.0, %v4098
        %v4100 = vpop.f32.mrb[0].mxu0
        %v4101 = vpop.f32.mrb[0].mxu0
        %v4102 = vpop.f32.mrb[0].mxu0
        %4103 = vdwg.mxu0
        %v4105 = vsel %vm2304, %v4043, 0
        %v4108 = vsel %vm2304, %v4051, 0
        %4110 = vmatprep.subr.bf16.mxu0 0
        %4111 = vmatpush1.bf16.xpose.msra.mxu0 %v4108
        %4112 = vmatprep.subr.bf16.mxu0 0
        %4113 = vmatpush1.bf16.xpose.msra.mxu0 0
        %4114 = vmatprep.subr.bf16.mxu0 0
        %4115 = vmatpush1.bf16.xpose.msra.mxu0 0
        %4116 = vmatprep.subr.bf16.mxu0 0
        %4117 = vmatpush1.bf16.xpose.msra.mxu0 0
        %4118 = vmatprep.subr.bf16.mxu0 0
        %4119 = vmatpush1.bf16.xpose.msra.mxu0 0
        %4120 = vmatprep.subr.bf16.mxu0 0
        %4121 = vmatpush1.bf16.xpose.msra.mxu0 0
        %4122 = vmatprep.subr.bf16.mxu0 0
        %4123 = vmatpush1.bf16.xpose.msra.mxu0 0
        %4124 = vmatprep.subr.bf16.mxu0 0
        %4125 = vmatpush1.bf16.xpose.msra.mxu0 0
        %4126 = vmatprep.subr.bf16.mxu0 0
        %4127 = vmatpush1.bf16.xpose.msra.mxu0 0
        %4128 = vmatprep.subr.bf16.mxu0 0
        %4129 = vmatpush1.bf16.xpose.msra.mxu0 0
        %4130 = vmatprep.subr.bf16.mxu0 0
        %4131 = vmatpush1.bf16.xpose.msra.mxu0 0
        %4132 = vmatprep.subr.bf16.mxu0 0
        %4133 = vmatpush1.bf16.xpose.msra.mxu0 0
        %4134 = vmatprep.subr.bf16.mxu0 0
        %4135 = vmatpush1.bf16.xpose.msra.mxu0 0
        %4136 = vmatprep.subr.bf16.mxu0 0
        %4137 = vmatpush1.bf16.xpose.msra.mxu0 0
        %4138 = vmatprep.subr.bf16.mxu0 0
        %4139 = vmatpush1.bf16.xpose.msra.mxu0 0
        %4140 = vmatprep.subr.bf16.mxu0 0
        %4141 = vmatpush1.bf16.xpose.msra.mxu0 0
        %4142 = vmatprep.mubr.bf16.mxu0 0
        %4143 = vmatmul.mubr.bf16.gmra.mrb[0].mxu0 %v4105
        %v4144 = vpop.f32.mrb[0].mxu0
        %v4145 = vadd.f32 0.0, %v4144
        %v4146 = vpop.f32.mrb[0].mxu0
        %v4147 = vpop.f32.mrb[0].mxu0
        %v4148 = vpop.f32.mrb[0].mxu0
        %4149 = vdwg.mxu0
        %v4151 = vsel %vm2304, %v4044, 0
        %v4154 = vsel %vm2304, %v4052, 0
        %4156 = vmatprep.subr.bf16.mxu0 0
        %4157 = vmatpush1.bf16.xpose.msra.mxu0 %v4154
        %4158 = vmatprep.subr.bf16.mxu0 0
        %4159 = vmatpush1.bf16.xpose.msra.mxu0 0
        %4160 = vmatprep.subr.bf16.mxu0 0
        %4161 = vmatpush1.bf16.xpose.msra.mxu0 0
        %4162 = vmatprep.subr.bf16.mxu0 0
        %4163 = vmatpush1.bf16.xpose.msra.mxu0 0
        %4164 = vmatprep.subr.bf16.mxu0 0
        %4165 = vmatpush1.bf16.xpose.msra.mxu0 0
        %4166 = vmatprep.subr.bf16.mxu0 0
        %4167 = vmatpush1.bf16.xpose.msra.mxu0 0
        %4168 = vmatprep.subr.bf16.mxu0 0
        %4169 = vmatpush1.bf16.xpose.msra.mxu0 0
        %4170 = vmatprep.subr.bf16.mxu0 0
        %4171 = vmatpush1.bf16.xpose.msra.mxu0 0
        %4172 = vmatprep.subr.bf16.mxu0 0
        %4173 = vmatpush1.bf16.xpose.msra.mxu0 0
        %4174 = vmatprep.subr.bf16.mxu0 0
        %4175 = vmatpush1.bf16.xpose.msra.mxu0 0
        %4176 = vmatprep.subr.bf16.mxu0 0
        %4177 = vmatpush1.bf16.xpose.msra.mxu0 0
        %4178 = vmatprep.subr.bf16.mxu0 0
        %4179 = vmatpush1.bf16.xpose.msra.mxu0 0
        %4180 = vmatprep.subr.bf16.mxu0 0
        %4181 = vmatpush1.bf16.xpose.msra.mxu0 0
        %4182 = vmatprep.subr.bf16.mxu0 0
        %4183 = vmatpush1.bf16.xpose.msra.mxu0 0
        %4184 = vmatprep.subr.bf16.mxu0 0
        %4185 = vmatpush1.bf16.xpose.msra.mxu0 0
        %4186 = vmatprep.subr.bf16.mxu0 0
        %4187 = vmatpush1.bf16.xpose.msra.mxu0 0
        %4188 = vmatprep.mubr.bf16.mxu0 0
        %4189 = vmatmul.mubr.bf16.gmra.mrb[0].mxu0 %v4151
        %v4190 = vpop.f32.mrb[0].mxu0
        %v4191 = vadd.f32 0.0, %v4190
        %v4192 = vpop.f32.mrb[0].mxu0
        %v4193 = vpop.f32.mrb[0].mxu0
        %v4194 = vpop.f32.mrb[0].mxu0
        %4195 = vdwg.mxu0
        %v4197 = vsel %vm2304, %v4045, 0
        %v4200 = vsel %vm2304, %v4053, 0
        %4202 = vmatprep.subr.bf16.mxu0 0
        %4203 = vmatpush1.bf16.xpose.msra.mxu0 %v4200
        %4204 = vmatprep.subr.bf16.mxu0 0
        %4205 = vmatpush1.bf16.xpose.msra.mxu0 0
        %4206 = vmatprep.subr.bf16.mxu0 0
        %4207 = vmatpush1.bf16.xpose.msra.mxu0 0
        %4208 = vmatprep.subr.bf16.mxu0 0
        %4209 = vmatpush1.bf16.xpose.msra.mxu0 0
        %4210 = vmatprep.subr.bf16.mxu0 0
        %4211 = vmatpush1.bf16.xpose.msra.mxu0 0
        %4212 = vmatprep.subr.bf16.mxu0 0
        %4213 = vmatpush1.bf16.xpose.msra.mxu0 0
        %4214 = vmatprep.subr.bf16.mxu0 0
        %4215 = vmatpush1.bf16.xpose.msra.mxu0 0
        %4216 = vmatprep.subr.bf16.mxu0 0
        %4217 = vmatpush1.bf16.xpose.msra.mxu0 0
        %4218 = vmatprep.subr.bf16.mxu0 0
        %4219 = vmatpush1.bf16.xpose.msra.mxu0 0
        %4220 = vmatprep.subr.bf16.mxu0 0
        %4221 = vmatpush1.bf16.xpose.msra.mxu0 0
        %4222 = vmatprep.subr.bf16.mxu0 0
        %4223 = vmatpush1.bf16.xpose.msra.mxu0 0
        %4224 = vmatprep.subr.bf16.mxu0 0
        %4225 = vmatpush1.bf16.xpose.msra.mxu0 0
        %4226 = vmatprep.subr.bf16.mxu0 0
        %4227 = vmatpush1.bf16.xpose.msra.mxu0 0
        %4228 = vmatprep.subr.bf16.mxu0 0
        %4229 = vmatpush1.bf16.xpose.msra.mxu0 0
        %4230 = vmatprep.subr.bf16.mxu0 0
        %4231 = vmatpush1.bf16.xpose.msra.mxu0 0
        %4232 = vmatprep.subr.bf16.mxu0 0
        %4233 = vmatpush1.bf16.xpose.msra.mxu0 0
        %4234 = vmatprep.mubr.bf16.mxu0 0
        %4235 = vmatmul.mubr.bf16.gmra.mrb[0].mxu0 %v4197
        %v4236 = vpop.f32.mrb[0].mxu0
        %v4237 = vadd.f32 0.0, %v4236
        %v4238 = vpop.f32.mrb[0].mxu0
        %v4239 = vpop.f32.mrb[0].mxu0
        %v4240 = vpop.f32.mrb[0].mxu0
        %4241 = vdwg.mxu0
        %v4243 = vsel %vm2304, %v4046, 0
        %v4246 = vsel %vm2304, %v4054, 0
        %4248 = vmatprep.subr.bf16.mxu0 0
        %4249 = vmatpush1.bf16.xpose.msra.mxu0 %v4246
        %4250 = vmatprep.subr.bf16.mxu0 0
        %4251 = vmatpush1.bf16.xpose.msra.mxu0 0
        %4252 = vmatprep.subr.bf16.mxu0 0
        %4253 = vmatpush1.bf16.xpose.msra.mxu0 0
        %4254 = vmatprep.subr.bf16.mxu0 0
        %4255 = vmatpush1.bf16.xpose.msra.mxu0 0
        %4256 = vmatprep.subr.bf16.mxu0 0
        %4257 = vmatpush1.bf16.xpose.msra.mxu0 0
        %4258 = vmatprep.subr.bf16.mxu0 0
        %4259 = vmatpush1.bf16.xpose.msra.mxu0 0
        %4260 = vmatprep.subr.bf16.mxu0 0
        %4261 = vmatpush1.bf16.xpose.msra.mxu0 0
        %4262 = vmatprep.subr.bf16.mxu0 0
        %4263 = vmatpush1.bf16.xpose.msra.mxu0 0
        %4264 = vmatprep.subr.bf16.mxu0 0
        %4265 = vmatpush1.bf16.xpose.msra.mxu0 0
        %4266 = vmatprep.subr.bf16.mxu0 0
        %4267 = vmatpush1.bf16.xpose.msra.mxu0 0
        %4268 = vmatprep.subr.bf16.mxu0 0
        %4269 = vmatpush1.bf16.xpose.msra.mxu0 0
        %4270 = vmatprep.subr.bf16.mxu0 0
        %4271 = vmatpush1.bf16.xpose.msra.mxu0 0
        %4272 = vmatprep.subr.bf16.mxu0 0
        %4273 = vmatpush1.bf16.xpose.msra.mxu0 0
        %4274 = vmatprep.subr.bf16.mxu0 0
        %4275 = vmatpush1.bf16.xpose.msra.mxu0 0
        %4276 = vmatprep.subr.bf16.mxu0 0
        %4277 = vmatpush1.bf16.xpose.msra.mxu0 0
        %4278 = vmatprep.subr.bf16.mxu0 0
        %4279 = vmatpush1.bf16.xpose.msra.mxu0 0
        %4280 = vmatprep.mubr.bf16.mxu0 0
        %4281 = vmatmul.mubr.bf16.gmra.mrb[0].mxu0 %v4243
        %v4282 = vpop.f32.mrb[0].mxu0
        %v4283 = vadd.f32 0.0, %v4282
        %v4284 = vpop.f32.mrb[0].mxu0
        %v4285 = vpop.f32.mrb[0].mxu0
        %v4286 = vpop.f32.mrb[0].mxu0
        %4287 = vdwg.mxu0
        %v4289 = vsel %vm2304, %v4047, 0
        %v4292 = vsel %vm2304, %v4055, 0
        %4294 = vmatprep.subr.bf16.mxu0 0
        %4295 = vmatpush1.bf16.xpose.msra.mxu0 %v4292
        %4296 = vmatprep.subr.bf16.mxu0 0
        %4297 = vmatpush1.bf16.xpose.msra.mxu0 0
        %4298 = vmatprep.subr.bf16.mxu0 0
        %4299 = vmatpush1.bf16.xpose.msra.mxu0 0
        %4300 = vmatprep.subr.bf16.mxu0 0
        %4301 = vmatpush1.bf16.xpose.msra.mxu0 0
        %4302 = vmatprep.subr.bf16.mxu0 0
        %4303 = vmatpush1.bf16.xpose.msra.mxu0 0
        %4304 = vmatprep.subr.bf16.mxu0 0
        %4305 = vmatpush1.bf16.xpose.msra.mxu0 0
        %4306 = vmatprep.subr.bf16.mxu0 0
        %4307 = vmatpush1.bf16.xpose.msra.mxu0 0
        %4308 = vmatprep.subr.bf16.mxu0 0
        %4309 = vmatpush1.bf16.xpose.msra.mxu0 0
        %4310 = vmatprep.subr.bf16.mxu0 0
        %4311 = vmatpush1.bf16.xpose.msra.mxu0 0
        %4312 = vmatprep.subr.bf16.mxu0 0
        %4313 = vmatpush1.bf16.xpose.msra.mxu0 0
        %4314 = vmatprep.subr.bf16.mxu0 0
        %4315 = vmatpush1.bf16.xpose.msra.mxu0 0
        %4316 = vmatprep.subr.bf16.mxu0 0
        %4317 = vmatpush1.bf16.xpose.msra.mxu0 0
        %4318 = vmatprep.subr.bf16.mxu0 0
        %4319 = vmatpush1.bf16.xpose.msra.mxu0 0
        %4320 = vmatprep.subr.bf16.mxu0 0
        %4321 = vmatpush1.bf16.xpose.msra.mxu0 0
        %4322 = vmatprep.subr.bf16.mxu0 0
        %4323 = vmatpush1.bf16.xpose.msra.mxu0 0
        %4324 = vmatprep.subr.bf16.mxu0 0
        %4325 = vmatpush1.bf16.xpose.msra.mxu0 0
        %4326 = vmatprep.mubr.bf16.mxu0 0
        %4327 = vmatmul.mubr.bf16.gmra.mrb[0].mxu0 %v4289
        %v4328 = vpop.f32.mrb[0].mxu0
        %v4329 = vadd.f32 0.0, %v4328
        %v4330 = vpop.f32.mrb[0].mxu0
        %v4331 = vpop.f32.mrb[0].mxu0
        %v4332 = vpop.f32.mrb[0].mxu0
        %4333 = vdwg.mxu0
        %v4335 = vsel %vm2304, %v4048, 0
        %v4338 = vsel %vm2304, %v4056, 0
        %4340 = vmatprep.subr.bf16.mxu0 0
        %4341 = vmatpush1.bf16.xpose.msra.mxu0 %v4338
        %4342 = vmatprep.subr.bf16.mxu0 0
        %4343 = vmatpush1.bf16.xpose.msra.mxu0 0
        %4344 = vmatprep.subr.bf16.mxu0 0
        %4345 = vmatpush1.bf16.xpose.msra.mxu0 0
        %4346 = vmatprep.subr.bf16.mxu0 0
        %4347 = vmatpush1.bf16.xpose.msra.mxu0 0
        %4348 = vmatprep.subr.bf16.mxu0 0
        %4349 = vmatpush1.bf16.xpose.msra.mxu0 0
        %4350 = vmatprep.subr.bf16.mxu0 0
        %4351 = vmatpush1.bf16.xpose.msra.mxu0 0
        %4352 = vmatprep.subr.bf16.mxu0 0
        %4353 = vmatpush1.bf16.xpose.msra.mxu0 0
        %4354 = vmatprep.subr.bf16.mxu0 0
        %4355 = vmatpush1.bf16.xpose.msra.mxu0 0
        %4356 = vmatprep.subr.bf16.mxu0 0
        %4357 = vmatpush1.bf16.xpose.msra.mxu0 0
        %4358 = vmatprep.subr.bf16.mxu0 0
        %4359 = vmatpush1.bf16.xpose.msra.mxu0 0
        %4360 = vmatprep.subr.bf16.mxu0 0
        %4361 = vmatpush1.bf16.xpose.msra.mxu0 0
        %4362 = vmatprep.subr.bf16.mxu0 0
        %4363 = vmatpush1.bf16.xpose.msra.mxu0 0
        %4364 = vmatprep.subr.bf16.mxu0 0
        %4365 = vmatpush1.bf16.xpose.msra.mxu0 0
        %4366 = vmatprep.subr.bf16.mxu0 0
        %4367 = vmatpush1.bf16.xpose.msra.mxu0 0
        %4368 = vmatprep.subr.bf16.mxu0 0
        %4369 = vmatpush1.bf16.xpose.msra.mxu0 0
        %4370 = vmatprep.subr.bf16.mxu0 0
        %4371 = vmatpush1.bf16.xpose.msra.mxu0 0
        %4372 = vmatprep.mubr.bf16.mxu0 0
        %4373 = vmatmul.mubr.bf16.gmra.mrb[0].mxu0 %v4335
        %v4374 = vpop.f32.mrb[0].mxu0
        %v4375 = vadd.f32 0.0, %v4374
        %v4376 = vpop.f32.mrb[0].mxu0
        %v4377 = vpop.f32.mrb[0].mxu0
        %v4378 = vpop.f32.mrb[0].mxu0
        %4379 = vdwg.mxu0
        %v4381 = vsel %vm2304, %v4049, 0
        %v4384 = vsel %vm2304, %v4057, 0
        %4386 = vmatprep.subr.bf16.mxu0 0
        %4387 = vmatpush1.bf16.xpose.msra.mxu0 %v4384
        %4388 = vmatprep.subr.bf16.mxu0 0
        %4389 = vmatpush1.bf16.xpose.msra.mxu0 0
        %4390 = vmatprep.subr.bf16.mxu0 0
        %4391 = vmatpush1.bf16.xpose.msra.mxu0 0
        %4392 = vmatprep.subr.bf16.mxu0 0
        %4393 = vmatpush1.bf16.xpose.msra.mxu0 0
        %4394 = vmatprep.subr.bf16.mxu0 0
        %4395 = vmatpush1.bf16.xpose.msra.mxu0 0
        %4396 = vmatprep.subr.bf16.mxu0 0
        %4397 = vmatpush1.bf16.xpose.msra.mxu0 0
        %4398 = vmatprep.subr.bf16.mxu0 0
        %4399 = vmatpush1.bf16.xpose.msra.mxu0 0
        %4400 = vmatprep.subr.bf16.mxu0 0
        %4401 = vmatpush1.bf16.xpose.msra.mxu0 0
        %4402 = vmatprep.subr.bf16.mxu0 0
        %4403 = vmatpush1.bf16.xpose.msra.mxu0 0
        %4404 = vmatprep.subr.bf16.mxu0 0
        %4405 = vmatpush1.bf16.xpose.msra.mxu0 0
        %4406 = vmatprep.subr.bf16.mxu0 0
        %4407 = vmatpush1.bf16.xpose.msra.mxu0 0
        %4408 = vmatprep.subr.bf16.mxu0 0
        %4409 = vmatpush1.bf16.xpose.msra.mxu0 0
        %4410 = vmatprep.subr.bf16.mxu0 0
        %4411 = vmatpush1.bf16.xpose.msra.mxu0 0
        %4412 = vmatprep.subr.bf16.mxu0 0
        %4413 = vmatpush1.bf16.xpose.msra.mxu0 0
        %4414 = vmatprep.subr.bf16.mxu0 0
        %4415 = vmatpush1.bf16.xpose.msra.mxu0 0
        %4416 = vmatprep.subr.bf16.mxu0 0
        %4417 = vmatpush1.bf16.xpose.msra.mxu0 0
        %4418 = vmatprep.mubr.bf16.mxu0 0
        %4419 = vmatmul.mubr.bf16.gmra.mrb[0].mxu0 %v4381
        %v4420 = vpop.f32.mrb[0].mxu0
        %v4421 = vadd.f32 0.0, %v4420
        %v4422 = vpop.f32.mrb[0].mxu0
        %v4423 = vpop.f32.mrb[0].mxu0
        %v4424 = vpop.f32.mrb[0].mxu0
        %4425 = vdwg.mxu0
        %v4426 = vmul.f32 %v4099, 0.17677669
        %v4427 = vmul.f32 %v4145, 0.17677669
        %v4428 = vmul.f32 %v4191, 0.17677669
        %v4429 = vmul.f32 %v4237, 0.17677669
        %v4430 = vmul.f32 %v4283, 0.17677669
        %v4431 = vmul.f32 %v4329, 0.17677669
        %v4432 = vmul.f32 %v4375, 0.17677669
        %v4433 = vmul.f32 %v4421, 0.17677669
        %v4436 = vunpack.c.l.s4 1966171168
        %v4437 = vunpack.c.0.s8 %v4436
        %v4438 = vlaneseq
        %v4439 = vshrl.u32 %v4438, 7
        %v4440 = vsub.s32 %v4437, %v4439
        %v4441 = vrot.slane %v3676, %v4440
        %v4442 = vcombine.high %v4441, %v4441
        %v4444 = vunpack.c.l.s4 1966171168
        %v4445 = vunpack.c.0.s8 %v4444
        %v4446 = vlaneseq
        %v4447 = vshrl.u32 %v4446, 7
        %v4448 = vsub.s32 %v4445, %v4447
        %v4449 = vrot.slane %v4441, %v4448
        %v4451 = vunpack.c.l.s4 1966171168
        %v4452 = vunpack.c.0.s8 %v4451
        %v4453 = vlaneseq
        %v4454 = vshrl.u32 %v4453, 7
        %v4455 = vsub.s32 %v4452, %v4454
        %v4456 = vrot.slane %v4442, %v4455
        %v4457 = vcombine.high %v4449, %v4449
        %v4458 = vcombine.high %v4456, %v4456
        %v4459 = vlaneseq
        %v4460 = vshrl.u32 %v4459, 7
        %v4461 = vsub.s32 0, %v4460
        %v4462 = vrot.slane %v4449, %v4461
        %v4463 = vlaneseq
        %v4464 = vshrl.u32 %v4463, 7
        %v4465 = vsub.s32 0, %v4464
        %v4466 = vrot.slane %v4456, %v4465
        %v4467 = vlaneseq
        %v4468 = vshrl.u32 %v4467, 7
        %v4469 = vsub.s32 0, %v4468
        %v4470 = vrot.slane %v4457, %v4469
        %v4471 = vlaneseq
        %v4472 = vshrl.u32 %v4471, 7
        %v4473 = vsub.s32 0, %v4472
        %v4474 = vrot.slane %v4458, %v4473
        %v4479 = vmul.f32 %v3785, %v4462
        %v4480 = vmul.f32 %v3788, %v4462
        %v4481 = vmul.f32 %v3985, %v4466
        %v4482 = vmul.f32 %v3987, %v4466
        %v4483 = vmul.f32 %v3991, %v4470
        %v4484 = vmul.f32 %v3993, %v4470
        %v4485 = vmul.f32 %v3997, %v4474
        %v4486 = vmul.f32 %v3999, %v4474
        %v4487 = vsel %vm2304, %v4479, 0.0
        %4488 = vadd.xlane.f32.xlu0 %v4487
        %v4489 = vpop.xlane.xlu0 %4488
        %v4490 = vsel %vm2304, %v4480, 0.0
        %4491 = vadd.xlane.f32.xlu0 %v4490
        %v4492 = vpop.xlane.xlu0 %4491
        %v4493 = vsel %vm2304, %v4481, 0.0
        %4494 = vadd.xlane.f32.xlu0 %v4493
        %v4495 = vpop.xlane.xlu0 %4494
        %v4496 = vsel %vm2304, %v4482, 0.0
        %4497 = vadd.xlane.f32.xlu0 %v4496
        %v4498 = vpop.xlane.xlu0 %4497
        %v4499 = vsel %vm2304, %v4483, 0.0
        %4500 = vadd.xlane.f32.xlu0 %v4499
        %v4501 = vpop.xlane.xlu0 %4500
        %v4502 = vsel %vm2304, %v4484, 0.0
        %4503 = vadd.xlane.f32.xlu0 %v4502
        %v4504 = vpop.xlane.xlu0 %4503
        %v4505 = vsel %vm2304, %v4485, 0.0
        %4506 = vadd.xlane.f32.xlu0 %v4505
        %v4507 = vpop.xlane.xlu0 %4506
        %v4508 = vsel %vm2304, %v4486, 0.0
        %4509 = vadd.xlane.f32.xlu0 %v4508
        %v4510 = vpop.xlane.xlu0 %4509
        %v4511 = vmul.f32 %v4489, 0.17677669
        %v4512 = vmul.f32 %v4492, 0.17677669
        %v4513 = vmul.f32 %v4495, 0.17677669
        %v4514 = vmul.f32 %v4498, 0.17677669
        %v4515 = vmul.f32 %v4501, 0.17677669
        %v4516 = vmul.f32 %v4504, 0.17677669
        %v4517 = vmul.f32 %v4507, 0.17677669
        %v4518 = vmul.f32 %v4510, 0.17677669
        %v4519 = vsel %vm2766, %v4426, -inf
        %4520 = vmax.xlane.f32.xlu0 %v4519
        %v4521 = vpop.xlane.xlu0 %4520
        %v4522 = vsel %vm2766, %v4427, -inf
        %4523 = vmax.xlane.f32.xlu0 %v4522
        %v4524 = vpop.xlane.xlu0 %4523
        %v4525 = vsel %vm2766, %v4428, -inf
        %4526 = vmax.xlane.f32.xlu0 %v4525
        %v4527 = vpop.xlane.xlu0 %4526
        %v4528 = vsel %vm2766, %v4429, -inf
        %4529 = vmax.xlane.f32.xlu0 %v4528
        %v4530 = vpop.xlane.xlu0 %4529
        %v4531 = vsel %vm2766, %v4430, -inf
        %4532 = vmax.xlane.f32.xlu0 %v4531
        %v4533 = vpop.xlane.xlu0 %4532
        %v4534 = vsel %vm2766, %v4431, -inf
        %4535 = vmax.xlane.f32.xlu0 %v4534
        %v4536 = vpop.xlane.xlu0 %4535
        %v4537 = vsel %vm2766, %v4432, -inf
        %4538 = vmax.xlane.f32.xlu0 %v4537
        %v4539 = vpop.xlane.xlu0 %4538
        %v4540 = vsel %vm2766, %v4433, -inf
        %4541 = vmax.xlane.f32.xlu0 %v4540
        %v4542 = vpop.xlane.xlu0 %4541
        %v4543 = vmax.f32 %v4521, %v4511
        %v4544 = vmax.f32 %v4524, %v4512
        %v4545 = vmax.f32 %v4527, %v4513
        %v4546 = vmax.f32 %v4530, %v4514
        %v4547 = vmax.f32 %v4533, %v4515
        %v4548 = vmax.f32 %v4536, %v4516
        %v4549 = vmax.f32 %v4539, %v4517
        %v4550 = vmax.f32 %v4542, %v4518
        %v4551 = vsub.f32 %v4426, %v4543
        %v4552 = vsub.f32 %v4427, %v4544
        %v4553 = vsub.f32 %v4428, %v4545
        %v4554 = vsub.f32 %v4429, %v4546
        %v4555 = vsub.f32 %v4430, %v4547
        %v4556 = vsub.f32 %v4431, %v4548
        %v4557 = vsub.f32 %v4432, %v4549
        %v4558 = vsub.f32 %v4433, %v4550
        %v4559 = vmul.f32 %v4551, 1.442695
        %v4560 = vpow.pop %v4559
        %v4561 = vmul.f32 %v4552, 1.442695
        %v4562 = vpow.pop %v4561
        %v4563 = vmul.f32 %v4553, 1.442695
        %v4564 = vpow.pop %v4563
        %v4565 = vmul.f32 %v4554, 1.442695
        %v4566 = vpow.pop %v4565
        %v4567 = vmul.f32 %v4555, 1.442695
        %v4568 = vpow.pop %v4567
        %v4569 = vmul.f32 %v4556, 1.442695
        %v4570 = vpow.pop %v4569
        %v4571 = vmul.f32 %v4557, 1.442695
        %v4572 = vpow.pop %v4571
        %v4573 = vmul.f32 %v4558, 1.442695
        %v4574 = vpow.pop %v4573
        %v4575 = vsub.f32 %v4511, %v4543
        %v4576 = vsub.f32 %v4512, %v4544
        %v4577 = vsub.f32 %v4513, %v4545
        %v4578 = vsub.f32 %v4514, %v4546
        %v4579 = vsub.f32 %v4515, %v4547
        %v4580 = vsub.f32 %v4516, %v4548
        %v4581 = vsub.f32 %v4517, %v4549
        %v4582 = vsub.f32 %v4518, %v4550
        %v4583 = vmul.f32 %v4575, 1.442695
        %v4584 = vpow.pop %v4583
        %v4585 = vmul.f32 %v4576, 1.442695
        %v4586 = vpow.pop %v4585
        %v4587 = vmul.f32 %v4577, 1.442695
        %v4588 = vpow.pop %v4587
        %v4589 = vmul.f32 %v4578, 1.442695
        %v4590 = vpow.pop %v4589
        %v4591 = vmul.f32 %v4579, 1.442695
        %v4592 = vpow.pop %v4591
        %v4593 = vmul.f32 %v4580, 1.442695
        %v4594 = vpow.pop %v4593
        %v4595 = vmul.f32 %v4581, 1.442695
        %v4596 = vpow.pop %v4595
        %v4597 = vmul.f32 %v4582, 1.442695
        %v4598 = vpow.pop %v4597
        %v4599 = vsel %vm2766, %v4560, 0.0
        %4600 = vadd.xlane.f32.xlu0 %v4599
        %v4601 = vpop.xlane.xlu0 %4600
        %v4602 = vsel %vm2766, %v4562, 0.0
        %4603 = vadd.xlane.f32.xlu0 %v4602
        %v4604 = vpop.xlane.xlu0 %4603
        %v4605 = vsel %vm2766, %v4564, 0.0
        %4606 = vadd.xlane.f32.xlu0 %v4605
        %v4607 = vpop.xlane.xlu0 %4606
        %v4608 = vsel %vm2766, %v4566, 0.0
        %4609 = vadd.xlane.f32.xlu0 %v4608
        %v4610 = vpop.xlane.xlu0 %4609
        %v4611 = vsel %vm2766, %v4568, 0.0
        %4612 = vadd.xlane.f32.xlu0 %v4611
        %v4613 = vpop.xlane.xlu0 %4612
        %v4614 = vsel %vm2766, %v4570, 0.0
        %4615 = vadd.xlane.f32.xlu0 %v4614
        %v4616 = vpop.xlane.xlu0 %4615
        %v4617 = vsel %vm2766, %v4572, 0.0
        %4618 = vadd.xlane.f32.xlu0 %v4617
        %v4619 = vpop.xlane.xlu0 %4618
        %v4620 = vsel %vm2766, %v4574, 0.0
        %4621 = vadd.xlane.f32.xlu0 %v4620
        %v4622 = vpop.xlane.xlu0 %4621
        %v4623 = vadd.f32 %v4601, %v4584
        %v4624 = vadd.f32 %v4604, %v4586
        %v4625 = vadd.f32 %v4607, %v4588
        %v4626 = vadd.f32 %v4610, %v4590
        %v4627 = vadd.f32 %v4613, %v4592
        %v4628 = vadd.f32 %v4616, %v4594
        %v4629 = vadd.f32 %v4619, %v4596
        %v4630 = vadd.f32 %v4622, %v4598
        %v4631 = vrcp.pop %v4623
        %v4632 = vrcp.pop %v4624
        %v4633 = vrcp.pop %v4625
        %v4634 = vrcp.pop %v4626
        %v4635 = vrcp.pop %v4627
        %v4636 = vrcp.pop %v4628
        %v4637 = vrcp.pop %v4629
        %v4638 = vrcp.pop %v4630
        %v4639 = vpack.c.bf16 %v4560, %v4560
        %v4640 = vpack.c.bf16 %v4562, %v4562
        %v4641 = vpack.c.bf16 %v4564, %v4564
        %v4642 = vpack.c.bf16 %v4566, %v4566
        %v4643 = vpack.c.bf16 %v4568, %v4568
        %v4644 = vpack.c.bf16 %v4570, %v4570
        %v4645 = vpack.c.bf16 %v4572, %v4572
        %v4646 = vpack.c.bf16 %v4574, %v4574
        %v4647 = vpack.c.bf16 %v3976, %v3976
        %v4648 = vpack.c.bf16 %v3979, %v3979
        %v4649 = vpack.c.bf16 %v4025, %v4025
        %v4650 = vpack.c.bf16 %v4027, %v4027
        %v4651 = vpack.c.bf16 %v4031, %v4031
        %v4652 = vpack.c.bf16 %v4033, %v4033
        %v4653 = vpack.c.bf16 %v4037, %v4037
        %v4654 = vpack.c.bf16 %v4039, %v4039
        %v4656 = vsel %vm2766, %v4639, 0
        %v4659 = vsel %vm2906, %v4647, 0
        %4661 = vmatprep.subr.bf16.mxu0 0
        %4662 = vmatpush1.bf16.msra.mxu0 %v4659
        %4663 = vmatprep.subr.bf16.mxu0 0
        %4664 = vmatpush1.bf16.msra.mxu0 0
        %4665 = vmatprep.subr.bf16.mxu0 0
        %4666 = vmatpush1.bf16.msra.mxu0 0
        %4667 = vmatprep.subr.bf16.mxu0 0
        %4668 = vmatpush1.bf16.msra.mxu0 0
        %4669 = vmatprep.subr.bf16.mxu0 0
        %4670 = vmatpush1.bf16.msra.mxu0 0
        %4671 = vmatprep.subr.bf16.mxu0 0
        %4672 = vmatpush1.bf16.msra.mxu0 0
        %4673 = vmatprep.subr.bf16.mxu0 0
        %4674 = vmatpush1.bf16.msra.mxu0 0
        %4675 = vmatprep.subr.bf16.mxu0 0
        %4676 = vmatpush1.bf16.msra.mxu0 0
        %4677 = vmatprep.subr.bf16.mxu0 0
        %4678 = vmatpush1.bf16.msra.mxu0 0
        %4679 = vmatprep.subr.bf16.mxu0 0
        %4680 = vmatpush1.bf16.msra.mxu0 0
        %4681 = vmatprep.subr.bf16.mxu0 0
        %4682 = vmatpush1.bf16.msra.mxu0 0
        %4683 = vmatprep.subr.bf16.mxu0 0
        %4684 = vmatpush1.bf16.msra.mxu0 0
        %4685 = vmatprep.subr.bf16.mxu0 0
        %4686 = vmatpush1.bf16.msra.mxu0 0
        %4687 = vmatprep.subr.bf16.mxu0 0
        %4688 = vmatpush1.bf16.msra.mxu0 0
        %4689 = vmatprep.subr.bf16.mxu0 0
        %4690 = vmatpush1.bf16.msra.mxu0 0
        %4691 = vmatprep.subr.bf16.mxu0 0
        %4692 = vmatpush1.bf16.msra.mxu0 0
        %4693 = vmatprep.mubr.bf16.mxu0 0
        %4694 = vmatmul.mubr.bf16.gmra.mrb[0].mxu0 %v4656
        %v4695 = vpop.f32.mrb[0].mxu0
        %v4696 = vadd.f32 0.0, %v4695
        %v4697 = vpop.f32.mrb[0].mxu0
        %v4698 = vpop.f32.mrb[0].mxu0
        %v4699 = vpop.f32.mrb[0].mxu0
        %4700 = vdwg.mxu0
        %v4702 = vsel %vm2766, %v4640, 0
        %v4705 = vsel %vm2906, %v4648, 0
        %4707 = vmatprep.subr.bf16.mxu0 0
        %4708 = vmatpush1.bf16.msra.mxu0 %v4705
        %4709 = vmatprep.subr.bf16.mxu0 0
        %4710 = vmatpush1.bf16.msra.mxu0 0
        %4711 = vmatprep.subr.bf16.mxu0 0
        %4712 = vmatpush1.bf16.msra.mxu0 0
        %4713 = vmatprep.subr.bf16.mxu0 0
        %4714 = vmatpush1.bf16.msra.mxu0 0
        %4715 = vmatprep.subr.bf16.mxu0 0
        %4716 = vmatpush1.bf16.msra.mxu0 0
        %4717 = vmatprep.subr.bf16.mxu0 0
        %4718 = vmatpush1.bf16.msra.mxu0 0
        %4719 = vmatprep.subr.bf16.mxu0 0
        %4720 = vmatpush1.bf16.msra.mxu0 0
        %4721 = vmatprep.subr.bf16.mxu0 0
        %4722 = vmatpush1.bf16.msra.mxu0 0
        %4723 = vmatprep.subr.bf16.mxu0 0
        %4724 = vmatpush1.bf16.msra.mxu0 0
        %4725 = vmatprep.subr.bf16.mxu0 0
        %4726 = vmatpush1.bf16.msra.mxu0 0
        %4727 = vmatprep.subr.bf16.mxu0 0
        %4728 = vmatpush1.bf16.msra.mxu0 0
        %4729 = vmatprep.subr.bf16.mxu0 0
        %4730 = vmatpush1.bf16.msra.mxu0 0
        %4731 = vmatprep.subr.bf16.mxu0 0
        %4732 = vmatpush1.bf16.msra.mxu0 0
        %4733 = vmatprep.subr.bf16.mxu0 0
        %4734 = vmatpush1.bf16.msra.mxu0 0
        %4735 = vmatprep.subr.bf16.mxu0 0
        %4736 = vmatpush1.bf16.msra.mxu0 0
        %4737 = vmatprep.subr.bf16.mxu0 0
        %4738 = vmatpush1.bf16.msra.mxu0 0
        %4739 = vmatprep.mubr.bf16.mxu0 0
        %4740 = vmatmul.mubr.bf16.gmra.mrb[0].mxu0 %v4702
        %v4741 = vpop.f32.mrb[0].mxu0
        %v4742 = vadd.f32 0.0, %v4741
        %v4743 = vpop.f32.mrb[0].mxu0
        %v4744 = vpop.f32.mrb[0].mxu0
        %v4745 = vpop.f32.mrb[0].mxu0
        %4746 = vdwg.mxu0
        %v4748 = vsel %vm2766, %v4641, 0
        %v4751 = vsel %vm2906, %v4649, 0
        %4753 = vmatprep.subr.bf16.mxu0 0
        %4754 = vmatpush1.bf16.msra.mxu0 %v4751
        %4755 = vmatprep.subr.bf16.mxu0 0
        %4756 = vmatpush1.bf16.msra.mxu0 0
        %4757 = vmatprep.subr.bf16.mxu0 0
        %4758 = vmatpush1.bf16.msra.mxu0 0
        %4759 = vmatprep.subr.bf16.mxu0 0
        %4760 = vmatpush1.bf16.msra.mxu0 0
        %4761 = vmatprep.subr.bf16.mxu0 0
        %4762 = vmatpush1.bf16.msra.mxu0 0
        %4763 = vmatprep.subr.bf16.mxu0 0
        %4764 = vmatpush1.bf16.msra.mxu0 0
        %4765 = vmatprep.subr.bf16.mxu0 0
        %4766 = vmatpush1.bf16.msra.mxu0 0
        %4767 = vmatprep.subr.bf16.mxu0 0
        %4768 = vmatpush1.bf16.msra.mxu0 0
        %4769 = vmatprep.subr.bf16.mxu0 0
        %4770 = vmatpush1.bf16.msra.mxu0 0
        %4771 = vmatprep.subr.bf16.mxu0 0
        %4772 = vmatpush1.bf16.msra.mxu0 0
        %4773 = vmatprep.subr.bf16.mxu0 0
        %4774 = vmatpush1.bf16.msra.mxu0 0
        %4775 = vmatprep.subr.bf16.mxu0 0
        %4776 = vmatpush1.bf16.msra.mxu0 0
        %4777 = vmatprep.subr.bf16.mxu0 0
        %4778 = vmatpush1.bf16.msra.mxu0 0
        %4779 = vmatprep.subr.bf16.mxu0 0
        %4780 = vmatpush1.bf16.msra.mxu0 0
        %4781 = vmatprep.subr.bf16.mxu0 0
        %4782 = vmatpush1.bf16.msra.mxu0 0
        %4783 = vmatprep.subr.bf16.mxu0 0
        %4784 = vmatpush1.bf16.msra.mxu0 0
        %4785 = vmatprep.mubr.bf16.mxu0 0
        %4786 = vmatmul.mubr.bf16.gmra.mrb[0].mxu0 %v4748
        %v4787 = vpop.f32.mrb[0].mxu0
        %v4788 = vadd.f32 0.0, %v4787
        %v4789 = vpop.f32.mrb[0].mxu0
        %v4790 = vpop.f32.mrb[0].mxu0
        %v4791 = vpop.f32.mrb[0].mxu0
        %4792 = vdwg.mxu0
        %v4794 = vsel %vm2766, %v4642, 0
        %v4797 = vsel %vm2906, %v4650, 0
        %4799 = vmatprep.subr.bf16.mxu0 0
        %4800 = vmatpush1.bf16.msra.mxu0 %v4797
        %4801 = vmatprep.subr.bf16.mxu0 0
        %4802 = vmatpush1.bf16.msra.mxu0 0
        %4803 = vmatprep.subr.bf16.mxu0 0
        %4804 = vmatpush1.bf16.msra.mxu0 0
        %4805 = vmatprep.subr.bf16.mxu0 0
        %4806 = vmatpush1.bf16.msra.mxu0 0
        %4807 = vmatprep.subr.bf16.mxu0 0
        %4808 = vmatpush1.bf16.msra.mxu0 0
        %4809 = vmatprep.subr.bf16.mxu0 0
        %4810 = vmatpush1.bf16.msra.mxu0 0
        %4811 = vmatprep.subr.bf16.mxu0 0
        %4812 = vmatpush1.bf16.msra.mxu0 0
        %4813 = vmatprep.subr.bf16.mxu0 0
        %4814 = vmatpush1.bf16.msra.mxu0 0
        %4815 = vmatprep.subr.bf16.mxu0 0
        %4816 = vmatpush1.bf16.msra.mxu0 0
        %4817 = vmatprep.subr.bf16.mxu0 0
        %4818 = vmatpush1.bf16.msra.mxu0 0
        %4819 = vmatprep.subr.bf16.mxu0 0
        %4820 = vmatpush1.bf16.msra.mxu0 0
        %4821 = vmatprep.subr.bf16.mxu0 0
        %4822 = vmatpush1.bf16.msra.mxu0 0
        %4823 = vmatprep.subr.bf16.mxu0 0
        %4824 = vmatpush1.bf16.msra.mxu0 0
        %4825 = vmatprep.subr.bf16.mxu0 0
        %4826 = vmatpush1.bf16.msra.mxu0 0
        %4827 = vmatprep.subr.bf16.mxu0 0
        %4828 = vmatpush1.bf16.msra.mxu0 0
        %4829 = vmatprep.subr.bf16.mxu0 0
        %4830 = vmatpush1.bf16.msra.mxu0 0
        %4831 = vmatprep.mubr.bf16.mxu0 0
        %4832 = vmatmul.mubr.bf16.gmra.mrb[0].mxu0 %v4794
        %v4833 = vpop.f32.mrb[0].mxu0
        %v4834 = vadd.f32 0.0, %v4833
        %v4835 = vpop.f32.mrb[0].mxu0
        %v4836 = vpop.f32.mrb[0].mxu0
        %v4837 = vpop.f32.mrb[0].mxu0
        %4838 = vdwg.mxu0
        %v4840 = vsel %vm2766, %v4643, 0
        %v4843 = vsel %vm2906, %v4651, 0
        %4845 = vmatprep.subr.bf16.mxu0 0
        %4846 = vmatpush1.bf16.msra.mxu0 %v4843
        %4847 = vmatprep.subr.bf16.mxu0 0
        %4848 = vmatpush1.bf16.msra.mxu0 0
        %4849 = vmatprep.subr.bf16.mxu0 0
        %4850 = vmatpush1.bf16.msra.mxu0 0
        %4851 = vmatprep.subr.bf16.mxu0 0
        %4852 = vmatpush1.bf16.msra.mxu0 0
        %4853 = vmatprep.subr.bf16.mxu0 0
        %4854 = vmatpush1.bf16.msra.mxu0 0
        %4855 = vmatprep.subr.bf16.mxu0 0
        %4856 = vmatpush1.bf16.msra.mxu0 0
        %4857 = vmatprep.subr.bf16.mxu0 0
        %4858 = vmatpush1.bf16.msra.mxu0 0
        %4859 = vmatprep.subr.bf16.mxu0 0
        %4860 = vmatpush1.bf16.msra.mxu0 0
        %4861 = vmatprep.subr.bf16.mxu0 0
        %4862 = vmatpush1.bf16.msra.mxu0 0
        %4863 = vmatprep.subr.bf16.mxu0 0
        %4864 = vmatpush1.bf16.msra.mxu0 0
        %4865 = vmatprep.subr.bf16.mxu0 0
        %4866 = vmatpush1.bf16.msra.mxu0 0
        %4867 = vmatprep.subr.bf16.mxu0 0
        %4868 = vmatpush1.bf16.msra.mxu0 0
        %4869 = vmatprep.subr.bf16.mxu0 0
        %4870 = vmatpush1.bf16.msra.mxu0 0
        %4871 = vmatprep.subr.bf16.mxu0 0
        %4872 = vmatpush1.bf16.msra.mxu0 0
        %4873 = vmatprep.subr.bf16.mxu0 0
        %4874 = vmatpush1.bf16.msra.mxu0 0
        %4875 = vmatprep.subr.bf16.mxu0 0
        %4876 = vmatpush1.bf16.msra.mxu0 0
        %4877 = vmatprep.mubr.bf16.mxu0 0
        %4878 = vmatmul.mubr.bf16.gmra.mrb[0].mxu0 %v4840
        %v4879 = vpop.f32.mrb[0].mxu0
        %v4880 = vadd.f32 0.0, %v4879
        %v4881 = vpop.f32.mrb[0].mxu0
        %v4882 = vpop.f32.mrb[0].mxu0
        %v4883 = vpop.f32.mrb[0].mxu0
        %4884 = vdwg.mxu0
        %v4886 = vsel %vm2766, %v4644, 0
        %v4889 = vsel %vm2906, %v4652, 0
        %4891 = vmatprep.subr.bf16.mxu0 0
        %4892 = vmatpush1.bf16.msra.mxu0 %v4889
        %4893 = vmatprep.subr.bf16.mxu0 0
        %4894 = vmatpush1.bf16.msra.mxu0 0
        %4895 = vmatprep.subr.bf16.mxu0 0
        %4896 = vmatpush1.bf16.msra.mxu0 0
        %4897 = vmatprep.subr.bf16.mxu0 0
        %4898 = vmatpush1.bf16.msra.mxu0 0
        %4899 = vmatprep.subr.bf16.mxu0 0
        %4900 = vmatpush1.bf16.msra.mxu0 0
        %4901 = vmatprep.subr.bf16.mxu0 0
        %4902 = vmatpush1.bf16.msra.mxu0 0
        %4903 = vmatprep.subr.bf16.mxu0 0
        %4904 = vmatpush1.bf16.msra.mxu0 0
        %4905 = vmatprep.subr.bf16.mxu0 0
        %4906 = vmatpush1.bf16.msra.mxu0 0
        %4907 = vmatprep.subr.bf16.mxu0 0
        %4908 = vmatpush1.bf16.msra.mxu0 0
        %4909 = vmatprep.subr.bf16.mxu0 0
        %4910 = vmatpush1.bf16.msra.mxu0 0
        %4911 = vmatprep.subr.bf16.mxu0 0
        %4912 = vmatpush1.bf16.msra.mxu0 0
        %4913 = vmatprep.subr.bf16.mxu0 0
        %4914 = vmatpush1.bf16.msra.mxu0 0
        %4915 = vmatprep.subr.bf16.mxu0 0
        %4916 = vmatpush1.bf16.msra.mxu0 0
        %4917 = vmatprep.subr.bf16.mxu0 0
        %4918 = vmatpush1.bf16.msra.mxu0 0
        %4919 = vmatprep.subr.bf16.mxu0 0
        %4920 = vmatpush1.bf16.msra.mxu0 0
        %4921 = vmatprep.subr.bf16.mxu0 0
        %4922 = vmatpush1.bf16.msra.mxu0 0
        %4923 = vmatprep.mubr.bf16.mxu0 0
        %4924 = vmatmul.mubr.bf16.gmra.mrb[0].mxu0 %v4886
        %v4925 = vpop.f32.mrb[0].mxu0
        %v4926 = vadd.f32 0.0, %v4925
        %v4927 = vpop.f32.mrb[0].mxu0
        %v4928 = vpop.f32.mrb[0].mxu0
        %v4929 = vpop.f32.mrb[0].mxu0
        %4930 = vdwg.mxu0
        %v4932 = vsel %vm2766, %v4645, 0
        %v4935 = vsel %vm2906, %v4653, 0
        %4937 = vmatprep.subr.bf16.mxu0 0
        %4938 = vmatpush1.bf16.msra.mxu0 %v4935
        %4939 = vmatprep.subr.bf16.mxu0 0
        %4940 = vmatpush1.bf16.msra.mxu0 0
        %4941 = vmatprep.subr.bf16.mxu0 0
        %4942 = vmatpush1.bf16.msra.mxu0 0
        %4943 = vmatprep.subr.bf16.mxu0 0
        %4944 = vmatpush1.bf16.msra.mxu0 0
        %4945 = vmatprep.subr.bf16.mxu0 0
        %4946 = vmatpush1.bf16.msra.mxu0 0
        %4947 = vmatprep.subr.bf16.mxu0 0
        %4948 = vmatpush1.bf16.msra.mxu0 0
        %4949 = vmatprep.subr.bf16.mxu0 0
        %4950 = vmatpush1.bf16.msra.mxu0 0
        %4951 = vmatprep.subr.bf16.mxu0 0
        %4952 = vmatpush1.bf16.msra.mxu0 0
        %4953 = vmatprep.subr.bf16.mxu0 0
        %4954 = vmatpush1.bf16.msra.mxu0 0
        %4955 = vmatprep.subr.bf16.mxu0 0
        %4956 = vmatpush1.bf16.msra.mxu0 0
        %4957 = vmatprep.subr.bf16.mxu0 0
        %4958 = vmatpush1.bf16.msra.mxu0 0
        %4959 = vmatprep.subr.bf16.mxu0 0
        %4960 = vmatpush1.bf16.msra.mxu0 0
        %4961 = vmatprep.subr.bf16.mxu0 0
        %4962 = vmatpush1.bf16.msra.mxu0 0
        %4963 = vmatprep.subr.bf16.mxu0 0
        %4964 = vmatpush1.bf16.msra.mxu0 0
        %4965 = vmatprep.subr.bf16.mxu0 0
        %4966 = vmatpush1.bf16.msra.mxu0 0
        %4967 = vmatprep.subr.bf16.mxu0 0
        %4968 = vmatpush1.bf16.msra.mxu0 0
        %4969 = vmatprep.mubr.bf16.mxu0 0
        %4970 = vmatmul.mubr.bf16.gmra.mrb[0].mxu0 %v4932
        %v4971 = vpop.f32.mrb[0].mxu0
        %v4972 = vadd.f32 0.0, %v4971
        %v4973 = vpop.f32.mrb[0].mxu0
        %v4974 = vpop.f32.mrb[0].mxu0
        %v4975 = vpop.f32.mrb[0].mxu0
        %4976 = vdwg.mxu0
        %v4978 = vsel %vm2766, %v4646, 0
        %v4981 = vsel %vm2906, %v4654, 0
        %4983 = vmatprep.subr.bf16.mxu0 0
        %4984 = vmatpush1.bf16.msra.mxu0 %v4981
        %4985 = vmatprep.subr.bf16.mxu0 0
        %4986 = vmatpush1.bf16.msra.mxu0 0
        %4987 = vmatprep.subr.bf16.mxu0 0
        %4988 = vmatpush1.bf16.msra.mxu0 0
        %4989 = vmatprep.subr.bf16.mxu0 0
        %4990 = vmatpush1.bf16.msra.mxu0 0
        %4991 = vmatprep.subr.bf16.mxu0 0
        %4992 = vmatpush1.bf16.msra.mxu0 0
        %4993 = vmatprep.subr.bf16.mxu0 0
        %4994 = vmatpush1.bf16.msra.mxu0 0
        %4995 = vmatprep.subr.bf16.mxu0 0
        %4996 = vmatpush1.bf16.msra.mxu0 0
        %4997 = vmatprep.subr.bf16.mxu0 0
        %4998 = vmatpush1.bf16.msra.mxu0 0
        %4999 = vmatprep.subr.bf16.mxu0 0
        %5000 = vmatpush1.bf16.msra.mxu0 0
        %5001 = vmatprep.subr.bf16.mxu0 0
        %5002 = vmatpush1.bf16.msra.mxu0 0
        %5003 = vmatprep.subr.bf16.mxu0 0
        %5004 = vmatpush1.bf16.msra.mxu0 0
        %5005 = vmatprep.subr.bf16.mxu0 0
        %5006 = vmatpush1.bf16.msra.mxu0 0
        %5007 = vmatprep.subr.bf16.mxu0 0
        %5008 = vmatpush1.bf16.msra.mxu0 0
        %5009 = vmatprep.subr.bf16.mxu0 0
        %5010 = vmatpush1.bf16.msra.mxu0 0
        %5011 = vmatprep.subr.bf16.mxu0 0
        %5012 = vmatpush1.bf16.msra.mxu0 0
        %5013 = vmatprep.subr.bf16.mxu0 0
        %5014 = vmatpush1.bf16.msra.mxu0 0
        %5015 = vmatprep.mubr.bf16.mxu0 0
        %5016 = vmatmul.mubr.bf16.gmra.mrb[0].mxu0 %v4978
        %v5017 = vpop.f32.mrb[0].mxu0
        %v5018 = vadd.f32 0.0, %v5017
        %v5019 = vpop.f32.mrb[0].mxu0
        %v5020 = vpop.f32.mrb[0].mxu0
        %v5021 = vpop.f32.mrb[0].mxu0
        %5022 = vdwg.mxu0
        %v5023 = vmul.f32 %v4696, %v4631
        %v5024 = vmul.f32 %v4742, %v4632
        %v5025 = vmul.f32 %v4788, %v4633
        %v5026 = vmul.f32 %v4834, %v4634
        %v5027 = vmul.f32 %v4880, %v4635
        %v5028 = vmul.f32 %v4926, %v4636
        %v5029 = vmul.f32 %v4972, %v4637
        %v5030 = vmul.f32 %v5018, %v4638
        %v5031 = vmul.f32 %v4584, %v4631
        %v5032 = vmul.f32 %v4586, %v4632
        %v5033 = vmul.f32 %v4588, %v4633
        %v5034 = vmul.f32 %v4590, %v4634
        %v5035 = vmul.f32 %v4592, %v4635
        %v5036 = vmul.f32 %v4594, %v4636
        %v5037 = vmul.f32 %v4596, %v4637
        %v5038 = vmul.f32 %v4598, %v4638
        %v5041 = vunpack.c.l.s4 1966171168
        %v5042 = vunpack.c.0.s8 %v5041
        %v5043 = vlaneseq
        %v5044 = vshrl.u32 %v5043, 7
        %v5045 = vsub.s32 %v5042, %v5044
        %v5046 = vrot.slane %v3677, %v5045
        %v5047 = vcombine.high %v5046, %v5046
        %v5049 = vunpack.c.l.s4 1966171168
        %v5050 = vunpack.c.0.s8 %v5049
        %v5051 = vlaneseq
        %v5052 = vshrl.u32 %v5051, 7
        %v5053 = vsub.s32 %v5050, %v5052
        %v5054 = vrot.slane %v5046, %v5053
        %v5056 = vunpack.c.l.s4 1966171168
        %v5057 = vunpack.c.0.s8 %v5056
        %v5058 = vlaneseq
        %v5059 = vshrl.u32 %v5058, 7
        %v5060 = vsub.s32 %v5057, %v5059
        %v5061 = vrot.slane %v5047, %v5060
        %v5062 = vcombine.high %v5054, %v5054
        %v5063 = vcombine.high %v5061, %v5061
        %v5064 = vlaneseq
        %v5065 = vshrl.u32 %v5064, 7
        %v5066 = vsub.s32 0, %v5065
        %v5067 = vrot.slane %v5054, %v5066
        %v5068 = vlaneseq
        %v5069 = vshrl.u32 %v5068, 7
        %v5070 = vsub.s32 0, %v5069
        %v5071 = vrot.slane %v5061, %v5070
        %v5072 = vlaneseq
        %v5073 = vshrl.u32 %v5072, 7
        %v5074 = vsub.s32 0, %v5073
        %v5075 = vrot.slane %v5062, %v5074
        %v5076 = vlaneseq
        %v5077 = vshrl.u32 %v5076, 7
        %v5078 = vsub.s32 0, %v5077
        %v5079 = vrot.slane %v5063, %v5078
        %v5084 = vmul.f32 %v5031, %v5067
        %v5085 = vmul.f32 %v5032, %v5067
        %v5086 = vmul.f32 %v5033, %v5071
        %v5087 = vmul.f32 %v5034, %v5071
        %v5088 = vmul.f32 %v5035, %v5075
        %v5089 = vmul.f32 %v5036, %v5075
        %v5090 = vmul.f32 %v5037, %v5079
        %v5091 = vmul.f32 %v5038, %v5079
        %v5092 = vadd.f32 %v5023, %v5084
        %v5093 = vadd.f32 %v5024, %v5085
        %v5094 = vadd.f32 %v5025, %v5086
        %v5095 = vadd.f32 %v5026, %v5087
        %v5096 = vadd.f32 %v5027, %v5088
        %v5097 = vadd.f32 %v5028, %v5089
        %v5098 = vadd.f32 %v5029, %v5090
        %v5099 = vadd.f32 %v5030, %v5091
        %v5100 = vpack.c.bf16 %v5093, %v5092
        %v5101 = vpack.c.bf16 %v5095, %v5094
        %v5106 = vunpack.c.l.b16 %v3682
        %v5107 = vunpack.c.l.b16 %v3683
        %v5108 = vunpack.c.l.b16 %v3684
        %v5109 = vunpack.c.l.b16 %v3685
        %v5110 = vpack.c.b16 %v5107, %v5106
        %v5111 = vpack.c.b16 %v5109, %v5108
        %v5115 = vsel %vm2304, %v5101, 0
        %5117 = vmatprep.subr.bf16.mxu0 0
        %5118 = vmatpush1.bf16.msra.mxu0 %v5110
        %5119 = vmatprep.subr.bf16.mxu0 0
        %5120 = vmatpush1.bf16.msra.mxu0 %v5111
        %5121 = vmatprep.subr.bf16.mxu0 0
        %5122 = vmatpush1.bf16.msra.mxu0 0
        %5123 = vmatprep.subr.bf16.mxu0 0
        %5124 = vmatpush1.bf16.msra.mxu0 0
        %5125 = vmatprep.subr.bf16.mxu0 0
        %5126 = vmatpush1.bf16.msra.mxu0 0
        %5127 = vmatprep.subr.bf16.mxu0 0
        %5128 = vmatpush1.bf16.msra.mxu0 0
        %5129 = vmatprep.subr.bf16.mxu0 0
        %5130 = vmatpush1.bf16.msra.mxu0 0
        %5131 = vmatprep.subr.bf16.mxu0 0
        %5132 = vmatpush1.bf16.msra.mxu0 0
        %5133 = vmatprep.subr.bf16.mxu0 0
        %5134 = vmatpush1.bf16.msra.mxu0 0
        %5135 = vmatprep.subr.bf16.mxu0 0
        %5136 = vmatpush1.bf16.msra.mxu0 0
        %5137 = vmatprep.subr.bf16.mxu0 0
        %5138 = vmatpush1.bf16.msra.mxu0 0
        %5139 = vmatprep.subr.bf16.mxu0 0
        %5140 = vmatpush1.bf16.msra.mxu0 0
        %5141 = vmatprep.subr.bf16.mxu0 0
        %5142 = vmatpush1.bf16.msra.mxu0 0
        %5143 = vmatprep.subr.bf16.mxu0 0
        %5144 = vmatpush1.bf16.msra.mxu0 0
        %5145 = vmatprep.subr.bf16.mxu0 0
        %5146 = vmatpush1.bf16.msra.mxu0 0
        %5147 = vmatprep.subr.bf16.mxu0 0
        %5148 = vmatpush1.bf16.msra.mxu0 0
        %5149 = vmatprep.mubr.bf16.mxu0 0
        %5150 = vmatmul.mubr.bf16.gmra.mrb[0].mxu0 %v5115
        %v5151 = vpop.f32.mrb[0].mxu0
        %v5152 = vadd.f32 0.0, %v5151
        %v5153 = vpop.f32.mrb[0].mxu0
        %v5154 = vpop.f32.mrb[0].mxu0
        %v5155 = vadd.f32 0.0, %v5154
        %v5156 = vpop.f32.mrb[0].mxu0
        %5157 = vdwg.mxu0
        %v5162 = vunpack.c.l.b16 %v3678
        %v5163 = vunpack.c.l.b16 %v3679
        %v5164 = vunpack.c.l.b16 %v3680
        %v5165 = vunpack.c.l.b16 %v3681
        %v5166 = vpack.c.b16 %v5163, %v5162
        %v5167 = vpack.c.b16 %v5165, %v5164
        %v5171 = vsel %vm2304, %v5100, 0
        %5173 = vmatprep.subr.bf16.mxu0 0
        %5174 = vmatpush1.bf16.msra.mxu0 %v5166
        %5175 = vmatprep.subr.bf16.mxu0 0
        %5176 = vmatpush1.bf16.msra.mxu0 %v5167
        %5177 = vmatprep.subr.bf16.mxu0 0
        %5178 = vmatpush1.bf16.msra.mxu0 0
        %5179 = vmatprep.subr.bf16.mxu0 0
        %5180 = vmatpush1.bf16.msra.mxu0 0
        %5181 = vmatprep.subr.bf16.mxu0 0
        %5182 = vmatpush1.bf16.msra.mxu0 0
        %5183 = vmatprep.subr.bf16.mxu0 0
        %5184 = vmatpush1.bf16.msra.mxu0 0
        %5185 = vmatprep.subr.bf16.mxu0 0
        %5186 = vmatpush1.bf16.msra.mxu0 0
        %5187 = vmatprep.subr.bf16.mxu0 0
        %5188 = vmatpush1.bf16.msra.mxu0 0
        %5189 = vmatprep.subr.bf16.mxu0 0
        %5190 = vmatpush1.bf16.msra.mxu0 0
        %5191 = vmatprep.subr.bf16.mxu0 0
        %5192 = vmatpush1.bf16.msra.mxu0 0
        %5193 = vmatprep.subr.bf16.mxu0 0
        %5194 = vmatpush1.bf16.msra.mxu0 0
        %5195 = vmatprep.subr.bf16.mxu0 0
        %5196 = vmatpush1.bf16.msra.mxu0 0
        %5197 = vmatprep.subr.bf16.mxu0 0
        %5198 = vmatpush1.bf16.msra.mxu0 0
        %5199 = vmatprep.subr.bf16.mxu0 0
        %5200 = vmatpush1.bf16.msra.mxu0 0
        %5201 = vmatprep.subr.bf16.mxu0 0
        %5202 = vmatpush1.bf16.msra.mxu0 0
        %5203 = vmatprep.subr.bf16.mxu0 0
        %5204 = vmatpush1.bf16.msra.mxu0 0
        %5205 = vmatprep.mubr.bf16.mxu0 0
        %5206 = vmatmul.mubr.bf16.gmra.mrb[0].mxu0 %v5171
        %v5207 = vpop.f32.mrb[0].mxu0
        %v5208 = vadd.f32 %v5152, %v5207
        %v5209 = vpop.f32.mrb[0].mxu0
        %v5210 = vpop.f32.mrb[0].mxu0
        %v5211 = vadd.f32 %v5155, %v5210
        %v5212 = vpop.f32.mrb[0].mxu0
        %5213 = vdwg.mxu0
        %v5214 = vpack.c.bf16 %v5097, %v5096
        %v5219 = vunpack.c.l.b16 %v3686
        %v5220 = vunpack.c.l.b16 %v3687
        %v5221 = vunpack.c.l.b16 %v3688
        %v5222 = vunpack.c.l.b16 %v3689
        %v5223 = vpack.c.b16 %v5220, %v5219
        %v5224 = vpack.c.b16 %v5222, %v5221
        %v5228 = vsel %vm2304, %v5214, 0
        %5230 = vmatprep.subr.bf16.mxu0 0
        %5231 = vmatpush1.bf16.msra.mxu0 %v5223
        %5232 = vmatprep.subr.bf16.mxu0 0
        %5233 = vmatpush1.bf16.msra.mxu0 %v5224
        %5234 = vmatprep.subr.bf16.mxu0 0
        %5235 = vmatpush1.bf16.msra.mxu0 0
        %5236 = vmatprep.subr.bf16.mxu0 0
        %5237 = vmatpush1.bf16.msra.mxu0 0
        %5238 = vmatprep.subr.bf16.mxu0 0
        %5239 = vmatpush1.bf16.msra.mxu0 0
        %5240 = vmatprep.subr.bf16.mxu0 0
        %5241 = vmatpush1.bf16.msra.mxu0 0
        %5242 = vmatprep.subr.bf16.mxu0 0
        %5243 = vmatpush1.bf16.msra.mxu0 0
        %5244 = vmatprep.subr.bf16.mxu0 0
        %5245 = vmatpush1.bf16.msra.mxu0 0
        %5246 = vmatprep.subr.bf16.mxu0 0
        %5247 = vmatpush1.bf16.msra.mxu0 0
        %5248 = vmatprep.subr.bf16.mxu0 0
        %5249 = vmatpush1.bf16.msra.mxu0 0
        %5250 = vmatprep.subr.bf16.mxu0 0
        %5251 = vmatpush1.bf16.msra.mxu0 0
        %5252 = vmatprep.subr.bf16.mxu0 0
        %5253 = vmatpush1.bf16.msra.mxu0 0
        %5254 = vmatprep.subr.bf16.mxu0 0
        %5255 = vmatpush1.bf16.msra.mxu0 0
        %5256 = vmatprep.subr.bf16.mxu0 0
        %5257 = vmatpush1.bf16.msra.mxu0 0
        %5258 = vmatprep.subr.bf16.mxu0 0
        %5259 = vmatpush1.bf16.msra.mxu0 0
        %5260 = vmatprep.subr.bf16.mxu0 0
        %5261 = vmatpush1.bf16.msra.mxu0 0
        %5262 = vmatprep.mubr.bf16.mxu0 0
        %5263 = vmatmul.mubr.bf16.gmra.mrb[0].mxu0 %v5228
        %v5264 = vpop.f32.mrb[0].mxu0
        %v5265 = vadd.f32 0.0, %v5264
        %v5266 = vpop.f32.mrb[0].mxu0
        %v5267 = vpop.f32.mrb[0].mxu0
        %v5268 = vadd.f32 0.0, %v5267
        %v5269 = vpop.f32.mrb[0].mxu0
        %5270 = vdwg.mxu0
        %v5271 = vadd.f32 %v5208, %v5265
        %v5272 = vadd.f32 %v5211, %v5268
        %v5273 = vpack.c.bf16 %v5099, %v5098
        %v5278 = vunpack.c.l.b16 %v3690
        %v5279 = vunpack.c.l.b16 %v3691
        %v5280 = vunpack.c.l.b16 %v3692
        %v5281 = vunpack.c.l.b16 %v3693
        %v5282 = vpack.c.b16 %v5279, %v5278
        %v5283 = vpack.c.b16 %v5281, %v5280
        %v5287 = vsel %vm2304, %v5273, 0
        %5289 = vmatprep.subr.bf16.mxu0 0
        %5290 = vmatpush1.bf16.msra.mxu0 %v5282
        %5291 = vmatprep.subr.bf16.mxu0 0
        %5292 = vmatpush1.bf16.msra.mxu0 %v5283
        %5293 = vmatprep.subr.bf16.mxu0 0
        %5294 = vmatpush1.bf16.msra.mxu0 0
        %5295 = vmatprep.subr.bf16.mxu0 0
        %5296 = vmatpush1.bf16.msra.mxu0 0
        %5297 = vmatprep.subr.bf16.mxu0 0
        %5298 = vmatpush1.bf16.msra.mxu0 0
        %5299 = vmatprep.subr.bf16.mxu0 0
        %5300 = vmatpush1.bf16.msra.mxu0 0
        %5301 = vmatprep.subr.bf16.mxu0 0
        %5302 = vmatpush1.bf16.msra.mxu0 0
        %5303 = vmatprep.subr.bf16.mxu0 0
        %5304 = vmatpush1.bf16.msra.mxu0 0
        %5305 = vmatprep.subr.bf16.mxu0 0
        %5306 = vmatpush1.bf16.msra.mxu0 0
        %5307 = vmatprep.subr.bf16.mxu0 0
        %5308 = vmatpush1.bf16.msra.mxu0 0
        %5309 = vmatprep.subr.bf16.mxu0 0
        %5310 = vmatpush1.bf16.msra.mxu0 0
        %5311 = vmatprep.subr.bf16.mxu0 0
        %5312 = vmatpush1.bf16.msra.mxu0 0
        %5313 = vmatprep.subr.bf16.mxu0 0
        %5314 = vmatpush1.bf16.msra.mxu0 0
        %5315 = vmatprep.subr.bf16.mxu0 0
        %5316 = vmatpush1.bf16.msra.mxu0 0
        %5317 = vmatprep.subr.bf16.mxu0 0
        %5318 = vmatpush1.bf16.msra.mxu0 0
        %5319 = vmatprep.subr.bf16.mxu0 0
        %5320 = vmatpush1.bf16.msra.mxu0 0
        %5321 = vmatprep.mubr.bf16.mxu0 0
        %5322 = vmatmul.mubr.bf16.gmra.mrb[0].mxu0 %v5287
        %v5323 = vpop.f32.mrb[0].mxu0
        %v5324 = vadd.f32 0.0, %v5323
        %v5325 = vpop.f32.mrb[0].mxu0
        %v5326 = vpop.f32.mrb[0].mxu0
        %v5327 = vadd.f32 0.0, %v5326
        %v5328 = vpop.f32.mrb[0].mxu0
        %5329 = vdwg.mxu0
        %v5330 = vadd.f32 %v5271, %v5324
        %v5331 = vadd.f32 %v5272, %v5327
        %v5333 = vlaneseq
        %v5334 = vshrl.u32 %v5333, 7
        %v5335 = vsub.s32 0, %v5334
        %v5336 = vrot.slane %v3694, %v5335
        %v5338 = vadd.f32 %v5330, %v5336
        %v5339 = vadd.f32 %v5331, %v5336
        %v5340 = vadd.f32 %v3601, %v5338
        %v5341 = vadd.f32 %v3602, %v5339
        %5342 = vadd.xlane.f32.xlu0 %v5340
        %v5343 = vpop.xlane.xlu0 %5342
        %5344 = vadd.xlane.f32.xlu0 %v5341
        %v5345 = vpop.xlane.xlu0 %5344
        %v5346 = vmul.f32 %v5343, %v1825
        %v5347 = vmul.f32 %v5345, %v1825
        %v5348 = vsub.f32 %v5340, %v5346
        %v5349 = vsub.f32 %v5341, %v5347
        %v5350 = vmul.f32 %v5348, %v5348
        %v5351 = vmul.f32 %v5349, %v5349
        %5352 = vadd.xlane.f32.xlu0 %v5350
        %v5353 = vpop.xlane.xlu0 %5352
        %5354 = vadd.xlane.f32.xlu0 %v5351
        %v5355 = vpop.xlane.xlu0 %5354
        %v5356 = vmul.f32 %v5353, %v1825
        %v5357 = vmul.f32 %v5355, %v1825
        %v5358 = vadd.f32 %v5356, 1e-06
        %v5359 = vadd.f32 %v5357, 1e-06
        %v5360 = vrsqrt.pop %v5358
        %v5361 = vrsqrt.pop %v5359
        %v5362 = vmul.f32 %v5348, %v5360
        %v5363 = vmul.f32 %v5349, %v5361
        %v5364 = vadd.f32 %v1788, 1.0
        %v5365 = vadd.f32 %v1795, 1.0
        %v5368 = vlaneseq
        %v5369 = vshrl.u32 %v5368, 7
        %v5370 = vsub.s32 0, %v5369
        %v5371 = vrot.slane %v5364, %v5370
        %v5372 = vlaneseq
        %v5373 = vshrl.u32 %v5372, 7
        %v5374 = vsub.s32 0, %v5373
        %v5375 = vrot.slane %v5365, %v5374
        %v5378 = vmul.f32 %v5362, %v5371
        %v5379 = vmul.f32 %v5363, %v5375
        %v5380 = vlaneseq
        %v5381 = vshrl.u32 %v5380, 7
        %v5382 = vsub.s32 0, %v5381
        %v5383 = vrot.slane %v1765, %v5382
        %v5384 = vlaneseq
        %v5385 = vshrl.u32 %v5384, 7
        %v5386 = vsub.s32 0, %v5385
        %v5387 = vrot.slane %v1772, %v5386
        %v5390 = vadd.f32 %v5378, %v5383
        %v5391 = vadd.f32 %v5379, %v5387
        %v5392 = vld [vmem:[#allocation32] sm:$0xff]
        %v5393 = vld [vmem:[#allocation32 + $0x8] sm:$0xff]
        %v5394 = vld [vmem:[#allocation32 + $0x10] sm:$0xff]
        %v5395 = vld [vmem:[#allocation32 + $0x18] sm:$0xff]
        %v5396 = vld [vmem:[#allocation32 + $0x20] sm:$0xff]
        %v5397 = vld [vmem:[#allocation32 + $0x28] sm:$0xff]
        %v5398 = vld [vmem:[#allocation32 + $0x30] sm:$0xff]
        %v5399 = vld [vmem:[#allocation32 + $0x38] sm:$0xff]
        %v5400 = vld [vmem:[#allocation32 + $0x40] sm:$0xff]
        %v5401 = vld [vmem:[#allocation32 + $0x48] sm:$0xff]
        %v5402 = vld [vmem:[#allocation32 + $0x50] sm:$0xff]
        %v5403 = vld [vmem:[#allocation32 + $0x58] sm:$0xff]
        %v5404 = vld [vmem:[#allocation32 + $0x60] sm:$0xff]
        %v5405 = vld [vmem:[#allocation32 + $0x68] sm:$0xff]
        %v5406 = vld [vmem:[#allocation32 + $0x70] sm:$0xff]
        %v5407 = vld [vmem:[#allocation32 + $0x78] sm:$0xff]
        %v5408 = vld [vmem:[#allocation32 + $0x80] sm:$0xff]
        %v5409 = vld [vmem:[#allocation32 + $0x88] sm:$0xff]
        %v5410 = vld [vmem:[#allocation32 + $0x90] sm:$0xff]
        %v5411 = vld [vmem:[#allocation32 + $0x98] sm:$0xff]
        %v5412 = vld [vmem:[#allocation32 + $0xa0] sm:$0xff]
        %v5413 = vld [vmem:[#allocation32 + $0xa8] sm:$0xff]
        %v5414 = vld [vmem:[#allocation32 + $0xb0] sm:$0xff]
        %v5415 = vld [vmem:[#allocation32 + $0xb8] sm:$0xff]
        %v5416 = vld [vmem:[#allocation32 + $0xc0] sm:$0xff]
        %v5417 = vld [vmem:[#allocation32 + $0xc8] sm:$0xff]
        %v5418 = vld [vmem:[#allocation32 + $0xd0] sm:$0xff]
        %v5419 = vld [vmem:[#allocation32 + $0xd8] sm:$0xff]
        %v5420 = vld [vmem:[#allocation32 + $0xe0] sm:$0xff]
        %v5421 = vld [vmem:[#allocation32 + $0xe8] sm:$0xff]
        %v5422 = vld [vmem:[#allocation32 + $0xf0] sm:$0xff]
        %v5423 = vld [vmem:[#allocation32 + $0xf8] sm:$0xff]
        %v5424 = vpack.c.bf16 %v5391, %v5390
        %v5425 = vld [vmem:[%s53] sm:$0xf]
        %v5427 = vlaneseq
        %v5428 = vshrl.u32 %v5427, 7
        %v5429 = vsub.s32 0, %v5428
        %v5430 = vrot.slane %v5425, %v5429
        %v5431 = vlaneseq
        %v5432 = vshrl.u32 %v5431, 7
        %v5433 = vsub.s32 1, %v5432
        %v5434 = vrot.slane %v5425, %v5433
        %v5435 = vlaneseq
        %v5436 = vshrl.u32 %v5435, 7
        %v5437 = vsub.s32 2, %v5436
        %v5438 = vrot.slane %v5425, %v5437
        %v5439 = vlaneseq
        %v5440 = vshrl.u32 %v5439, 7
        %v5441 = vsub.s32 3, %v5440
        %v5442 = vrot.slane %v5425, %v5441
        %v5479 = vunpack.c.l.b16 %v5392
        %v5480 = vunpack.c.h.b16 %v5392
        %v5481 = vunpack.c.l.b16 %v5393
        %v5482 = vunpack.c.h.b16 %v5393
        %v5483 = vunpack.c.l.b16 %v5394
        %v5484 = vunpack.c.h.b16 %v5394
        %v5485 = vunpack.c.l.b16 %v5395
        %v5486 = vunpack.c.h.b16 %v5395
        %v5487 = vunpack.c.l.b16 %v5396
        %v5488 = vunpack.c.h.b16 %v5396
        %v5489 = vunpack.c.l.b16 %v5397
        %v5490 = vunpack.c.h.b16 %v5397
        %v5491 = vunpack.c.l.b16 %v5398
        %v5492 = vunpack.c.h.b16 %v5398
        %v5493 = vunpack.c.l.b16 %v5399
        %v5494 = vunpack.c.h.b16 %v5399
        %v5495 = vunpack.c.l.b16 %v5400
        %v5496 = vunpack.c.h.b16 %v5400
        %v5497 = vunpack.c.l.b16 %v5401
        %v5498 = vunpack.c.h.b16 %v5401
        %v5499 = vunpack.c.l.b16 %v5402
        %v5500 = vunpack.c.h.b16 %v5402
        %v5501 = vunpack.c.l.b16 %v5403
        %v5502 = vunpack.c.h.b16 %v5403
        %v5503 = vunpack.c.l.b16 %v5404
        %v5504 = vunpack.c.h.b16 %v5404
        %v5505 = vunpack.c.l.b16 %v5405
        %v5506 = vunpack.c.h.b16 %v5405
        %v5507 = vunpack.c.l.b16 %v5406
        %v5508 = vunpack.c.h.b16 %v5406
        %v5509 = vunpack.c.l.b16 %v5407
        %v5510 = vunpack.c.h.b16 %v5407
        %v5511 = vunpack.c.l.b16 %v5408
        %v5512 = vunpack.c.h.b16 %v5408
        %v5513 = vunpack.c.l.b16 %v5409
        %v5514 = vunpack.c.h.b16 %v5409
        %v5515 = vunpack.c.l.b16 %v5410
        %v5516 = vunpack.c.h.b16 %v5410
        %v5517 = vunpack.c.l.b16 %v5411
        %v5518 = vunpack.c.h.b16 %v5411
        %v5519 = vunpack.c.l.b16 %v5412
        %v5520 = vunpack.c.h.b16 %v5412
        %v5521 = vunpack.c.l.b16 %v5413
        %v5522 = vunpack.c.h.b16 %v5413
        %v5523 = vunpack.c.l.b16 %v5414
        %v5524 = vunpack.c.h.b16 %v5414
        %v5525 = vunpack.c.l.b16 %v5415
        %v5526 = vunpack.c.h.b16 %v5415
        %v5527 = vunpack.c.l.b16 %v5416
        %v5528 = vunpack.c.h.b16 %v5416
        %v5529 = vunpack.c.l.b16 %v5417
        %v5530 = vunpack.c.h.b16 %v5417
        %v5531 = vunpack.c.l.b16 %v5418
        %v5532 = vunpack.c.h.b16 %v5418
        %v5533 = vunpack.c.l.b16 %v5419
        %v5534 = vunpack.c.h.b16 %v5419
        %v5535 = vunpack.c.l.b16 %v5420
        %v5536 = vunpack.c.h.b16 %v5420
        %v5537 = vunpack.c.l.b16 %v5421
        %v5538 = vunpack.c.h.b16 %v5421
        %v5539 = vunpack.c.l.b16 %v5422
        %v5540 = vunpack.c.h.b16 %v5422
        %v5541 = vunpack.c.l.b16 %v5423
        %v5542 = vunpack.c.h.b16 %v5423
        %v5543 = vpack.c.b16 %v5483, %v5479
        %v5544 = vpack.c.b16 %v5484, %v5480
        %v5545 = vpack.c.b16 %v5485, %v5481
        %v5546 = vpack.c.b16 %v5486, %v5482
        %v5547 = vpack.c.b16 %v5491, %v5487
        %v5548 = vpack.c.b16 %v5492, %v5488
        %v5549 = vpack.c.b16 %v5493, %v5489
        %v5550 = vpack.c.b16 %v5494, %v5490
        %v5551 = vpack.c.b16 %v5499, %v5495
        %v5552 = vpack.c.b16 %v5500, %v5496
        %v5553 = vpack.c.b16 %v5501, %v5497
        %v5554 = vpack.c.b16 %v5502, %v5498
        %v5555 = vpack.c.b16 %v5507, %v5503
        %v5556 = vpack.c.b16 %v5508, %v5504
        %v5557 = vpack.c.b16 %v5509, %v5505
        %v5558 = vpack.c.b16 %v5510, %v5506
        %v5559 = vpack.c.b16 %v5515, %v5511
        %v5560 = vpack.c.b16 %v5516, %v5512
        %v5561 = vpack.c.b16 %v5517, %v5513
        %v5562 = vpack.c.b16 %v5518, %v5514
        %v5563 = vpack.c.b16 %v5523, %v5519
        %v5564 = vpack.c.b16 %v5524, %v5520
        %v5565 = vpack.c.b16 %v5525, %v5521
        %v5566 = vpack.c.b16 %v5526, %v5522
        %v5567 = vpack.c.b16 %v5531, %v5527
        %v5568 = vpack.c.b16 %v5532, %v5528
        %v5569 = vpack.c.b16 %v5533, %v5529
        %v5570 = vpack.c.b16 %v5534, %v5530
        %v5571 = vpack.c.b16 %v5539, %v5535
        %v5572 = vpack.c.b16 %v5540, %v5536
        %v5573 = vpack.c.b16 %v5541, %v5537
        %v5574 = vpack.c.b16 %v5542, %v5538
        %5607 = vmatprep.subr.bf16.mxu0 %v5544
        %5608 = vmatpush1.bf16.msra.mxu0 %v5543
        %5609 = vmatprep.subr.bf16.mxu0 %v5548
        %5610 = vmatpush1.bf16.msra.mxu0 %v5547
        %5611 = vmatprep.subr.bf16.mxu0 %v5552
        %5612 = vmatpush1.bf16.msra.mxu0 %v5551
        %5613 = vmatprep.subr.bf16.mxu0 %v5556
        %5614 = vmatpush1.bf16.msra.mxu0 %v5555
        %5615 = vmatprep.subr.bf16.mxu0 %v5560
        %5616 = vmatpush1.bf16.msra.mxu0 %v5559
        %5617 = vmatprep.subr.bf16.mxu0 %v5564
        %5618 = vmatpush1.bf16.msra.mxu0 %v5563
        %5619 = vmatprep.subr.bf16.mxu0 %v5568
        %5620 = vmatpush1.bf16.msra.mxu0 %v5567
        %5621 = vmatprep.subr.bf16.mxu0 %v5572
        %5622 = vmatpush1.bf16.msra.mxu0 %v5571
        %5623 = vmatprep.subr.bf16.mxu0 0
        %5624 = vmatpush1.bf16.msra.mxu0 0
        %5625 = vmatprep.subr.bf16.mxu0 0
        %5626 = vmatpush1.bf16.msra.mxu0 0
        %5627 = vmatprep.subr.bf16.mxu0 0
        %5628 = vmatpush1.bf16.msra.mxu0 0
        %5629 = vmatprep.subr.bf16.mxu0 0
        %5630 = vmatpush1.bf16.msra.mxu0 0
        %5631 = vmatprep.subr.bf16.mxu0 0
        %5632 = vmatpush1.bf16.msra.mxu0 0
        %5633 = vmatprep.subr.bf16.mxu0 0
        %5634 = vmatpush1.bf16.msra.mxu0 0
        %5635 = vmatprep.subr.bf16.mxu0 0
        %5636 = vmatpush1.bf16.msra.mxu0 0
        %5637 = vmatprep.subr.bf16.mxu0 0
        %5638 = vmatpush1.bf16.msra.mxu0 0
        %5639 = vmatprep.mubr.bf16.mxu0 0
        %5640 = vmatmul.mubr.bf16.gmra.mrb[0].mxu0 %v5424
        %v5641 = vpop.f32.mrb[0].mxu0
        %v5642 = vadd.f32 %v5430, %v5641
        %v5643 = vpop.f32.mrb[0].mxu0
        %v5644 = vadd.f32 %v5434, %v5643
        %v5645 = vpop.f32.mrb[0].mxu0
        %v5646 = vadd.f32 %v5430, %v5645
        %v5647 = vpop.f32.mrb[0].mxu0
        %v5648 = vadd.f32 %v5434, %v5647
        %5649 = vdwg.mxu0
        %5650 = vmatprep.subr.bf16.mxu0 %v5546
        %5651 = vmatpush1.bf16.msra.mxu0 %v5545
        %5652 = vmatprep.subr.bf16.mxu0 %v5550
        %5653 = vmatpush1.bf16.msra.mxu0 %v5549
        %5654 = vmatprep.subr.bf16.mxu0 %v5554
        %5655 = vmatpush1.bf16.msra.mxu0 %v5553
        %5656 = vmatprep.subr.bf16.mxu0 %v5558
        %5657 = vmatpush1.bf16.msra.mxu0 %v5557
        %5658 = vmatprep.subr.bf16.mxu0 %v5562
        %5659 = vmatpush1.bf16.msra.mxu0 %v5561
        %5660 = vmatprep.subr.bf16.mxu0 %v5566
        %5661 = vmatpush1.bf16.msra.mxu0 %v5565
        %5662 = vmatprep.subr.bf16.mxu0 %v5570
        %5663 = vmatpush1.bf16.msra.mxu0 %v5569
        %5664 = vmatprep.subr.bf16.mxu0 %v5574
        %5665 = vmatpush1.bf16.msra.mxu0 %v5573
        %5666 = vmatprep.subr.bf16.mxu0 0
        %5667 = vmatpush1.bf16.msra.mxu0 0
        %5668 = vmatprep.subr.bf16.mxu0 0
        %5669 = vmatpush1.bf16.msra.mxu0 0
        %5670 = vmatprep.subr.bf16.mxu0 0
        %5671 = vmatpush1.bf16.msra.mxu0 0
        %5672 = vmatprep.subr.bf16.mxu0 0
        %5673 = vmatpush1.bf16.msra.mxu0 0
        %5674 = vmatprep.subr.bf16.mxu0 0
        %5675 = vmatpush1.bf16.msra.mxu0 0
        %5676 = vmatprep.subr.bf16.mxu0 0
        %5677 = vmatpush1.bf16.msra.mxu0 0
        %5678 = vmatprep.subr.bf16.mxu0 0
        %5679 = vmatpush1.bf16.msra.mxu0 0
        %5680 = vmatprep.subr.bf16.mxu0 0
        %5681 = vmatpush1.bf16.msra.mxu0 0
        %5682 = vmatprep.mubr.bf16.mxu0 0
        %5683 = vmatmul.mubr.bf16.gmra.mrb[0].mxu0 %v5424
        %v5684 = vpop.f32.mrb[0].mxu0
        %v5685 = vadd.f32 %v5438, %v5684
        %v5686 = vpop.f32.mrb[0].mxu0
        %v5687 = vadd.f32 %v5442, %v5686
        %v5688 = vpop.f32.mrb[0].mxu0
        %v5689 = vadd.f32 %v5438, %v5688
        %v5690 = vpop.f32.mrb[0].mxu0
        %v5691 = vadd.f32 %v5442, %v5690
        %5692 = vdwg.mxu0
        %v5693 = vmul.f32 %v5642, 0.5
        %v5694 = vmul.f32 %v5644, 0.5
        %v5695 = vmul.f32 %v5685, 0.5
        %v5696 = vmul.f32 %v5687, 0.5
        %v5697 = vmul.f32 %v5646, 0.5
        %v5698 = vmul.f32 %v5648, 0.5
        %v5699 = vmul.f32 %v5689, 0.5
        %v5700 = vmul.f32 %v5691, 0.5
        %v5701 = vmul.f32 %v5642, 0.044715
        %v5702 = vmul.f32 %v5644, 0.044715
        %v5703 = vmul.f32 %v5685, 0.044715
        %v5704 = vmul.f32 %v5687, 0.044715
        %v5705 = vmul.f32 %v5646, 0.044715
        %v5706 = vmul.f32 %v5648, 0.044715
        %v5707 = vmul.f32 %v5689, 0.044715
        %v5708 = vmul.f32 %v5691, 0.044715
        %v5709 = vmul.f32 %v5701, %v5642
        %v5710 = vmul.f32 %v5702, %v5644
        %v5711 = vmul.f32 %v5703, %v5685
        %v5712 = vmul.f32 %v5704, %v5687
        %v5713 = vmul.f32 %v5705, %v5646
        %v5714 = vmul.f32 %v5706, %v5648
        %v5715 = vmul.f32 %v5707, %v5689
        %v5716 = vmul.f32 %v5708, %v5691
        %v5717 = vmul.f32 %v5709, %v5642
        %v5718 = vmul.f32 %v5710, %v5644
        %v5719 = vmul.f32 %v5711, %v5685
        %v5720 = vmul.f32 %v5712, %v5687
        %v5721 = vmul.f32 %v5713, %v5646
        %v5722 = vmul.f32 %v5714, %v5648
        %v5723 = vmul.f32 %v5715, %v5689
        %v5724 = vmul.f32 %v5716, %v5691
        %v5725 = vadd.f32 %v5642, %v5717
        %v5726 = vadd.f32 %v5644, %v5718
        %v5727 = vadd.f32 %v5685, %v5719
        %v5728 = vadd.f32 %v5687, %v5720
        %v5729 = vadd.f32 %v5646, %v5721
        %v5730 = vadd.f32 %v5648, %v5722
        %v5731 = vadd.f32 %v5689, %v5723
        %v5732 = vadd.f32 %v5691, %v5724
        %v5733 = vmul.f32 %v5725, 0.7978846
        %v5734 = vmul.f32 %v5726, 0.7978846
        %v5735 = vmul.f32 %v5727, 0.7978846
        %v5736 = vmul.f32 %v5728, 0.7978846
        %v5737 = vmul.f32 %v5729, 0.7978846
        %v5738 = vmul.f32 %v5730, 0.7978846
        %v5739 = vmul.f32 %v5731, 0.7978846
        %v5740 = vmul.f32 %v5732, 0.7978846
        %v5741 = vtanh.pop %v5733
        %v5742 = vtanh.pop %v5734
        %v5743 = vtanh.pop %v5735
        %v5744 = vtanh.pop %v5736
        %v5745 = vtanh.pop %v5737
        %v5746 = vtanh.pop %v5738
        %v5747 = vtanh.pop %v5739
        %v5748 = vtanh.pop %v5740
        %v5749 = vadd.f32 %v5741, 1.0
        %v5750 = vadd.f32 %v5742, 1.0
        %v5751 = vadd.f32 %v5743, 1.0
        %v5752 = vadd.f32 %v5744, 1.0
        %v5753 = vadd.f32 %v5745, 1.0
        %v5754 = vadd.f32 %v5746, 1.0
        %v5755 = vadd.f32 %v5747, 1.0
        %v5756 = vadd.f32 %v5748, 1.0
        %v5757 = vmul.f32 %v5693, %v5749
        %v5758 = vmul.f32 %v5694, %v5750
        %v5759 = vmul.f32 %v5695, %v5751
        %v5760 = vmul.f32 %v5696, %v5752
        %v5761 = vmul.f32 %v5697, %v5753
        %v5762 = vmul.f32 %v5698, %v5754
        %v5763 = vmul.f32 %v5699, %v5755
        %v5764 = vmul.f32 %v5700, %v5756
        %v5765 = vld [vmem:[#allocation34] sm:$0xf]
        %v5766 = vld [vmem:[#allocation34 + $0x4] sm:$0xf]
        %v5767 = vld [vmem:[#allocation34 + $0x8] sm:$0xf]
        %v5768 = vld [vmem:[#allocation34 + $0xc] sm:$0xf]
        %v5769 = vld [vmem:[#allocation34 + $0x10] sm:$0xf]
        %v5770 = vld [vmem:[#allocation34 + $0x14] sm:$0xf]
        %v5771 = vld [vmem:[#allocation34 + $0x18] sm:$0xf]
        %v5772 = vld [vmem:[#allocation34 + $0x1c] sm:$0xf]
        %v5773 = vld [vmem:[#allocation34 + $0x20] sm:$0xf]
        %v5774 = vld [vmem:[#allocation34 + $0x24] sm:$0xf]
        %v5775 = vld [vmem:[#allocation34 + $0x28] sm:$0xf]
        %v5776 = vld [vmem:[#allocation34 + $0x2c] sm:$0xf]
        %v5777 = vld [vmem:[#allocation34 + $0x30] sm:$0xf]
        %v5778 = vld [vmem:[#allocation34 + $0x34] sm:$0xf]
        %v5779 = vld [vmem:[#allocation34 + $0x38] sm:$0xf]
        %v5780 = vld [vmem:[#allocation34 + $0x3c] sm:$0xf]
        %v5781 = vld [vmem:[#allocation34 + $0x40] sm:$0xf]
        %v5782 = vld [vmem:[#allocation34 + $0x44] sm:$0xf]
        %v5783 = vld [vmem:[#allocation34 + $0x48] sm:$0xf]
        %v5784 = vld [vmem:[#allocation34 + $0x4c] sm:$0xf]
        %v5785 = vld [vmem:[#allocation34 + $0x50] sm:$0xf]
        %v5786 = vld [vmem:[#allocation34 + $0x54] sm:$0xf]
        %v5787 = vld [vmem:[#allocation34 + $0x58] sm:$0xf]
        %v5788 = vld [vmem:[#allocation34 + $0x5c] sm:$0xf]
        %v5789 = vld [vmem:[#allocation34 + $0x60] sm:$0xf]
        %v5790 = vld [vmem:[#allocation34 + $0x64] sm:$0xf]
        %v5791 = vld [vmem:[#allocation34 + $0x68] sm:$0xf]
        %v5792 = vld [vmem:[#allocation34 + $0x6c] sm:$0xf]
        %v5793 = vld [vmem:[#allocation34 + $0x70] sm:$0xf]
        %v5794 = vld [vmem:[#allocation34 + $0x74] sm:$0xf]
        %v5795 = vld [vmem:[#allocation34 + $0x78] sm:$0xf]
        %v5796 = vld [vmem:[#allocation34 + $0x7c] sm:$0xf]
        %v5797 = vld [vmem:[#allocation34 + $0x80] sm:$0xf]
        %v5798 = vld [vmem:[#allocation34 + $0x84] sm:$0xf]
        %v5799 = vld [vmem:[#allocation34 + $0x88] sm:$0xf]
        %v5800 = vld [vmem:[#allocation34 + $0x8c] sm:$0xf]
        %v5801 = vld [vmem:[#allocation34 + $0x90] sm:$0xf]
        %v5802 = vld [vmem:[#allocation34 + $0x94] sm:$0xf]
        %v5803 = vld [vmem:[#allocation34 + $0x98] sm:$0xf]
        %v5804 = vld [vmem:[#allocation34 + $0x9c] sm:$0xf]
        %v5805 = vld [vmem:[#allocation34 + $0xa0] sm:$0xf]
        %v5806 = vld [vmem:[#allocation34 + $0xa4] sm:$0xf]
        %v5807 = vld [vmem:[#allocation34 + $0xa8] sm:$0xf]
        %v5808 = vld [vmem:[#allocation34 + $0xac] sm:$0xf]
        %v5809 = vld [vmem:[#allocation34 + $0xb0] sm:$0xf]
        %v5810 = vld [vmem:[#allocation34 + $0xb4] sm:$0xf]
        %v5811 = vld [vmem:[#allocation34 + $0xb8] sm:$0xf]
        %v5812 = vld [vmem:[#allocation34 + $0xbc] sm:$0xf]
        %v5813 = vld [vmem:[#allocation34 + $0xc0] sm:$0xf]
        %v5814 = vld [vmem:[#allocation34 + $0xc4] sm:$0xf]
        %v5815 = vld [vmem:[#allocation34 + $0xc8] sm:$0xf]
        %v5816 = vld [vmem:[#allocation34 + $0xcc] sm:$0xf]
        %v5817 = vld [vmem:[#allocation34 + $0xd0] sm:$0xf]
        %v5818 = vld [vmem:[#allocation34 + $0xd4] sm:$0xf]
        %v5819 = vld [vmem:[#allocation34 + $0xd8] sm:$0xf]
        %v5820 = vld [vmem:[#allocation34 + $0xdc] sm:$0xf]
        %v5821 = vld [vmem:[#allocation34 + $0xe0] sm:$0xf]
        %v5822 = vld [vmem:[#allocation34 + $0xe4] sm:$0xf]
        %v5823 = vld [vmem:[#allocation34 + $0xe8] sm:$0xf]
        %v5824 = vld [vmem:[#allocation34 + $0xec] sm:$0xf]
        %v5825 = vld [vmem:[#allocation34 + $0xf0] sm:$0xf]
        %v5826 = vld [vmem:[#allocation34 + $0xf4] sm:$0xf]
        %v5827 = vld [vmem:[#allocation34 + $0xf8] sm:$0xf]
        %v5828 = vld [vmem:[#allocation34 + $0xfc] sm:$0xf]
        %v5829 = vpack.c.bf16 %v5761, %v5757
        %v5830 = vpack.c.bf16 %v5762, %v5758
        %v5831 = vpack.c.bf16 %v5763, %v5759
        %v5832 = vpack.c.bf16 %v5764, %v5760
        %v5833 = vld [vmem:[%s57] sm:$0x1]
        %v5835 = vlaneseq
        %v5836 = vshrl.u32 %v5835, 7
        %v5837 = vsub.s32 0, %v5836
        %v5838 = vrot.slane %v5833, %v5837
        %v5904 = vunpack.c.l.b16 %v5765
        %v5905 = vunpack.c.l.b16 %v5766
        %v5906 = vunpack.c.l.b16 %v5767
        %v5907 = vunpack.c.l.b16 %v5768
        %v5908 = vunpack.c.l.b16 %v5769
        %v5909 = vunpack.c.l.b16 %v5770
        %v5910 = vunpack.c.l.b16 %v5771
        %v5911 = vunpack.c.l.b16 %v5772
        %v5912 = vunpack.c.l.b16 %v5773
        %v5913 = vunpack.c.l.b16 %v5774
        %v5914 = vunpack.c.l.b16 %v5775
        %v5915 = vunpack.c.l.b16 %v5776
        %v5916 = vunpack.c.l.b16 %v5777
        %v5917 = vunpack.c.l.b16 %v5778
        %v5918 = vunpack.c.l.b16 %v5779
        %v5919 = vunpack.c.l.b16 %v5780
        %v5920 = vunpack.c.l.b16 %v5781
        %v5921 = vunpack.c.l.b16 %v5782
        %v5922 = vunpack.c.l.b16 %v5783
        %v5923 = vunpack.c.l.b16 %v5784
        %v5924 = vunpack.c.l.b16 %v5785
        %v5925 = vunpack.c.l.b16 %v5786
        %v5926 = vunpack.c.l.b16 %v5787
        %v5927 = vunpack.c.l.b16 %v5788
        %v5928 = vunpack.c.l.b16 %v5789
        %v5929 = vunpack.c.l.b16 %v5790
        %v5930 = vunpack.c.l.b16 %v5791
        %v5931 = vunpack.c.l.b16 %v5792
        %v5932 = vunpack.c.l.b16 %v5793
        %v5933 = vunpack.c.l.b16 %v5794
        %v5934 = vunpack.c.l.b16 %v5795
        %v5935 = vunpack.c.l.b16 %v5796
        %v5936 = vunpack.c.l.b16 %v5797
        %v5937 = vunpack.c.l.b16 %v5798
        %v5938 = vunpack.c.l.b16 %v5799
        %v5939 = vunpack.c.l.b16 %v5800
        %v5940 = vunpack.c.l.b16 %v5801
        %v5941 = vunpack.c.l.b16 %v5802
        %v5942 = vunpack.c.l.b16 %v5803
        %v5943 = vunpack.c.l.b16 %v5804
        %v5944 = vunpack.c.l.b16 %v5805
        %v5945 = vunpack.c.l.b16 %v5806
        %v5946 = vunpack.c.l.b16 %v5807
        %v5947 = vunpack.c.l.b16 %v5808
        %v5948 = vunpack.c.l.b16 %v5809
        %v5949 = vunpack.c.l.b16 %v5810
        %v5950 = vunpack.c.l.b16 %v5811
        %v5951 = vunpack.c.l.b16 %v5812
        %v5952 = vunpack.c.l.b16 %v5813
        %v5953 = vunpack.c.l.b16 %v5814
        %v5954 = vunpack.c.l.b16 %v5815
        %v5955 = vunpack.c.l.b16 %v5816
        %v5956 = vunpack.c.l.b16 %v5817
        %v5957 = vunpack.c.l.b16 %v5818
        %v5958 = vunpack.c.l.b16 %v5819
        %v5959 = vunpack.c.l.b16 %v5820
        %v5960 = vunpack.c.l.b16 %v5821
        %v5961 = vunpack.c.l.b16 %v5822
        %v5962 = vunpack.c.l.b16 %v5823
        %v5963 = vunpack.c.l.b16 %v5824
        %v5964 = vunpack.c.l.b16 %v5825
        %v5965 = vunpack.c.l.b16 %v5826
        %v5966 = vunpack.c.l.b16 %v5827
        %v5967 = vunpack.c.l.b16 %v5828
        %v5968 = vpack.c.b16 %v5905, %v5904
        %v5969 = vpack.c.b16 %v5907, %v5906
        %v5970 = vpack.c.b16 %v5909, %v5908
        %v5971 = vpack.c.b16 %v5911, %v5910
        %v5972 = vpack.c.b16 %v5913, %v5912
        %v5973 = vpack.c.b16 %v5915, %v5914
        %v5974 = vpack.c.b16 %v5917, %v5916
        %v5975 = vpack.c.b16 %v5919, %v5918
        %v5976 = vpack.c.b16 %v5921, %v5920
        %v5977 = vpack.c.b16 %v5923, %v5922
        %v5978 = vpack.c.b16 %v5925, %v5924
        %v5979 = vpack.c.b16 %v5927, %v5926
        %v5980 = vpack.c.b16 %v5929, %v5928
        %v5981 = vpack.c.b16 %v5931, %v5930
        %v5982 = vpack.c.b16 %v5933, %v5932
        %v5983 = vpack.c.b16 %v5935, %v5934
        %v5984 = vpack.c.b16 %v5937, %v5936
        %v5985 = vpack.c.b16 %v5939, %v5938
        %v5986 = vpack.c.b16 %v5941, %v5940
        %v5987 = vpack.c.b16 %v5943, %v5942
        %v5988 = vpack.c.b16 %v5945, %v5944
        %v5989 = vpack.c.b16 %v5947, %v5946
        %v5990 = vpack.c.b16 %v5949, %v5948
        %v5991 = vpack.c.b16 %v5951, %v5950
        %v5992 = vpack.c.b16 %v5953, %v5952
        %v5993 = vpack.c.b16 %v5955, %v5954
        %v5994 = vpack.c.b16 %v5957, %v5956
        %v5995 = vpack.c.b16 %v5959, %v5958
        %v5996 = vpack.c.b16 %v5961, %v5960
        %v5997 = vpack.c.b16 %v5963, %v5962
        %v5998 = vpack.c.b16 %v5965, %v5964
        %v5999 = vpack.c.b16 %v5967, %v5966
        %6032 = vmatprep.subr.bf16.mxu0 0
        %6033 = vmatpush1.bf16.msra.mxu0 %v5968
        %6034 = vmatprep.subr.bf16.mxu0 0
        %6035 = vmatpush1.bf16.msra.mxu0 %v5969
        %6036 = vmatprep.subr.bf16.mxu0 0
        %6037 = vmatpush1.bf16.msra.mxu0 %v5970
        %6038 = vmatprep.subr.bf16.mxu0 0
        %6039 = vmatpush1.bf16.msra.mxu0 %v5971
        %6040 = vmatprep.subr.bf16.mxu0 0
        %6041 = vmatpush1.bf16.msra.mxu0 %v5972
        %6042 = vmatprep.subr.bf16.mxu0 0
        %6043 = vmatpush1.bf16.msra.mxu0 %v5973
        %6044 = vmatprep.subr.bf16.mxu0 0
        %6045 = vmatpush1.bf16.msra.mxu0 %v5974
        %6046 = vmatprep.subr.bf16.mxu0 0
        %6047 = vmatpush1.bf16.msra.mxu0 %v5975
        %6048 = vmatprep.subr.bf16.mxu0 0
        %6049 = vmatpush1.bf16.msra.mxu0 %v5976
        %6050 = vmatprep.subr.bf16.mxu0 0
        %6051 = vmatpush1.bf16.msra.mxu0 %v5977
        %6052 = vmatprep.subr.bf16.mxu0 0
        %6053 = vmatpush1.bf16.msra.mxu0 %v5978
        %6054 = vmatprep.subr.bf16.mxu0 0
        %6055 = vmatpush1.bf16.msra.mxu0 %v5979
        %6056 = vmatprep.subr.bf16.mxu0 0
        %6057 = vmatpush1.bf16.msra.mxu0 %v5980
        %6058 = vmatprep.subr.bf16.mxu0 0
        %6059 = vmatpush1.bf16.msra.mxu0 %v5981
        %6060 = vmatprep.subr.bf16.mxu0 0
        %6061 = vmatpush1.bf16.msra.mxu0 %v5982
        %6062 = vmatprep.subr.bf16.mxu0 0
        %6063 = vmatpush1.bf16.msra.mxu0 %v5983
        %6064 = vmatprep.mubr.bf16.mxu0 %v5830
        %6065 = vmatmul.mubr.bf16.gmra.mrb[0].mxu0 %v5829
        %v6066 = vpop.f32.mrb[0].mxu0
        %v6067 = vadd.f32 %v5838, %v6066
        %v6068 = vpop.f32.mrb[0].mxu0
        %v6069 = vpop.f32.mrb[0].mxu0
        %v6070 = vadd.f32 %v5838, %v6069
        %v6071 = vpop.f32.mrb[0].mxu0
        %6072 = vdwg.mxu0
        %6073 = vmatprep.subr.bf16.mxu0 0
        %6074 = vmatpush1.bf16.msra.mxu0 %v5984
        %6075 = vmatprep.subr.bf16.mxu0 0
        %6076 = vmatpush1.bf16.msra.mxu0 %v5985
        %6077 = vmatprep.subr.bf16.mxu0 0
        %6078 = vmatpush1.bf16.msra.mxu0 %v5986
        %6079 = vmatprep.subr.bf16.mxu0 0
        %6080 = vmatpush1.bf16.msra.mxu0 %v5987
        %6081 = vmatprep.subr.bf16.mxu0 0
        %6082 = vmatpush1.bf16.msra.mxu0 %v5988
        %6083 = vmatprep.subr.bf16.mxu0 0
        %6084 = vmatpush1.bf16.msra.mxu0 %v5989
        %6085 = vmatprep.subr.bf16.mxu0 0
        %6086 = vmatpush1.bf16.msra.mxu0 %v5990
        %6087 = vmatprep.subr.bf16.mxu0 0
        %6088 = vmatpush1.bf16.msra.mxu0 %v5991
        %6089 = vmatprep.subr.bf16.mxu0 0
        %6090 = vmatpush1.bf16.msra.mxu0 %v5992
        %6091 = vmatprep.subr.bf16.mxu0 0
        %6092 = vmatpush1.bf16.msra.mxu0 %v5993
        %6093 = vmatprep.subr.bf16.mxu0 0
        %6094 = vmatpush1.bf16.msra.mxu0 %v5994
        %6095 = vmatprep.subr.bf16.mxu0 0
        %6096 = vmatpush1.bf16.msra.mxu0 %v5995
        %6097 = vmatprep.subr.bf16.mxu0 0
        %6098 = vmatpush1.bf16.msra.mxu0 %v5996
        %6099 = vmatprep.subr.bf16.mxu0 0
        %6100 = vmatpush1.bf16.msra.mxu0 %v5997
        %6101 = vmatprep.subr.bf16.mxu0 0
        %6102 = vmatpush1.bf16.msra.mxu0 %v5998
        %6103 = vmatprep.subr.bf16.mxu0 0
        %6104 = vmatpush1.bf16.msra.mxu0 %v5999
        %6105 = vmatprep.mubr.bf16.mxu0 %v5832
        %6106 = vmatmul.mubr.bf16.gmra.mrb[0].mxu0 %v5831
        %v6107 = vpop.f32.mrb[0].mxu0
        %v6108 = vadd.f32 %v6067, %v6107
        %v6109 = vpop.f32.mrb[0].mxu0
        %v6110 = vpop.f32.mrb[0].mxu0
        %v6111 = vadd.f32 %v6070, %v6110
        %v6112 = vpop.f32.mrb[0].mxu0
        %6113 = vdwg.mxu0
        %v6114 = vlaneseq
        %v6115 = vshrl.u32 %v6114, 7
        %v6116 = vsub.s32 0, %v6115
        %v6117 = vrot.slane %v1813, %v6116
        %v6118 = vlaneseq
        %v6119 = vshrl.u32 %v6118, 7
        %v6120 = vsub.s32 0, %v6119
        %v6121 = vrot.slane %v1820, %v6120
        %v6124 = vmul.f32 %v6117, %v6108
        %v6125 = vmul.f32 %v6121, %v6111
        %v6126 = vadd.f32 %v5340, %v6124
        %v6127 = vadd.f32 %v5341, %v6125
        %6128 = vst [vmem:[%s1217] sm:$0xff] %v6126
        %6129 = vst [vmem:[%s1217 + $0x8] sm:$0xff] %v6127
        %s6130 = sand.u32 %s715, 1
        %s6131 = scalar_lea.sflag [#allocation4], %s6130
        %s6132 = sand.u32 %s715, 1
        %s6133 = smul.addr %s6132, 16
        %s6134 = scalar_lea.vmem [#allocation35], %s6133
        // Predicated region
        $region221: #{tpu_custom_call.1} parent=135 // pred_check
          %p6135 = pneg %p725
        $region222: #{tpu_custom_call.1} parent=135 // pred_check_branch
          %6137 = sbr.rel (%p6135) target = $region224
        $region223: #{tpu_custom_call.1} parent=135 // pred_region
          %s6138 = smul.u32 2, %s88
          %s6140 = ssub.s32 256, 256
          %6141 = vsyncadd %s6131, %s6140
          %s6142 = smul.addr %s6138, 128
          %s6143 = scalar_lea.hbm %s59, %s6142
          %s6144 = sshll.u32 %s6134, 4
          %s6145 = int_to_ptr.vmem [resolvable:$true] %s6144
          %6150 = dma.vmem_to_hbm [thread:$0]  %s6145, 256, %s6143, %s6131, 128, 128, 8
        $region224: #{tpu_custom_call.1} parent=135 // pred_fallthru
          _
      $region136: #{tpu_custom_call.1} parent=5 // pred_fallthru
        _
      %p6151 = scmp.le.s32.totalorder 2, %s83
      // Predicated region
      $region225: #{tpu_custom_call.1} parent=5 // pred_check
        %p6152 = pneg %p6151
      $region226: #{tpu_custom_call.1} parent=5 // pred_check_branch
        %6154 = sbr.rel (%p6152) target = $region228
      $region227: #{tpu_custom_call.1} parent=5 // pred_region
        %s6155 = ssub.s32 %s83, 2
        // Predicated region
        $region229: #{tpu_custom_call.1} parent=227 // pred_check
          %p6156 = pneg %p731
        $region230: #{tpu_custom_call.1} parent=227 // pred_check_branch
          %6158 = sbr.rel (%p6156) target = $region232
        $region231: #{tpu_custom_call.1} parent=227 // pred_region
          %s6159 = sand.u32 %s716, 1
          %s6160 = scalar_lea.sflag [#allocation4], %s6159
          %s6161 = sand.u32 %s716, 1
          %s6162 = smul.addr %s6161, 16
          %s6163 = scalar_lea.vmem [#allocation35], %s6162
          %6164 = dma.done %s6160, 256
        $region232: #{tpu_custom_call.1} parent=227 // pred_fallthru
          _
      $region228: #{tpu_custom_call.1} parent=5 // pred_fallthru
        _
    $region6: #{tpu_custom_call.1} parent=1 // loop_footer
      %s87 = sadd.s32 1, %s83
    $region7: #{tpu_custom_call.1} parent=1 // loop_footer_branch
      %82 = sbr.rel target = $region3
    $region8: #{tpu_custom_call.1} parent=1 // loop_exit
      _
    %6165 = vsyncpa [#allocation3], 1
    %s6166 = scalar_lea.sflag [#allocation3], 1
    %6167 = vsyncpa %s6166, 1
    %6168 = vsyncpa [#allocation6], 1
    %s6169 = scalar_lea.sflag [#allocation6], 1
    %6170 = vsyncpa %s6169, 1
    %6171 = vsyncpa [#allocation9], 1
    %6172 = vsyncpa [#allocation12], 1
    %6173 = vsyncpa [#allocation15], 1
    %6174 = vsyncpa [#allocation18], 1
    %6175 = vsyncpa [#allocation21], 1
    %6176 = vsyncpa [#allocation24], 1
    %6177 = vsyncpa [#allocation27], 1
    %6178 = vsyncpa [#allocation30], 1
    %6179 = vsyncpa [#allocation33], 1
    %6180 = vsyncpa [#allocation4], 1
    %s6181 = scalar_lea.sflag [#allocation4], 1
    %6182 = vsyncpa %s6181, 1

</llo_original>
